<compile_context>
chip_gen: v5e
topology: v5e:2x2
jax: 0.10.0
libtpu: 0.0.40
codegen_flags: <defaults>
</compile_context>

<pallas_src>
import functools
import math

import jax
import jax.numpy as jnp
from jax.experimental import pallas as pl
from jax.experimental.pallas import tpu as pltpu

_WDT = jnp.bfloat16            # weight dtype (halves weight DMA, bf16 MXU path)
_ADT = jnp.bfloat16            # inter-kernel activation dtype
_VMEM_LIMIT = 48 * 1024 * 1024


# -----------------------------------------------------------------------------
# In-kernel helpers (operate on values; all statistics / accumulation in f32)
# -----------------------------------------------------------------------------
def _layernorm(x, gamma, beta, eps):
    mu = jnp.mean(x, axis=-1, keepdims=True)
    var = jnp.mean(jnp.square(x - mu), axis=-1, keepdims=True)
    return (x - mu) * jax.lax.rsqrt(var + eps) * gamma + beta


def _head_proj(x, w, b):
    """x: (S, D); w: (G, D, Dh) bf16; b: (G, 1, Dh) f32 -> (G, S, Dh) f32.

    Head-batched projection: one leading-batch 3-D matmul.  Heads stay on the
    major axis throughout, so there is no sub-128 lane slicing anywhere.
    """
    G = w.shape[0]
    xb = jnp.broadcast_to(x.astype(_WDT)[None], (G,) + x.shape)
    y = jax.lax.dot_general(xb, w, (((2,), (1,)), ((0,), (0,))),
                            preferred_element_type=jnp.float32)
    return y + b


def _attention(q, k, v, w_o, b_o, scale, causal_mask=None):
    """q: (H,Sq,Dh) f32, k/v: (H,Skv,Dh) f32, w_o: (H,Dh,D) bf16 -> (Sq,D) f32."""
    H, Sq, _ = q.shape
    D = w_o.shape[-1]
    qs = (q * scale).astype(_WDT)                     # fold 1/sqrt(Dh) into q
    s = jax.lax.dot_general(qs, k.astype(_WDT), (((2,), (2,)), ((0,), (0,))),
                            preferred_element_type=jnp.float32)   # (H,Sq,Skv)
    if causal_mask is not None:
        s = jnp.where(causal_mask[None], s, -1e30)
    m = jnp.max(s, axis=-1, keepdims=True)
    p = jnp.exp(s - m)
    den = jnp.sum(p, axis=-1, keepdims=True)
    p = (p * pl.reciprocal(den, approx=True)).astype(_WDT)
    ctx = jax.lax.dot_general(p, v.astype(_WDT), (((2,), (1,)), ((0,), (0,))),
                              preferred_element_type=jnp.float32)  # (H,Sq,Dh)
    out = jnp.zeros((Sq, D), jnp.float32)
    for h in range(H):      # small static loop: per-head (Sq,Dh)@(Dh,D) accumulate
        out = out + jnp.dot(ctx[h].astype(_WDT), w_o[h],
                            preferred_element_type=jnp.float32)
    return out + b_o


def _ffn(x, w1, b1, w2, b2):
    h = jnp.dot(x.astype(_WDT), w1, preferred_element_type=jnp.float32) + b1
    h = jnp.maximum(h, 0.0)
    return jnp.dot(h.astype(_WDT), w2, preferred_element_type=jnp.float32) + b2


# -----------------------------------------------------------------------------
# Fused encoder STACK kernel: grid = (batch_blocks, num_layers)
# -----------------------------------------------------------------------------
def _encoder_stack_kernel(x_ref, wqkv_ref, bqkv_ref, wo_ref, bo_ref,
                          ln1g_ref, ln1b_ref, w1_ref, b1_ref, w2_ref, b2_ref,
                          ln2g_ref, ln2b_ref, fng_ref, fnb_ref,
                          o_ref, carry, *, nhead, eps):
    bb, S, D = x_ref.shape
    M = bb * S
    H = nhead
    Dh = D // H
    scale = 1.0 / math.sqrt(Dh)
    l = pl.program_id(1)

    @pl.when(l == 0)
    def _():
        carry[...] = x_ref[...].reshape(M, D).astype(jnp.float32)

    x = carry[...]

    # --- self attention (heads batched on the major axis)
    rows = []
    for b in range(bb):
        xb = x[b * S:(b + 1) * S]
        r = _head_proj(xb, wqkv_ref[0], bqkv_ref[0])      # (3H, S, Dh)
        rows.append(_attention(r[:H], r[H:2 * H], r[2 * H:],
                               wo_ref[0], bo_ref[0], scale))
    attn = rows[0] if bb == 1 else jnp.concatenate(rows, axis=0)
    x1 = _layernorm(x + attn, ln1g_ref[0], ln1b_ref[0], eps)

    # --- FFN + residual + LN (whole batch block flattened into the M rows)
    ff = _ffn(x1, w1_ref[0], b1_ref[0], w2_ref[0], b2_ref[0])
    x2 = _layernorm(x1 + ff, ln2g_ref[0], ln2b_ref[0], eps)
    carry[...] = x2

    @pl.when(l == pl.num_programs(1) - 1)
    def _():   # final encoder norm fused into the last layer's epilogue
        y = _layernorm(x2, fng_ref[...], fnb_ref[...], eps)
        o_ref[...] = y.reshape(bb, S, D).astype(o_ref.dtype)


def encoder_stack(x, p, nhead, batch_block, eps=1e-5):
    B, S, D = x.shape
    L = p["w_qkv"].shape[0]
    H = nhead
    Dh = D // H
    dff = p["w1"].shape[-1]
    bb = batch_block
    nb = B // bb

    def wspec(shape):      # per-layer stacked weight: index by layer
        return pl.BlockSpec((1,) + shape, lambda b, l: (l,) + (0,) * len(shape))

    def nspec(shape):      # layer-independent param
        return pl.BlockSpec(shape, lambda b, l: (0,) * len(shape))

    return pl.pallas_call(
        functools.partial(_encoder_stack_kernel, nhead=H, eps=eps),
        out_shape=jax.ShapeDtypeStruct((B, S, D), _ADT),
        grid=(nb, L),
        in_specs=[
            pl.BlockSpec((bb, S, D), lambda b, l: (b, 0, 0)),
            wspec((3 * H, D, Dh)), wspec((3 * H, 1, Dh)),
            wspec((H, Dh, D)), wspec((1, D)),
            wspec((1, D)), wspec((1, D)),
            wspec((D, dff)), wspec((1, dff)),
            wspec((dff, D)), wspec((1, D)),
            wspec((1, D)), wspec((1, D)),
            nspec((1, D)), nspec((1, D)),
        ],
        out_specs=pl.BlockSpec((bb, S, D), lambda b, l: (b, 0, 0)),
        scratch_shapes=[pltpu.VMEM((bb * S, D), jnp.float32)],
        compiler_params=pltpu.CompilerParams(
            dimension_semantics=("parallel", "arbitrary"),
            vmem_limit_bytes=_VMEM_LIMIT),
    )(x, p["w_qkv"], p["b_qkv"], p["w_o"], p["b_o"],
      p["ln1_g"], p["ln1_b"], p["w1"], p["b1"], p["w2"], p["b2"],
      p["ln2_g"], p["ln2_b"], p["norm_g"], p["norm_b"])


# -----------------------------------------------------------------------------
# Fused decoder STACK kernel: causal self-attn + cross-attn + FFN per layer
# -----------------------------------------------------------------------------
def _decoder_stack_kernel(x_ref, mem_ref,
                          sa_wqkv_ref, sa_bqkv_ref, sa_wo_ref, sa_bo_ref,
                          ln1g_ref, ln1b_ref,
                          ca_wq_ref, ca_bq_ref, ca_wkv_ref, ca_bkv_ref,
                          ca_wo_ref, ca_bo_ref, ln2g_ref, ln2b_ref,
                          w1_ref, b1_ref, w2_ref, b2_ref, ln3g_ref, ln3b_ref,
                          fng_ref, fnb_ref,
                          o_ref, carry, *, nhead, eps):
    bb, St, D = x_ref.shape
    Ss = mem_ref.shape[1]
    Mt = bb * St
    H = nhead
    Dh = D // H
    scale = 1.0 / math.sqrt(Dh)
    l = pl.program_id(1)

    @pl.when(l == 0)
    def _():
        carry[...] = x_ref[...].reshape(Mt, D).astype(jnp.float32)

    x = carry[...]
    mem = mem_ref[...].reshape(bb * Ss, D)

    # causal mask generated in-kernel (no HBM traffic)
    row = jax.lax.broadcasted_iota(jnp.int32, (St, St), 0)
    col = jax.lax.broadcasted_iota(jnp.int32, (St, St), 1)
    causal = row >= col

    # --- masked self attention
    rows = []
    for b in range(bb):
        xb = x[b * St:(b + 1) * St]
        r = _head_proj(xb, sa_wqkv_ref[0], sa_bqkv_ref[0])      # (3H, St, Dh)
        rows.append(_attention(r[:H], r[H:2 * H], r[2 * H:],
                               sa_wo_ref[0], sa_bo_ref[0], scale,
                               causal_mask=causal))
    sa = rows[0] if bb == 1 else jnp.concatenate(rows, axis=0)
    x1 = _layernorm(x + sa, ln1g_ref[0], ln1b_ref[0], eps)

    # --- cross attention over the (resident) encoder memory
    rows = []
    for b in range(bb):
        q = _head_proj(x1[b * St:(b + 1) * St], ca_wq_ref[0], ca_bq_ref[0])
        kv = _head_proj(mem[b * Ss:(b + 1) * Ss], ca_wkv_ref[0], ca_bkv_ref[0])
        rows.append(_attention(q, kv[:H], kv[H:],
                               ca_wo_ref[0], ca_bo_ref[0], scale))
    ca = rows[0] if bb == 1 else jnp.concatenate(rows, axis=0)
    x2 = _layernorm(x1 + ca, ln2g_ref[0], ln2b_ref[0], eps)

    # --- FFN
    ff = _ffn(x2, w1_ref[0], b1_ref[0], w2_ref[0], b2_ref[0])
    x3 = _layernorm(x2 + ff, ln3g_ref[0], ln3b_ref[0], eps)
    carry[...] = x3

    @pl.when(l == pl.num_programs(1) - 1)
    def _():   # final decoder norm fused -> vocab projection never recomputes it
        y = _layernorm(x3, fng_ref[...], fnb_ref[...], eps)
        o_ref[...] = y.reshape(bb, St, D).astype(o_ref.dtype)


def decoder_stack(x, mem, p, nhead, batch_block, eps=1e-5):
    B, St, D = x.shape
    Ss = mem.shape[1]
    L = p["sa_w_qkv"].shape[0]
    H = nhead
    Dh = D // H
    dff = p["w1"].shape[-1]
    bb = batch_block
    nb = B // bb

    def wspec(shape):
        return pl.BlockSpec((1,) + shape, lambda b, l: (l,) + (0,) * len(shape))

    def nspec(shape):
        return pl.BlockSpec(shape, lambda b, l: (0,) * len(shape))

    return pl.pallas_call(
        functools.partial(_decoder_stack_kernel, nhead=H, eps=eps),
        out_shape=jax.ShapeDtypeStruct((B, St, D), _ADT),
        grid=(nb, L),
        in_specs=[
            pl.BlockSpec((bb, St, D), lambda b, l: (b, 0, 0)),
            pl.BlockSpec((bb, Ss, D), lambda b, l: (b, 0, 0)),
            wspec((3 * H, D, Dh)), wspec((3 * H, 1, Dh)),
            wspec((H, Dh, D)), wspec((1, D)),
            wspec((1, D)), wspec((1, D)),
            wspec((H, D, Dh)), wspec((H, 1, Dh)),
            wspec((2 * H, D, Dh)), wspec((2 * H, 1, Dh)),
            wspec((H, Dh, D)), wspec((1, D)),
            wspec((1, D)), wspec((1, D)),
            wspec((D, dff)), wspec((1, dff)),
            wspec((dff, D)), wspec((1, D)),
            wspec((1, D)), wspec((1, D)),
            nspec((1, D)), nspec((1, D)),
        ],
        out_specs=pl.BlockSpec((bb, St, D), lambda b, l: (b, 0, 0)),
        scratch_shapes=[pltpu.VMEM((bb * St, D), jnp.float32)],
        compiler_params=pltpu.CompilerParams(
            dimension_semantics=("parallel", "arbitrary"),
            vmem_limit_bytes=_VMEM_LIMIT),
    )(x, mem,
      p["sa_w_qkv"], p["sa_b_qkv"], p["sa_w_o"], p["sa_b_o"],
      p["ln1_g"], p["ln1_b"],
      p["ca_w_q"], p["ca_b_q"], p["ca_w_kv"], p["ca_b_kv"],
      p["ca_w_o"], p["ca_b_o"], p["ln2_g"], p["ln2_b"],
      p["w1"], p["b1"], p["w2"], p["b2"], p["ln3_g"], p["ln3_b"],
      p["norm_g"], p["norm_b"])


# -----------------------------------------------------------------------------
# Vocab projection, tiled lane-dense over a 128-padded vocab axis
# -----------------------------------------------------------------------------
def _proj_kernel(x_ref, w_ref, b_ref, o_ref):
    y = jnp.dot(x_ref[0], w_ref[...], preferred_element_type=jnp.float32)
    o_ref[0] = (y + b_ref[...]).astype(o_ref.dtype)


def vocab_project(x, w, b, tn_max=2048):
    B, St, D = x.shape
    Vp = w.shape[1]                       # already padded to a multiple of 128
    tn = Vp
    for cand in (tn_max, 1024, 512, 256, 128):
        if cand <= Vp and Vp % cand == 0:
            tn = cand
            break
    nt = Vp // tn
    return pl.pallas_call(
        _proj_kernel,
        out_shape=jax.ShapeDtypeStruct((B, St, Vp), jnp.float32),
        grid=(nt, B),
        in_specs=[pl.BlockSpec((1, St, D), lambda n, bi: (bi, 0, 0)),
                  pl.BlockSpec((D, tn), lambda n, bi: (0, n)),
                  pl.BlockSpec((1, tn), lambda n, bi: (0, n))],
        out_specs=pl.BlockSpec((1, St, tn), lambda n, bi: (bi, 0, n)),
        compiler_params=pltpu.CompilerParams(
            dimension_semantics=("parallel", "parallel"),
            vmem_limit_bytes=_VMEM_LIMIT),
    )(x, w, b)


# -----------------------------------------------------------------------------
# Full forward (embedding gather + PE stay as XLA glue)
# -----------------------------------------------------------------------------
def positional_encoding(max_len, d_model):
    pos = jnp.arange(max_len, dtype=jnp.float32)[:, None]
    div = jnp.exp(jnp.arange(0, d_model, 2, dtype=jnp.float32)
                  * -(math.log(10000.0) / d_model))
    pe = jnp.zeros((max_len, d_model), dtype=jnp.float32)
    pe = pe.at[:, 0::2].set(jnp.sin(pos * div))
    pe = pe.at[:, 1::2].set(jnp.cos(pos * div))
    return pe


def _pick_batch_block(B):
    # Largest divisor of B giving >= 2 grid rows, so both v7x TCs get work
    # while still flattening several sequences into the matmul M dimension.
    if B < 2:
        return max(B, 1)
    for bb in range(B // 2, 0, -1):
        if B % bb == 0:
            return bb
    return 1


def translation_transformer_forward(params, src, tgt, *, nhead, tgt_vocab):
    B, Ss = src.shape
    St = tgt.shape[1]
    pe = params["pe"]

    # TODO(synk): embedding gather + positional-encoding add remain XLA glue.
    src_x = (jnp.take(params["src_emb"], src, axis=0).astype(jnp.float32)
             + pe[:Ss][None]).astype(_ADT)
    tgt_x = (jnp.take(params["tgt_emb"], tgt, axis=0).astype(jnp.float32)
             + pe[:St][None]).astype(_ADT)

    bb = _pick_batch_block(B)
    mem = encoder_stack(src_x, params["enc"], nhead, bb)      # incl. final enc LN
    out = decoder_stack(tgt_x, mem, params["dec"], nhead, bb)  # incl. final dec LN
    logits = vocab_project(out, params["fc_w"], params["fc_b"])
    if logits.shape[-1] != tgt_vocab:
        logits = logits[..., :tgt_vocab]   # drop 128-padding columns
    return logits


# -----------------------------------------------------------------------------
# Deterministic synthetic parameters (shapes follow the PyTorch module; the
# attention projections are stored pre-split per head with heads on the major
# axis, and all layers stacked along a leading layer axis).
# -----------------------------------------------------------------------------
def init_params(key, src_vocab, tgt_vocab, d_model, nhead, num_layers, dff,
                max_len=512):
    H, L = nhead, num_layers
    Dh = d_model // H
    keys = iter(jax.random.split(key, 64))

    def nrm(shape, scale=0.02, dtype=_WDT):
        return (scale * jax.random.normal(next(keys), shape,
                                          dtype=jnp.float32)).astype(dtype)

    def zeros(shape):
        return jnp.zeros(shape, jnp.float32)

    def ones(shape):
        return jnp.ones(shape, jnp.float32)

    # TODO(synk): loading a real checkpoint requires transposing PyTorch's
    # in_proj_weight (3D,D) to (D,3D) and reshaping to (3H, D, Dh) in q|k|v order.
    enc = dict(
        w_qkv=nrm((L, 3 * H, d_model, Dh)), b_qkv=zeros((L, 3 * H, 1, Dh)),
        w_o=nrm((L, H, Dh, d_model)), b_o=zeros((L, 1, d_model)),
        ln1_g=ones((L, 1, d_model)), ln1_b=zeros((L, 1, d_model)),
        w1=nrm((L, d_model, dff)), b1=zeros((L, 1, dff)),
        w2=nrm((L, dff, d_model)), b2=zeros((L, 1, d_model)),
        ln2_g=ones((L, 1, d_model)), ln2_b=zeros((L, 1, d_model)),
        norm_g=ones((1, d_model)), norm_b=zeros((1, d_model)),
    )
    dec = dict(
        sa_w_qkv=nrm((L, 3 * H, d_model, Dh)), sa_b_qkv=zeros((L, 3 * H, 1, Dh)),
        sa_w_o=nrm((L, H, Dh, d_model)), sa_b_o=zeros((L, 1, d_model)),
        ln1_g=ones((L, 1, d_model)), ln1_b=zeros((L, 1, d_model)),
        ca_w_q=nrm((L, H, d_model, Dh)), ca_b_q=zeros((L, H, 1, Dh)),
        ca_w_kv=nrm((L, 2 * H, d_model, Dh)), ca_b_kv=zeros((L, 2 * H, 1, Dh)),
        ca_w_o=nrm((L, H, Dh, d_model)), ca_b_o=zeros((L, 1, d_model)),
        ln2_g=ones((L, 1, d_model)), ln2_b=zeros((L, 1, d_model)),
        w1=nrm((L, d_model, dff)), b1=zeros((L, 1, dff)),
        w2=nrm((L, dff, d_model)), b2=zeros((L, 1, d_model)),
        ln3_g=ones((L, 1, d_model)), ln3_b=zeros((L, 1, d_model)),
        norm_g=ones((1, d_model)), norm_b=zeros((1, d_model)),
    )

    vpad = ((tgt_vocab + 127) // 128) * 128
    fc_w = nrm((d_model, tgt_vocab), dtype=jnp.float32)
    fc_w = jnp.pad(fc_w, ((0, 0), (0, vpad - tgt_vocab))).astype(_WDT)
    fc_b = jnp.pad(zeros((1, tgt_vocab)), ((0, 0), (0, vpad - tgt_vocab)))

    return dict(
        src_emb=nrm((src_vocab, d_model)),
        tgt_emb=nrm((tgt_vocab, d_model)),
        pe=positional_encoding(max_len, d_model),
        enc=enc, dec=dec, fc_w=fc_w, fc_b=fc_b,
    )


if __name__ == "__main__":
    # Scaled-down config consistent with the module's __init__ arguments.
    SRC_VOCAB, TGT_VOCAB = 96, 200        # TGT not a multiple of 128 -> pad path
    D_MODEL, NHEAD, NUM_LAYERS, DFF = 128, 4, 2, 256
    B, S_SRC, S_TGT = 2, 8, 8

    root = jax.random.PRNGKey(0)
    k_param, k_src, k_tgt = jax.random.split(root, 3)
    params = init_params(k_param, SRC_VOCAB, TGT_VOCAB, D_MODEL, NHEAD,
                         NUM_LAYERS, DFF)

    src = jax.random.randint(k_src, (B, S_SRC), 0, SRC_VOCAB, dtype=jnp.int32)
    tgt = jax.random.randint(k_tgt, (B, S_TGT), 0, TGT_VOCAB, dtype=jnp.int32)

    fwd = jax.jit(functools.partial(translation_transformer_forward,
                                    nhead=NHEAD, tgt_vocab=TGT_VOCAB))
    logits = fwd(params, src, tgt)
    jax.block_until_ready(logits)

    assert logits.shape == (B, S_TGT, TGT_VOCAB), logits.shape
    assert bool(jnp.all(jnp.isfinite(logits)))
    print("KERNEL_OK")
</pallas_src>

<mosaic_0001>
module attributes {stable_mosaic.version = 11 : i64} {
  func.func @_encoder_stack_kernel(%arg0: i32, %arg1: i32, %arg2: memref<1x8x128xbf16, #tpu.memory_space<vmem>>, %arg3: memref<1x12x128x32xbf16, #tpu.memory_space<vmem>>, %arg4: memref<1x12x1x32xf32, #tpu.memory_space<vmem>>, %arg5: memref<1x4x32x128xbf16, #tpu.memory_space<vmem>>, %arg6: memref<1x1x128xf32, #tpu.memory_space<vmem>>, %arg7: memref<1x1x128xf32, #tpu.memory_space<vmem>>, %arg8: memref<1x1x128xf32, #tpu.memory_space<vmem>>, %arg9: memref<1x128x256xbf16, #tpu.memory_space<vmem>>, %arg10: memref<1x1x256xf32, #tpu.memory_space<vmem>>, %arg11: memref<1x256x128xbf16, #tpu.memory_space<vmem>>, %arg12: memref<1x1x128xf32, #tpu.memory_space<vmem>>, %arg13: memref<1x1x128xf32, #tpu.memory_space<vmem>>, %arg14: memref<1x1x128xf32, #tpu.memory_space<vmem>>, %arg15: memref<1x128xf32, #tpu.memory_space<vmem>>, %arg16: memref<1x128xf32, #tpu.memory_space<vmem>>, %arg17: memref<1x8x128xbf16, #tpu.memory_space<vmem>>, %arg18: memref<8x128xf32, #tpu.memory_space<vmem>>) attributes {dimension_semantics = [#tpu.dimension_semantics<parallel>, #tpu.dimension_semantics<arbitrary>], iteration_bounds = array<i64: 2, 2>, scalar_prefetch = 0 : i64, scratch_operands = 1 : i64, tpu.core_type = #tpu.core_type<tc>, window_params = [{transform_indices = @transform_0, window_bounds = array<i64: 1, 8, 128>}, {transform_indices = @transform_1, window_bounds = array<i64: 1, 12, 128, 32>}, {transform_indices = @transform_2, window_bounds = array<i64: 1, 12, 1, 32>}, {transform_indices = @transform_3, window_bounds = array<i64: 1, 4, 32, 128>}, {transform_indices = @transform_4, window_bounds = array<i64: 1, 1, 128>}, {transform_indices = @transform_5, window_bounds = array<i64: 1, 1, 128>}, {transform_indices = @transform_6, window_bounds = array<i64: 1, 1, 128>}, {transform_indices = @transform_7, window_bounds = array<i64: 1, 128, 256>}, {transform_indices = @transform_8, window_bounds = array<i64: 1, 1, 256>}, {transform_indices = @transform_9, window_bounds = array<i64: 1, 256, 128>}, {transform_indices = @transform_10, window_bounds = array<i64: 1, 1, 128>}, {transform_indices = @transform_11, window_bounds = array<i64: 1, 1, 128>}, {transform_indices = @transform_12, window_bounds = array<i64: 1, 1, 128>}, {pipeline_mode = #tpu.pipeline_mode<synchronous>, transform_indices = @transform_13, window_bounds = array<i64: 1, 128>}, {pipeline_mode = #tpu.pipeline_mode<synchronous>, transform_indices = @transform_14, window_bounds = array<i64: 1, 128>}, {transform_indices = @transform_15, window_bounds = array<i64: 1, 8, 128>}]} {
    %c0_i32 = arith.constant 0 : i32
    %0 = arith.cmpi eq, %arg1, %c0_i32 : i32
    %1 = arith.extui %0 : i1 to i32
    %c0_i32_0 = arith.constant 0 : i32
    %2 = arith.cmpi ne, %1, %c0_i32_0 : i32
    scf.if %2 {
      %c0_67 = arith.constant 0 : index
      %c0_68 = arith.constant 0 : index
      %c0_69 = arith.constant 0 : index
      %147 = vector.load %arg2[%c0_67, %c0_68, %c0_69] : memref<1x8x128xbf16, #tpu.memory_space<vmem>>, vector<1x8x128xbf16>
      %148 = vector.shape_cast %147 : vector<1x8x128xbf16> to vector<8x128xbf16>
      %149 = arith.extf %148 : vector<8x128xbf16> to vector<8x128xf32>
      %c0_70 = arith.constant 0 : index
      %c0_71 = arith.constant 0 : index
      %150 = vector.load %arg18[%c0_70, %c0_71] : memref<8x128xf32, #tpu.memory_space<vmem>>, vector<8x128xf32>
      tpu.vector_store %arg18[%c0_70, %c0_71], %149 {strides = array<i32>} : memref<8x128xf32, #tpu.memory_space<vmem>>, vector<8x128xf32>,
    } else {
    }
    %c0 = arith.constant 0 : index
    %c0_1 = arith.constant 0 : index
    %3 = vector.load %arg18[%c0, %c0_1] : memref<8x128xf32, #tpu.memory_space<vmem>>, vector<8x128xf32>
    %c0_2 = arith.constant 0 : index
    %c0_3 = arith.constant 0 : index
    %c0_4 = arith.constant 0 : index
    %c0_5 = arith.constant 0 : index
    %4 = vector.load %arg3[%c0_2, %c0_3, %c0_4, %c0_5] : memref<1x12x128x32xbf16, #tpu.memory_space<vmem>>, vector<1x12x128x32xbf16>
    %5 = vector.shape_cast %4 : vector<1x12x128x32xbf16> to vector<12x128x32xbf16>
    %c0_6 = arith.constant 0 : index
    %c0_7 = arith.constant 0 : index
    %c0_8 = arith.constant 0 : index
    %c0_9 = arith.constant 0 : index
    %6 = vector.load %arg4[%c0_6, %c0_7, %c0_8, %c0_9] : memref<1x12x1x32xf32, #tpu.memory_space<vmem>>, vector<1x12x1x32xf32>
    %7 = vector.shape_cast %6 : vector<1x12x1x32xf32> to vector<12x1x32xf32>
    %8 = arith.truncf %3 : vector<8x128xf32> to vector<8x128xbf16>
    %9 = vector.shape_cast %8 : vector<8x128xbf16> to vector<1x8x128xbf16>
    %10 = vector.shape_cast %9 : vector<1x8x128xbf16> to vector<1x8x128xbf16>
    %11 = vector.broadcast %10 : vector<1x8x128xbf16> to vector<12x8x128xbf16>
    %cst = arith.constant dense<0.000000e+00> : vector<12x8x32xf32>
    %12 = tpu.matmul %11, %5, %cst {dimension_numbers = #tpu.dot_dimension_numbers<[2], [1], [1], [2], [0, 0, 0, 1, 1, 2], [0], [0]>} : vector<12x8x128xbf16>, vector<12x128x32xbf16>, vector<12x8x32xf32> -> vector<12x8x32xf32>
    %13 = vector.broadcast %7 : vector<12x1x32xf32> to vector<12x8x32xf32>
    %14 = arith.addf %12, %13 : vector<12x8x32xf32>
    %15 = vector.extract_strided_slice %14 {offsets = [0, 0, 0], sizes = [4, 8, 32], strides = [1, 1, 1]} : vector<12x8x32xf32> to vector<4x8x32xf32>
    %16 = vector.extract_strided_slice %14 {offsets = [4, 0, 0], sizes = [4, 8, 32], strides = [1, 1, 1]} : vector<12x8x32xf32> to vector<4x8x32xf32>
    %17 = vector.extract_strided_slice %14 {offsets = [8, 0, 0], sizes = [4, 8, 32], strides = [1, 1, 1]} : vector<12x8x32xf32> to vector<4x8x32xf32>
    %c0_10 = arith.constant 0 : index
    %c0_11 = arith.constant 0 : index
    %c0_12 = arith.constant 0 : index
    %c0_13 = arith.constant 0 : index
    %18 = vector.load %arg5[%c0_10, %c0_11, %c0_12, %c0_13] : memref<1x4x32x128xbf16, #tpu.memory_space<vmem>>, vector<1x4x32x128xbf16>
    %19 = vector.shape_cast %18 : vector<1x4x32x128xbf16> to vector<4x32x128xbf16>
    %c0_14 = arith.constant 0 : index
    %c0_15 = arith.constant 0 : index
    %c0_16 = arith.constant 0 : index
    %20 = vector.load %arg6[%c0_14, %c0_15, %c0_16] : memref<1x1x128xf32, #tpu.memory_space<vmem>>, vector<1x1x128xf32>
    %21 = vector.shape_cast %20 : vector<1x1x128xf32> to vector<1x128xf32>
    %cst_17 = arith.constant 0.176776692 : f32
    %22 = vector.broadcast %cst_17 : f32 to vector<4x8x32xf32>
    %23 = arith.mulf %15, %22 : vector<4x8x32xf32>
    %24 = arith.truncf %23 : vector<4x8x32xf32> to vector<4x8x32xbf16>
    %25 = arith.truncf %16 : vector<4x8x32xf32> to vector<4x8x32xbf16>
    %cst_18 = arith.constant dense<0.000000e+00> : vector<4x8x8xf32>
    %26 = tpu.matmul %24, %25, %cst_18 {dimension_numbers = #tpu.dot_dimension_numbers<[2], [2], [1], [1], [0, 0, 0, 1, 1, 1], [0], [0]>} : vector<4x8x32xbf16>, vector<4x8x32xbf16>, vector<4x8x8xf32> -> vector<4x8x8xf32>
    %cst_19 = arith.constant dense<0xFF800000> : vector<4x8xf32>
    %27 = vector.multi_reduction <maximumf>, %26, %cst_19 [2] : vector<4x8x8xf32> to vector<4x8xf32>
    %28 = vector.shape_cast %27 : vector<4x8xf32> to vector<4x8x1xf32>
    %29 = vector.broadcast %28 : vector<4x8x1xf32> to vector<4x8x8xf32>
    %30 = arith.subf %26, %29 : vector<4x8x8xf32>
    %31 = math.exp %30 : vector<4x8x8xf32>
    %cst_20 = arith.constant dense<0.000000e+00> : vector<4x8xf32>
    %32 = vector.multi_reduction <add>, %31, %cst_20 [2] : vector<4x8x8xf32> to vector<4x8xf32>
    %33 = vector.shape_cast %32 : vector<4x8xf32> to vector<4x8x1xf32>
    %34 = tpu.reciprocal %33 {approx = true} : vector<4x8x1xf32> -> vector<4x8x1xf32>
    %35 = vector.broadcast %34 : vector<4x8x1xf32> to vector<4x8x8xf32>
    %36 = arith.mulf %31, %35 : vector<4x8x8xf32>
    %37 = arith.truncf %36 : vector<4x8x8xf32> to vector<4x8x8xbf16>
    %38 = arith.truncf %17 : vector<4x8x32xf32> to vector<4x8x32xbf16>
    %cst_21 = arith.constant dense<0.000000e+00> : vector<4x8x32xf32>
    %39 = tpu.matmul %37, %38, %cst_21 {dimension_numbers = #tpu.dot_dimension_numbers<[2], [1], [1], [2], [0, 0, 0, 1, 1, 2], [0], [0]>} : vector<4x8x8xbf16>, vector<4x8x32xbf16>, vector<4x8x32xf32> -> vector<4x8x32xf32>
    %cst_22 = arith.constant 0.000000e+00 : f32
    %40 = vector.broadcast %cst_22 : f32 to vector<8x128xf32>
    %41 = vector.extract_strided_slice %39 {offsets = [0, 0, 0], sizes = [1, 8, 32], strides = [1, 1, 1]} : vector<4x8x32xf32> to vector<1x8x32xf32>
    %42 = vector.shape_cast %41 : vector<1x8x32xf32> to vector<8x32xf32>
    %43 = arith.truncf %42 : vector<8x32xf32> to vector<8x32xbf16>
    %44 = vector.extract_strided_slice %19 {offsets = [0, 0, 0], sizes = [1, 32, 128], strides = [1, 1, 1]} : vector<4x32x128xbf16> to vector<1x32x128xbf16>
    %45 = vector.shape_cast %44 : vector<1x32x128xbf16> to vector<32x128xbf16>
    %cst_23 = arith.constant dense<0.000000e+00> : vector<8x128xf32>
    %46 = tpu.matmul %43, %45, %cst_23 {dimension_numbers = #tpu.dot_dimension_numbers<[1], [0], [0], [1], [0, 0, 1, 1], [], []>} : vector<8x32xbf16>, vector<32x128xbf16>, vector<8x128xf32> -> vector<8x128xf32>
    %47 = arith.addf %40, %46 : vector<8x128xf32>
    %48 = vector.extract_strided_slice %39 {offsets = [1, 0, 0], sizes = [1, 8, 32], strides = [1, 1, 1]} : vector<4x8x32xf32> to vector<1x8x32xf32>
    %49 = vector.shape_cast %48 : vector<1x8x32xf32> to vector<8x32xf32>
    %50 = arith.truncf %49 : vector<8x32xf32> to vector<8x32xbf16>
    %51 = vector.extract_strided_slice %19 {offsets = [1, 0, 0], sizes = [1, 32, 128], strides = [1, 1, 1]} : vector<4x32x128xbf16> to vector<1x32x128xbf16>
    %52 = vector.shape_cast %51 : vector<1x32x128xbf16> to vector<32x128xbf16>
    %cst_24 = arith.constant dense<0.000000e+00> : vector<8x128xf32>
    %53 = tpu.matmul %50, %52, %cst_24 {dimension_numbers = #tpu.dot_dimension_numbers<[1], [0], [0], [1], [0, 0, 1, 1], [], []>} : vector<8x32xbf16>, vector<32x128xbf16>, vector<8x128xf32> -> vector<8x128xf32>
    %54 = arith.addf %47, %53 : vector<8x128xf32>
    %55 = vector.extract_strided_slice %39 {offsets = [2, 0, 0], sizes = [1, 8, 32], strides = [1, 1, 1]} : vector<4x8x32xf32> to vector<1x8x32xf32>
    %56 = vector.shape_cast %55 : vector<1x8x32xf32> to vector<8x32xf32>
    %57 = arith.truncf %56 : vector<8x32xf32> to vector<8x32xbf16>
    %58 = vector.extract_strided_slice %19 {offsets = [2, 0, 0], sizes = [1, 32, 128], strides = [1, 1, 1]} : vector<4x32x128xbf16> to vector<1x32x128xbf16>
    %59 = vector.shape_cast %58 : vector<1x32x128xbf16> to vector<32x128xbf16>
    %cst_25 = arith.constant dense<0.000000e+00> : vector<8x128xf32>
    %60 = tpu.matmul %57, %59, %cst_25 {dimension_numbers = #tpu.dot_dimension_numbers<[1], [0], [0], [1], [0, 0, 1, 1], [], []>} : vector<8x32xbf16>, vector<32x128xbf16>, vector<8x128xf32> -> vector<8x128xf32>
    %61 = arith.addf %54, %60 : vector<8x128xf32>
    %62 = vector.extract_strided_slice %39 {offsets = [3, 0, 0], sizes = [1, 8, 32], strides = [1, 1, 1]} : vector<4x8x32xf32> to vector<1x8x32xf32>
    %63 = vector.shape_cast %62 : vector<1x8x32xf32> to vector<8x32xf32>
    %64 = arith.truncf %63 : vector<8x32xf32> to vector<8x32xbf16>
    %65 = vector.extract_strided_slice %19 {offsets = [3, 0, 0], sizes = [1, 32, 128], strides = [1, 1, 1]} : vector<4x32x128xbf16> to vector<1x32x128xbf16>
    %66 = vector.shape_cast %65 : vector<1x32x128xbf16> to vector<32x128xbf16>
    %cst_26 = arith.constant dense<0.000000e+00> : vector<8x128xf32>
    %67 = tpu.matmul %64, %66, %cst_26 {dimension_numbers = #tpu.dot_dimension_numbers<[1], [0], [0], [1], [0, 0, 1, 1], [], []>} : vector<8x32xbf16>, vector<32x128xbf16>, vector<8x128xf32> -> vector<8x128xf32>
    %68 = arith.addf %61, %67 : vector<8x128xf32>
    %69 = vector.broadcast %21 : vector<1x128xf32> to vector<8x128xf32>
    %70 = arith.addf %68, %69 : vector<8x128xf32>
    %71 = arith.addf %3, %70 : vector<8x128xf32>
    %c0_27 = arith.constant 0 : index
    %c0_28 = arith.constant 0 : index
    %c0_29 = arith.constant 0 : index
    %72 = vector.load %arg7[%c0_27, %c0_28, %c0_29] : memref<1x1x128xf32, #tpu.memory_space<vmem>>, vector<1x1x128xf32>
    %73 = vector.shape_cast %72 : vector<1x1x128xf32> to vector<1x128xf32>
    %c0_30 = arith.constant 0 : index
    %c0_31 = arith.constant 0 : index
    %c0_32 = arith.constant 0 : index
    %74 = vector.load %arg8[%c0_30, %c0_31, %c0_32] : memref<1x1x128xf32, #tpu.memory_space<vmem>>, vector<1x1x128xf32>
    %75 = vector.shape_cast %74 : vector<1x1x128xf32> to vector<1x128xf32>
    %cst_33 = arith.constant dense<0.000000e+00> : vector<8xf32>
    %76 = vector.multi_reduction <add>, %71, %cst_33 [1] : vector<8x128xf32> to vector<8xf32>
    %77 = vector.shape_cast %76 : vector<8xf32> to vector<8x1xf32>
    %cst_34 = arith.constant 1.280000e+02 : f32
    %78 = vector.broadcast %cst_34 : f32 to vector<8x1xf32>
    %79 = arith.divf %77, %78 : vector<8x1xf32>
    %80 = vector.broadcast %79 : vector<8x1xf32> to vector<8x128xf32>
    %81 = arith.subf %71, %80 : vector<8x128xf32>
    %82 = arith.mulf %81, %81 : vector<8x128xf32>
    %cst_35 = arith.constant dense<0.000000e+00> : vector<8xf32>
    %83 = vector.multi_reduction <add>, %82, %cst_35 [1] : vector<8x128xf32> to vector<8xf32>
    %84 = vector.shape_cast %83 : vector<8xf32> to vector<8x1xf32>
    %cst_36 = arith.constant 1.280000e+02 : f32
    %85 = vector.broadcast %cst_36 : f32 to vector<8x1xf32>
    %86 = arith.divf %84, %85 : vector<8x1xf32>
    %87 = vector.broadcast %79 : vector<8x1xf32> to vector<8x128xf32>
    %88 = arith.subf %71, %87 : vector<8x128xf32>
    %cst_37 = arith.constant 9.99999974E-6 : f32
    %89 = vector.broadcast %cst_37 : f32 to vector<8x1xf32>
    %90 = arith.addf %86, %89 : vector<8x1xf32>
    %91 = math.rsqrt %90 : vector<8x1xf32>
    %92 = vector.broadcast %91 : vector<8x1xf32> to vector<8x128xf32>
    %93 = arith.mulf %88, %92 : vector<8x128xf32>
    %94 = vector.broadcast %73 : vector<1x128xf32> to vector<8x128xf32>
    %95 = arith.mulf %93, %94 : vector<8x128xf32>
    %96 = vector.broadcast %75 : vector<1x128xf32> to vector<8x128xf32>
    %97 = arith.addf %95, %96 : vector<8x128xf32>
    %c0_38 = arith.constant 0 : index
    %c0_39 = arith.constant 0 : index
    %c0_40 = arith.constant 0 : index
    %98 = vector.load %arg9[%c0_38, %c0_39, %c0_40] : memref<1x128x256xbf16, #tpu.memory_space<vmem>>, vector<1x128x256xbf16>
    %99 = vector.shape_cast %98 : vector<1x128x256xbf16> to vector<128x256xbf16>
    %c0_41 = arith.constant 0 : index
    %c0_42 = arith.constant 0 : index
    %c0_43 = arith.constant 0 : index
    %100 = vector.load %arg10[%c0_41, %c0_42, %c0_43] : memref<1x1x256xf32, #tpu.memory_space<vmem>>, vector<1x1x256xf32>
    %101 = vector.shape_cast %100 : vector<1x1x256xf32> to vector<1x256xf32>
    %c0_44 = arith.constant 0 : index
    %c0_45 = arith.constant 0 : index
    %c0_46 = arith.constant 0 : index
    %102 = vector.load %arg11[%c0_44, %c0_45, %c0_46] : memref<1x256x128xbf16, #tpu.memory_space<vmem>>, vector<1x256x128xbf16>
    %103 = vector.shape_cast %102 : vector<1x256x128xbf16> to vector<256x128xbf16>
    %c0_47 = arith.constant 0 : index
    %c0_48 = arith.constant 0 : index
    %c0_49 = arith.constant 0 : index
    %104 = vector.load %arg12[%c0_47, %c0_48, %c0_49] : memref<1x1x128xf32, #tpu.memory_space<vmem>>, vector<1x1x128xf32>
    %105 = vector.shape_cast %104 : vector<1x1x128xf32> to vector<1x128xf32>
    %106 = arith.truncf %97 : vector<8x128xf32> to vector<8x128xbf16>
    %cst_50 = arith.constant dense<0.000000e+00> : vector<8x256xf32>
    %107 = tpu.matmul %106, %99, %cst_50 {dimension_numbers = #tpu.dot_dimension_numbers<[1], [0], [0], [1], [0, 0, 1, 1], [], []>} : vector<8x128xbf16>, vector<128x256xbf16>, vector<8x256xf32> -> vector<8x256xf32>
    %108 = vector.broadcast %101 : vector<1x256xf32> to vector<8x256xf32>
    %109 = arith.addf %107, %108 : vector<8x256xf32>
    %cst_51 = arith.constant 0.000000e+00 : f32
    %110 = vector.broadcast %cst_51 : f32 to vector<8x256xf32>
    %111 = arith.maximumf %109, %110 : vector<8x256xf32>
    %112 = arith.truncf %111 : vector<8x256xf32> to vector<8x256xbf16>
    %cst_52 = arith.constant dense<0.000000e+00> : vector<8x128xf32>
    %113 = tpu.matmul %112, %103, %cst_52 {dimension_numbers = #tpu.dot_dimension_numbers<[1], [0], [0], [1], [0, 0, 1, 1], [], []>} : vector<8x256xbf16>, vector<256x128xbf16>, vector<8x128xf32> -> vector<8x128xf32>
    %114 = vector.broadcast %105 : vector<1x128xf32> to vector<8x128xf32>
    %115 = arith.addf %113, %114 : vector<8x128xf32>
    %116 = arith.addf %97, %115 : vector<8x128xf32>
    %c0_53 = arith.constant 0 : index
    %c0_54 = arith.constant 0 : index
    %c0_55 = arith.constant 0 : index
    %117 = vector.load %arg13[%c0_53, %c0_54, %c0_55] : memref<1x1x128xf32, #tpu.memory_space<vmem>>, vector<1x1x128xf32>
    %118 = vector.shape_cast %117 : vector<1x1x128xf32> to vector<1x128xf32>
    %c0_56 = arith.constant 0 : index
    %c0_57 = arith.constant 0 : index
    %c0_58 = arith.constant 0 : index
    %119 = vector.load %arg14[%c0_56, %c0_57, %c0_58] : memref<1x1x128xf32, #tpu.memory_space<vmem>>, vector<1x1x128xf32>
    %120 = vector.shape_cast %119 : vector<1x1x128xf32> to vector<1x128xf32>
    %cst_59 = arith.constant dense<0.000000e+00> : vector<8xf32>
    %121 = vector.multi_reduction <add>, %116, %cst_59 [1] : vector<8x128xf32> to vector<8xf32>
    %122 = vector.shape_cast %121 : vector<8xf32> to vector<8x1xf32>
    %cst_60 = arith.constant 1.280000e+02 : f32
    %123 = vector.broadcast %cst_60 : f32 to vector<8x1xf32>
    %124 = arith.divf %122, %123 : vector<8x1xf32>
    %125 = vector.broadcast %124 : vector<8x1xf32> to vector<8x128xf32>
    %126 = arith.subf %116, %125 : vector<8x128xf32>
    %127 = arith.mulf %126, %126 : vector<8x128xf32>
    %cst_61 = arith.constant dense<0.000000e+00> : vector<8xf32>
    %128 = vector.multi_reduction <add>, %127, %cst_61 [1] : vector<8x128xf32> to vector<8xf32>
    %129 = vector.shape_cast %128 : vector<8xf32> to vector<8x1xf32>
    %cst_62 = arith.constant 1.280000e+02 : f32
    %130 = vector.broadcast %cst_62 : f32 to vector<8x1xf32>
    %131 = arith.divf %129, %130 : vector<8x1xf32>
    %132 = vector.broadcast %124 : vector<8x1xf32> to vector<8x128xf32>
    %133 = arith.subf %116, %132 : vector<8x128xf32>
    %cst_63 = arith.constant 9.99999974E-6 : f32
    %134 = vector.broadcast %cst_63 : f32 to vector<8x1xf32>
    %135 = arith.addf %131, %134 : vector<8x1xf32>
    %136 = math.rsqrt %135 : vector<8x1xf32>
    %137 = vector.broadcast %136 : vector<8x1xf32> to vector<8x128xf32>
    %138 = arith.mulf %133, %137 : vector<8x128xf32>
    %139 = vector.broadcast %118 : vector<1x128xf32> to vector<8x128xf32>
    %140 = arith.mulf %138, %139 : vector<8x128xf32>
    %141 = vector.broadcast %120 : vector<1x128xf32> to vector<8x128xf32>
    %142 = arith.addf %140, %141 : vector<8x128xf32>
    %c0_64 = arith.constant 0 : index
    %c0_65 = arith.constant 0 : index
    %143 = vector.load %arg18[%c0_64, %c0_65] : memref<8x128xf32, #tpu.memory_space<vmem>>, vector<8x128xf32>
    tpu.vector_store %arg18[%c0_64, %c0_65], %142 {strides = array<i32>} : memref<8x128xf32, #tpu.memory_space<vmem>>, vector<8x128xf32>,
    %c1_i32 = arith.constant 1 : i32
    %144 = arith.cmpi eq, %arg1, %c1_i32 : i32
    %145 = arith.extui %144 : i1 to i32
    %c0_i32_66 = arith.constant 0 : i32
    %146 = arith.cmpi ne, %145, %c0_i32_66 : i32
    scf.if %146 {
      %c0_67 = arith.constant 0 : index
      %c0_68 = arith.constant 0 : index
      %147 = vector.load %arg15[%c0_67, %c0_68] : memref<1x128xf32, #tpu.memory_space<vmem>>, vector<1x128xf32>
      %c0_69 = arith.constant 0 : index
      %c0_70 = arith.constant 0 : index
      %148 = vector.load %arg16[%c0_69, %c0_70] : memref<1x128xf32, #tpu.memory_space<vmem>>, vector<1x128xf32>
      %cst_71 = arith.constant dense<0.000000e+00> : vector<8xf32>
      %149 = vector.multi_reduction <add>, %142, %cst_71 [1] : vector<8x128xf32> to vector<8xf32>
      %150 = vector.shape_cast %149 : vector<8xf32> to vector<8x1xf32>
      %cst_72 = arith.constant 1.280000e+02 : f32
      %151 = vector.broadcast %cst_72 : f32 to vector<8x1xf32>
      %152 = arith.divf %150, %151 : vector<8x1xf32>
      %153 = vector.broadcast %152 : vector<8x1xf32> to vector<8x128xf32>
      %154 = arith.subf %142, %153 : vector<8x128xf32>
      %155 = arith.mulf %154, %154 : vector<8x128xf32>
      %cst_73 = arith.constant dense<0.000000e+00> : vector<8xf32>
      %156 = vector.multi_reduction <add>, %155, %cst_73 [1] : vector<8x128xf32> to vector<8xf32>
      %157 = vector.shape_cast %156 : vector<8xf32> to vector<8x1xf32>
      %cst_74 = arith.constant 1.280000e+02 : f32
      %158 = vector.broadcast %cst_74 : f32 to vector<8x1xf32>
      %159 = arith.divf %157, %158 : vector<8x1xf32>
      %160 = vector.broadcast %152 : vector<8x1xf32> to vector<8x128xf32>
      %161 = arith.subf %142, %160 : vector<8x128xf32>
      %cst_75 = arith.constant 9.99999974E-6 : f32
      %162 = vector.broadcast %cst_75 : f32 to vector<8x1xf32>
      %163 = arith.addf %159, %162 : vector<8x1xf32>
      %164 = math.rsqrt %163 : vector<8x1xf32>
      %165 = vector.broadcast %164 : vector<8x1xf32> to vector<8x128xf32>
      %166 = arith.mulf %161, %165 : vector<8x128xf32>
      %167 = vector.broadcast %147 : vector<1x128xf32> to vector<8x128xf32>
      %168 = arith.mulf %166, %167 : vector<8x128xf32>
      %169 = vector.broadcast %148 : vector<1x128xf32> to vector<8x128xf32>
      %170 = arith.addf %168, %169 : vector<8x128xf32>
      %171 = vector.shape_cast %170 : vector<8x128xf32> to vector<1x8x128xf32>
      %172 = arith.truncf %171 : vector<1x8x128xf32> to vector<1x8x128xbf16>
      %c0_76 = arith.constant 0 : index
      %c0_77 = arith.constant 0 : index
      %c0_78 = arith.constant 0 : index
      %173 = vector.load %arg17[%c0_76, %c0_77, %c0_78] : memref<1x8x128xbf16, #tpu.memory_space<vmem>>, vector<1x8x128xbf16>
      tpu.vector_store %arg17[%c0_76, %c0_77, %c0_78], %172 {strides = array<i32>} : memref<1x8x128xbf16, #tpu.memory_space<vmem>>, vector<1x8x128xbf16>,
    } else {
    }
    return
  }
  func.func @transform_0(%arg0: i32, %arg1: i32) -> (i32, i32, i32) {
    %c0_i32 = arith.constant 0 : i32
    %c0_i32_0 = arith.constant 0 : i32
    %c0_i32_1 = arith.constant 0 : i32
    return %arg0, %c0_i32, %c0_i32_0 : i32, i32, i32
  }
  func.func @transform_1(%arg0: i32, %arg1: i32) -> (i32, i32, i32, i32) {
    %c0_i32 = arith.constant 0 : i32
    %c0_i32_0 = arith.constant 0 : i32
    %c0_i32_1 = arith.constant 0 : i32
    %c0_i32_2 = arith.constant 0 : i32
    return %arg1, %c0_i32, %c0_i32_0, %c0_i32_1 : i32, i32, i32, i32
  }
  func.func @transform_2(%arg0: i32, %arg1: i32) -> (i32, i32, i32, i32) {
    %c0_i32 = arith.constant 0 : i32
    %c0_i32_0 = arith.constant 0 : i32
    %c0_i32_1 = arith.constant 0 : i32
    %c0_i32_2 = arith.constant 0 : i32
    return %arg1, %c0_i32, %c0_i32_0, %c0_i32_1 : i32, i32, i32, i32
  }
  func.func @transform_3(%arg0: i32, %arg1: i32) -> (i32, i32, i32, i32) {
    %c0_i32 = arith.constant 0 : i32
    %c0_i32_0 = arith.constant 0 : i32
    %c0_i32_1 = arith.constant 0 : i32
    %c0_i32_2 = arith.constant 0 : i32
    return %arg1, %c0_i32, %c0_i32_0, %c0_i32_1 : i32, i32, i32, i32
  }
  func.func @transform_4(%arg0: i32, %arg1: i32) -> (i32, i32, i32) {
    %c0_i32 = arith.constant 0 : i32
    %c0_i32_0 = arith.constant 0 : i32
    %c0_i32_1 = arith.constant 0 : i32
    return %arg1, %c0_i32, %c0_i32_0 : i32, i32, i32
  }
  func.func @transform_5(%arg0: i32, %arg1: i32) -> (i32, i32, i32) {
    %c0_i32 = arith.constant 0 : i32
    %c0_i32_0 = arith.constant 0 : i32
    %c0_i32_1 = arith.constant 0 : i32
    return %arg1, %c0_i32, %c0_i32_0 : i32, i32, i32
  }
  func.func @transform_6(%arg0: i32, %arg1: i32) -> (i32, i32, i32) {
    %c0_i32 = arith.constant 0 : i32
    %c0_i32_0 = arith.constant 0 : i32
    %c0_i32_1 = arith.constant 0 : i32
    return %arg1, %c0_i32, %c0_i32_0 : i32, i32, i32
  }
  func.func @transform_7(%arg0: i32, %arg1: i32) -> (i32, i32, i32) {
    %c0_i32 = arith.constant 0 : i32
    %c0_i32_0 = arith.constant 0 : i32
    %c0_i32_1 = arith.constant 0 : i32
    return %arg1, %c0_i32, %c0_i32_0 : i32, i32, i32
  }
  func.func @transform_8(%arg0: i32, %arg1: i32) -> (i32, i32, i32) {
    %c0_i32 = arith.constant 0 : i32
    %c0_i32_0 = arith.constant 0 : i32
    %c0_i32_1 = arith.constant 0 : i32
    return %arg1, %c0_i32, %c0_i32_0 : i32, i32, i32
  }
  func.func @transform_9(%arg0: i32, %arg1: i32) -> (i32, i32, i32) {
    %c0_i32 = arith.constant 0 : i32
    %c0_i32_0 = arith.constant 0 : i32
    %c0_i32_1 = arith.constant 0 : i32
    return %arg1, %c0_i32, %c0_i32_0 : i32, i32, i32
  }
  func.func @transform_10(%arg0: i32, %arg1: i32) -> (i32, i32, i32) {
    %c0_i32 = arith.constant 0 : i32
    %c0_i32_0 = arith.constant 0 : i32
    %c0_i32_1 = arith.constant 0 : i32
    return %arg1, %c0_i32, %c0_i32_0 : i32, i32, i32
  }
  func.func @transform_11(%arg0: i32, %arg1: i32) -> (i32, i32, i32) {
    %c0_i32 = arith.constant 0 : i32
    %c0_i32_0 = arith.constant 0 : i32
    %c0_i32_1 = arith.constant 0 : i32
    return %arg1, %c0_i32, %c0_i32_0 : i32, i32, i32
  }
  func.func @transform_12(%arg0: i32, %arg1: i32) -> (i32, i32, i32) {
    %c0_i32 = arith.constant 0 : i32
    %c0_i32_0 = arith.constant 0 : i32
    %c0_i32_1 = arith.constant 0 : i32
    return %arg1, %c0_i32, %c0_i32_0 : i32, i32, i32
  }
  func.func @transform_13(%arg0: i32, %arg1: i32) -> (i32, i32) {
    %c0_i32 = arith.constant 0 : i32
    %c0_i32_0 = arith.constant 0 : i32
    %c0_i32_1 = arith.constant 0 : i32
    return %c0_i32, %c0_i32_0 : i32, i32
  }
  func.func @transform_14(%arg0: i32, %arg1: i32) -> (i32, i32) {
    %c0_i32 = arith.constant 0 : i32
    %c0_i32_0 = arith.constant 0 : i32
    %c0_i32_1 = arith.constant 0 : i32
    return %c0_i32, %c0_i32_0 : i32, i32
  }
  func.func @transform_15(%arg0: i32, %arg1: i32) -> (i32, i32, i32) {
    %c0_i32 = arith.constant 0 : i32
    %c0_i32_0 = arith.constant 0 : i32
    %c0_i32_1 = arith.constant 0 : i32
    return %arg0, %c0_i32, %c0_i32_0 : i32, i32, i32
  }
}

module attributes {stable_mosaic.version = 11 : i64} {
  func.func @_proj_kernel(%arg0: i32, %arg1: i32, %arg2: memref<1x8x128xbf16, #tpu.memory_space<vmem>>, %arg3: memref<128x256xbf16, #tpu.memory_space<vmem>>, %arg4: memref<1x256xf32, #tpu.memory_space<vmem>>, %arg5: memref<1x8x256xf32, #tpu.memory_space<vmem>>) attributes {dimension_semantics = [#tpu.dimension_semantics<parallel>, #tpu.dimension_semantics<parallel>], iteration_bounds = array<i64: 1, 2>, scalar_prefetch = 0 : i64, scratch_operands = 0 : i64, tpu.core_type = #tpu.core_type<tc>, window_params = [{transform_indices = @transform_0, window_bounds = array<i64: 1, 8, 128>}, {transform_indices = @transform_1, window_bounds = array<i64: 128, 256>}, {transform_indices = @transform_2, window_bounds = array<i64: 1, 256>}, {transform_indices = @transform_3, window_bounds = array<i64: 1, 8, 256>}]} {
    %c0 = arith.constant 0 : index
    %c0_0 = arith.constant 0 : index
    %c0_1 = arith.constant 0 : index
    %0 = vector.load %arg2[%c0, %c0_0, %c0_1] : memref<1x8x128xbf16, #tpu.memory_space<vmem>>, vector<1x8x128xbf16>
    %1 = vector.shape_cast %0 : vector<1x8x128xbf16> to vector<8x128xbf16>
    %c0_2 = arith.constant 0 : index
    %c0_3 = arith.constant 0 : index
    %2 = vector.load %arg3[%c0_2, %c0_3] : memref<128x256xbf16, #tpu.memory_space<vmem>>, vector<128x256xbf16>
    %cst = arith.constant dense<0.000000e+00> : vector<8x256xf32>
    %3 = tpu.matmul %1, %2, %cst {dimension_numbers = #tpu.dot_dimension_numbers<[1], [0], [0], [1], [0, 0, 1, 1], [], []>} : vector<8x128xbf16>, vector<128x256xbf16>, vector<8x256xf32> -> vector<8x256xf32>
    %c0_4 = arith.constant 0 : index
    %c0_5 = arith.constant 0 : index
    %4 = vector.load %arg4[%c0_4, %c0_5] : memref<1x256xf32, #tpu.memory_space<vmem>>, vector<1x256xf32>
    %5 = vector.broadcast %4 : vector<1x256xf32> to vector<8x256xf32>
    %6 = arith.addf %3, %5 : vector<8x256xf32>
    %c0_6 = arith.constant 0 : index
    %c0_7 = arith.constant 0 : index
    %c0_8 = arith.constant 0 : index
    %7 = vector.load %arg5[%c0_6, %c0_7, %c0_8] : memref<1x8x256xf32, #tpu.memory_space<vmem>>, vector<1x8x256xf32>
    %8 = vector.shape_cast %7 : vector<1x8x256xf32> to vector<8x256xf32>
    %9 = vector.shape_cast %6 : vector<8x256xf32> to vector<1x8x256xf32>
    tpu.vector_store %arg5[%c0_6, %c0_7, %c0_8], %9 {strides = array<i32>} : memref<1x8x256xf32, #tpu.memory_space<vmem>>, vector<1x8x256xf32>,
    return
  }
  func.func @transform_0(%arg0: i32, %arg1: i32) -> (i32, i32, i32) {
    %c0_i32 = arith.constant 0 : i32
    %c0_i32_0 = arith.constant 0 : i32
    %c0_i32_1 = arith.constant 0 : i32
    return %arg1, %c0_i32, %c0_i32_0 : i32, i32, i32
  }
  func.func @transform_1(%arg0: i32, %arg1: i32) -> (i32, i32) {
    %c0_i32 = arith.constant 0 : i32
    %c0_i32_0 = arith.constant 0 : i32
    return %c0_i32, %arg0 : i32, i32
  }
  func.func @transform_2(%arg0: i32, %arg1: i32) -> (i32, i32) {
    %c0_i32 = arith.constant 0 : i32
    %c0_i32_0 = arith.constant 0 : i32
    return %c0_i32, %arg0 : i32, i32
  }
  func.func @transform_3(%arg0: i32, %arg1: i32) -> (i32, i32, i32) {
    %c0_i32 = arith.constant 0 : i32
    %c0_i32_0 = arith.constant 0 : i32
    return %arg1, %c0_i32, %arg0 : i32, i32, i32
  }
}

module attributes {stable_mosaic.version = 11 : i64} {
  func.func @_decoder_stack_kernel(%arg0: i32, %arg1: i32, %arg2: memref<1x8x128xbf16, #tpu.memory_space<vmem>>, %arg3: memref<1x8x128xbf16, #tpu.memory_space<vmem>>, %arg4: memref<1x12x128x32xbf16, #tpu.memory_space<vmem>>, %arg5: memref<1x12x1x32xf32, #tpu.memory_space<vmem>>, %arg6: memref<1x4x32x128xbf16, #tpu.memory_space<vmem>>, %arg7: memref<1x1x128xf32, #tpu.memory_space<vmem>>, %arg8: memref<1x1x128xf32, #tpu.memory_space<vmem>>, %arg9: memref<1x1x128xf32, #tpu.memory_space<vmem>>, %arg10: memref<1x4x128x32xbf16, #tpu.memory_space<vmem>>, %arg11: memref<1x4x1x32xf32, #tpu.memory_space<vmem>>, %arg12: memref<1x8x128x32xbf16, #tpu.memory_space<vmem>>, %arg13: memref<1x8x1x32xf32, #tpu.memory_space<vmem>>, %arg14: memref<1x4x32x128xbf16, #tpu.memory_space<vmem>>, %arg15: memref<1x1x128xf32, #tpu.memory_space<vmem>>, %arg16: memref<1x1x128xf32, #tpu.memory_space<vmem>>, %arg17: memref<1x1x128xf32, #tpu.memory_space<vmem>>, %arg18: memref<1x128x256xbf16, #tpu.memory_space<vmem>>, %arg19: memref<1x1x256xf32, #tpu.memory_space<vmem>>, %arg20: memref<1x256x128xbf16, #tpu.memory_space<vmem>>, %arg21: memref<1x1x128xf32, #tpu.memory_space<vmem>>, %arg22: memref<1x1x128xf32, #tpu.memory_space<vmem>>, %arg23: memref<1x1x128xf32, #tpu.memory_space<vmem>>, %arg24: memref<1x128xf32, #tpu.memory_space<vmem>>, %arg25: memref<1x128xf32, #tpu.memory_space<vmem>>, %arg26: memref<1x8x128xbf16, #tpu.memory_space<vmem>>, %arg27: memref<8x128xf32, #tpu.memory_space<vmem>>) attributes {dimension_semantics = [#tpu.dimension_semantics<parallel>, #tpu.dimension_semantics<arbitrary>], iteration_bounds = array<i64: 2, 2>, scalar_prefetch = 0 : i64, scratch_operands = 1 : i64, tpu.core_type = #tpu.core_type<tc>, window_params = [{transform_indices = @transform_0, window_bounds = array<i64: 1, 8, 128>}, {transform_indices = @transform_1, window_bounds = array<i64: 1, 8, 128>}, {transform_indices = @transform_2, window_bounds = array<i64: 1, 12, 128, 32>}, {transform_indices = @transform_3, window_bounds = array<i64: 1, 12, 1, 32>}, {transform_indices = @transform_4, window_bounds = array<i64: 1, 4, 32, 128>}, {transform_indices = @transform_5, window_bounds = array<i64: 1, 1, 128>}, {transform_indices = @transform_6, window_bounds = array<i64: 1, 1, 128>}, {transform_indices = @transform_7, window_bounds = array<i64: 1, 1, 128>}, {transform_indices = @transform_8, window_bounds = array<i64: 1, 4, 128, 32>}, {transform_indices = @transform_9, window_bounds = array<i64: 1, 4, 1, 32>}, {transform_indices = @transform_10, window_bounds = array<i64: 1, 8, 128, 32>}, {transform_indices = @transform_11, window_bounds = array<i64: 1, 8, 1, 32>}, {transform_indices = @transform_12, window_bounds = array<i64: 1, 4, 32, 128>}, {transform_indices = @transform_13, window_bounds = array<i64: 1, 1, 128>}, {transform_indices = @transform_14, window_bounds = array<i64: 1, 1, 128>}, {transform_indices = @transform_15, window_bounds = array<i64: 1, 1, 128>}, {transform_indices = @transform_16, window_bounds = array<i64: 1, 128, 256>}, {transform_indices = @transform_17, window_bounds = array<i64: 1, 1, 256>}, {transform_indices = @transform_18, window_bounds = array<i64: 1, 256, 128>}, {transform_indices = @transform_19, window_bounds = array<i64: 1, 1, 128>}, {transform_indices = @transform_20, window_bounds = array<i64: 1, 1, 128>}, {transform_indices = @transform_21, window_bounds = array<i64: 1, 1, 128>}, {pipeline_mode = #tpu.pipeline_mode<synchronous>, transform_indices = @transform_22, window_bounds = array<i64: 1, 128>}, {pipeline_mode = #tpu.pipeline_mode<synchronous>, transform_indices = @transform_23, window_bounds = array<i64: 1, 128>}, {transform_indices = @transform_24, window_bounds = array<i64: 1, 8, 128>}]} {
    %c0_i32 = arith.constant 0 : i32
    %0 = arith.cmpi eq, %arg1, %c0_i32 : i32
    %1 = arith.extui %0 : i1 to i32
    %c0_i32_0 = arith.constant 0 : i32
    %2 = arith.cmpi ne, %1, %c0_i32_0 : i32
    scf.if %2 {
      %c0_117 = arith.constant 0 : index
      %c0_118 = arith.constant 0 : index
      %c0_119 = arith.constant 0 : index
      %260 = vector.load %arg2[%c0_117, %c0_118, %c0_119] : memref<1x8x128xbf16, #tpu.memory_space<vmem>>, vector<1x8x128xbf16>
      %261 = vector.shape_cast %260 : vector<1x8x128xbf16> to vector<8x128xbf16>
      %262 = arith.extf %261 : vector<8x128xbf16> to vector<8x128xf32>
      %c0_120 = arith.constant 0 : index
      %c0_121 = arith.constant 0 : index
      %263 = vector.load %arg27[%c0_120, %c0_121] : memref<8x128xf32, #tpu.memory_space<vmem>>, vector<8x128xf32>
      tpu.vector_store %arg27[%c0_120, %c0_121], %262 {strides = array<i32>} : memref<8x128xf32, #tpu.memory_space<vmem>>, vector<8x128xf32>,
    } else {
    }
    %c0 = arith.constant 0 : index
    %c0_1 = arith.constant 0 : index
    %3 = vector.load %arg27[%c0, %c0_1] : memref<8x128xf32, #tpu.memory_space<vmem>>, vector<8x128xf32>
    %c0_2 = arith.constant 0 : index
    %c0_3 = arith.constant 0 : index
    %c0_4 = arith.constant 0 : index
    %4 = vector.load %arg3[%c0_2, %c0_3, %c0_4] : memref<1x8x128xbf16, #tpu.memory_space<vmem>>, vector<1x8x128xbf16>
    %5 = vector.shape_cast %4 : vector<1x8x128xbf16> to vector<8x128xbf16>
    %6 = tpu.iota {dimensions = array<i32: 0>} : vector<8x8xi32>
    %7 = tpu.iota {dimensions = array<i32: 1>} : vector<8x8xi32>
    %8 = arith.cmpi sge, %6, %7 : vector<8x8xi32>
    %c0_5 = arith.constant 0 : index
    %c0_6 = arith.constant 0 : index
    %c0_7 = arith.constant 0 : index
    %c0_8 = arith.constant 0 : index
    %9 = vector.load %arg4[%c0_5, %c0_6, %c0_7, %c0_8] : memref<1x12x128x32xbf16, #tpu.memory_space<vmem>>, vector<1x12x128x32xbf16>
    %10 = vector.shape_cast %9 : vector<1x12x128x32xbf16> to vector<12x128x32xbf16>
    %c0_9 = arith.constant 0 : index
    %c0_10 = arith.constant 0 : index
    %c0_11 = arith.constant 0 : index
    %c0_12 = arith.constant 0 : index
    %11 = vector.load %arg5[%c0_9, %c0_10, %c0_11, %c0_12] : memref<1x12x1x32xf32, #tpu.memory_space<vmem>>, vector<1x12x1x32xf32>
    %12 = vector.shape_cast %11 : vector<1x12x1x32xf32> to vector<12x1x32xf32>
    %13 = arith.truncf %3 : vector<8x128xf32> to vector<8x128xbf16>
    %14 = vector.shape_cast %13 : vector<8x128xbf16> to vector<1x8x128xbf16>
    %15 = vector.shape_cast %14 : vector<1x8x128xbf16> to vector<1x8x128xbf16>
    %16 = vector.broadcast %15 : vector<1x8x128xbf16> to vector<12x8x128xbf16>
    %cst = arith.constant dense<0.000000e+00> : vector<12x8x32xf32>
    %17 = tpu.matmul %16, %10, %cst {dimension_numbers = #tpu.dot_dimension_numbers<[2], [1], [1], [2], [0, 0, 0, 1, 1, 2], [0], [0]>} : vector<12x8x128xbf16>, vector<12x128x32xbf16>, vector<12x8x32xf32> -> vector<12x8x32xf32>
    %18 = vector.broadcast %12 : vector<12x1x32xf32> to vector<12x8x32xf32>
    %19 = arith.addf %17, %18 : vector<12x8x32xf32>
    %20 = vector.extract_strided_slice %19 {offsets = [0, 0, 0], sizes = [4, 8, 32], strides = [1, 1, 1]} : vector<12x8x32xf32> to vector<4x8x32xf32>
    %21 = vector.extract_strided_slice %19 {offsets = [4, 0, 0], sizes = [4, 8, 32], strides = [1, 1, 1]} : vector<12x8x32xf32> to vector<4x8x32xf32>
    %22 = vector.extract_strided_slice %19 {offsets = [8, 0, 0], sizes = [4, 8, 32], strides = [1, 1, 1]} : vector<12x8x32xf32> to vector<4x8x32xf32>
    %c0_13 = arith.constant 0 : index
    %c0_14 = arith.constant 0 : index
    %c0_15 = arith.constant 0 : index
    %c0_16 = arith.constant 0 : index
    %23 = vector.load %arg6[%c0_13, %c0_14, %c0_15, %c0_16] : memref<1x4x32x128xbf16, #tpu.memory_space<vmem>>, vector<1x4x32x128xbf16>
    %24 = vector.shape_cast %23 : vector<1x4x32x128xbf16> to vector<4x32x128xbf16>
    %c0_17 = arith.constant 0 : index
    %c0_18 = arith.constant 0 : index
    %c0_19 = arith.constant 0 : index
    %25 = vector.load %arg7[%c0_17, %c0_18, %c0_19] : memref<1x1x128xf32, #tpu.memory_space<vmem>>, vector<1x1x128xf32>
    %26 = vector.shape_cast %25 : vector<1x1x128xf32> to vector<1x128xf32>
    %cst_20 = arith.constant 0.176776692 : f32
    %27 = vector.broadcast %cst_20 : f32 to vector<4x8x32xf32>
    %28 = arith.mulf %20, %27 : vector<4x8x32xf32>
    %29 = arith.truncf %28 : vector<4x8x32xf32> to vector<4x8x32xbf16>
    %30 = arith.truncf %21 : vector<4x8x32xf32> to vector<4x8x32xbf16>
    %cst_21 = arith.constant dense<0.000000e+00> : vector<4x8x8xf32>
    %31 = tpu.matmul %29, %30, %cst_21 {dimension_numbers = #tpu.dot_dimension_numbers<[2], [2], [1], [1], [0, 0, 0, 1, 1, 1], [0], [0]>} : vector<4x8x32xbf16>, vector<4x8x32xbf16>, vector<4x8x8xf32> -> vector<4x8x8xf32>
    %32 = vector.shape_cast %8 : vector<8x8xi1> to vector<1x8x8xi1>
    %cst_22 = arith.constant -1.000000e+30 : f32
    %33 = vector.shape_cast %32 : vector<1x8x8xi1> to vector<1x8x8xi1>
    %34 = vector.broadcast %33 : vector<1x8x8xi1> to vector<4x8x8xi1>
    %35 = vector.broadcast %cst_22 : f32 to vector<4x8x8xf32>
    %36 = arith.select %34, %31, %35 : vector<4x8x8xi1>, vector<4x8x8xf32>
    %cst_23 = arith.constant dense<0xFF800000> : vector<4x8xf32>
    %37 = vector.multi_reduction <maximumf>, %36, %cst_23 [2] : vector<4x8x8xf32> to vector<4x8xf32>
    %38 = vector.shape_cast %37 : vector<4x8xf32> to vector<4x8x1xf32>
    %39 = vector.broadcast %38 : vector<4x8x1xf32> to vector<4x8x8xf32>
    %40 = arith.subf %36, %39 : vector<4x8x8xf32>
    %41 = math.exp %40 : vector<4x8x8xf32>
    %cst_24 = arith.constant dense<0.000000e+00> : vector<4x8xf32>
    %42 = vector.multi_reduction <add>, %41, %cst_24 [2] : vector<4x8x8xf32> to vector<4x8xf32>
    %43 = vector.shape_cast %42 : vector<4x8xf32> to vector<4x8x1xf32>
    %44 = tpu.reciprocal %43 {approx = true} : vector<4x8x1xf32> -> vector<4x8x1xf32>
    %45 = vector.broadcast %44 : vector<4x8x1xf32> to vector<4x8x8xf32>
    %46 = arith.mulf %41, %45 : vector<4x8x8xf32>
    %47 = arith.truncf %46 : vector<4x8x8xf32> to vector<4x8x8xbf16>
    %48 = arith.truncf %22 : vector<4x8x32xf32> to vector<4x8x32xbf16>
    %cst_25 = arith.constant dense<0.000000e+00> : vector<4x8x32xf32>
    %49 = tpu.matmul %47, %48, %cst_25 {dimension_numbers = #tpu.dot_dimension_numbers<[2], [1], [1], [2], [0, 0, 0, 1, 1, 2], [0], [0]>} : vector<4x8x8xbf16>, vector<4x8x32xbf16>, vector<4x8x32xf32> -> vector<4x8x32xf32>
    %cst_26 = arith.constant 0.000000e+00 : f32
    %50 = vector.broadcast %cst_26 : f32 to vector<8x128xf32>
    %51 = vector.extract_strided_slice %49 {offsets = [0, 0, 0], sizes = [1, 8, 32], strides = [1, 1, 1]} : vector<4x8x32xf32> to vector<1x8x32xf32>
    %52 = vector.shape_cast %51 : vector<1x8x32xf32> to vector<8x32xf32>
    %53 = arith.truncf %52 : vector<8x32xf32> to vector<8x32xbf16>
    %54 = vector.extract_strided_slice %24 {offsets = [0, 0, 0], sizes = [1, 32, 128], strides = [1, 1, 1]} : vector<4x32x128xbf16> to vector<1x32x128xbf16>
    %55 = vector.shape_cast %54 : vector<1x32x128xbf16> to vector<32x128xbf16>
    %cst_27 = arith.constant dense<0.000000e+00> : vector<8x128xf32>
    %56 = tpu.matmul %53, %55, %cst_27 {dimension_numbers = #tpu.dot_dimension_numbers<[1], [0], [0], [1], [0, 0, 1, 1], [], []>} : vector<8x32xbf16>, vector<32x128xbf16>, vector<8x128xf32> -> vector<8x128xf32>
    %57 = arith.addf %50, %56 : vector<8x128xf32>
    %58 = vector.extract_strided_slice %49 {offsets = [1, 0, 0], sizes = [1, 8, 32], strides = [1, 1, 1]} : vector<4x8x32xf32> to vector<1x8x32xf32>
    %59 = vector.shape_cast %58 : vector<1x8x32xf32> to vector<8x32xf32>
    %60 = arith.truncf %59 : vector<8x32xf32> to vector<8x32xbf16>
    %61 = vector.extract_strided_slice %24 {offsets = [1, 0, 0], sizes = [1, 32, 128], strides = [1, 1, 1]} : vector<4x32x128xbf16> to vector<1x32x128xbf16>
    %62 = vector.shape_cast %61 : vector<1x32x128xbf16> to vector<32x128xbf16>
    %cst_28 = arith.constant dense<0.000000e+00> : vector<8x128xf32>
    %63 = tpu.matmul %60, %62, %cst_28 {dimension_numbers = #tpu.dot_dimension_numbers<[1], [0], [0], [1], [0, 0, 1, 1], [], []>} : vector<8x32xbf16>, vector<32x128xbf16>, vector<8x128xf32> -> vector<8x128xf32>
    %64 = arith.addf %57, %63 : vector<8x128xf32>
    %65 = vector.extract_strided_slice %49 {offsets = [2, 0, 0], sizes = [1, 8, 32], strides = [1, 1, 1]} : vector<4x8x32xf32> to vector<1x8x32xf32>
    %66 = vector.shape_cast %65 : vector<1x8x32xf32> to vector<8x32xf32>
    %67 = arith.truncf %66 : vector<8x32xf32> to vector<8x32xbf16>
    %68 = vector.extract_strided_slice %24 {offsets = [2, 0, 0], sizes = [1, 32, 128], strides = [1, 1, 1]} : vector<4x32x128xbf16> to vector<1x32x128xbf16>
    %69 = vector.shape_cast %68 : vector<1x32x128xbf16> to vector<32x128xbf16>
    %cst_29 = arith.constant dense<0.000000e+00> : vector<8x128xf32>
    %70 = tpu.matmul %67, %69, %cst_29 {dimension_numbers = #tpu.dot_dimension_numbers<[1], [0], [0], [1], [0, 0, 1, 1], [], []>} : vector<8x32xbf16>, vector<32x128xbf16>, vector<8x128xf32> -> vector<8x128xf32>
    %71 = arith.addf %64, %70 : vector<8x128xf32>
    %72 = vector.extract_strided_slice %49 {offsets = [3, 0, 0], sizes = [1, 8, 32], strides = [1, 1, 1]} : vector<4x8x32xf32> to vector<1x8x32xf32>
    %73 = vector.shape_cast %72 : vector<1x8x32xf32> to vector<8x32xf32>
    %74 = arith.truncf %73 : vector<8x32xf32> to vector<8x32xbf16>
    %75 = vector.extract_strided_slice %24 {offsets = [3, 0, 0], sizes = [1, 32, 128], strides = [1, 1, 1]} : vector<4x32x128xbf16> to vector<1x32x128xbf16>
    %76 = vector.shape_cast %75 : vector<1x32x128xbf16> to vector<32x128xbf16>
    %cst_30 = arith.constant dense<0.000000e+00> : vector<8x128xf32>
    %77 = tpu.matmul %74, %76, %cst_30 {dimension_numbers = #tpu.dot_dimension_numbers<[1], [0], [0], [1], [0, 0, 1, 1], [], []>} : vector<8x32xbf16>, vector<32x128xbf16>, vector<8x128xf32> -> vector<8x128xf32>
    %78 = arith.addf %71, %77 : vector<8x128xf32>
    %79 = vector.broadcast %26 : vector<1x128xf32> to vector<8x128xf32>
    %80 = arith.addf %78, %79 : vector<8x128xf32>
    %81 = arith.addf %3, %80 : vector<8x128xf32>
    %c0_31 = arith.constant 0 : index
    %c0_32 = arith.constant 0 : index
    %c0_33 = arith.constant 0 : index
    %82 = vector.load %arg8[%c0_31, %c0_32, %c0_33] : memref<1x1x128xf32, #tpu.memory_space<vmem>>, vector<1x1x128xf32>
    %83 = vector.shape_cast %82 : vector<1x1x128xf32> to vector<1x128xf32>
    %c0_34 = arith.constant 0 : index
    %c0_35 = arith.constant 0 : index
    %c0_36 = arith.constant 0 : index
    %84 = vector.load %arg9[%c0_34, %c0_35, %c0_36] : memref<1x1x128xf32, #tpu.memory_space<vmem>>, vector<1x1x128xf32>
    %85 = vector.shape_cast %84 : vector<1x1x128xf32> to vector<1x128xf32>
    %cst_37 = arith.constant dense<0.000000e+00> : vector<8xf32>
    %86 = vector.multi_reduction <add>, %81, %cst_37 [1] : vector<8x128xf32> to vector<8xf32>
    %87 = vector.shape_cast %86 : vector<8xf32> to vector<8x1xf32>
    %cst_38 = arith.constant 1.280000e+02 : f32
    %88 = vector.broadcast %cst_38 : f32 to vector<8x1xf32>
    %89 = arith.divf %87, %88 : vector<8x1xf32>
    %90 = vector.broadcast %89 : vector<8x1xf32> to vector<8x128xf32>
    %91 = arith.subf %81, %90 : vector<8x128xf32>
    %92 = arith.mulf %91, %91 : vector<8x128xf32>
    %cst_39 = arith.constant dense<0.000000e+00> : vector<8xf32>
    %93 = vector.multi_reduction <add>, %92, %cst_39 [1] : vector<8x128xf32> to vector<8xf32>
    %94 = vector.shape_cast %93 : vector<8xf32> to vector<8x1xf32>
    %cst_40 = arith.constant 1.280000e+02 : f32
    %95 = vector.broadcast %cst_40 : f32 to vector<8x1xf32>
    %96 = arith.divf %94, %95 : vector<8x1xf32>
    %97 = vector.broadcast %89 : vector<8x1xf32> to vector<8x128xf32>
    %98 = arith.subf %81, %97 : vector<8x128xf32>
    %cst_41 = arith.constant 9.99999974E-6 : f32
    %99 = vector.broadcast %cst_41 : f32 to vector<8x1xf32>
    %100 = arith.addf %96, %99 : vector<8x1xf32>
    %101 = math.rsqrt %100 : vector<8x1xf32>
    %102 = vector.broadcast %101 : vector<8x1xf32> to vector<8x128xf32>
    %103 = arith.mulf %98, %102 : vector<8x128xf32>
    %104 = vector.broadcast %83 : vector<1x128xf32> to vector<8x128xf32>
    %105 = arith.mulf %103, %104 : vector<8x128xf32>
    %106 = vector.broadcast %85 : vector<1x128xf32> to vector<8x128xf32>
    %107 = arith.addf %105, %106 : vector<8x128xf32>
    %c0_42 = arith.constant 0 : index
    %c0_43 = arith.constant 0 : index
    %c0_44 = arith.constant 0 : index
    %c0_45 = arith.constant 0 : index
    %108 = vector.load %arg10[%c0_42, %c0_43, %c0_44, %c0_45] : memref<1x4x128x32xbf16, #tpu.memory_space<vmem>>, vector<1x4x128x32xbf16>
    %109 = vector.shape_cast %108 : vector<1x4x128x32xbf16> to vector<4x128x32xbf16>
    %c0_46 = arith.constant 0 : index
    %c0_47 = arith.constant 0 : index
    %c0_48 = arith.constant 0 : index
    %c0_49 = arith.constant 0 : index
    %110 = vector.load %arg11[%c0_46, %c0_47, %c0_48, %c0_49] : memref<1x4x1x32xf32, #tpu.memory_space<vmem>>, vector<1x4x1x32xf32>
    %111 = vector.shape_cast %110 : vector<1x4x1x32xf32> to vector<4x1x32xf32>
    %112 = arith.truncf %107 : vector<8x128xf32> to vector<8x128xbf16>
    %113 = vector.shape_cast %112 : vector<8x128xbf16> to vector<1x8x128xbf16>
    %114 = vector.shape_cast %113 : vector<1x8x128xbf16> to vector<1x8x128xbf16>
    %115 = vector.broadcast %114 : vector<1x8x128xbf16> to vector<4x8x128xbf16>
    %cst_50 = arith.constant dense<0.000000e+00> : vector<4x8x32xf32>
    %116 = tpu.matmul %115, %109, %cst_50 {dimension_numbers = #tpu.dot_dimension_numbers<[2], [1], [1], [2], [0, 0, 0, 1, 1, 2], [0], [0]>} : vector<4x8x128xbf16>, vector<4x128x32xbf16>, vector<4x8x32xf32> -> vector<4x8x32xf32>
    %117 = vector.broadcast %111 : vector<4x1x32xf32> to vector<4x8x32xf32>
    %118 = arith.addf %116, %117 : vector<4x8x32xf32>
    %c0_51 = arith.constant 0 : index
    %c0_52 = arith.constant 0 : index
    %c0_53 = arith.constant 0 : index
    %c0_54 = arith.constant 0 : index
    %119 = vector.load %arg12[%c0_51, %c0_52, %c0_53, %c0_54] : memref<1x8x128x32xbf16, #tpu.memory_space<vmem>>, vector<1x8x128x32xbf16>
    %120 = vector.shape_cast %119 : vector<1x8x128x32xbf16> to vector<8x128x32xbf16>
    %c0_55 = arith.constant 0 : index
    %c0_56 = arith.constant 0 : index
    %c0_57 = arith.constant 0 : index
    %c0_58 = arith.constant 0 : index
    %121 = vector.load %arg13[%c0_55, %c0_56, %c0_57, %c0_58] : memref<1x8x1x32xf32, #tpu.memory_space<vmem>>, vector<1x8x1x32xf32>
    %122 = vector.shape_cast %121 : vector<1x8x1x32xf32> to vector<8x1x32xf32>
    %123 = vector.shape_cast %5 : vector<8x128xbf16> to vector<1x8x128xbf16>
    %124 = vector.shape_cast %123 : vector<1x8x128xbf16> to vector<1x8x128xbf16>
    %125 = vector.broadcast %124 : vector<1x8x128xbf16> to vector<8x8x128xbf16>
    %cst_59 = arith.constant dense<0.000000e+00> : vector<8x8x32xf32>
    %126 = tpu.matmul %125, %120, %cst_59 {dimension_numbers = #tpu.dot_dimension_numbers<[2], [1], [1], [2], [0, 0, 0, 1, 1, 2], [0], [0]>} : vector<8x8x128xbf16>, vector<8x128x32xbf16>, vector<8x8x32xf32> -> vector<8x8x32xf32>
    %127 = vector.broadcast %122 : vector<8x1x32xf32> to vector<8x8x32xf32>
    %128 = arith.addf %126, %127 : vector<8x8x32xf32>
    %129 = vector.extract_strided_slice %128 {offsets = [0, 0, 0], sizes = [4, 8, 32], strides = [1, 1, 1]} : vector<8x8x32xf32> to vector<4x8x32xf32>
    %130 = vector.extract_strided_slice %128 {offsets = [4, 0, 0], sizes = [4, 8, 32], strides = [1, 1, 1]} : vector<8x8x32xf32> to vector<4x8x32xf32>
    %c0_60 = arith.constant 0 : index
    %c0_61 = arith.constant 0 : index
    %c0_62 = arith.constant 0 : index
    %c0_63 = arith.constant 0 : index
    %131 = vector.load %arg14[%c0_60, %c0_61, %c0_62, %c0_63] : memref<1x4x32x128xbf16, #tpu.memory_space<vmem>>, vector<1x4x32x128xbf16>
    %132 = vector.shape_cast %131 : vector<1x4x32x128xbf16> to vector<4x32x128xbf16>
    %c0_64 = arith.constant 0 : index
    %c0_65 = arith.constant 0 : index
    %c0_66 = arith.constant 0 : index
    %133 = vector.load %arg15[%c0_64, %c0_65, %c0_66] : memref<1x1x128xf32, #tpu.memory_space<vmem>>, vector<1x1x128xf32>
    %134 = vector.shape_cast %133 : vector<1x1x128xf32> to vector<1x128xf32>
    %cst_67 = arith.constant 0.176776692 : f32
    %135 = vector.broadcast %cst_67 : f32 to vector<4x8x32xf32>
    %136 = arith.mulf %118, %135 : vector<4x8x32xf32>
    %137 = arith.truncf %136 : vector<4x8x32xf32> to vector<4x8x32xbf16>
    %138 = arith.truncf %129 : vector<4x8x32xf32> to vector<4x8x32xbf16>
    %cst_68 = arith.constant dense<0.000000e+00> : vector<4x8x8xf32>
    %139 = tpu.matmul %137, %138, %cst_68 {dimension_numbers = #tpu.dot_dimension_numbers<[2], [2], [1], [1], [0, 0, 0, 1, 1, 1], [0], [0]>} : vector<4x8x32xbf16>, vector<4x8x32xbf16>, vector<4x8x8xf32> -> vector<4x8x8xf32>
    %cst_69 = arith.constant dense<0xFF800000> : vector<4x8xf32>
    %140 = vector.multi_reduction <maximumf>, %139, %cst_69 [2] : vector<4x8x8xf32> to vector<4x8xf32>
    %141 = vector.shape_cast %140 : vector<4x8xf32> to vector<4x8x1xf32>
    %142 = vector.broadcast %141 : vector<4x8x1xf32> to vector<4x8x8xf32>
    %143 = arith.subf %139, %142 : vector<4x8x8xf32>
    %144 = math.exp %143 : vector<4x8x8xf32>
    %cst_70 = arith.constant dense<0.000000e+00> : vector<4x8xf32>
    %145 = vector.multi_reduction <add>, %144, %cst_70 [2] : vector<4x8x8xf32> to vector<4x8xf32>
    %146 = vector.shape_cast %145 : vector<4x8xf32> to vector<4x8x1xf32>
    %147 = tpu.reciprocal %146 {approx = true} : vector<4x8x1xf32> -> vector<4x8x1xf32>
    %148 = vector.broadcast %147 : vector<4x8x1xf32> to vector<4x8x8xf32>
    %149 = arith.mulf %144, %148 : vector<4x8x8xf32>
    %150 = arith.truncf %149 : vector<4x8x8xf32> to vector<4x8x8xbf16>
    %151 = arith.truncf %130 : vector<4x8x32xf32> to vector<4x8x32xbf16>
    %cst_71 = arith.constant dense<0.000000e+00> : vector<4x8x32xf32>
    %152 = tpu.matmul %150, %151, %cst_71 {dimension_numbers = #tpu.dot_dimension_numbers<[2], [1], [1], [2], [0, 0, 0, 1, 1, 2], [0], [0]>} : vector<4x8x8xbf16>, vector<4x8x32xbf16>, vector<4x8x32xf32> -> vector<4x8x32xf32>
    %cst_72 = arith.constant 0.000000e+00 : f32
    %153 = vector.broadcast %cst_72 : f32 to vector<8x128xf32>
    %154 = vector.extract_strided_slice %152 {offsets = [0, 0, 0], sizes = [1, 8, 32], strides = [1, 1, 1]} : vector<4x8x32xf32> to vector<1x8x32xf32>
    %155 = vector.shape_cast %154 : vector<1x8x32xf32> to vector<8x32xf32>
    %156 = arith.truncf %155 : vector<8x32xf32> to vector<8x32xbf16>
    %157 = vector.extract_strided_slice %132 {offsets = [0, 0, 0], sizes = [1, 32, 128], strides = [1, 1, 1]} : vector<4x32x128xbf16> to vector<1x32x128xbf16>
    %158 = vector.shape_cast %157 : vector<1x32x128xbf16> to vector<32x128xbf16>
    %cst_73 = arith.constant dense<0.000000e+00> : vector<8x128xf32>
    %159 = tpu.matmul %156, %158, %cst_73 {dimension_numbers = #tpu.dot_dimension_numbers<[1], [0], [0], [1], [0, 0, 1, 1], [], []>} : vector<8x32xbf16>, vector<32x128xbf16>, vector<8x128xf32> -> vector<8x128xf32>
    %160 = arith.addf %153, %159 : vector<8x128xf32>
    %161 = vector.extract_strided_slice %152 {offsets = [1, 0, 0], sizes = [1, 8, 32], strides = [1, 1, 1]} : vector<4x8x32xf32> to vector<1x8x32xf32>
    %162 = vector.shape_cast %161 : vector<1x8x32xf32> to vector<8x32xf32>
    %163 = arith.truncf %162 : vector<8x32xf32> to vector<8x32xbf16>
    %164 = vector.extract_strided_slice %132 {offsets = [1, 0, 0], sizes = [1, 32, 128], strides = [1, 1, 1]} : vector<4x32x128xbf16> to vector<1x32x128xbf16>
    %165 = vector.shape_cast %164 : vector<1x32x128xbf16> to vector<32x128xbf16>
    %cst_74 = arith.constant dense<0.000000e+00> : vector<8x128xf32>
    %166 = tpu.matmul %163, %165, %cst_74 {dimension_numbers = #tpu.dot_dimension_numbers<[1], [0], [0], [1], [0, 0, 1, 1], [], []>} : vector<8x32xbf16>, vector<32x128xbf16>, vector<8x128xf32> -> vector<8x128xf32>
    %167 = arith.addf %160, %166 : vector<8x128xf32>
    %168 = vector.extract_strided_slice %152 {offsets = [2, 0, 0], sizes = [1, 8, 32], strides = [1, 1, 1]} : vector<4x8x32xf32> to vector<1x8x32xf32>
    %169 = vector.shape_cast %168 : vector<1x8x32xf32> to vector<8x32xf32>
    %170 = arith.truncf %169 : vector<8x32xf32> to vector<8x32xbf16>
    %171 = vector.extract_strided_slice %132 {offsets = [2, 0, 0], sizes = [1, 32, 128], strides = [1, 1, 1]} : vector<4x32x128xbf16> to vector<1x32x128xbf16>
    %172 = vector.shape_cast %171 : vector<1x32x128xbf16> to vector<32x128xbf16>
    %cst_75 = arith.constant dense<0.000000e+00> : vector<8x128xf32>
    %173 = tpu.matmul %170, %172, %cst_75 {dimension_numbers = #tpu.dot_dimension_numbers<[1], [0], [0], [1], [0, 0, 1, 1], [], []>} : vector<8x32xbf16>, vector<32x128xbf16>, vector<8x128xf32> -> vector<8x128xf32>
    %174 = arith.addf %167, %173 : vector<8x128xf32>
    %175 = vector.extract_strided_slice %152 {offsets = [3, 0, 0], sizes = [1, 8, 32], strides = [1, 1, 1]} : vector<4x8x32xf32> to vector<1x8x32xf32>
    %176 = vector.shape_cast %175 : vector<1x8x32xf32> to vector<8x32xf32>
    %177 = arith.truncf %176 : vector<8x32xf32> to vector<8x32xbf16>
    %178 = vector.extract_strided_slice %132 {offsets = [3, 0, 0], sizes = [1, 32, 128], strides = [1, 1, 1]} : vector<4x32x128xbf16> to vector<1x32x128xbf16>
    %179 = vector.shape_cast %178 : vector<1x32x128xbf16> to vector<32x128xbf16>
    %cst_76 = arith.constant dense<0.000000e+00> : vector<8x128xf32>
    %180 = tpu.matmul %177, %179, %cst_76 {dimension_numbers = #tpu.dot_dimension_numbers<[1], [0], [0], [1], [0, 0, 1, 1], [], []>} : vector<8x32xbf16>, vector<32x128xbf16>, vector<8x128xf32> -> vector<8x128xf32>
    %181 = arith.addf %174, %180 : vector<8x128xf32>
    %182 = vector.broadcast %134 : vector<1x128xf32> to vector<8x128xf32>
    %183 = arith.addf %181, %182 : vector<8x128xf32>
    %184 = arith.addf %107, %183 : vector<8x128xf32>
    %c0_77 = arith.constant 0 : index
    %c0_78 = arith.constant 0 : index
    %c0_79 = arith.constant 0 : index
    %185 = vector.load %arg16[%c0_77, %c0_78, %c0_79] : memref<1x1x128xf32, #tpu.memory_space<vmem>>, vector<1x1x128xf32>
    %186 = vector.shape_cast %185 : vector<1x1x128xf32> to vector<1x128xf32>
    %c0_80 = arith.constant 0 : index
    %c0_81 = arith.constant 0 : index
    %c0_82 = arith.constant 0 : index
    %187 = vector.load %arg17[%c0_80, %c0_81, %c0_82] : memref<1x1x128xf32, #tpu.memory_space<vmem>>, vector<1x1x128xf32>
    %188 = vector.shape_cast %187 : vector<1x1x128xf32> to vector<1x128xf32>
    %cst_83 = arith.constant dense<0.000000e+00> : vector<8xf32>
    %189 = vector.multi_reduction <add>, %184, %cst_83 [1] : vector<8x128xf32> to vector<8xf32>
    %190 = vector.shape_cast %189 : vector<8xf32> to vector<8x1xf32>
    %cst_84 = arith.constant 1.280000e+02 : f32
    %191 = vector.broadcast %cst_84 : f32 to vector<8x1xf32>
    %192 = arith.divf %190, %191 : vector<8x1xf32>
    %193 = vector.broadcast %192 : vector<8x1xf32> to vector<8x128xf32>
    %194 = arith.subf %184, %193 : vector<8x128xf32>
    %195 = arith.mulf %194, %194 : vector<8x128xf32>
    %cst_85 = arith.constant dense<0.000000e+00> : vector<8xf32>
    %196 = vector.multi_reduction <add>, %195, %cst_85 [1] : vector<8x128xf32> to vector<8xf32>
    %197 = vector.shape_cast %196 : vector<8xf32> to vector<8x1xf32>
    %cst_86 = arith.constant 1.280000e+02 : f32
    %198 = vector.broadcast %cst_86 : f32 to vector<8x1xf32>
    %199 = arith.divf %197, %198 : vector<8x1xf32>
    %200 = vector.broadcast %192 : vector<8x1xf32> to vector<8x128xf32>
    %201 = arith.subf %184, %200 : vector<8x128xf32>
    %cst_87 = arith.constant 9.99999974E-6 : f32
    %202 = vector.broadcast %cst_87 : f32 to vector<8x1xf32>
    %203 = arith.addf %199, %202 : vector<8x1xf32>
    %204 = math.rsqrt %203 : vector<8x1xf32>
    %205 = vector.broadcast %204 : vector<8x1xf32> to vector<8x128xf32>
    %206 = arith.mulf %201, %205 : vector<8x128xf32>
    %207 = vector.broadcast %186 : vector<1x128xf32> to vector<8x128xf32>
    %208 = arith.mulf %206, %207 : vector<8x128xf32>
    %209 = vector.broadcast %188 : vector<1x128xf32> to vector<8x128xf32>
    %210 = arith.addf %208, %209 : vector<8x128xf32>
    %c0_88 = arith.constant 0 : index
    %c0_89 = arith.constant 0 : index
    %c0_90 = arith.constant 0 : index
    %211 = vector.load %arg18[%c0_88, %c0_89, %c0_90] : memref<1x128x256xbf16, #tpu.memory_space<vmem>>, vector<1x128x256xbf16>
    %212 = vector.shape_cast %211 : vector<1x128x256xbf16> to vector<128x256xbf16>
    %c0_91 = arith.constant 0 : index
    %c0_92 = arith.constant 0 : index
    %c0_93 = arith.constant 0 : index
    %213 = vector.load %arg19[%c0_91, %c0_92, %c0_93] : memref<1x1x256xf32, #tpu.memory_space<vmem>>, vector<1x1x256xf32>
    %214 = vector.shape_cast %213 : vector<1x1x256xf32> to vector<1x256xf32>
    %c0_94 = arith.constant 0 : index
    %c0_95 = arith.constant 0 : index
    %c0_96 = arith.constant 0 : index
    %215 = vector.load %arg20[%c0_94, %c0_95, %c0_96] : memref<1x256x128xbf16, #tpu.memory_space<vmem>>, vector<1x256x128xbf16>
    %216 = vector.shape_cast %215 : vector<1x256x128xbf16> to vector<256x128xbf16>
    %c0_97 = arith.constant 0 : index
    %c0_98 = arith.constant 0 : index
    %c0_99 = arith.constant 0 : index
    %217 = vector.load %arg21[%c0_97, %c0_98, %c0_99] : memref<1x1x128xf32, #tpu.memory_space<vmem>>, vector<1x1x128xf32>
    %218 = vector.shape_cast %217 : vector<1x1x128xf32> to vector<1x128xf32>
    %219 = arith.truncf %210 : vector<8x128xf32> to vector<8x128xbf16>
    %cst_100 = arith.constant dense<0.000000e+00> : vector<8x256xf32>
    %220 = tpu.matmul %219, %212, %cst_100 {dimension_numbers = #tpu.dot_dimension_numbers<[1], [0], [0], [1], [0, 0, 1, 1], [], []>} : vector<8x128xbf16>, vector<128x256xbf16>, vector<8x256xf32> -> vector<8x256xf32>
    %221 = vector.broadcast %214 : vector<1x256xf32> to vector<8x256xf32>
    %222 = arith.addf %220, %221 : vector<8x256xf32>
    %cst_101 = arith.constant 0.000000e+00 : f32
    %223 = vector.broadcast %cst_101 : f32 to vector<8x256xf32>
    %224 = arith.maximumf %222, %223 : vector<8x256xf32>
    %225 = arith.truncf %224 : vector<8x256xf32> to vector<8x256xbf16>
    %cst_102 = arith.constant dense<0.000000e+00> : vector<8x128xf32>
    %226 = tpu.matmul %225, %216, %cst_102 {dimension_numbers = #tpu.dot_dimension_numbers<[1], [0], [0], [1], [0, 0, 1, 1], [], []>} : vector<8x256xbf16>, vector<256x128xbf16>, vector<8x128xf32> -> vector<8x128xf32>
    %227 = vector.broadcast %218 : vector<1x128xf32> to vector<8x128xf32>
    %228 = arith.addf %226, %227 : vector<8x128xf32>
    %229 = arith.addf %210, %228 : vector<8x128xf32>
    %c0_103 = arith.constant 0 : index
    %c0_104 = arith.constant 0 : index
    %c0_105 = arith.constant 0 : index
    %230 = vector.load %arg22[%c0_103, %c0_104, %c0_105] : memref<1x1x128xf32, #tpu.memory_space<vmem>>, vector<1x1x128xf32>
    %231 = vector.shape_cast %230 : vector<1x1x128xf32> to vector<1x128xf32>
    %c0_106 = arith.constant 0 : index
    %c0_107 = arith.constant 0 : index
    %c0_108 = arith.constant 0 : index
    %232 = vector.load %arg23[%c0_106, %c0_107, %c0_108] : memref<1x1x128xf32, #tpu.memory_space<vmem>>, vector<1x1x128xf32>
    %233 = vector.shape_cast %232 : vector<1x1x128xf32> to vector<1x128xf32>
    %cst_109 = arith.constant dense<0.000000e+00> : vector<8xf32>
    %234 = vector.multi_reduction <add>, %229, %cst_109 [1] : vector<8x128xf32> to vector<8xf32>
    %235 = vector.shape_cast %234 : vector<8xf32> to vector<8x1xf32>
    %cst_110 = arith.constant 1.280000e+02 : f32
    %236 = vector.broadcast %cst_110 : f32 to vector<8x1xf32>
    %237 = arith.divf %235, %236 : vector<8x1xf32>
    %238 = vector.broadcast %237 : vector<8x1xf32> to vector<8x128xf32>
    %239 = arith.subf %229, %238 : vector<8x128xf32>
    %240 = arith.mulf %239, %239 : vector<8x128xf32>
    %cst_111 = arith.constant dense<0.000000e+00> : vector<8xf32>
    %241 = vector.multi_reduction <add>, %240, %cst_111 [1] : vector<8x128xf32> to vector<8xf32>
    %242 = vector.shape_cast %241 : vector<8xf32> to vector<8x1xf32>
    %cst_112 = arith.constant 1.280000e+02 : f32
    %243 = vector.broadcast %cst_112 : f32 to vector<8x1xf32>
    %244 = arith.divf %242, %243 : vector<8x1xf32>
    %245 = vector.broadcast %237 : vector<8x1xf32> to vector<8x128xf32>
    %246 = arith.subf %229, %245 : vector<8x128xf32>
    %cst_113 = arith.constant 9.99999974E-6 : f32
    %247 = vector.broadcast %cst_113 : f32 to vector<8x1xf32>
    %248 = arith.addf %244, %247 : vector<8x1xf32>
    %249 = math.rsqrt %248 : vector<8x1xf32>
    %250 = vector.broadcast %249 : vector<8x1xf32> to vector<8x128xf32>
    %251 = arith.mulf %246, %250 : vector<8x128xf32>
    %252 = vector.broadcast %231 : vector<1x128xf32> to vector<8x128xf32>
    %253 = arith.mulf %251, %252 : vector<8x128xf32>
    %254 = vector.broadcast %233 : vector<1x128xf32> to vector<8x128xf32>
    %255 = arith.addf %253, %254 : vector<8x128xf32>
    %c0_114 = arith.constant 0 : index
    %c0_115 = arith.constant 0 : index
    %256 = vector.load %arg27[%c0_114, %c0_115] : memref<8x128xf32, #tpu.memory_space<vmem>>, vector<8x128xf32>
    tpu.vector_store %arg27[%c0_114, %c0_115], %255 {strides = array<i32>} : memref<8x128xf32, #tpu.memory_space<vmem>>, vector<8x128xf32>,
    %c1_i32 = arith.constant 1 : i32
    %257 = arith.cmpi eq, %arg1, %c1_i32 : i32
    %258 = arith.extui %257 : i1 to i32
    %c0_i32_116 = arith.constant 0 : i32
    %259 = arith.cmpi ne, %258, %c0_i32_116 : i32
    scf.if %259 {
      %c0_117 = arith.constant 0 : index
      %c0_118 = arith.constant 0 : index
      %260 = vector.load %arg24[%c0_117, %c0_118] : memref<1x128xf32, #tpu.memory_space<vmem>>, vector<1x128xf32>
      %c0_119 = arith.constant 0 : index
      %c0_120 = arith.constant 0 : index
      %261 = vector.load %arg25[%c0_119, %c0_120] : memref<1x128xf32, #tpu.memory_space<vmem>>, vector<1x128xf32>
      %cst_121 = arith.constant dense<0.000000e+00> : vector<8xf32>
      %262 = vector.multi_reduction <add>, %255, %cst_121 [1] : vector<8x128xf32> to vector<8xf32>
      %263 = vector.shape_cast %262 : vector<8xf32> to vector<8x1xf32>
      %cst_122 = arith.constant 1.280000e+02 : f32
      %264 = vector.broadcast %cst_122 : f32 to vector<8x1xf32>
      %265 = arith.divf %263, %264 : vector<8x1xf32>
      %266 = vector.broadcast %265 : vector<8x1xf32> to vector<8x128xf32>
      %267 = arith.subf %255, %266 : vector<8x128xf32>
      %268 = arith.mulf %267, %267 : vector<8x128xf32>
      %cst_123 = arith.constant dense<0.000000e+00> : vector<8xf32>
      %269 = vector.multi_reduction <add>, %268, %cst_123 [1] : vector<8x128xf32> to vector<8xf32>
      %270 = vector.shape_cast %269 : vector<8xf32> to vector<8x1xf32>
      %cst_124 = arith.constant 1.280000e+02 : f32
      %271 = vector.broadcast %cst_124 : f32 to vector<8x1xf32>
      %272 = arith.divf %270, %271 : vector<8x1xf32>
      %273 = vector.broadcast %265 : vector<8x1xf32> to vector<8x128xf32>
      %274 = arith.subf %255, %273 : vector<8x128xf32>
      %cst_125 = arith.constant 9.99999974E-6 : f32
      %275 = vector.broadcast %cst_125 : f32 to vector<8x1xf32>
      %276 = arith.addf %272, %275 : vector<8x1xf32>
      %277 = math.rsqrt %276 : vector<8x1xf32>
      %278 = vector.broadcast %277 : vector<8x1xf32> to vector<8x128xf32>
      %279 = arith.mulf %274, %278 : vector<8x128xf32>
      %280 = vector.broadcast %260 : vector<1x128xf32> to vector<8x128xf32>
      %281 = arith.mulf %279, %280 : vector<8x128xf32>
      %282 = vector.broadcast %261 : vector<1x128xf32> to vector<8x128xf32>
      %283 = arith.addf %281, %282 : vector<8x128xf32>
      %284 = vector.shape_cast %283 : vector<8x128xf32> to vector<1x8x128xf32>
      %285 = arith.truncf %284 : vector<1x8x128xf32> to vector<1x8x128xbf16>
      %c0_126 = arith.constant 0 : index
      %c0_127 = arith.constant 0 : index
      %c0_128 = arith.constant 0 : index
      %286 = vector.load %arg26[%c0_126, %c0_127, %c0_128] : memref<1x8x128xbf16, #tpu.memory_space<vmem>>, vector<1x8x128xbf16>
      tpu.vector_store %arg26[%c0_126, %c0_127, %c0_128], %285 {strides = array<i32>} : memref<1x8x128xbf16, #tpu.memory_space<vmem>>, vector<1x8x128xbf16>,
    } else {
    }
    return
  }
  func.func @transform_0(%arg0: i32, %arg1: i32) -> (i32, i32, i32) {
    %c0_i32 = arith.constant 0 : i32
    %c0_i32_0 = arith.constant 0 : i32
    %c0_i32_1 = arith.constant 0 : i32
    return %arg0, %c0_i32, %c0_i32_0 : i32, i32, i32
  }
  func.func @transform_1(%arg0: i32, %arg1: i32) -> (i32, i32, i32) {
    %c0_i32 = arith.constant 0 : i32
    %c0_i32_0 = arith.constant 0 : i32
    %c0_i32_1 = arith.constant 0 : i32
    return %arg0, %c0_i32, %c0_i32_0 : i32, i32, i32
  }
  func.func @transform_2(%arg0: i32, %arg1: i32) -> (i32, i32, i32, i32) {
    %c0_i32 = arith.constant 0 : i32
    %c0_i32_0 = arith.constant 0 : i32
    %c0_i32_1 = arith.constant 0 : i32
    %c0_i32_2 = arith.constant 0 : i32
    return %arg1, %c0_i32, %c0_i32_0, %c0_i32_1 : i32, i32, i32, i32
  }
  func.func @transform_3(%arg0: i32, %arg1: i32) -> (i32, i32, i32, i32) {
    %c0_i32 = arith.constant 0 : i32
    %c0_i32_0 = arith.constant 0 : i32
    %c0_i32_1 = arith.constant 0 : i32
    %c0_i32_2 = arith.constant 0 : i32
    return %arg1, %c0_i32, %c0_i32_0, %c0_i32_1 : i32, i32, i32, i32
  }
  func.func @transform_4(%arg0: i32, %arg1: i32) -> (i32, i32, i32, i32) {
    %c0_i32 = arith.constant 0 : i32
    %c0_i32_0 = arith.constant 0 : i32
    %c0_i32_1 = arith.constant 0 : i32
    %c0_i32_2 = arith.constant 0 : i32
    return %arg1, %c0_i32, %c0_i32_0, %c0_i32_1 : i32, i32, i32, i32
  }
  func.func @transform_5(%arg0: i32, %arg1: i32) -> (i32, i32, i32) {
    %c0_i32 = arith.constant 0 : i32
    %c0_i32_0 = arith.constant 0 : i32
    %c0_i32_1 = arith.constant 0 : i32
    return %arg1, %c0_i32, %c0_i32_0 : i32, i32, i32
  }
  func.func @transform_6(%arg0: i32, %arg1: i32) -> (i32, i32, i32) {
    %c0_i32 = arith.constant 0 : i32
    %c0_i32_0 = arith.constant 0 : i32
    %c0_i32_1 = arith.constant 0 : i32
    return %arg1, %c0_i32, %c0_i32_0 : i32, i32, i32
  }
  func.func @transform_7(%arg0: i32, %arg1: i32) -> (i32, i32, i32) {
    %c0_i32 = arith.constant 0 : i32
    %c0_i32_0 = arith.constant 0 : i32
    %c0_i32_1 = arith.constant 0 : i32
    return %arg1, %c0_i32, %c0_i32_0 : i32, i32, i32
  }
  func.func @transform_8(%arg0: i32, %arg1: i32) -> (i32, i32, i32, i32) {
    %c0_i32 = arith.constant 0 : i32
    %c0_i32_0 = arith.constant 0 : i32
    %c0_i32_1 = arith.constant 0 : i32
    %c0_i32_2 = arith.constant 0 : i32
    return %arg1, %c0_i32, %c0_i32_0, %c0_i32_1 : i32, i32, i32, i32
  }
  func.func @transform_9(%arg0: i32, %arg1: i32) -> (i32, i32, i32, i32) {
    %c0_i32 = arith.constant 0 : i32
    %c0_i32_0 = arith.constant 0 : i32
    %c0_i32_1 = arith.constant 0 : i32
    %c0_i32_2 = arith.constant 0 : i32
    return %arg1, %c0_i32, %c0_i32_0, %c0_i32_1 : i32, i32, i32, i32
  }
  func.func @transform_10(%arg0: i32, %arg1: i32) -> (i32, i32, i32, i32) {
    %c0_i32 = arith.constant 0 : i32
    %c0_i32_0 = arith.constant 0 : i32
    %c0_i32_1 = arith.constant 0 : i32
    %c0_i32_2 = arith.constant 0 : i32
    return %arg1, %c0_i32, %c0_i32_0, %c0_i32_1 : i32, i32, i32, i32
  }
  func.func @transform_11(%arg0: i32, %arg1: i32) -> (i32, i32, i32, i32) {
    %c0_i32 = arith.constant 0 : i32
    %c0_i32_0 = arith.constant 0 : i32
    %c0_i32_1 = arith.constant 0 : i32
    %c0_i32_2 = arith.constant 0 : i32
    return %arg1, %c0_i32, %c0_i32_0, %c0_i32_1 : i32, i32, i32, i32
  }
  func.func @transform_12(%arg0: i32, %arg1: i32) -> (i32, i32, i32, i32) {
    %c0_i32 = arith.constant 0 : i32
    %c0_i32_0 = arith.constant 0 : i32
    %c0_i32_1 = arith.constant 0 : i32
    %c0_i32_2 = arith.constant 0 : i32
    return %arg1, %c0_i32, %c0_i32_0, %c0_i32_1 : i32, i32, i32, i32
  }
  func.func @transform_13(%arg0: i32, %arg1: i32) -> (i32, i32, i32) {
    %c0_i32 = arith.constant 0 : i32
    %c0_i32_0 = arith.constant 0 : i32
    %c0_i32_1 = arith.constant 0 : i32
    return %arg1, %c0_i32, %c0_i32_0 : i32, i32, i32
  }
  func.func @transform_14(%arg0: i32, %arg1: i32) -> (i32, i32, i32) {
    %c0_i32 = arith.constant 0 : i32
    %c0_i32_0 = arith.constant 0 : i32
    %c0_i32_1 = arith.constant 0 : i32
    return %arg1, %c0_i32, %c0_i32_0 : i32, i32, i32
  }
  func.func @transform_15(%arg0: i32, %arg1: i32) -> (i32, i32, i32) {
    %c0_i32 = arith.constant 0 : i32
    %c0_i32_0 = arith.constant 0 : i32
    %c0_i32_1 = arith.constant 0 : i32
    return %arg1, %c0_i32, %c0_i32_0 : i32, i32, i32
  }
  func.func @transform_16(%arg0: i32, %arg1: i32) -> (i32, i32, i32) {
    %c0_i32 = arith.constant 0 : i32
    %c0_i32_0 = arith.constant 0 : i32
    %c0_i32_1 = arith.constant 0 : i32
    return %arg1, %c0_i32, %c0_i32_0 : i32, i32, i32
  }
  func.func @transform_17(%arg0: i32, %arg1: i32) -> (i32, i32, i32) {
    %c0_i32 = arith.constant 0 : i32
    %c0_i32_0 = arith.constant 0 : i32
    %c0_i32_1 = arith.constant 0 : i32
    return %arg1, %c0_i32, %c0_i32_0 : i32, i32, i32
  }
  func.func @transform_18(%arg0: i32, %arg1: i32) -> (i32, i32, i32) {
    %c0_i32 = arith.constant 0 : i32
    %c0_i32_0 = arith.constant 0 : i32
    %c0_i32_1 = arith.constant 0 : i32
    return %arg1, %c0_i32, %c0_i32_0 : i32, i32, i32
  }
  func.func @transform_19(%arg0: i32, %arg1: i32) -> (i32, i32, i32) {
    %c0_i32 = arith.constant 0 : i32
    %c0_i32_0 = arith.constant 0 : i32
    %c0_i32_1 = arith.constant 0 : i32
    return %arg1, %c0_i32, %c0_i32_0 : i32, i32, i32
  }
  func.func @transform_20(%arg0: i32, %arg1: i32) -> (i32, i32, i32) {
    %c0_i32 = arith.constant 0 : i32
    %c0_i32_0 = arith.constant 0 : i32
    %c0_i32_1 = arith.constant 0 : i32
    return %arg1, %c0_i32, %c0_i32_0 : i32, i32, i32
  }
  func.func @transform_21(%arg0: i32, %arg1: i32) -> (i32, i32, i32) {
    %c0_i32 = arith.constant 0 : i32
    %c0_i32_0 = arith.constant 0 : i32
    %c0_i32_1 = arith.constant 0 : i32
    return %arg1, %c0_i32, %c0_i32_0 : i32, i32, i32
  }
  func.func @transform_22(%arg0: i32, %arg1: i32) -> (i32, i32) {
    %c0_i32 = arith.constant 0 : i32
    %c0_i32_0 = arith.constant 0 : i32
    %c0_i32_1 = arith.constant 0 : i32
    return %c0_i32, %c0_i32_0 : i32, i32
  }
  func.func @transform_23(%arg0: i32, %arg1: i32) -> (i32, i32) {
    %c0_i32 = arith.constant 0 : i32
    %c0_i32_0 = arith.constant 0 : i32
    %c0_i32_1 = arith.constant 0 : i32
    return %c0_i32, %c0_i32_0 : i32, i32
  }
  func.func @transform_24(%arg0: i32, %arg1: i32) -> (i32, i32, i32) {
    %c0_i32 = arith.constant 0 : i32
    %c0_i32_0 = arith.constant 0 : i32
    %c0_i32_1 = arith.constant 0 : i32
    return %arg0, %c0_i32, %c0_i32_0 : i32, i32, i32
  }
}

</mosaic_0001>

<llo_original>
// kernel: translation_transformer_forward.5
$region0: #{translation_transformer_forward.5}
  #allocation0 [shape = 'u32[]', space=smem, size = 0x4, offset = 0x4, fixed_abs, tag = 'smem constant byte address 0x4 - core index']
  #allocation1 [shape = 'u32[72,128]{1,0:T(1,128)}', space=vmem, size = 0x9000, scoped, tag = 'internal scratch']
  %s0 = inlined_call_operand.vmem [shape: bf16[2,8,128], index: 0, kind: input, shape index: {}]
  %s1 = inlined_call_operand.vmem [shape: bf16[128,256], index: 1, kind: input, shape index: {}]
  %s2 = inlined_call_operand.vmem [shape: f32[1,256], index: 2, kind: input, shape index: {}]
  %s3 = inlined_call_operand.hbm [shape: f32[2,8,256], index: 3, kind: output, shape index: {}]
  %s4 = sld [smem:[#allocation0]]
  $region45: #{translation_transformer_forward.5} parent=0
    _
  %s6 = ssub.s32 1, %s4
  %s7 = scalar_select 0, %s6, %s4
  $region1: #{translation_transformer_forward.5} parent=0
    #allocation2 [shape = 'u8[16384]{0}', space=vmem, size = 0x4000, scoped, tag = 'output window, operand 0']
    #allocation3 [shape = 's32[2]{0}', space=sflag, size = 0x8, scoped, tag = 'scoped memory for translation_transformer_forward.5']
    %8 = vsyncpa [#allocation3], 0
    %s9 = scalar_lea.sflag [#allocation3], 1
    %10 = vsyncpa %s9, 0
    loop: start=0, step=1, limit=4
    $region2: #{translation_transformer_forward.5} parent=1 // loop_pre_header
      _
    $region3: #{translation_transformer_forward.5} parent=1 // loop_header
      %s12 = sphi 0, %s16
      %p13 = scmp.ge.s32.totalorder %s12, 4
      %s19 = sphi 0, %s31
      %s20 = sphi 0, %s27
      %s21 = sphi 0, %s19
      %s22 = sphi 0, %s20
      %s23 = sphi 0, %s21
      %s24 = sphi 0, %s22
      %s34 = sphi 0, %s36
      %s37 = sphi 0, %s34
      %s38 = sphi 0, %s37
      %s54 = sphi 0, %s38
      %s60 = sphi 0, %s62
      %s63 = sphi 0, %s60
      %s64 = sphi 0, %s63
      %s80 = sphi 0, %s64
      %s86 = sphi 0, %s88
      %s89 = sphi 0, %s86
      %s90 = sphi 0, %s89
      %s106 = sphi 0, %s90
      %s114 = sphi 0, %s116
      %s117 = sphi 0, %s114
      %s118 = sphi 0, %s117
      %s134 = sphi 0, %s118
    $region4: #{translation_transformer_forward.5} parent=1 // loop_header_branch
      %15 = sbr.rel (%p13) target = $region8
    $region5: #{translation_transformer_forward.5} parent=1 // loop_body
      %s17 = ssub.s32 %s12, 1
      %s18 = ssub.s32 %s12, 2
      %s25 = sadd.s32 1, %s20
      %p26 = scmp.ge.s32.totalorder %s25, 2
      %s27 = scalar_select %p26, 0, %s25
      %s28 = sadd.s32 1, %s19
      %s29 = scalar_select %p26, %s28, %s19
      %p30 = scmp.ge.s32.totalorder %s29, 1
      %s31 = scalar_select %p30, 0, %s29
      %s32 = ssub.s32 %s20, %s27
      %p33 = scmp.eq.s32.totalorder %s32, 0
      %s35 = sadd.s32 %s34, 1
      %s36 = scalar_select %p33, %s34, %s35
      %p39 = pneg %p33
      %p40 = scmp.eq.s32.totalorder %s12, 1
      %p41 = por %p39, %p40
      %p42 = scmp.ne.s32.totalorder %s34, %s37
      %p43 = scmp.eq.s32.totalorder %s12, 0
      %p44 = por %p42, %p43
      %p45 = scmp.ne.s32.totalorder %s34, %s37
      %p46 = scmp.eq.s32.totalorder %s17, 1
      %p47 = por %p45, %p46
      %p48 = scmp.ne.s32.totalorder %s37, %s38
      %p49 = scmp.eq.s32.totalorder %s17, 0
      %p50 = por %p48, %p49
      %p51 = scmp.ne.s32.totalorder %s37, %s38
      %p52 = scmp.eq.s32.totalorder %s18, 1
      %p53 = por %p51, %p52
      %p55 = scmp.ne.s32.totalorder %s38, %s54
      %p56 = scmp.eq.s32.totalorder %s18, 0
      %p57 = por %p55, %p56
      %s58 = ssub.s32 %s19, %s31
      %p59 = scmp.eq.s32.totalorder %s58, 0
      %s61 = sadd.s32 %s60, 1
      %s62 = scalar_select %p59, %s60, %s61
      %p65 = pneg %p59
      %p66 = scmp.eq.s32.totalorder %s12, 1
      %p67 = por %p65, %p66
      %p68 = scmp.ne.s32.totalorder %s60, %s63
      %p69 = scmp.eq.s32.totalorder %s12, 0
      %p70 = por %p68, %p69
      %p71 = scmp.ne.s32.totalorder %s60, %s63
      %p72 = scmp.eq.s32.totalorder %s17, 1
      %p73 = por %p71, %p72
      %p74 = scmp.ne.s32.totalorder %s63, %s64
      %p75 = scmp.eq.s32.totalorder %s17, 0
      %p76 = por %p74, %p75
      %p77 = scmp.ne.s32.totalorder %s63, %s64
      %p78 = scmp.eq.s32.totalorder %s18, 1
      %p79 = por %p77, %p78
      %p81 = scmp.ne.s32.totalorder %s64, %s80
      %p82 = scmp.eq.s32.totalorder %s18, 0
      %p83 = por %p81, %p82
      %s84 = ssub.s32 %s19, %s31
      %p85 = scmp.eq.s32.totalorder %s84, 0
      %s87 = sadd.s32 %s86, 1
      %s88 = scalar_select %p85, %s86, %s87
      %p91 = pneg %p85
      %p92 = scmp.eq.s32.totalorder %s12, 1
      %p93 = por %p91, %p92
      %p94 = scmp.ne.s32.totalorder %s86, %s89
      %p95 = scmp.eq.s32.totalorder %s12, 0
      %p96 = por %p94, %p95
      %p97 = scmp.ne.s32.totalorder %s86, %s89
      %p98 = scmp.eq.s32.totalorder %s17, 1
      %p99 = por %p97, %p98
      %p100 = scmp.ne.s32.totalorder %s89, %s90
      %p101 = scmp.eq.s32.totalorder %s17, 0
      %p102 = por %p100, %p101
      %p103 = scmp.ne.s32.totalorder %s89, %s90
      %p104 = scmp.eq.s32.totalorder %s18, 1
      %p105 = por %p103, %p104
      %p107 = scmp.ne.s32.totalorder %s90, %s106
      %p108 = scmp.eq.s32.totalorder %s18, 0
      %p109 = por %p107, %p108
      %s110 = ssub.s32 %s20, %s27
      %s111 = ssub.s32 %s19, %s31
      %s112 = sor.u32 %s110, %s111
      %p113 = scmp.eq.s32.totalorder %s112, 0
      %s115 = sadd.s32 %s114, 1
      %s116 = scalar_select %p113, %s114, %s115
      %p119 = pneg %p113
      %p120 = scmp.eq.s32.totalorder %s12, 1
      %p121 = por %p119, %p120
      %p122 = scmp.ne.s32.totalorder %s114, %s117
      %p123 = scmp.eq.s32.totalorder %s12, 0
      %p124 = por %p122, %p123
      %p125 = scmp.ne.s32.totalorder %s114, %s117
      %p126 = scmp.eq.s32.totalorder %s17, 1
      %p127 = por %p125, %p126
      %p128 = scmp.ne.s32.totalorder %s117, %s118
      %p129 = scmp.eq.s32.totalorder %s17, 0
      %p130 = por %p128, %p129
      %p131 = scmp.ne.s32.totalorder %s117, %s118
      %p132 = scmp.eq.s32.totalorder %s18, 1
      %p133 = por %p131, %p132
      %p135 = scmp.ne.s32.totalorder %s118, %s134
      %p136 = scmp.eq.s32.totalorder %s18, 0
      %p137 = por %p135, %p136
      %p138 = scmp.le.s32.totalorder 1, %s12
      %p139 = scmp.lt.s32.totalorder %s12, 3
      %p140 = pnand %p138, %p139
      %p141 = pneg %p140
      // Predicated region
      $region9: #{translation_transformer_forward.5} parent=5 // pred_check
        _
      $region10: #{translation_transformer_forward.5} parent=5 // pred_check_branch
        %143 = sbr.rel (%p140) target = $region12
      $region11: #{translation_transformer_forward.5} parent=5 // pred_region
        %s144 = ssub.s32 %s12, 1
        // Predicated region
        $region13: #{translation_transformer_forward.5} parent=11 // pred_check
          %p145 = pneg %p76
        $region14: #{translation_transformer_forward.5} parent=11 // pred_check_branch
          %147 = sbr.rel (%p145) target = $region16
        $region15: #{translation_transformer_forward.5} parent=11 // pred_region
          %s148 = smul.u32 2, %s21
          %p149 = scmp.lt.s32.totalorder %s148, 1
          %s150 = scalar_select %p149, %s148, 1
          %s151 = smul.addr %s150, 4
          %s152 = scalar_lea.vmem %s1, %s151
          %s153 = smul.u32 2, %s21
        $region16: #{translation_transformer_forward.5} parent=11 // pred_fallthru
          _
        // Predicated region
        $region17: #{translation_transformer_forward.5} parent=11 // pred_check
          %p154 = pneg %p102
        $region18: #{translation_transformer_forward.5} parent=11 // pred_check_branch
          %156 = sbr.rel (%p154) target = $region20
        $region19: #{translation_transformer_forward.5} parent=11 // pred_region
          %s157 = smul.u32 2, %s21
          %p158 = scmp.lt.s32.totalorder %s157, 1
          %s159 = scalar_select %p158, %s157, 1
          %s160 = scalar_lea.vmem %s2, %s159
          %s161 = smul.u32 2, %s21
        $region20: #{translation_transformer_forward.5} parent=11 // pred_fallthru
          _
      $region12: #{translation_transformer_forward.5} parent=5 // pred_fallthru
        _
      %p162 = scmp.lt.s32.totalorder %s12, 2
      // Predicated region
      $region21: #{translation_transformer_forward.5} parent=5 // pred_check
        %p163 = pneg %p162
      $region22: #{translation_transformer_forward.5} parent=5 // pred_check_branch
        %165 = sbr.rel (%p163) target = $region24
      $region23: #{translation_transformer_forward.5} parent=5 // pred_region
        // Predicated region
        $region25: #{translation_transformer_forward.5} parent=23 // pred_check
          %p166 = pneg %p44
        $region26: #{translation_transformer_forward.5} parent=23 // pred_check_branch
          %168 = sbr.rel (%p166) target = $region28
        $region27: #{translation_transformer_forward.5} parent=23 // pred_region
          %p169 = scmp.lt.s32.totalorder %s20, 1
          %s170 = scalar_select %p169, %s20, 1
          %s171 = smul.addr %s170, 4
          %s172 = scalar_lea.vmem %s0, %s171
        $region28: #{translation_transformer_forward.5} parent=23 // pred_fallthru
          _
      $region24: #{translation_transformer_forward.5} parent=5 // pred_fallthru
        _
      %p173 = scmp.le.s32.totalorder 1, %s12
      %p174 = scmp.lt.s32.totalorder %s12, 3
      %p175 = pnand %p173, %p174
      %p176 = pneg %p175
      // Predicated region
      $region29: #{translation_transformer_forward.5} parent=5 // pred_check
        _
      $region30: #{translation_transformer_forward.5} parent=5 // pred_check_branch
        %178 = sbr.rel (%p175) target = $region32
      $region31: #{translation_transformer_forward.5} parent=5 // pred_region
        %s179 = ssub.s32 %s12, 1
        %p180 = scmp.lt.s32.totalorder %s22, 1
        %s181 = scalar_select %p180, %s22, 1
        %s182 = smul.addr %s181, 4
        %s183 = scalar_lea.vmem %s0, %s182
        %p184 = pneg %p50
        %p185 = pneg %p47
        %s186 = smul.u32 2, %s21
        %p187 = scmp.lt.s32.totalorder %s186, 1
        %s188 = scalar_select %p187, %s186, 1
        %s189 = smul.addr %s188, 4
        %s190 = scalar_lea.vmem %s1, %s189
        %p191 = pneg %p76
        %p192 = pneg %p73
        %s193 = smul.u32 2, %s21
        %p194 = scmp.lt.s32.totalorder %s193, 1
        %s195 = scalar_select %p194, %s193, 1
        %s196 = scalar_lea.vmem %s2, %s195
        %p197 = pneg %p102
        %p198 = pneg %p99
        %p199 = pneg %p130
        %p200 = pneg %p127
        %s201 = sand.u32 %s117, 1
        %s202 = scalar_lea.sflag [#allocation3], %s201
        %s203 = sand.u32 %s117, 1
        %s204 = smul.addr %s203, 16
        %s205 = scalar_lea.vmem [#allocation2], %s204
        %p206 = scmp.lt.s32.totalorder %s22, 1
        %s207 = scalar_select %p206, %s22, 1
        %s208 = smul.addr %s207, 4
        %s209 = scalar_lea.vmem %s0, %s208
        %s210 = smul.u32 2, %s21
        %p211 = scmp.lt.s32.totalorder %s210, 1
        %s212 = scalar_select %p211, %s210, 1
        %s213 = smul.addr %s212, 4
        %s214 = scalar_lea.vmem %s1, %s213
        %s215 = smul.u32 2, %s21
        %s216 = smul.u32 2, %s21
        %p217 = scmp.lt.s32.totalorder %s216, 1
        %s218 = scalar_select %p217, %s216, 1
        %s219 = scalar_lea.vmem %s2, %s218
        %s220 = smul.u32 2, %s21
        %s221 = smul.u32 2, %s21
        %v222 = vld [vmem:[%s209] sm:$0xf]
        %v223 = vld [vmem:[%s214] sm:$0xff]
        %v224 = vld [vmem:[%s214 + $0x8] sm:$0xff]
        %v225 = vld [vmem:[%s214 + $0x10] sm:$0xff]
        %v226 = vld [vmem:[%s214 + $0x18] sm:$0xff]
        %v227 = vld [vmem:[%s214 + $0x20] sm:$0xff]
        %v228 = vld [vmem:[%s214 + $0x28] sm:$0xff]
        %v229 = vld [vmem:[%s214 + $0x30] sm:$0xff]
        %v230 = vld [vmem:[%s214 + $0x38] sm:$0xff]
        %v231 = vld [vmem:[%s214 + $0x40] sm:$0xff]
        %v232 = vld [vmem:[%s214 + $0x48] sm:$0xff]
        %v233 = vld [vmem:[%s214 + $0x50] sm:$0xff]
        %v234 = vld [vmem:[%s214 + $0x58] sm:$0xff]
        %v235 = vld [vmem:[%s214 + $0x60] sm:$0xff]
        %v236 = vld [vmem:[%s214 + $0x68] sm:$0xff]
        %v237 = vld [vmem:[%s214 + $0x70] sm:$0xff]
        %v238 = vld [vmem:[%s214 + $0x78] sm:$0xff]
        %v239 = vld [vmem:[%s219] sm:$0x3]
        %v241 = vperm.slane %v239, 0
        %v242 = vperm.slane %v239, 1
        %v261 = vunpack.c.l.b16 %v223
        %v262 = vunpack.c.h.b16 %v223
        %v263 = vunpack.c.l.b16 %v224
        %v264 = vunpack.c.h.b16 %v224
        %v265 = vunpack.c.l.b16 %v225
        %v266 = vunpack.c.h.b16 %v225
        %v267 = vunpack.c.l.b16 %v226
        %v268 = vunpack.c.h.b16 %v226
        %v269 = vunpack.c.l.b16 %v227
        %v270 = vunpack.c.h.b16 %v227
        %v271 = vunpack.c.l.b16 %v228
        %v272 = vunpack.c.h.b16 %v228
        %v273 = vunpack.c.l.b16 %v229
        %v274 = vunpack.c.h.b16 %v229
        %v275 = vunpack.c.l.b16 %v230
        %v276 = vunpack.c.h.b16 %v230
        %v277 = vunpack.c.l.b16 %v231
        %v278 = vunpack.c.h.b16 %v231
        %v279 = vunpack.c.l.b16 %v232
        %v280 = vunpack.c.h.b16 %v232
        %v281 = vunpack.c.l.b16 %v233
        %v282 = vunpack.c.h.b16 %v233
        %v283 = vunpack.c.l.b16 %v234
        %v284 = vunpack.c.h.b16 %v234
        %v285 = vunpack.c.l.b16 %v235
        %v286 = vunpack.c.h.b16 %v235
        %v287 = vunpack.c.l.b16 %v236
        %v288 = vunpack.c.h.b16 %v236
        %v289 = vunpack.c.l.b16 %v237
        %v290 = vunpack.c.h.b16 %v237
        %v291 = vunpack.c.l.b16 %v238
        %v292 = vunpack.c.h.b16 %v238
        %v293 = vpack.c.b16 %v263, %v261
        %v294 = vpack.c.b16 %v264, %v262
        %v295 = vpack.c.b16 %v267, %v265
        %v296 = vpack.c.b16 %v268, %v266
        %v297 = vpack.c.b16 %v271, %v269
        %v298 = vpack.c.b16 %v272, %v270
        %v299 = vpack.c.b16 %v275, %v273
        %v300 = vpack.c.b16 %v276, %v274
        %v301 = vpack.c.b16 %v279, %v277
        %v302 = vpack.c.b16 %v280, %v278
        %v303 = vpack.c.b16 %v283, %v281
        %v304 = vpack.c.b16 %v284, %v282
        %v305 = vpack.c.b16 %v287, %v285
        %v306 = vpack.c.b16 %v288, %v286
        %v307 = vpack.c.b16 %v291, %v289
        %v308 = vpack.c.b16 %v292, %v290
        %325 = vmatpush.bf16.msra.mxu0 %v307
        %326 = vmatpush.bf16.msra.mxu0 %v305
        %327 = vmatpush.bf16.msra.mxu0 %v303
        %328 = vmatpush.bf16.msra.mxu0 %v301
        %329 = vmatpush.bf16.msra.mxu0 %v299
        %330 = vmatpush.bf16.msra.mxu0 %v297
        %331 = vmatpush.bf16.msra.mxu0 %v295
        %332 = vmatpush.bf16.msra.mxu0 %v293
        %333 = vmatmul.bf16.gmra.mxu0 %v222
        %v334 = vpop.f32.mrf.mxu0
        %v335 = vadd.f32 %v241, %v334
        %v336 = vpop.f32.mrf.mxu0
        %337 = vdwg.mxu0
        %338 = vmatpush.bf16.msra.mxu0 %v308
        %339 = vmatpush.bf16.msra.mxu0 %v306
        %340 = vmatpush.bf16.msra.mxu0 %v304
        %341 = vmatpush.bf16.msra.mxu0 %v302
        %342 = vmatpush.bf16.msra.mxu0 %v300
        %343 = vmatpush.bf16.msra.mxu0 %v298
        %344 = vmatpush.bf16.msra.mxu0 %v296
        %345 = vmatpush.bf16.msra.mxu0 %v294
        %346 = vmatmul.bf16.gmra.mxu0 %v222
        %v347 = vpop.f32.mrf.mxu0
        %v348 = vadd.f32 %v242, %v347
        %v349 = vpop.f32.mrf.mxu0
        %350 = vdwg.mxu0
        %351 = vst [vmem:[%s205] sm:$0xff] %v335
        %352 = vst [vmem:[%s205 + $0x8] sm:$0xff] %v348
        %s353 = sand.u32 %s117, 1
        %s354 = scalar_lea.sflag [#allocation3], %s353
        %s355 = sand.u32 %s117, 1
        %s356 = smul.addr %s355, 16
        %s357 = scalar_lea.vmem [#allocation2], %s356
        // Predicated region
        $region33: #{translation_transformer_forward.5} parent=31 // pred_check
          %p358 = pneg %p127
        $region34: #{translation_transformer_forward.5} parent=31 // pred_check_branch
          %360 = sbr.rel (%p358) target = $region36
        $region35: #{translation_transformer_forward.5} parent=31 // pred_region
          %s361 = smul.u32 2, %s21
          %363 = vsyncadd %s354, 0
          %s364 = smul.addr %s22, 2
          %s365 = sadd.s32 %s361, %s364
          %s366 = smul.addr %s365, 8
          %s367 = scalar_lea.hbm %s3, %s366
          %s369 = sshll.u32 %s357, 4
          %s370 = int_to_ptr.vmem [resolvable:$true] %s369
          %s371 = sshll.u32 %s367, 4
          %s372 = int_to_ptr.hbm [resolvable:$true] %s371
          %374 = dma.vmem_to_hbm [thread:$0]  %s370, 256, %s372, %s354
        $region36: #{translation_transformer_forward.5} parent=31 // pred_fallthru
          _
      $region32: #{translation_transformer_forward.5} parent=5 // pred_fallthru
        _
      %p375 = scmp.le.s32.totalorder 2, %s12
      // Predicated region
      $region37: #{translation_transformer_forward.5} parent=5 // pred_check
        %p376 = pneg %p375
      $region38: #{translation_transformer_forward.5} parent=5 // pred_check_branch
        %378 = sbr.rel (%p376) target = $region40
      $region39: #{translation_transformer_forward.5} parent=5 // pred_region
        %s379 = ssub.s32 %s12, 2
        // Predicated region
        $region41: #{translation_transformer_forward.5} parent=39 // pred_check
          %p380 = pneg %p133
        $region42: #{translation_transformer_forward.5} parent=39 // pred_check_branch
          %382 = sbr.rel (%p380) target = $region44
        $region43: #{translation_transformer_forward.5} parent=39 // pred_region
          %s383 = sand.u32 %s118, 1
          %s384 = scalar_lea.sflag [#allocation3], %s383
          %s385 = sand.u32 %s118, 1
          %s386 = smul.addr %s385, 16
          %s387 = scalar_lea.vmem [#allocation2], %s386
          %389 = dma.done %s384, 256
        $region44: #{translation_transformer_forward.5} parent=39 // pred_fallthru
          _
      $region40: #{translation_transformer_forward.5} parent=5 // pred_fallthru
        _
    $region6: #{translation_transformer_forward.5} parent=1 // loop_footer
      %s16 = sadd.s32 1, %s12
    $region7: #{translation_transformer_forward.5} parent=1 // loop_footer_branch
      %11 = sbr.rel target = $region3
    $region8: #{translation_transformer_forward.5} parent=1 // loop_exit
      _
    %390 = vsyncpa [#allocation3], 1
    %s391 = scalar_lea.sflag [#allocation3], 1
    %392 = vsyncpa %s391, 1

// kernel: translation_transformer_forward.3
$region0: #{translation_transformer_forward.3}
  #allocation0 [shape = 'u32[]', space=smem, size = 0x4, offset = 0x4, fixed_abs, tag = 'smem constant byte address 0x4 - core index']
  #allocation1 [shape = 'u32[72,128]{1,0:T(1,128)}', space=vmem, size = 0x9000, scoped, tag = 'internal scratch']
  #allocation2 [shape = 'f32[8,128]{1,0:T(8,128)}', space=vmem, size = 0x1000, scoped, tag = 'scratch operand']
  %s0 = inlined_call_operand.vmem [shape: bf16[2,8,128], index: 0, kind: input, shape index: {}]
  %s1 = inlined_call_operand.vmem [shape: bf16[2,12,128,32], index: 1, kind: input, shape index: {}]
  %s2 = inlined_call_operand.vmem [shape: f32[2,12,1,32], index: 2, kind: input, shape index: {}]
  %s3 = inlined_call_operand.vmem [shape: bf16[2,4,32,128], index: 3, kind: input, shape index: {}]
  %s4 = inlined_call_operand.vmem [shape: f32[2,1,128], index: 4, kind: input, shape index: {}]
  %s5 = inlined_call_operand.vmem [shape: f32[2,1,128], index: 5, kind: input, shape index: {}]
  %s6 = inlined_call_operand.vmem [shape: f32[2,1,128], index: 6, kind: input, shape index: {}]
  %s7 = inlined_call_operand.vmem [shape: bf16[2,128,256], index: 7, kind: input, shape index: {}]
  %s8 = inlined_call_operand.vmem [shape: f32[2,1,256], index: 8, kind: input, shape index: {}]
  %s9 = inlined_call_operand.vmem [shape: bf16[2,256,128], index: 9, kind: input, shape index: {}]
  %s10 = inlined_call_operand.vmem [shape: f32[2,1,128], index: 10, kind: input, shape index: {}]
  %s11 = inlined_call_operand.vmem [shape: f32[2,1,128], index: 11, kind: input, shape index: {}]
  %s12 = inlined_call_operand.vmem [shape: f32[2,1,128], index: 12, kind: input, shape index: {}]
  %s13 = inlined_call_operand.vmem [shape: f32[1,128], index: 13, kind: input, shape index: {}]
  %s14 = inlined_call_operand.vmem [shape: f32[1,128], index: 14, kind: input, shape index: {}]
  %s15 = inlined_call_operand.vmem [shape: bf16[2,8,128], index: 15, kind: output, shape index: {}]
  %s16 = sld [smem:[#allocation0]]
  $region101: #{translation_transformer_forward.3} parent=0
    _
  %s18 = ssub.s32 1, %s16
  %s19 = scalar_select 0, %s18, %s16
  loop: start=0, step=1, limit=6
  $region2: #{translation_transformer_forward.3} parent=0 // loop_pre_header
    _
  $region3: #{translation_transformer_forward.3} parent=0 // loop_header
    %s21 = sphi 0, %s25
    %p22 = scmp.ge.s32.totalorder %s21, 6
    %s28 = sphi 0, %s40
    %s29 = sphi 0, %s36
    %s30 = sphi 0, %s28
    %s31 = sphi 0, %s29
    %s32 = sphi 0, %s30
    %s33 = sphi 0, %s31
    %s43 = sphi 0, %s45
    %s46 = sphi 0, %s43
    %s47 = sphi 0, %s46
    %s63 = sphi 0, %s47
    %s69 = sphi 0, %s71
    %s72 = sphi 0, %s69
    %s73 = sphi 0, %s72
    %s89 = sphi 0, %s73
    %s95 = sphi 0, %s97
    %s98 = sphi 0, %s95
    %s99 = sphi 0, %s98
    %s115 = sphi 0, %s99
    %s121 = sphi 0, %s123
    %s124 = sphi 0, %s121
    %s125 = sphi 0, %s124
    %s141 = sphi 0, %s125
    %s147 = sphi 0, %s149
    %s150 = sphi 0, %s147
    %s151 = sphi 0, %s150
    %s167 = sphi 0, %s151
    %s173 = sphi 0, %s175
    %s176 = sphi 0, %s173
    %s177 = sphi 0, %s176
    %s193 = sphi 0, %s177
    %s199 = sphi 0, %s201
    %s202 = sphi 0, %s199
    %s203 = sphi 0, %s202
    %s219 = sphi 0, %s203
    %s225 = sphi 0, %s227
    %s228 = sphi 0, %s225
    %s229 = sphi 0, %s228
    %s245 = sphi 0, %s229
    %s251 = sphi 0, %s253
    %s254 = sphi 0, %s251
    %s255 = sphi 0, %s254
    %s271 = sphi 0, %s255
    %s277 = sphi 0, %s279
    %s280 = sphi 0, %s277
    %s281 = sphi 0, %s280
    %s297 = sphi 0, %s281
    %s303 = sphi 0, %s305
    %s306 = sphi 0, %s303
    %s307 = sphi 0, %s306
    %s323 = sphi 0, %s307
    %s329 = sphi 0, %s331
    %s332 = sphi 0, %s329
    %s333 = sphi 0, %s332
    %s349 = sphi 0, %s333
    %s355 = sphi 0, %s357
    %s358 = sphi 0, %s355
    %s359 = sphi 0, %s358
    %s375 = sphi 0, %s359
    %s379 = sphi 0, %s379
    %s381 = sphi 0, %s379
    %s382 = sphi 0, %s381
    %s396 = sphi 0, %s382
    %s400 = sphi 0, %s400
    %s402 = sphi 0, %s400
    %s403 = sphi 0, %s402
    %s417 = sphi 0, %s403
    %s423 = sphi 0, %s425
    %s426 = sphi 0, %s423
    %s427 = sphi 0, %s426
    %s443 = sphi 0, %s427
  $region4: #{translation_transformer_forward.3} parent=0 // loop_header_branch
    %24 = sbr.rel (%p22) target = $region8
  $region5: #{translation_transformer_forward.3} parent=0 // loop_body
    %s26 = ssub.s32 %s21, 1
    %s27 = ssub.s32 %s21, 2
    %s34 = sadd.s32 1, %s29
    %p35 = scmp.ge.s32.totalorder %s34, 2
    %s36 = scalar_select %p35, 0, %s34
    %s37 = sadd.s32 1, %s28
    %s38 = scalar_select %p35, %s37, %s28
    %p39 = scmp.ge.s32.totalorder %s38, 2
    %s40 = scalar_select %p39, 0, %s38
    %s41 = ssub.s32 %s28, %s40
    %p42 = scmp.eq.s32.totalorder %s41, 0
    %s44 = sadd.s32 %s43, 1
    %s45 = scalar_select %p42, %s43, %s44
    %p48 = pneg %p42
    %p49 = scmp.eq.s32.totalorder %s21, 3
    %p50 = por %p48, %p49
    %p51 = scmp.ne.s32.totalorder %s43, %s46
    %p52 = scmp.eq.s32.totalorder %s21, 0
    %p53 = por %p51, %p52
    %p54 = scmp.ne.s32.totalorder %s43, %s46
    %p55 = scmp.eq.s32.totalorder %s26, 3
    %p56 = por %p54, %p55
    %p57 = scmp.ne.s32.totalorder %s46, %s47
    %p58 = scmp.eq.s32.totalorder %s26, 0
    %p59 = por %p57, %p58
    %p60 = scmp.ne.s32.totalorder %s46, %s47
    %p61 = scmp.eq.s32.totalorder %s27, 3
    %p62 = por %p60, %p61
    %p64 = scmp.ne.s32.totalorder %s47, %s63
    %p65 = scmp.eq.s32.totalorder %s27, 0
    %p66 = por %p64, %p65
    %s67 = ssub.s32 %s29, %s36
    %p68 = scmp.eq.s32.totalorder %s67, 0
    %s70 = sadd.s32 %s69, 1
    %s71 = scalar_select %p68, %s69, %s70
    %p74 = pneg %p68
    %p75 = scmp.eq.s32.totalorder %s21, 3
    %p76 = por %p74, %p75
    %p77 = scmp.ne.s32.totalorder %s69, %s72
    %p78 = scmp.eq.s32.totalorder %s21, 0
    %p79 = por %p77, %p78
    %p80 = scmp.ne.s32.totalorder %s69, %s72
    %p81 = scmp.eq.s32.totalorder %s26, 3
    %p82 = por %p80, %p81
    %p83 = scmp.ne.s32.totalorder %s72, %s73
    %p84 = scmp.eq.s32.totalorder %s26, 0
    %p85 = por %p83, %p84
    %p86 = scmp.ne.s32.totalorder %s72, %s73
    %p87 = scmp.eq.s32.totalorder %s27, 3
    %p88 = por %p86, %p87
    %p90 = scmp.ne.s32.totalorder %s73, %s89
    %p91 = scmp.eq.s32.totalorder %s27, 0
    %p92 = por %p90, %p91
    %s93 = ssub.s32 %s29, %s36
    %p94 = scmp.eq.s32.totalorder %s93, 0
    %s96 = sadd.s32 %s95, 1
    %s97 = scalar_select %p94, %s95, %s96
    %p100 = pneg %p94
    %p101 = scmp.eq.s32.totalorder %s21, 3
    %p102 = por %p100, %p101
    %p103 = scmp.ne.s32.totalorder %s95, %s98
    %p104 = scmp.eq.s32.totalorder %s21, 0
    %p105 = por %p103, %p104
    %p106 = scmp.ne.s32.totalorder %s95, %s98
    %p107 = scmp.eq.s32.totalorder %s26, 3
    %p108 = por %p106, %p107
    %p109 = scmp.ne.s32.totalorder %s98, %s99
    %p110 = scmp.eq.s32.totalorder %s26, 0
    %p111 = por %p109, %p110
    %p112 = scmp.ne.s32.totalorder %s98, %s99
    %p113 = scmp.eq.s32.totalorder %s27, 3
    %p114 = por %p112, %p113
    %p116 = scmp.ne.s32.totalorder %s99, %s115
    %p117 = scmp.eq.s32.totalorder %s27, 0
    %p118 = por %p116, %p117
    %s119 = ssub.s32 %s29, %s36
    %p120 = scmp.eq.s32.totalorder %s119, 0
    %s122 = sadd.s32 %s121, 1
    %s123 = scalar_select %p120, %s121, %s122
    %p126 = pneg %p120
    %p127 = scmp.eq.s32.totalorder %s21, 3
    %p128 = por %p126, %p127
    %p129 = scmp.ne.s32.totalorder %s121, %s124
    %p130 = scmp.eq.s32.totalorder %s21, 0
    %p131 = por %p129, %p130
    %p132 = scmp.ne.s32.totalorder %s121, %s124
    %p133 = scmp.eq.s32.totalorder %s26, 3
    %p134 = por %p132, %p133
    %p135 = scmp.ne.s32.totalorder %s124, %s125
    %p136 = scmp.eq.s32.totalorder %s26, 0
    %p137 = por %p135, %p136
    %p138 = scmp.ne.s32.totalorder %s124, %s125
    %p139 = scmp.eq.s32.totalorder %s27, 3
    %p140 = por %p138, %p139
    %p142 = scmp.ne.s32.totalorder %s125, %s141
    %p143 = scmp.eq.s32.totalorder %s27, 0
    %p144 = por %p142, %p143
    %s145 = ssub.s32 %s29, %s36
    %p146 = scmp.eq.s32.totalorder %s145, 0
    %s148 = sadd.s32 %s147, 1
    %s149 = scalar_select %p146, %s147, %s148
    %p152 = pneg %p146
    %p153 = scmp.eq.s32.totalorder %s21, 3
    %p154 = por %p152, %p153
    %p155 = scmp.ne.s32.totalorder %s147, %s150
    %p156 = scmp.eq.s32.totalorder %s21, 0
    %p157 = por %p155, %p156
    %p158 = scmp.ne.s32.totalorder %s147, %s150
    %p159 = scmp.eq.s32.totalorder %s26, 3
    %p160 = por %p158, %p159
    %p161 = scmp.ne.s32.totalorder %s150, %s151
    %p162 = scmp.eq.s32.totalorder %s26, 0
    %p163 = por %p161, %p162
    %p164 = scmp.ne.s32.totalorder %s150, %s151
    %p165 = scmp.eq.s32.totalorder %s27, 3
    %p166 = por %p164, %p165
    %p168 = scmp.ne.s32.totalorder %s151, %s167
    %p169 = scmp.eq.s32.totalorder %s27, 0
    %p170 = por %p168, %p169
    %s171 = ssub.s32 %s29, %s36
    %p172 = scmp.eq.s32.totalorder %s171, 0
    %s174 = sadd.s32 %s173, 1
    %s175 = scalar_select %p172, %s173, %s174
    %p178 = pneg %p172
    %p179 = scmp.eq.s32.totalorder %s21, 3
    %p180 = por %p178, %p179
    %p181 = scmp.ne.s32.totalorder %s173, %s176
    %p182 = scmp.eq.s32.totalorder %s21, 0
    %p183 = por %p181, %p182
    %p184 = scmp.ne.s32.totalorder %s173, %s176
    %p185 = scmp.eq.s32.totalorder %s26, 3
    %p186 = por %p184, %p185
    %p187 = scmp.ne.s32.totalorder %s176, %s177
    %p188 = scmp.eq.s32.totalorder %s26, 0
    %p189 = por %p187, %p188
    %p190 = scmp.ne.s32.totalorder %s176, %s177
    %p191 = scmp.eq.s32.totalorder %s27, 3
    %p192 = por %p190, %p191
    %p194 = scmp.ne.s32.totalorder %s177, %s193
    %p195 = scmp.eq.s32.totalorder %s27, 0
    %p196 = por %p194, %p195
    %s197 = ssub.s32 %s29, %s36
    %p198 = scmp.eq.s32.totalorder %s197, 0
    %s200 = sadd.s32 %s199, 1
    %s201 = scalar_select %p198, %s199, %s200
    %p204 = pneg %p198
    %p205 = scmp.eq.s32.totalorder %s21, 3
    %p206 = por %p204, %p205
    %p207 = scmp.ne.s32.totalorder %s199, %s202
    %p208 = scmp.eq.s32.totalorder %s21, 0
    %p209 = por %p207, %p208
    %p210 = scmp.ne.s32.totalorder %s199, %s202
    %p211 = scmp.eq.s32.totalorder %s26, 3
    %p212 = por %p210, %p211
    %p213 = scmp.ne.s32.totalorder %s202, %s203
    %p214 = scmp.eq.s32.totalorder %s26, 0
    %p215 = por %p213, %p214
    %p216 = scmp.ne.s32.totalorder %s202, %s203
    %p217 = scmp.eq.s32.totalorder %s27, 3
    %p218 = por %p216, %p217
    %p220 = scmp.ne.s32.totalorder %s203, %s219
    %p221 = scmp.eq.s32.totalorder %s27, 0
    %p222 = por %p220, %p221
    %s223 = ssub.s32 %s29, %s36
    %p224 = scmp.eq.s32.totalorder %s223, 0
    %s226 = sadd.s32 %s225, 1
    %s227 = scalar_select %p224, %s225, %s226
    %p230 = pneg %p224
    %p231 = scmp.eq.s32.totalorder %s21, 3
    %p232 = por %p230, %p231
    %p233 = scmp.ne.s32.totalorder %s225, %s228
    %p234 = scmp.eq.s32.totalorder %s21, 0
    %p235 = por %p233, %p234
    %p236 = scmp.ne.s32.totalorder %s225, %s228
    %p237 = scmp.eq.s32.totalorder %s26, 3
    %p238 = por %p236, %p237
    %p239 = scmp.ne.s32.totalorder %s228, %s229
    %p240 = scmp.eq.s32.totalorder %s26, 0
    %p241 = por %p239, %p240
    %p242 = scmp.ne.s32.totalorder %s228, %s229
    %p243 = scmp.eq.s32.totalorder %s27, 3
    %p244 = por %p242, %p243
    %p246 = scmp.ne.s32.totalorder %s229, %s245
    %p247 = scmp.eq.s32.totalorder %s27, 0
    %p248 = por %p246, %p247
    %s249 = ssub.s32 %s29, %s36
    %p250 = scmp.eq.s32.totalorder %s249, 0
    %s252 = sadd.s32 %s251, 1
    %s253 = scalar_select %p250, %s251, %s252
    %p256 = pneg %p250
    %p257 = scmp.eq.s32.totalorder %s21, 3
    %p258 = por %p256, %p257
    %p259 = scmp.ne.s32.totalorder %s251, %s254
    %p260 = scmp.eq.s32.totalorder %s21, 0
    %p261 = por %p259, %p260
    %p262 = scmp.ne.s32.totalorder %s251, %s254
    %p263 = scmp.eq.s32.totalorder %s26, 3
    %p264 = por %p262, %p263
    %p265 = scmp.ne.s32.totalorder %s254, %s255
    %p266 = scmp.eq.s32.totalorder %s26, 0
    %p267 = por %p265, %p266
    %p268 = scmp.ne.s32.totalorder %s254, %s255
    %p269 = scmp.eq.s32.totalorder %s27, 3
    %p270 = por %p268, %p269
    %p272 = scmp.ne.s32.totalorder %s255, %s271
    %p273 = scmp.eq.s32.totalorder %s27, 0
    %p274 = por %p272, %p273
    %s275 = ssub.s32 %s29, %s36
    %p276 = scmp.eq.s32.totalorder %s275, 0
    %s278 = sadd.s32 %s277, 1
    %s279 = scalar_select %p276, %s277, %s278
    %p282 = pneg %p276
    %p283 = scmp.eq.s32.totalorder %s21, 3
    %p284 = por %p282, %p283
    %p285 = scmp.ne.s32.totalorder %s277, %s280
    %p286 = scmp.eq.s32.totalorder %s21, 0
    %p287 = por %p285, %p286
    %p288 = scmp.ne.s32.totalorder %s277, %s280
    %p289 = scmp.eq.s32.totalorder %s26, 3
    %p290 = por %p288, %p289
    %p291 = scmp.ne.s32.totalorder %s280, %s281
    %p292 = scmp.eq.s32.totalorder %s26, 0
    %p293 = por %p291, %p292
    %p294 = scmp.ne.s32.totalorder %s280, %s281
    %p295 = scmp.eq.s32.totalorder %s27, 3
    %p296 = por %p294, %p295
    %p298 = scmp.ne.s32.totalorder %s281, %s297
    %p299 = scmp.eq.s32.totalorder %s27, 0
    %p300 = por %p298, %p299
    %s301 = ssub.s32 %s29, %s36
    %p302 = scmp.eq.s32.totalorder %s301, 0
    %s304 = sadd.s32 %s303, 1
    %s305 = scalar_select %p302, %s303, %s304
    %p308 = pneg %p302
    %p309 = scmp.eq.s32.totalorder %s21, 3
    %p310 = por %p308, %p309
    %p311 = scmp.ne.s32.totalorder %s303, %s306
    %p312 = scmp.eq.s32.totalorder %s21, 0
    %p313 = por %p311, %p312
    %p314 = scmp.ne.s32.totalorder %s303, %s306
    %p315 = scmp.eq.s32.totalorder %s26, 3
    %p316 = por %p314, %p315
    %p317 = scmp.ne.s32.totalorder %s306, %s307
    %p318 = scmp.eq.s32.totalorder %s26, 0
    %p319 = por %p317, %p318
    %p320 = scmp.ne.s32.totalorder %s306, %s307
    %p321 = scmp.eq.s32.totalorder %s27, 3
    %p322 = por %p320, %p321
    %p324 = scmp.ne.s32.totalorder %s307, %s323
    %p325 = scmp.eq.s32.totalorder %s27, 0
    %p326 = por %p324, %p325
    %s327 = ssub.s32 %s29, %s36
    %p328 = scmp.eq.s32.totalorder %s327, 0
    %s330 = sadd.s32 %s329, 1
    %s331 = scalar_select %p328, %s329, %s330
    %p334 = pneg %p328
    %p335 = scmp.eq.s32.totalorder %s21, 3
    %p336 = por %p334, %p335
    %p337 = scmp.ne.s32.totalorder %s329, %s332
    %p338 = scmp.eq.s32.totalorder %s21, 0
    %p339 = por %p337, %p338
    %p340 = scmp.ne.s32.totalorder %s329, %s332
    %p341 = scmp.eq.s32.totalorder %s26, 3
    %p342 = por %p340, %p341
    %p343 = scmp.ne.s32.totalorder %s332, %s333
    %p344 = scmp.eq.s32.totalorder %s26, 0
    %p345 = por %p343, %p344
    %p346 = scmp.ne.s32.totalorder %s332, %s333
    %p347 = scmp.eq.s32.totalorder %s27, 3
    %p348 = por %p346, %p347
    %p350 = scmp.ne.s32.totalorder %s333, %s349
    %p351 = scmp.eq.s32.totalorder %s27, 0
    %p352 = por %p350, %p351
    %s353 = ssub.s32 %s29, %s36
    %p354 = scmp.eq.s32.totalorder %s353, 0
    %s356 = sadd.s32 %s355, 1
    %s357 = scalar_select %p354, %s355, %s356
    %p360 = pneg %p354
    %p361 = scmp.eq.s32.totalorder %s21, 3
    %p362 = por %p360, %p361
    %p363 = scmp.ne.s32.totalorder %s355, %s358
    %p364 = scmp.eq.s32.totalorder %s21, 0
    %p365 = por %p363, %p364
    %p366 = scmp.ne.s32.totalorder %s355, %s358
    %p367 = scmp.eq.s32.totalorder %s26, 3
    %p368 = por %p366, %p367
    %p369 = scmp.ne.s32.totalorder %s358, %s359
    %p370 = scmp.eq.s32.totalorder %s26, 0
    %p371 = por %p369, %p370
    %p372 = scmp.ne.s32.totalorder %s358, %s359
    %p373 = scmp.eq.s32.totalorder %s27, 3
    %p374 = por %p372, %p373
    %p376 = scmp.ne.s32.totalorder %s359, %s375
    %p377 = scmp.eq.s32.totalorder %s27, 0
    %p378 = por %p376, %p377
    %s380 = sadd.s32 %s379, 1
    %p383 = scmp.eq.s32.totalorder %s21, 3
    %p384 = scmp.ne.s32.totalorder %s379, %s381
    %p385 = scmp.eq.s32.totalorder %s21, 0
    %p386 = por %p384, %p385
    %p387 = scmp.ne.s32.totalorder %s379, %s381
    %p388 = scmp.eq.s32.totalorder %s26, 3
    %p389 = por %p387, %p388
    %p390 = scmp.ne.s32.totalorder %s381, %s382
    %p391 = scmp.eq.s32.totalorder %s26, 0
    %p392 = por %p390, %p391
    %p393 = scmp.ne.s32.totalorder %s381, %s382
    %p394 = scmp.eq.s32.totalorder %s27, 3
    %p395 = por %p393, %p394
    %p397 = scmp.ne.s32.totalorder %s382, %s396
    %p398 = scmp.eq.s32.totalorder %s27, 0
    %p399 = por %p397, %p398
    %s401 = sadd.s32 %s400, 1
    %p404 = scmp.eq.s32.totalorder %s21, 3
    %p405 = scmp.ne.s32.totalorder %s400, %s402
    %p406 = scmp.eq.s32.totalorder %s21, 0
    %p407 = por %p405, %p406
    %p408 = scmp.ne.s32.totalorder %s400, %s402
    %p409 = scmp.eq.s32.totalorder %s26, 3
    %p410 = por %p408, %p409
    %p411 = scmp.ne.s32.totalorder %s402, %s403
    %p412 = scmp.eq.s32.totalorder %s26, 0
    %p413 = por %p411, %p412
    %p414 = scmp.ne.s32.totalorder %s402, %s403
    %p415 = scmp.eq.s32.totalorder %s27, 3
    %p416 = por %p414, %p415
    %p418 = scmp.ne.s32.totalorder %s403, %s417
    %p419 = scmp.eq.s32.totalorder %s27, 0
    %p420 = por %p418, %p419
    %s421 = ssub.s32 %s28, %s40
    %p422 = scmp.eq.s32.totalorder %s421, 0
    %s424 = sadd.s32 %s423, 1
    %s425 = scalar_select %p422, %s423, %s424
    %p428 = pneg %p422
    %p429 = scmp.eq.s32.totalorder %s21, 3
    %p430 = por %p428, %p429
    %p431 = scmp.ne.s32.totalorder %s423, %s426
    %p432 = scmp.eq.s32.totalorder %s21, 0
    %p433 = por %p431, %p432
    %p434 = scmp.ne.s32.totalorder %s423, %s426
    %p435 = scmp.eq.s32.totalorder %s26, 3
    %p436 = por %p434, %p435
    %p437 = scmp.ne.s32.totalorder %s426, %s427
    %p438 = scmp.eq.s32.totalorder %s26, 0
    %p439 = por %p437, %p438
    %p440 = scmp.ne.s32.totalorder %s426, %s427
    %p441 = scmp.eq.s32.totalorder %s27, 3
    %p442 = por %p440, %p441
    %p444 = scmp.ne.s32.totalorder %s427, %s443
    %p445 = scmp.eq.s32.totalorder %s27, 0
    %p446 = por %p444, %p445
    %p447 = scmp.le.s32.totalorder 1, %s21
    %p448 = scmp.lt.s32.totalorder %s21, 5
    %p449 = pnand %p447, %p448
    %p450 = pneg %p449
    // Predicated region
    $region9: #{translation_transformer_forward.3} parent=5 // pred_check
      _
    $region10: #{translation_transformer_forward.3} parent=5 // pred_check_branch
      %452 = sbr.rel (%p449) target = $region12
    $region11: #{translation_transformer_forward.3} parent=5 // pred_region
      %s453 = ssub.s32 %s21, 1
      // Predicated region
      $region13: #{translation_transformer_forward.3} parent=11 // pred_check
        %p454 = pneg %p392
      $region14: #{translation_transformer_forward.3} parent=11 // pred_check_branch
        %456 = sbr.rel (%p454) target = $region16
      $region15: #{translation_transformer_forward.3} parent=11 // pred_region
        _
      $region16: #{translation_transformer_forward.3} parent=11 // pred_fallthru
        _
      // Predicated region
      $region17: #{translation_transformer_forward.3} parent=11 // pred_check
        %p457 = pneg %p413
      $region18: #{translation_transformer_forward.3} parent=11 // pred_check_branch
        %459 = sbr.rel (%p457) target = $region20
      $region19: #{translation_transformer_forward.3} parent=11 // pred_region
        _
      $region20: #{translation_transformer_forward.3} parent=11 // pred_fallthru
        _
    $region12: #{translation_transformer_forward.3} parent=5 // pred_fallthru
      _
    %p460 = scmp.lt.s32.totalorder %s21, 4
    // Predicated region
    $region21: #{translation_transformer_forward.3} parent=5 // pred_check
      %p461 = pneg %p460
    $region22: #{translation_transformer_forward.3} parent=5 // pred_check_branch
      %463 = sbr.rel (%p461) target = $region24
    $region23: #{translation_transformer_forward.3} parent=5 // pred_region
      // Predicated region
      $region25: #{translation_transformer_forward.3} parent=23 // pred_check
        %p464 = pneg %p53
      $region26: #{translation_transformer_forward.3} parent=23 // pred_check_branch
        %466 = sbr.rel (%p464) target = $region28
      $region27: #{translation_transformer_forward.3} parent=23 // pred_region
        %p467 = scmp.lt.s32.totalorder %s28, 1
        %s468 = scalar_select %p467, %s28, 1
        %s469 = smul.addr %s468, 4
        %s470 = scalar_lea.vmem %s0, %s469
      $region28: #{translation_transformer_forward.3} parent=23 // pred_fallthru
        _
      // Predicated region
      $region29: #{translation_transformer_forward.3} parent=23 // pred_check
        %p471 = pneg %p79
      $region30: #{translation_transformer_forward.3} parent=23 // pred_check_branch
        %473 = sbr.rel (%p471) target = $region32
      $region31: #{translation_transformer_forward.3} parent=23 // pred_region
        %p474 = scmp.lt.s32.totalorder %s29, 1
        %s475 = scalar_select %p474, %s29, 1
        %s476 = smul.addr %s475, 192
        %s477 = smul.addr %s476, 4
        %s478 = scalar_lea.vmem %s1, %s477
      $region32: #{translation_transformer_forward.3} parent=23 // pred_fallthru
        _
      // Predicated region
      $region33: #{translation_transformer_forward.3} parent=23 // pred_check
        %p479 = pneg %p105
      $region34: #{translation_transformer_forward.3} parent=23 // pred_check_branch
        %481 = sbr.rel (%p479) target = $region36
      $region35: #{translation_transformer_forward.3} parent=23 // pred_region
        %p482 = scmp.lt.s32.totalorder %s29, 1
        %s483 = scalar_select %p482, %s29, 1
        %s484 = smul.addr %s483, 12
        %s485 = scalar_lea.vmem %s2, %s484
      $region36: #{translation_transformer_forward.3} parent=23 // pred_fallthru
        _
      // Predicated region
      $region37: #{translation_transformer_forward.3} parent=23 // pred_check
        %p486 = pneg %p131
      $region38: #{translation_transformer_forward.3} parent=23 // pred_check_branch
        %488 = sbr.rel (%p486) target = $region40
      $region39: #{translation_transformer_forward.3} parent=23 // pred_region
        %p489 = scmp.lt.s32.totalorder %s29, 1
        %s490 = scalar_select %p489, %s29, 1
        %s491 = smul.addr %s490, 16
        %s492 = smul.addr %s491, 4
        %s493 = scalar_lea.vmem %s3, %s492
      $region40: #{translation_transformer_forward.3} parent=23 // pred_fallthru
        _
      // Predicated region
      $region41: #{translation_transformer_forward.3} parent=23 // pred_check
        %p494 = pneg %p157
      $region42: #{translation_transformer_forward.3} parent=23 // pred_check_branch
        %496 = sbr.rel (%p494) target = $region44
      $region43: #{translation_transformer_forward.3} parent=23 // pred_region
        %p497 = scmp.lt.s32.totalorder %s29, 1
        %s498 = scalar_select %p497, %s29, 1
        %s499 = scalar_lea.vmem %s4, %s498
      $region44: #{translation_transformer_forward.3} parent=23 // pred_fallthru
        _
      // Predicated region
      $region45: #{translation_transformer_forward.3} parent=23 // pred_check
        %p500 = pneg %p183
      $region46: #{translation_transformer_forward.3} parent=23 // pred_check_branch
        %502 = sbr.rel (%p500) target = $region48
      $region47: #{translation_transformer_forward.3} parent=23 // pred_region
        %p503 = scmp.lt.s32.totalorder %s29, 1
        %s504 = scalar_select %p503, %s29, 1
        %s505 = scalar_lea.vmem %s5, %s504
      $region48: #{translation_transformer_forward.3} parent=23 // pred_fallthru
        _
      // Predicated region
      $region49: #{translation_transformer_forward.3} parent=23 // pred_check
        %p506 = pneg %p209
      $region50: #{translation_transformer_forward.3} parent=23 // pred_check_branch
        %508 = sbr.rel (%p506) target = $region52
      $region51: #{translation_transformer_forward.3} parent=23 // pred_region
        %p509 = scmp.lt.s32.totalorder %s29, 1
        %s510 = scalar_select %p509, %s29, 1
        %s511 = scalar_lea.vmem %s6, %s510
      $region52: #{translation_transformer_forward.3} parent=23 // pred_fallthru
        _
      // Predicated region
      $region53: #{translation_transformer_forward.3} parent=23 // pred_check
        %p512 = pneg %p235
      $region54: #{translation_transformer_forward.3} parent=23 // pred_check_branch
        %514 = sbr.rel (%p512) target = $region56
      $region55: #{translation_transformer_forward.3} parent=23 // pred_region
        %p515 = scmp.lt.s32.totalorder %s29, 1
        %s516 = scalar_select %p515, %s29, 1
        %s517 = smul.addr %s516, 32
        %s518 = smul.addr %s517, 4
        %s519 = scalar_lea.vmem %s7, %s518
      $region56: #{translation_transformer_forward.3} parent=23 // pred_fallthru
        _
      // Predicated region
      $region57: #{translation_transformer_forward.3} parent=23 // pred_check
        %p520 = pneg %p261
      $region58: #{translation_transformer_forward.3} parent=23 // pred_check_branch
        %522 = sbr.rel (%p520) target = $region60
      $region59: #{translation_transformer_forward.3} parent=23 // pred_region
        %p523 = scmp.lt.s32.totalorder %s29, 1
        %s524 = scalar_select %p523, %s29, 1
        %s525 = smul.addr %s524, 2
        %s526 = scalar_lea.vmem %s8, %s525
      $region60: #{translation_transformer_forward.3} parent=23 // pred_fallthru
        _
      // Predicated region
      $region61: #{translation_transformer_forward.3} parent=23 // pred_check
        %p527 = pneg %p287
      $region62: #{translation_transformer_forward.3} parent=23 // pred_check_branch
        %529 = sbr.rel (%p527) target = $region64
      $region63: #{translation_transformer_forward.3} parent=23 // pred_region
        %p530 = scmp.lt.s32.totalorder %s29, 1
        %s531 = scalar_select %p530, %s29, 1
        %s532 = smul.addr %s531, 32
        %s533 = smul.addr %s532, 4
        %s534 = scalar_lea.vmem %s9, %s533
      $region64: #{translation_transformer_forward.3} parent=23 // pred_fallthru
        _
      // Predicated region
      $region65: #{translation_transformer_forward.3} parent=23 // pred_check
        %p535 = pneg %p313
      $region66: #{translation_transformer_forward.3} parent=23 // pred_check_branch
        %537 = sbr.rel (%p535) target = $region68
      $region67: #{translation_transformer_forward.3} parent=23 // pred_region
        %p538 = scmp.lt.s32.totalorder %s29, 1
        %s539 = scalar_select %p538, %s29, 1
        %s540 = scalar_lea.vmem %s10, %s539
      $region68: #{translation_transformer_forward.3} parent=23 // pred_fallthru
        _
      // Predicated region
      $region69: #{translation_transformer_forward.3} parent=23 // pred_check
        %p541 = pneg %p339
      $region70: #{translation_transformer_forward.3} parent=23 // pred_check_branch
        %543 = sbr.rel (%p541) target = $region72
      $region71: #{translation_transformer_forward.3} parent=23 // pred_region
        %p544 = scmp.lt.s32.totalorder %s29, 1
        %s545 = scalar_select %p544, %s29, 1
        %s546 = scalar_lea.vmem %s11, %s545
      $region72: #{translation_transformer_forward.3} parent=23 // pred_fallthru
        _
      // Predicated region
      $region73: #{translation_transformer_forward.3} parent=23 // pred_check
        %p547 = pneg %p365
      $region74: #{translation_transformer_forward.3} parent=23 // pred_check_branch
        %549 = sbr.rel (%p547) target = $region76
      $region75: #{translation_transformer_forward.3} parent=23 // pred_region
        %p550 = scmp.lt.s32.totalorder %s29, 1
        %s551 = scalar_select %p550, %s29, 1
        %s552 = scalar_lea.vmem %s12, %s551
      $region76: #{translation_transformer_forward.3} parent=23 // pred_fallthru
        _
    $region24: #{translation_transformer_forward.3} parent=5 // pred_fallthru
      _
    %p553 = scmp.le.s32.totalorder 1, %s21
    %p554 = scmp.lt.s32.totalorder %s21, 5
    %p555 = pnand %p553, %p554
    %p556 = pneg %p555
    // Predicated region
    $region77: #{translation_transformer_forward.3} parent=5 // pred_check
      _
    $region78: #{translation_transformer_forward.3} parent=5 // pred_check_branch
      %558 = sbr.rel (%p555) target = $region80
    $region79: #{translation_transformer_forward.3} parent=5 // pred_region
      %s559 = ssub.s32 %s21, 1
      %p560 = scmp.lt.s32.totalorder %s30, 1
      %s561 = scalar_select %p560, %s30, 1
      %s562 = smul.addr %s561, 4
      %s563 = scalar_lea.vmem %s0, %s562
      %p564 = pneg %p59
      %p565 = pneg %p56
      %p566 = scmp.lt.s32.totalorder %s31, 1
      %s567 = scalar_select %p566, %s31, 1
      %s568 = smul.addr %s567, 192
      %s569 = smul.addr %s568, 4
      %s570 = scalar_lea.vmem %s1, %s569
      %p571 = pneg %p85
      %p572 = pneg %p82
      %p573 = scmp.lt.s32.totalorder %s31, 1
      %s574 = scalar_select %p573, %s31, 1
      %s575 = smul.addr %s574, 12
      %s576 = scalar_lea.vmem %s2, %s575
      %p577 = pneg %p111
      %p578 = pneg %p108
      %p579 = scmp.lt.s32.totalorder %s31, 1
      %s580 = scalar_select %p579, %s31, 1
      %s581 = smul.addr %s580, 16
      %s582 = smul.addr %s581, 4
      %s583 = scalar_lea.vmem %s3, %s582
      %p584 = pneg %p137
      %p585 = pneg %p134
      %p586 = scmp.lt.s32.totalorder %s31, 1
      %s587 = scalar_select %p586, %s31, 1
      %s588 = scalar_lea.vmem %s4, %s587
      %p589 = pneg %p163
      %p590 = pneg %p160
      %p591 = scmp.lt.s32.totalorder %s31, 1
      %s592 = scalar_select %p591, %s31, 1
      %s593 = scalar_lea.vmem %s5, %s592
      %p594 = pneg %p189
      %p595 = pneg %p186
      %p596 = scmp.lt.s32.totalorder %s31, 1
      %s597 = scalar_select %p596, %s31, 1
      %s598 = scalar_lea.vmem %s6, %s597
      %p599 = pneg %p215
      %p600 = pneg %p212
      %p601 = scmp.lt.s32.totalorder %s31, 1
      %s602 = scalar_select %p601, %s31, 1
      %s603 = smul.addr %s602, 32
      %s604 = smul.addr %s603, 4
      %s605 = scalar_lea.vmem %s7, %s604
      %p606 = pneg %p241
      %p607 = pneg %p238
      %p608 = scmp.lt.s32.totalorder %s31, 1
      %s609 = scalar_select %p608, %s31, 1
      %s610 = smul.addr %s609, 2
      %s611 = scalar_lea.vmem %s8, %s610
      %p612 = pneg %p267
      %p613 = pneg %p264
      %p614 = scmp.lt.s32.totalorder %s31, 1
      %s615 = scalar_select %p614, %s31, 1
      %s616 = smul.addr %s615, 32
      %s617 = smul.addr %s616, 4
      %s618 = scalar_lea.vmem %s9, %s617
      %p619 = pneg %p293
      %p620 = pneg %p290
      %p621 = scmp.lt.s32.totalorder %s31, 1
      %s622 = scalar_select %p621, %s31, 1
      %s623 = scalar_lea.vmem %s10, %s622
      %p624 = pneg %p319
      %p625 = pneg %p316
      %p626 = scmp.lt.s32.totalorder %s31, 1
      %s627 = scalar_select %p626, %s31, 1
      %s628 = scalar_lea.vmem %s11, %s627
      %p629 = pneg %p345
      %p630 = pneg %p342
      %p631 = scmp.lt.s32.totalorder %s31, 1
      %s632 = scalar_select %p631, %s31, 1
      %s633 = scalar_lea.vmem %s12, %s632
      %p634 = pneg %p371
      %p635 = pneg %p368
      %p636 = pneg %p392
      %p637 = pneg %p389
      %p638 = pneg %p413
      %p639 = pneg %p410
      %p640 = pneg %p439
      %p641 = pneg %p436
      %p642 = scmp.lt.s32.totalorder %s30, 1
      %s643 = scalar_select %p642, %s30, 1
      %s644 = smul.addr %s643, 4
      %s645 = scalar_lea.vmem %s15, %s644
      %p646 = scmp.lt.s32.totalorder %s30, 1
      %s647 = scalar_select %p646, %s30, 1
      %s648 = smul.addr %s647, 4
      %s649 = scalar_lea.vmem %s0, %s648
      %p650 = scmp.lt.s32.totalorder %s31, 1
      %s651 = scalar_select %p650, %s31, 1
      %s652 = smul.addr %s651, 192
      %s653 = smul.addr %s652, 4
      %s654 = scalar_lea.vmem %s1, %s653
      %p655 = scmp.lt.s32.totalorder %s31, 1
      %s656 = scalar_select %p655, %s31, 1
      %s657 = smul.addr %s656, 12
      %s658 = scalar_lea.vmem %s2, %s657
      %p659 = scmp.lt.s32.totalorder %s31, 1
      %s660 = scalar_select %p659, %s31, 1
      %s661 = smul.addr %s660, 16
      %s662 = smul.addr %s661, 4
      %s663 = scalar_lea.vmem %s3, %s662
      %p664 = scmp.lt.s32.totalorder %s31, 1
      %s665 = scalar_select %p664, %s31, 1
      %s666 = scalar_lea.vmem %s4, %s665
      %p667 = scmp.lt.s32.totalorder %s31, 1
      %s668 = scalar_select %p667, %s31, 1
      %s669 = scalar_lea.vmem %s5, %s668
      %p670 = scmp.lt.s32.totalorder %s31, 1
      %s671 = scalar_select %p670, %s31, 1
      %s672 = scalar_lea.vmem %s6, %s671
      %p673 = scmp.lt.s32.totalorder %s31, 1
      %s674 = scalar_select %p673, %s31, 1
      %s675 = smul.addr %s674, 32
      %s676 = smul.addr %s675, 4
      %s677 = scalar_lea.vmem %s7, %s676
      %p678 = scmp.lt.s32.totalorder %s31, 1
      %s679 = scalar_select %p678, %s31, 1
      %s680 = smul.addr %s679, 2
      %s681 = scalar_lea.vmem %s8, %s680
      %p682 = scmp.lt.s32.totalorder %s31, 1
      %s683 = scalar_select %p682, %s31, 1
      %s684 = smul.addr %s683, 32
      %s685 = smul.addr %s684, 4
      %s686 = scalar_lea.vmem %s9, %s685
      %p687 = scmp.lt.s32.totalorder %s31, 1
      %s688 = scalar_select %p687, %s31, 1
      %s689 = scalar_lea.vmem %s10, %s688
      %p690 = scmp.lt.s32.totalorder %s31, 1
      %s691 = scalar_select %p690, %s31, 1
      %s692 = scalar_lea.vmem %s11, %s691
      %p693 = scmp.lt.s32.totalorder %s31, 1
      %s694 = scalar_select %p693, %s31, 1
      %s695 = scalar_lea.vmem %s12, %s694
      %p696 = scmp.lt.s32.totalorder %s30, 1
      %s697 = scalar_select %p696, %s30, 1
      %s698 = smul.addr %s697, 4
      %s699 = scalar_lea.vmem %s15, %s698
      %p701 = scmp.eq.s32.totalorder %s31, 0
      // Predicated region
      $region81: #{translation_transformer_forward.3} parent=79 // pred_check
        %p702 = pneg %p701
      $region82: #{translation_transformer_forward.3} parent=79 // pred_check_branch
        %704 = sbr.rel (%p702) target = $region84
      $region83: #{translation_transformer_forward.3} parent=79 // pred_region
        %v705 = vld [vmem:[%s649] sm:$0xf]
        %v706 = vunpack.c.l.bf16 %v705
        %707 = vst [vmem:[#allocation2] sm:$0xff] %v706
      $region84: #{translation_transformer_forward.3} parent=79 // pred_fallthru
        _
      %v708 = vld [vmem:[#allocation2] sm:$0xff]
      %v709 = vld [vmem:[%s654] sm:$0xf]
      %v710 = vld [vmem:[%s654 + $0x4] sm:$0xf]
      %v711 = vld [vmem:[%s654 + $0x8] sm:$0xf]
      %v712 = vld [vmem:[%s654 + $0xc] sm:$0xf]
      %v713 = vld [vmem:[%s654 + $0x10] sm:$0xf]
      %v714 = vld [vmem:[%s654 + $0x14] sm:$0xf]
      %v715 = vld [vmem:[%s654 + $0x18] sm:$0xf]
      %v716 = vld [vmem:[%s654 + $0x1c] sm:$0xf]
      %v717 = vld [vmem:[%s654 + $0x20] sm:$0xf]
      %v718 = vld [vmem:[%s654 + $0x24] sm:$0xf]
      %v719 = vld [vmem:[%s654 + $0x28] sm:$0xf]
      %v720 = vld [vmem:[%s654 + $0x2c] sm:$0xf]
      %v721 = vld [vmem:[%s654 + $0x30] sm:$0xf]
      %v722 = vld [vmem:[%s654 + $0x34] sm:$0xf]
      %v723 = vld [vmem:[%s654 + $0x38] sm:$0xf]
      %v724 = vld [vmem:[%s654 + $0x3c] sm:$0xf]
      %v725 = vld [vmem:[%s654 + $0x40] sm:$0xf]
      %v726 = vld [vmem:[%s654 + $0x44] sm:$0xf]
      %v727 = vld [vmem:[%s654 + $0x48] sm:$0xf]
      %v728 = vld [vmem:[%s654 + $0x4c] sm:$0xf]
      %v729 = vld [vmem:[%s654 + $0x50] sm:$0xf]
      %v730 = vld [vmem:[%s654 + $0x54] sm:$0xf]
      %v731 = vld [vmem:[%s654 + $0x58] sm:$0xf]
      %v732 = vld [vmem:[%s654 + $0x5c] sm:$0xf]
      %v733 = vld [vmem:[%s654 + $0x60] sm:$0xf]
      %v734 = vld [vmem:[%s654 + $0x64] sm:$0xf]
      %v735 = vld [vmem:[%s654 + $0x68] sm:$0xf]
      %v736 = vld [vmem:[%s654 + $0x6c] sm:$0xf]
      %v737 = vld [vmem:[%s654 + $0x70] sm:$0xf]
      %v738 = vld [vmem:[%s654 + $0x74] sm:$0xf]
      %v739 = vld [vmem:[%s654 + $0x78] sm:$0xf]
      %v740 = vld [vmem:[%s654 + $0x7c] sm:$0xf]
      %v741 = vld [vmem:[%s654 + $0x80] sm:$0xf]
      %v742 = vld [vmem:[%s654 + $0x84] sm:$0xf]
      %v743 = vld [vmem:[%s654 + $0x88] sm:$0xf]
      %v744 = vld [vmem:[%s654 + $0x8c] sm:$0xf]
      %v745 = vld [vmem:[%s654 + $0x90] sm:$0xf]
      %v746 = vld [vmem:[%s654 + $0x94] sm:$0xf]
      %v747 = vld [vmem:[%s654 + $0x98] sm:$0xf]
      %v748 = vld [vmem:[%s654 + $0x9c] sm:$0xf]
      %v749 = vld [vmem:[%s654 + $0xa0] sm:$0xf]
      %v750 = vld [vmem:[%s654 + $0xa4] sm:$0xf]
      %v751 = vld [vmem:[%s654 + $0xa8] sm:$0xf]
      %v752 = vld [vmem:[%s654 + $0xac] sm:$0xf]
      %v753 = vld [vmem:[%s654 + $0xb0] sm:$0xf]
      %v754 = vld [vmem:[%s654 + $0xb4] sm:$0xf]
      %v755 = vld [vmem:[%s654 + $0xb8] sm:$0xf]
      %v756 = vld [vmem:[%s654 + $0xbc] sm:$0xf]
      %v757 = vld [vmem:[%s654 + $0xc0] sm:$0xf]
      %v758 = vld [vmem:[%s654 + $0xc4] sm:$0xf]
      %v759 = vld [vmem:[%s654 + $0xc8] sm:$0xf]
      %v760 = vld [vmem:[%s654 + $0xcc] sm:$0xf]
      %v761 = vld [vmem:[%s654 + $0xd0] sm:$0xf]
      %v762 = vld [vmem:[%s654 + $0xd4] sm:$0xf]
      %v763 = vld [vmem:[%s654 + $0xd8] sm:$0xf]
      %v764 = vld [vmem:[%s654 + $0xdc] sm:$0xf]
      %v765 = vld [vmem:[%s654 + $0xe0] sm:$0xf]
      %v766 = vld [vmem:[%s654 + $0xe4] sm:$0xf]
      %v767 = vld [vmem:[%s654 + $0xe8] sm:$0xf]
      %v768 = vld [vmem:[%s654 + $0xec] sm:$0xf]
      %v769 = vld [vmem:[%s654 + $0xf0] sm:$0xf]
      %v770 = vld [vmem:[%s654 + $0xf4] sm:$0xf]
      %v771 = vld [vmem:[%s654 + $0xf8] sm:$0xf]
      %v772 = vld [vmem:[%s654 + $0xfc] sm:$0xf]
      %v773 = vld [vmem:[%s654 + $0x100] sm:$0xf]
      %v774 = vld [vmem:[%s654 + $0x104] sm:$0xf]
      %v775 = vld [vmem:[%s654 + $0x108] sm:$0xf]
      %v776 = vld [vmem:[%s654 + $0x10c] sm:$0xf]
      %v777 = vld [vmem:[%s654 + $0x110] sm:$0xf]
      %v778 = vld [vmem:[%s654 + $0x114] sm:$0xf]
      %v779 = vld [vmem:[%s654 + $0x118] sm:$0xf]
      %v780 = vld [vmem:[%s654 + $0x11c] sm:$0xf]
      %v781 = vld [vmem:[%s654 + $0x120] sm:$0xf]
      %v782 = vld [vmem:[%s654 + $0x124] sm:$0xf]
      %v783 = vld [vmem:[%s654 + $0x128] sm:$0xf]
      %v784 = vld [vmem:[%s654 + $0x12c] sm:$0xf]
      %v785 = vld [vmem:[%s654 + $0x130] sm:$0xf]
      %v786 = vld [vmem:[%s654 + $0x134] sm:$0xf]
      %v787 = vld [vmem:[%s654 + $0x138] sm:$0xf]
      %v788 = vld [vmem:[%s654 + $0x13c] sm:$0xf]
      %v789 = vld [vmem:[%s654 + $0x140] sm:$0xf]
      %v790 = vld [vmem:[%s654 + $0x144] sm:$0xf]
      %v791 = vld [vmem:[%s654 + $0x148] sm:$0xf]
      %v792 = vld [vmem:[%s654 + $0x14c] sm:$0xf]
      %v793 = vld [vmem:[%s654 + $0x150] sm:$0xf]
      %v794 = vld [vmem:[%s654 + $0x154] sm:$0xf]
      %v795 = vld [vmem:[%s654 + $0x158] sm:$0xf]
      %v796 = vld [vmem:[%s654 + $0x15c] sm:$0xf]
      %v797 = vld [vmem:[%s654 + $0x160] sm:$0xf]
      %v798 = vld [vmem:[%s654 + $0x164] sm:$0xf]
      %v799 = vld [vmem:[%s654 + $0x168] sm:$0xf]
      %v800 = vld [vmem:[%s654 + $0x16c] sm:$0xf]
      %v801 = vld [vmem:[%s654 + $0x170] sm:$0xf]
      %v802 = vld [vmem:[%s654 + $0x174] sm:$0xf]
      %v803 = vld [vmem:[%s654 + $0x178] sm:$0xf]
      %v804 = vld [vmem:[%s654 + $0x17c] sm:$0xf]
      %v805 = vld [vmem:[%s654 + $0x180] sm:$0xf]
      %v806 = vld [vmem:[%s654 + $0x184] sm:$0xf]
      %v807 = vld [vmem:[%s654 + $0x188] sm:$0xf]
      %v808 = vld [vmem:[%s654 + $0x18c] sm:$0xf]
      %v809 = vld [vmem:[%s654 + $0x190] sm:$0xf]
      %v810 = vld [vmem:[%s654 + $0x194] sm:$0xf]
      %v811 = vld [vmem:[%s654 + $0x198] sm:$0xf]
      %v812 = vld [vmem:[%s654 + $0x19c] sm:$0xf]
      %v813 = vld [vmem:[%s654 + $0x1a0] sm:$0xf]
      %v814 = vld [vmem:[%s654 + $0x1a4] sm:$0xf]
      %v815 = vld [vmem:[%s654 + $0x1a8] sm:$0xf]
      %v816 = vld [vmem:[%s654 + $0x1ac] sm:$0xf]
      %v817 = vld [vmem:[%s654 + $0x1b0] sm:$0xf]
      %v818 = vld [vmem:[%s654 + $0x1b4] sm:$0xf]
      %v819 = vld [vmem:[%s654 + $0x1b8] sm:$0xf]
      %v820 = vld [vmem:[%s654 + $0x1bc] sm:$0xf]
      %v821 = vld [vmem:[%s654 + $0x1c0] sm:$0xf]
      %v822 = vld [vmem:[%s654 + $0x1c4] sm:$0xf]
      %v823 = vld [vmem:[%s654 + $0x1c8] sm:$0xf]
      %v824 = vld [vmem:[%s654 + $0x1cc] sm:$0xf]
      %v825 = vld [vmem:[%s654 + $0x1d0] sm:$0xf]
      %v826 = vld [vmem:[%s654 + $0x1d4] sm:$0xf]
      %v827 = vld [vmem:[%s654 + $0x1d8] sm:$0xf]
      %v828 = vld [vmem:[%s654 + $0x1dc] sm:$0xf]
      %v829 = vld [vmem:[%s654 + $0x1e0] sm:$0xf]
      %v830 = vld [vmem:[%s654 + $0x1e4] sm:$0xf]
      %v831 = vld [vmem:[%s654 + $0x1e8] sm:$0xf]
      %v832 = vld [vmem:[%s654 + $0x1ec] sm:$0xf]
      %v833 = vld [vmem:[%s654 + $0x1f0] sm:$0xf]
      %v834 = vld [vmem:[%s654 + $0x1f4] sm:$0xf]
      %v835 = vld [vmem:[%s654 + $0x1f8] sm:$0xf]
      %v836 = vld [vmem:[%s654 + $0x1fc] sm:$0xf]
      %v837 = vld [vmem:[%s654 + $0x200] sm:$0xf]
      %v838 = vld [vmem:[%s654 + $0x204] sm:$0xf]
      %v839 = vld [vmem:[%s654 + $0x208] sm:$0xf]
      %v840 = vld [vmem:[%s654 + $0x20c] sm:$0xf]
      %v841 = vld [vmem:[%s654 + $0x210] sm:$0xf]
      %v842 = vld [vmem:[%s654 + $0x214] sm:$0xf]
      %v843 = vld [vmem:[%s654 + $0x218] sm:$0xf]
      %v844 = vld [vmem:[%s654 + $0x21c] sm:$0xf]
      %v845 = vld [vmem:[%s654 + $0x220] sm:$0xf]
      %v846 = vld [vmem:[%s654 + $0x224] sm:$0xf]
      %v847 = vld [vmem:[%s654 + $0x228] sm:$0xf]
      %v848 = vld [vmem:[%s654 + $0x22c] sm:$0xf]
      %v849 = vld [vmem:[%s654 + $0x230] sm:$0xf]
      %v850 = vld [vmem:[%s654 + $0x234] sm:$0xf]
      %v851 = vld [vmem:[%s654 + $0x238] sm:$0xf]
      %v852 = vld [vmem:[%s654 + $0x23c] sm:$0xf]
      %v853 = vld [vmem:[%s654 + $0x240] sm:$0xf]
      %v854 = vld [vmem:[%s654 + $0x244] sm:$0xf]
      %v855 = vld [vmem:[%s654 + $0x248] sm:$0xf]
      %v856 = vld [vmem:[%s654 + $0x24c] sm:$0xf]
      %v857 = vld [vmem:[%s654 + $0x250] sm:$0xf]
      %v858 = vld [vmem:[%s654 + $0x254] sm:$0xf]
      %v859 = vld [vmem:[%s654 + $0x258] sm:$0xf]
      %v860 = vld [vmem:[%s654 + $0x25c] sm:$0xf]
      %v861 = vld [vmem:[%s654 + $0x260] sm:$0xf]
      %v862 = vld [vmem:[%s654 + $0x264] sm:$0xf]
      %v863 = vld [vmem:[%s654 + $0x268] sm:$0xf]
      %v864 = vld [vmem:[%s654 + $0x26c] sm:$0xf]
      %v865 = vld [vmem:[%s654 + $0x270] sm:$0xf]
      %v866 = vld [vmem:[%s654 + $0x274] sm:$0xf]
      %v867 = vld [vmem:[%s654 + $0x278] sm:$0xf]
      %v868 = vld [vmem:[%s654 + $0x27c] sm:$0xf]
      %v869 = vld [vmem:[%s654 + $0x280] sm:$0xf]
      %v870 = vld [vmem:[%s654 + $0x284] sm:$0xf]
      %v871 = vld [vmem:[%s654 + $0x288] sm:$0xf]
      %v872 = vld [vmem:[%s654 + $0x28c] sm:$0xf]
      %v873 = vld [vmem:[%s654 + $0x290] sm:$0xf]
      %v874 = vld [vmem:[%s654 + $0x294] sm:$0xf]
      %v875 = vld [vmem:[%s654 + $0x298] sm:$0xf]
      %v876 = vld [vmem:[%s654 + $0x29c] sm:$0xf]
      %v877 = vld [vmem:[%s654 + $0x2a0] sm:$0xf]
      %v878 = vld [vmem:[%s654 + $0x2a4] sm:$0xf]
      %v879 = vld [vmem:[%s654 + $0x2a8] sm:$0xf]
      %v880 = vld [vmem:[%s654 + $0x2ac] sm:$0xf]
      %v881 = vld [vmem:[%s654 + $0x2b0] sm:$0xf]
      %v882 = vld [vmem:[%s654 + $0x2b4] sm:$0xf]
      %v883 = vld [vmem:[%s654 + $0x2b8] sm:$0xf]
      %v884 = vld [vmem:[%s654 + $0x2bc] sm:$0xf]
      %v885 = vld [vmem:[%s654 + $0x2c0] sm:$0xf]
      %v886 = vld [vmem:[%s654 + $0x2c4] sm:$0xf]
      %v887 = vld [vmem:[%s654 + $0x2c8] sm:$0xf]
      %v888 = vld [vmem:[%s654 + $0x2cc] sm:$0xf]
      %v889 = vld [vmem:[%s654 + $0x2d0] sm:$0xf]
      %v890 = vld [vmem:[%s654 + $0x2d4] sm:$0xf]
      %v891 = vld [vmem:[%s654 + $0x2d8] sm:$0xf]
      %v892 = vld [vmem:[%s654 + $0x2dc] sm:$0xf]
      %v893 = vld [vmem:[%s654 + $0x2e0] sm:$0xf]
      %v894 = vld [vmem:[%s654 + $0x2e4] sm:$0xf]
      %v895 = vld [vmem:[%s654 + $0x2e8] sm:$0xf]
      %v896 = vld [vmem:[%s654 + $0x2ec] sm:$0xf]
      %v897 = vld [vmem:[%s654 + $0x2f0] sm:$0xf]
      %v898 = vld [vmem:[%s654 + $0x2f4] sm:$0xf]
      %v899 = vld [vmem:[%s654 + $0x2f8] sm:$0xf]
      %v900 = vld [vmem:[%s654 + $0x2fc] sm:$0xf]
      %v901 = vld [vmem:[%s658] sm:$0x1]
      %v902 = vld [vmem:[%s658 + $0x1] sm:$0x1]
      %v903 = vld [vmem:[%s658 + $0x2] sm:$0x1]
      %v904 = vld [vmem:[%s658 + $0x3] sm:$0x1]
      %v905 = vld [vmem:[%s658 + $0x4] sm:$0x1]
      %v906 = vld [vmem:[%s658 + $0x5] sm:$0x1]
      %v907 = vld [vmem:[%s658 + $0x6] sm:$0x1]
      %v908 = vld [vmem:[%s658 + $0x7] sm:$0x1]
      %v909 = vld [vmem:[%s658 + $0x8] sm:$0x1]
      %v910 = vld [vmem:[%s658 + $0x9] sm:$0x1]
      %v911 = vld [vmem:[%s658 + $0xa] sm:$0x1]
      %v912 = vld [vmem:[%s658 + $0xb] sm:$0x1]
      %v913 = vpack.c.bf16 %v708, %v708
      %v926 = vperm.slane %v901, 0
      %v927 = vperm.slane %v902, 0
      %v928 = vperm.slane %v903, 0
      %v929 = vperm.slane %v904, 0
      %v930 = vperm.slane %v905, 0
      %v931 = vperm.slane %v906, 0
      %v932 = vperm.slane %v907, 0
      %v933 = vperm.slane %v908, 0
      %v934 = vperm.slane %v909, 0
      %v935 = vperm.slane %v910, 0
      %v936 = vperm.slane %v911, 0
      %v937 = vperm.slane %v912, 0
      %v966 = vunpack.c.l.b16 %v709
      %v967 = vunpack.c.l.b16 %v710
      %v968 = vunpack.c.l.b16 %v711
      %v969 = vunpack.c.l.b16 %v712
      %v970 = vunpack.c.l.b16 %v713
      %v971 = vunpack.c.l.b16 %v714
      %v972 = vunpack.c.l.b16 %v715
      %v973 = vunpack.c.l.b16 %v716
      %v974 = vunpack.c.l.b16 %v717
      %v975 = vunpack.c.l.b16 %v718
      %v976 = vunpack.c.l.b16 %v719
      %v977 = vunpack.c.l.b16 %v720
      %v978 = vunpack.c.l.b16 %v721
      %v979 = vunpack.c.l.b16 %v722
      %v980 = vunpack.c.l.b16 %v723
      %v981 = vunpack.c.l.b16 %v724
      %v982 = vpack.c.b16 %v967, %v966
      %v983 = vpack.c.b16 %v969, %v968
      %v984 = vpack.c.b16 %v971, %v970
      %v985 = vpack.c.b16 %v973, %v972
      %v986 = vpack.c.b16 %v975, %v974
      %v987 = vpack.c.b16 %v977, %v976
      %v988 = vpack.c.b16 %v979, %v978
      %v989 = vpack.c.b16 %v981, %v980
      %998 = vmatpush.bf16.msra.mxu0 %v989
      %999 = vmatpush.bf16.msra.mxu0 %v988
      %1000 = vmatpush.bf16.msra.mxu0 %v987
      %1001 = vmatpush.bf16.msra.mxu0 %v986
      %1002 = vmatpush.bf16.msra.mxu0 %v985
      %1003 = vmatpush.bf16.msra.mxu0 %v984
      %1004 = vmatpush.bf16.msra.mxu0 %v983
      %1005 = vmatpush.bf16.msra.mxu0 %v982
      %1006 = vmatmul.bf16.gmra.mxu0 %v913
      %v1007 = vpop.f32.mrf.mxu0
      %v1008 = vadd.f32 %v926, %v1007
      %v1009 = vpop.f32.mrf.mxu0
      %1010 = vdwg.mxu0
      %v1027 = vunpack.c.l.b16 %v725
      %v1028 = vunpack.c.l.b16 %v726
      %v1029 = vunpack.c.l.b16 %v727
      %v1030 = vunpack.c.l.b16 %v728
      %v1031 = vunpack.c.l.b16 %v729
      %v1032 = vunpack.c.l.b16 %v730
      %v1033 = vunpack.c.l.b16 %v731
      %v1034 = vunpack.c.l.b16 %v732
      %v1035 = vunpack.c.l.b16 %v733
      %v1036 = vunpack.c.l.b16 %v734
      %v1037 = vunpack.c.l.b16 %v735
      %v1038 = vunpack.c.l.b16 %v736
      %v1039 = vunpack.c.l.b16 %v737
      %v1040 = vunpack.c.l.b16 %v738
      %v1041 = vunpack.c.l.b16 %v739
      %v1042 = vunpack.c.l.b16 %v740
      %v1043 = vpack.c.b16 %v1028, %v1027
      %v1044 = vpack.c.b16 %v1030, %v1029
      %v1045 = vpack.c.b16 %v1032, %v1031
      %v1046 = vpack.c.b16 %v1034, %v1033
      %v1047 = vpack.c.b16 %v1036, %v1035
      %v1048 = vpack.c.b16 %v1038, %v1037
      %v1049 = vpack.c.b16 %v1040, %v1039
      %v1050 = vpack.c.b16 %v1042, %v1041
      %1059 = vmatpush.bf16.msra.mxu0 %v1050
      %1060 = vmatpush.bf16.msra.mxu0 %v1049
      %1061 = vmatpush.bf16.msra.mxu0 %v1048
      %1062 = vmatpush.bf16.msra.mxu0 %v1047
      %1063 = vmatpush.bf16.msra.mxu0 %v1046
      %1064 = vmatpush.bf16.msra.mxu0 %v1045
      %1065 = vmatpush.bf16.msra.mxu0 %v1044
      %1066 = vmatpush.bf16.msra.mxu0 %v1043
      %1067 = vmatmul.bf16.gmra.mxu0 %v913
      %v1068 = vpop.f32.mrf.mxu0
      %v1069 = vadd.f32 %v927, %v1068
      %v1070 = vpop.f32.mrf.mxu0
      %1071 = vdwg.mxu0
      %v1088 = vunpack.c.l.b16 %v741
      %v1089 = vunpack.c.l.b16 %v742
      %v1090 = vunpack.c.l.b16 %v743
      %v1091 = vunpack.c.l.b16 %v744
      %v1092 = vunpack.c.l.b16 %v745
      %v1093 = vunpack.c.l.b16 %v746
      %v1094 = vunpack.c.l.b16 %v747
      %v1095 = vunpack.c.l.b16 %v748
      %v1096 = vunpack.c.l.b16 %v749
      %v1097 = vunpack.c.l.b16 %v750
      %v1098 = vunpack.c.l.b16 %v751
      %v1099 = vunpack.c.l.b16 %v752
      %v1100 = vunpack.c.l.b16 %v753
      %v1101 = vunpack.c.l.b16 %v754
      %v1102 = vunpack.c.l.b16 %v755
      %v1103 = vunpack.c.l.b16 %v756
      %v1104 = vpack.c.b16 %v1089, %v1088
      %v1105 = vpack.c.b16 %v1091, %v1090
      %v1106 = vpack.c.b16 %v1093, %v1092
      %v1107 = vpack.c.b16 %v1095, %v1094
      %v1108 = vpack.c.b16 %v1097, %v1096
      %v1109 = vpack.c.b16 %v1099, %v1098
      %v1110 = vpack.c.b16 %v1101, %v1100
      %v1111 = vpack.c.b16 %v1103, %v1102
      %1120 = vmatpush.bf16.msra.mxu0 %v1111
      %1121 = vmatpush.bf16.msra.mxu0 %v1110
      %1122 = vmatpush.bf16.msra.mxu0 %v1109
      %1123 = vmatpush.bf16.msra.mxu0 %v1108
      %1124 = vmatpush.bf16.msra.mxu0 %v1107
      %1125 = vmatpush.bf16.msra.mxu0 %v1106
      %1126 = vmatpush.bf16.msra.mxu0 %v1105
      %1127 = vmatpush.bf16.msra.mxu0 %v1104
      %1128 = vmatmul.bf16.gmra.mxu0 %v913
      %v1129 = vpop.f32.mrf.mxu0
      %v1130 = vadd.f32 %v928, %v1129
      %v1131 = vpop.f32.mrf.mxu0
      %1132 = vdwg.mxu0
      %v1149 = vunpack.c.l.b16 %v757
      %v1150 = vunpack.c.l.b16 %v758
      %v1151 = vunpack.c.l.b16 %v759
      %v1152 = vunpack.c.l.b16 %v760
      %v1153 = vunpack.c.l.b16 %v761
      %v1154 = vunpack.c.l.b16 %v762
      %v1155 = vunpack.c.l.b16 %v763
      %v1156 = vunpack.c.l.b16 %v764
      %v1157 = vunpack.c.l.b16 %v765
      %v1158 = vunpack.c.l.b16 %v766
      %v1159 = vunpack.c.l.b16 %v767
      %v1160 = vunpack.c.l.b16 %v768
      %v1161 = vunpack.c.l.b16 %v769
      %v1162 = vunpack.c.l.b16 %v770
      %v1163 = vunpack.c.l.b16 %v771
      %v1164 = vunpack.c.l.b16 %v772
      %v1165 = vpack.c.b16 %v1150, %v1149
      %v1166 = vpack.c.b16 %v1152, %v1151
      %v1167 = vpack.c.b16 %v1154, %v1153
      %v1168 = vpack.c.b16 %v1156, %v1155
      %v1169 = vpack.c.b16 %v1158, %v1157
      %v1170 = vpack.c.b16 %v1160, %v1159
      %v1171 = vpack.c.b16 %v1162, %v1161
      %v1172 = vpack.c.b16 %v1164, %v1163
      %1181 = vmatpush.bf16.msra.mxu0 %v1172
      %1182 = vmatpush.bf16.msra.mxu0 %v1171
      %1183 = vmatpush.bf16.msra.mxu0 %v1170
      %1184 = vmatpush.bf16.msra.mxu0 %v1169
      %1185 = vmatpush.bf16.msra.mxu0 %v1168
      %1186 = vmatpush.bf16.msra.mxu0 %v1167
      %1187 = vmatpush.bf16.msra.mxu0 %v1166
      %1188 = vmatpush.bf16.msra.mxu0 %v1165
      %1189 = vmatmul.bf16.gmra.mxu0 %v913
      %v1190 = vpop.f32.mrf.mxu0
      %v1191 = vadd.f32 %v929, %v1190
      %v1192 = vpop.f32.mrf.mxu0
      %1193 = vdwg.mxu0
      %v1210 = vunpack.c.l.b16 %v773
      %v1211 = vunpack.c.l.b16 %v774
      %v1212 = vunpack.c.l.b16 %v775
      %v1213 = vunpack.c.l.b16 %v776
      %v1214 = vunpack.c.l.b16 %v777
      %v1215 = vunpack.c.l.b16 %v778
      %v1216 = vunpack.c.l.b16 %v779
      %v1217 = vunpack.c.l.b16 %v780
      %v1218 = vunpack.c.l.b16 %v781
      %v1219 = vunpack.c.l.b16 %v782
      %v1220 = vunpack.c.l.b16 %v783
      %v1221 = vunpack.c.l.b16 %v784
      %v1222 = vunpack.c.l.b16 %v785
      %v1223 = vunpack.c.l.b16 %v786
      %v1224 = vunpack.c.l.b16 %v787
      %v1225 = vunpack.c.l.b16 %v788
      %v1226 = vpack.c.b16 %v1211, %v1210
      %v1227 = vpack.c.b16 %v1213, %v1212
      %v1228 = vpack.c.b16 %v1215, %v1214
      %v1229 = vpack.c.b16 %v1217, %v1216
      %v1230 = vpack.c.b16 %v1219, %v1218
      %v1231 = vpack.c.b16 %v1221, %v1220
      %v1232 = vpack.c.b16 %v1223, %v1222
      %v1233 = vpack.c.b16 %v1225, %v1224
      %1242 = vmatpush.bf16.msra.mxu0 %v1233
      %1243 = vmatpush.bf16.msra.mxu0 %v1232
      %1244 = vmatpush.bf16.msra.mxu0 %v1231
      %1245 = vmatpush.bf16.msra.mxu0 %v1230
      %1246 = vmatpush.bf16.msra.mxu0 %v1229
      %1247 = vmatpush.bf16.msra.mxu0 %v1228
      %1248 = vmatpush.bf16.msra.mxu0 %v1227
      %1249 = vmatpush.bf16.msra.mxu0 %v1226
      %1250 = vmatmul.bf16.gmra.mxu0 %v913
      %v1251 = vpop.f32.mrf.mxu0
      %v1252 = vadd.f32 %v930, %v1251
      %v1253 = vpop.f32.mrf.mxu0
      %1254 = vdwg.mxu0
      %v1271 = vunpack.c.l.b16 %v789
      %v1272 = vunpack.c.l.b16 %v790
      %v1273 = vunpack.c.l.b16 %v791
      %v1274 = vunpack.c.l.b16 %v792
      %v1275 = vunpack.c.l.b16 %v793
      %v1276 = vunpack.c.l.b16 %v794
      %v1277 = vunpack.c.l.b16 %v795
      %v1278 = vunpack.c.l.b16 %v796
      %v1279 = vunpack.c.l.b16 %v797
      %v1280 = vunpack.c.l.b16 %v798
      %v1281 = vunpack.c.l.b16 %v799
      %v1282 = vunpack.c.l.b16 %v800
      %v1283 = vunpack.c.l.b16 %v801
      %v1284 = vunpack.c.l.b16 %v802
      %v1285 = vunpack.c.l.b16 %v803
      %v1286 = vunpack.c.l.b16 %v804
      %v1287 = vpack.c.b16 %v1272, %v1271
      %v1288 = vpack.c.b16 %v1274, %v1273
      %v1289 = vpack.c.b16 %v1276, %v1275
      %v1290 = vpack.c.b16 %v1278, %v1277
      %v1291 = vpack.c.b16 %v1280, %v1279
      %v1292 = vpack.c.b16 %v1282, %v1281
      %v1293 = vpack.c.b16 %v1284, %v1283
      %v1294 = vpack.c.b16 %v1286, %v1285
      %1303 = vmatpush.bf16.msra.mxu0 %v1294
      %1304 = vmatpush.bf16.msra.mxu0 %v1293
      %1305 = vmatpush.bf16.msra.mxu0 %v1292
      %1306 = vmatpush.bf16.msra.mxu0 %v1291
      %1307 = vmatpush.bf16.msra.mxu0 %v1290
      %1308 = vmatpush.bf16.msra.mxu0 %v1289
      %1309 = vmatpush.bf16.msra.mxu0 %v1288
      %1310 = vmatpush.bf16.msra.mxu0 %v1287
      %1311 = vmatmul.bf16.gmra.mxu0 %v913
      %v1312 = vpop.f32.mrf.mxu0
      %v1313 = vadd.f32 %v931, %v1312
      %v1314 = vpop.f32.mrf.mxu0
      %1315 = vdwg.mxu0
      %v1332 = vunpack.c.l.b16 %v805
      %v1333 = vunpack.c.l.b16 %v806
      %v1334 = vunpack.c.l.b16 %v807
      %v1335 = vunpack.c.l.b16 %v808
      %v1336 = vunpack.c.l.b16 %v809
      %v1337 = vunpack.c.l.b16 %v810
      %v1338 = vunpack.c.l.b16 %v811
      %v1339 = vunpack.c.l.b16 %v812
      %v1340 = vunpack.c.l.b16 %v813
      %v1341 = vunpack.c.l.b16 %v814
      %v1342 = vunpack.c.l.b16 %v815
      %v1343 = vunpack.c.l.b16 %v816
      %v1344 = vunpack.c.l.b16 %v817
      %v1345 = vunpack.c.l.b16 %v818
      %v1346 = vunpack.c.l.b16 %v819
      %v1347 = vunpack.c.l.b16 %v820
      %v1348 = vpack.c.b16 %v1333, %v1332
      %v1349 = vpack.c.b16 %v1335, %v1334
      %v1350 = vpack.c.b16 %v1337, %v1336
      %v1351 = vpack.c.b16 %v1339, %v1338
      %v1352 = vpack.c.b16 %v1341, %v1340
      %v1353 = vpack.c.b16 %v1343, %v1342
      %v1354 = vpack.c.b16 %v1345, %v1344
      %v1355 = vpack.c.b16 %v1347, %v1346
      %1364 = vmatpush.bf16.msra.mxu0 %v1355
      %1365 = vmatpush.bf16.msra.mxu0 %v1354
      %1366 = vmatpush.bf16.msra.mxu0 %v1353
      %1367 = vmatpush.bf16.msra.mxu0 %v1352
      %1368 = vmatpush.bf16.msra.mxu0 %v1351
      %1369 = vmatpush.bf16.msra.mxu0 %v1350
      %1370 = vmatpush.bf16.msra.mxu0 %v1349
      %1371 = vmatpush.bf16.msra.mxu0 %v1348
      %1372 = vmatmul.bf16.gmra.mxu0 %v913
      %v1373 = vpop.f32.mrf.mxu0
      %v1374 = vadd.f32 %v932, %v1373
      %v1375 = vpop.f32.mrf.mxu0
      %1376 = vdwg.mxu0
      %v1393 = vunpack.c.l.b16 %v821
      %v1394 = vunpack.c.l.b16 %v822
      %v1395 = vunpack.c.l.b16 %v823
      %v1396 = vunpack.c.l.b16 %v824
      %v1397 = vunpack.c.l.b16 %v825
      %v1398 = vunpack.c.l.b16 %v826
      %v1399 = vunpack.c.l.b16 %v827
      %v1400 = vunpack.c.l.b16 %v828
      %v1401 = vunpack.c.l.b16 %v829
      %v1402 = vunpack.c.l.b16 %v830
      %v1403 = vunpack.c.l.b16 %v831
      %v1404 = vunpack.c.l.b16 %v832
      %v1405 = vunpack.c.l.b16 %v833
      %v1406 = vunpack.c.l.b16 %v834
      %v1407 = vunpack.c.l.b16 %v835
      %v1408 = vunpack.c.l.b16 %v836
      %v1409 = vpack.c.b16 %v1394, %v1393
      %v1410 = vpack.c.b16 %v1396, %v1395
      %v1411 = vpack.c.b16 %v1398, %v1397
      %v1412 = vpack.c.b16 %v1400, %v1399
      %v1413 = vpack.c.b16 %v1402, %v1401
      %v1414 = vpack.c.b16 %v1404, %v1403
      %v1415 = vpack.c.b16 %v1406, %v1405
      %v1416 = vpack.c.b16 %v1408, %v1407
      %1425 = vmatpush.bf16.msra.mxu0 %v1416
      %1426 = vmatpush.bf16.msra.mxu0 %v1415
      %1427 = vmatpush.bf16.msra.mxu0 %v1414
      %1428 = vmatpush.bf16.msra.mxu0 %v1413
      %1429 = vmatpush.bf16.msra.mxu0 %v1412
      %1430 = vmatpush.bf16.msra.mxu0 %v1411
      %1431 = vmatpush.bf16.msra.mxu0 %v1410
      %1432 = vmatpush.bf16.msra.mxu0 %v1409
      %1433 = vmatmul.bf16.gmra.mxu0 %v913
      %v1434 = vpop.f32.mrf.mxu0
      %v1435 = vadd.f32 %v933, %v1434
      %v1436 = vpop.f32.mrf.mxu0
      %1437 = vdwg.mxu0
      %v1454 = vunpack.c.l.b16 %v837
      %v1455 = vunpack.c.l.b16 %v838
      %v1456 = vunpack.c.l.b16 %v839
      %v1457 = vunpack.c.l.b16 %v840
      %v1458 = vunpack.c.l.b16 %v841
      %v1459 = vunpack.c.l.b16 %v842
      %v1460 = vunpack.c.l.b16 %v843
      %v1461 = vunpack.c.l.b16 %v844
      %v1462 = vunpack.c.l.b16 %v845
      %v1463 = vunpack.c.l.b16 %v846
      %v1464 = vunpack.c.l.b16 %v847
      %v1465 = vunpack.c.l.b16 %v848
      %v1466 = vunpack.c.l.b16 %v849
      %v1467 = vunpack.c.l.b16 %v850
      %v1468 = vunpack.c.l.b16 %v851
      %v1469 = vunpack.c.l.b16 %v852
      %v1470 = vpack.c.b16 %v1455, %v1454
      %v1471 = vpack.c.b16 %v1457, %v1456
      %v1472 = vpack.c.b16 %v1459, %v1458
      %v1473 = vpack.c.b16 %v1461, %v1460
      %v1474 = vpack.c.b16 %v1463, %v1462
      %v1475 = vpack.c.b16 %v1465, %v1464
      %v1476 = vpack.c.b16 %v1467, %v1466
      %v1477 = vpack.c.b16 %v1469, %v1468
      %1486 = vmatpush.bf16.msra.mxu0 %v1477
      %1487 = vmatpush.bf16.msra.mxu0 %v1476
      %1488 = vmatpush.bf16.msra.mxu0 %v1475
      %1489 = vmatpush.bf16.msra.mxu0 %v1474
      %1490 = vmatpush.bf16.msra.mxu0 %v1473
      %1491 = vmatpush.bf16.msra.mxu0 %v1472
      %1492 = vmatpush.bf16.msra.mxu0 %v1471
      %1493 = vmatpush.bf16.msra.mxu0 %v1470
      %1494 = vmatmul.bf16.gmra.mxu0 %v913
      %v1495 = vpop.f32.mrf.mxu0
      %v1496 = vadd.f32 %v934, %v1495
      %v1497 = vpop.f32.mrf.mxu0
      %1498 = vdwg.mxu0
      %v1515 = vunpack.c.l.b16 %v853
      %v1516 = vunpack.c.l.b16 %v854
      %v1517 = vunpack.c.l.b16 %v855
      %v1518 = vunpack.c.l.b16 %v856
      %v1519 = vunpack.c.l.b16 %v857
      %v1520 = vunpack.c.l.b16 %v858
      %v1521 = vunpack.c.l.b16 %v859
      %v1522 = vunpack.c.l.b16 %v860
      %v1523 = vunpack.c.l.b16 %v861
      %v1524 = vunpack.c.l.b16 %v862
      %v1525 = vunpack.c.l.b16 %v863
      %v1526 = vunpack.c.l.b16 %v864
      %v1527 = vunpack.c.l.b16 %v865
      %v1528 = vunpack.c.l.b16 %v866
      %v1529 = vunpack.c.l.b16 %v867
      %v1530 = vunpack.c.l.b16 %v868
      %v1531 = vpack.c.b16 %v1516, %v1515
      %v1532 = vpack.c.b16 %v1518, %v1517
      %v1533 = vpack.c.b16 %v1520, %v1519
      %v1534 = vpack.c.b16 %v1522, %v1521
      %v1535 = vpack.c.b16 %v1524, %v1523
      %v1536 = vpack.c.b16 %v1526, %v1525
      %v1537 = vpack.c.b16 %v1528, %v1527
      %v1538 = vpack.c.b16 %v1530, %v1529
      %1547 = vmatpush.bf16.msra.mxu0 %v1538
      %1548 = vmatpush.bf16.msra.mxu0 %v1537
      %1549 = vmatpush.bf16.msra.mxu0 %v1536
      %1550 = vmatpush.bf16.msra.mxu0 %v1535
      %1551 = vmatpush.bf16.msra.mxu0 %v1534
      %1552 = vmatpush.bf16.msra.mxu0 %v1533
      %1553 = vmatpush.bf16.msra.mxu0 %v1532
      %1554 = vmatpush.bf16.msra.mxu0 %v1531
      %1555 = vmatmul.bf16.gmra.mxu0 %v913
      %v1556 = vpop.f32.mrf.mxu0
      %v1557 = vadd.f32 %v935, %v1556
      %v1558 = vpop.f32.mrf.mxu0
      %1559 = vdwg.mxu0
      %v1576 = vunpack.c.l.b16 %v869
      %v1577 = vunpack.c.l.b16 %v870
      %v1578 = vunpack.c.l.b16 %v871
      %v1579 = vunpack.c.l.b16 %v872
      %v1580 = vunpack.c.l.b16 %v873
      %v1581 = vunpack.c.l.b16 %v874
      %v1582 = vunpack.c.l.b16 %v875
      %v1583 = vunpack.c.l.b16 %v876
      %v1584 = vunpack.c.l.b16 %v877
      %v1585 = vunpack.c.l.b16 %v878
      %v1586 = vunpack.c.l.b16 %v879
      %v1587 = vunpack.c.l.b16 %v880
      %v1588 = vunpack.c.l.b16 %v881
      %v1589 = vunpack.c.l.b16 %v882
      %v1590 = vunpack.c.l.b16 %v883
      %v1591 = vunpack.c.l.b16 %v884
      %v1592 = vpack.c.b16 %v1577, %v1576
      %v1593 = vpack.c.b16 %v1579, %v1578
      %v1594 = vpack.c.b16 %v1581, %v1580
      %v1595 = vpack.c.b16 %v1583, %v1582
      %v1596 = vpack.c.b16 %v1585, %v1584
      %v1597 = vpack.c.b16 %v1587, %v1586
      %v1598 = vpack.c.b16 %v1589, %v1588
      %v1599 = vpack.c.b16 %v1591, %v1590
      %1608 = vmatpush.bf16.msra.mxu0 %v1599
      %1609 = vmatpush.bf16.msra.mxu0 %v1598
      %1610 = vmatpush.bf16.msra.mxu0 %v1597
      %1611 = vmatpush.bf16.msra.mxu0 %v1596
      %1612 = vmatpush.bf16.msra.mxu0 %v1595
      %1613 = vmatpush.bf16.msra.mxu0 %v1594
      %1614 = vmatpush.bf16.msra.mxu0 %v1593
      %1615 = vmatpush.bf16.msra.mxu0 %v1592
      %1616 = vmatmul.bf16.gmra.mxu0 %v913
      %v1617 = vpop.f32.mrf.mxu0
      %v1618 = vadd.f32 %v936, %v1617
      %v1619 = vpop.f32.mrf.mxu0
      %1620 = vdwg.mxu0
      %v1637 = vunpack.c.l.b16 %v885
      %v1638 = vunpack.c.l.b16 %v886
      %v1639 = vunpack.c.l.b16 %v887
      %v1640 = vunpack.c.l.b16 %v888
      %v1641 = vunpack.c.l.b16 %v889
      %v1642 = vunpack.c.l.b16 %v890
      %v1643 = vunpack.c.l.b16 %v891
      %v1644 = vunpack.c.l.b16 %v892
      %v1645 = vunpack.c.l.b16 %v893
      %v1646 = vunpack.c.l.b16 %v894
      %v1647 = vunpack.c.l.b16 %v895
      %v1648 = vunpack.c.l.b16 %v896
      %v1649 = vunpack.c.l.b16 %v897
      %v1650 = vunpack.c.l.b16 %v898
      %v1651 = vunpack.c.l.b16 %v899
      %v1652 = vunpack.c.l.b16 %v900
      %v1653 = vpack.c.b16 %v1638, %v1637
      %v1654 = vpack.c.b16 %v1640, %v1639
      %v1655 = vpack.c.b16 %v1642, %v1641
      %v1656 = vpack.c.b16 %v1644, %v1643
      %v1657 = vpack.c.b16 %v1646, %v1645
      %v1658 = vpack.c.b16 %v1648, %v1647
      %v1659 = vpack.c.b16 %v1650, %v1649
      %v1660 = vpack.c.b16 %v1652, %v1651
      %1669 = vmatpush.bf16.msra.mxu0 %v1660
      %1670 = vmatpush.bf16.msra.mxu0 %v1659
      %1671 = vmatpush.bf16.msra.mxu0 %v1658
      %1672 = vmatpush.bf16.msra.mxu0 %v1657
      %1673 = vmatpush.bf16.msra.mxu0 %v1656
      %1674 = vmatpush.bf16.msra.mxu0 %v1655
      %1675 = vmatpush.bf16.msra.mxu0 %v1654
      %1676 = vmatpush.bf16.msra.mxu0 %v1653
      %1677 = vmatmul.bf16.gmra.mxu0 %v913
      %v1678 = vpop.f32.mrf.mxu0
      %v1679 = vadd.f32 %v937, %v1678
      %v1680 = vpop.f32.mrf.mxu0
      %1681 = vdwg.mxu0
      %v1682 = vld [vmem:[%s663] sm:$0xf]
      %v1683 = vld [vmem:[%s663 + $0x4] sm:$0xf]
      %v1684 = vld [vmem:[%s663 + $0x8] sm:$0xf]
      %v1685 = vld [vmem:[%s663 + $0xc] sm:$0xf]
      %v1686 = vld [vmem:[%s663 + $0x10] sm:$0xf]
      %v1687 = vld [vmem:[%s663 + $0x14] sm:$0xf]
      %v1688 = vld [vmem:[%s663 + $0x18] sm:$0xf]
      %v1689 = vld [vmem:[%s663 + $0x1c] sm:$0xf]
      %v1690 = vld [vmem:[%s663 + $0x20] sm:$0xf]
      %v1691 = vld [vmem:[%s663 + $0x24] sm:$0xf]
      %v1692 = vld [vmem:[%s663 + $0x28] sm:$0xf]
      %v1693 = vld [vmem:[%s663 + $0x2c] sm:$0xf]
      %v1694 = vld [vmem:[%s663 + $0x30] sm:$0xf]
      %v1695 = vld [vmem:[%s663 + $0x34] sm:$0xf]
      %v1696 = vld [vmem:[%s663 + $0x38] sm:$0xf]
      %v1697 = vld [vmem:[%s663 + $0x3c] sm:$0xf]
      %v1698 = vld [vmem:[%s666] sm:$0x1]
      %v1699 = vmul.f32 %v1008, 0.17677669
      %v1700 = vmul.f32 %v1069, 0.17677669
      %v1701 = vmul.f32 %v1130, 0.17677669
      %v1702 = vmul.f32 %v1191, 0.17677669
      %v1703 = vpack.c.bf16 %v1699, %v1699
      %v1704 = vpack.c.bf16 %v1700, %v1700
      %v1705 = vpack.c.bf16 %v1701, %v1701
      %v1706 = vpack.c.bf16 %v1702, %v1702
      %v1707 = vpack.c.bf16 %v1252, %v1252
      %v1708 = vpack.c.bf16 %v1313, %v1313
      %v1709 = vpack.c.bf16 %v1374, %v1374
      %v1710 = vpack.c.bf16 %v1435, %v1435
      %vm1711 = vcmask 261120
      %v1713 = vsel %vm1711, %v1703, 0
      %v1716 = vsel %vm1711, %v1707, 0
      %1718 = vmatpush.bf16.xpose.msra.mxu0 0
      %1719 = vmatpush.bf16.xpose.msra.mxu0 0
      %1720 = vmatpush.bf16.xpose.msra.mxu0 0
      %1721 = vmatpush.bf16.xpose.msra.mxu0 0
      %1722 = vmatpush.bf16.xpose.msra.mxu0 0
      %1723 = vmatpush.bf16.xpose.msra.mxu0 0
      %1724 = vmatpush.bf16.xpose.msra.mxu0 0
      %1725 = vmatpush.bf16.xpose.msra.mxu0 %v1716
      %1726 = vmatmul.bf16.gmra.mxu0 %v1713
      %v1727 = vpop.f32.mrf.mxu0
      %v1728 = vadd.f32 0.0, %v1727
      %v1729 = vpop.f32.mrf.mxu0
      %1730 = vdwg.mxu0
      %v1732 = vsel %vm1711, %v1704, 0
      %v1735 = vsel %vm1711, %v1708, 0
      %1737 = vmatpush.bf16.xpose.msra.mxu0 0
      %1738 = vmatpush.bf16.xpose.msra.mxu0 0
      %1739 = vmatpush.bf16.xpose.msra.mxu0 0
      %1740 = vmatpush.bf16.xpose.msra.mxu0 0
      %1741 = vmatpush.bf16.xpose.msra.mxu0 0
      %1742 = vmatpush.bf16.xpose.msra.mxu0 0
      %1743 = vmatpush.bf16.xpose.msra.mxu0 0
      %1744 = vmatpush.bf16.xpose.msra.mxu0 %v1735
      %1745 = vmatmul.bf16.gmra.mxu0 %v1732
      %v1746 = vpop.f32.mrf.mxu0
      %v1747 = vadd.f32 0.0, %v1746
      %v1748 = vpop.f32.mrf.mxu0
      %1749 = vdwg.mxu0
      %v1751 = vsel %vm1711, %v1705, 0
      %v1754 = vsel %vm1711, %v1709, 0
      %1756 = vmatpush.bf16.xpose.msra.mxu0 0
      %1757 = vmatpush.bf16.xpose.msra.mxu0 0
      %1758 = vmatpush.bf16.xpose.msra.mxu0 0
      %1759 = vmatpush.bf16.xpose.msra.mxu0 0
      %1760 = vmatpush.bf16.xpose.msra.mxu0 0
      %1761 = vmatpush.bf16.xpose.msra.mxu0 0
      %1762 = vmatpush.bf16.xpose.msra.mxu0 0
      %1763 = vmatpush.bf16.xpose.msra.mxu0 %v1754
      %1764 = vmatmul.bf16.gmra.mxu0 %v1751
      %v1765 = vpop.f32.mrf.mxu0
      %v1766 = vadd.f32 0.0, %v1765
      %v1767 = vpop.f32.mrf.mxu0
      %1768 = vdwg.mxu0
      %v1770 = vsel %vm1711, %v1706, 0
      %v1773 = vsel %vm1711, %v1710, 0
      %1775 = vmatpush.bf16.xpose.msra.mxu0 0
      %1776 = vmatpush.bf16.xpose.msra.mxu0 0
      %1777 = vmatpush.bf16.xpose.msra.mxu0 0
      %1778 = vmatpush.bf16.xpose.msra.mxu0 0
      %1779 = vmatpush.bf16.xpose.msra.mxu0 0
      %1780 = vmatpush.bf16.xpose.msra.mxu0 0
      %1781 = vmatpush.bf16.xpose.msra.mxu0 0
      %1782 = vmatpush.bf16.xpose.msra.mxu0 %v1773
      %1783 = vmatmul.bf16.gmra.mxu0 %v1770
      %v1784 = vpop.f32.mrf.mxu0
      %v1785 = vadd.f32 0.0, %v1784
      %v1786 = vpop.f32.mrf.mxu0
      %1787 = vdwg.mxu0
      %vm1788 = vcmask 64512
      %v1789 = vsel %vm1788, %v1728, -inf
      %1790 = vmax.xlane.f32.xlu0 %v1789
      %v1791 = vpop.xlane.xlu0 %1790
      %v1792 = vsel %vm1788, %v1747, -inf
      %1793 = vmax.xlane.f32.xlu0 %v1792
      %v1794 = vpop.xlane.xlu0 %1793
      %v1795 = vsel %vm1788, %v1766, -inf
      %1796 = vmax.xlane.f32.xlu0 %v1795
      %v1797 = vpop.xlane.xlu0 %1796
      %v1798 = vsel %vm1788, %v1785, -inf
      %1799 = vmax.xlane.f32.xlu0 %v1798
      %v1800 = vpop.xlane.xlu0 %1799
      %v1801 = vsub.f32 %v1728, %v1791
      %v1802 = vsub.f32 %v1747, %v1794
      %v1803 = vsub.f32 %v1766, %v1797
      %v1804 = vsub.f32 %v1785, %v1800
      %v1805 = vmul.f32 %v1801, 1.442695
      %v1806 = vpow.pop %v1805
      %v1807 = vmul.f32 %v1802, 1.442695
      %v1808 = vpow.pop %v1807
      %v1809 = vmul.f32 %v1803, 1.442695
      %v1810 = vpow.pop %v1809
      %v1811 = vmul.f32 %v1804, 1.442695
      %v1812 = vpow.pop %v1811
      %v1813 = vsel %vm1788, %v1806, 0.0
      %1814 = vadd.xlane.f32.xlu0 %v1813
      %v1815 = vpop.xlane.xlu0 %1814
      %v1816 = vsel %vm1788, %v1808, 0.0
      %1817 = vadd.xlane.f32.xlu0 %v1816
      %v1818 = vpop.xlane.xlu0 %1817
      %v1819 = vsel %vm1788, %v1810, 0.0
      %1820 = vadd.xlane.f32.xlu0 %v1819
      %v1821 = vpop.xlane.xlu0 %1820
      %v1822 = vsel %vm1788, %v1812, 0.0
      %1823 = vadd.xlane.f32.xlu0 %v1822
      %v1824 = vpop.xlane.xlu0 %1823
      %v1825 = vrcp.pop %v1815
      %v1826 = vrcp.pop %v1818
      %v1827 = vrcp.pop %v1821
      %v1828 = vrcp.pop %v1824
      %v1829 = vmul.f32 %v1806, %v1825
      %v1830 = vmul.f32 %v1808, %v1826
      %v1831 = vmul.f32 %v1810, %v1827
      %v1832 = vmul.f32 %v1812, %v1828
      %v1833 = vpack.c.bf16 %v1829, %v1829
      %v1834 = vpack.c.bf16 %v1830, %v1830
      %v1835 = vpack.c.bf16 %v1831, %v1831
      %v1836 = vpack.c.bf16 %v1832, %v1832
      %v1837 = vpack.c.bf16 %v1496, %v1496
      %v1838 = vpack.c.bf16 %v1557, %v1557
      %v1839 = vpack.c.bf16 %v1618, %v1618
      %v1840 = vpack.c.bf16 %v1679, %v1679
      %v1842 = vsel %vm1788, %v1833, 0
      %vm1844 = vcmask 1043456
      %v1846 = vsel %vm1844, %v1837, 0
      %1848 = vmatpush.bf16.msra.mxu0 0
      %1849 = vmatpush.bf16.msra.mxu0 0
      %1850 = vmatpush.bf16.msra.mxu0 0
      %1851 = vmatpush.bf16.msra.mxu0 0
      %1852 = vmatpush.bf16.msra.mxu0 0
      %1853 = vmatpush.bf16.msra.mxu0 0
      %1854 = vmatpush.bf16.msra.mxu0 0
      %1855 = vmatpush.bf16.msra.mxu0 %v1846
      %1856 = vmatmul.bf16.gmra.mxu0 %v1842
      %v1857 = vpop.f32.mrf.mxu0
      %v1858 = vadd.f32 0.0, %v1857
      %v1859 = vpop.f32.mrf.mxu0
      %1860 = vdwg.mxu0
      %v1862 = vsel %vm1788, %v1834, 0
      %v1865 = vsel %vm1844, %v1838, 0
      %1867 = vmatpush.bf16.msra.mxu0 0
      %1868 = vmatpush.bf16.msra.mxu0 0
      %1869 = vmatpush.bf16.msra.mxu0 0
      %1870 = vmatpush.bf16.msra.mxu0 0
      %1871 = vmatpush.bf16.msra.mxu0 0
      %1872 = vmatpush.bf16.msra.mxu0 0
      %1873 = vmatpush.bf16.msra.mxu0 0
      %1874 = vmatpush.bf16.msra.mxu0 %v1865
      %1875 = vmatmul.bf16.gmra.mxu0 %v1862
      %v1876 = vpop.f32.mrf.mxu0
      %v1877 = vadd.f32 0.0, %v1876
      %v1878 = vpop.f32.mrf.mxu0
      %1879 = vdwg.mxu0
      %v1881 = vsel %vm1788, %v1835, 0
      %v1884 = vsel %vm1844, %v1839, 0
      %1886 = vmatpush.bf16.msra.mxu0 0
      %1887 = vmatpush.bf16.msra.mxu0 0
      %1888 = vmatpush.bf16.msra.mxu0 0
      %1889 = vmatpush.bf16.msra.mxu0 0
      %1890 = vmatpush.bf16.msra.mxu0 0
      %1891 = vmatpush.bf16.msra.mxu0 0
      %1892 = vmatpush.bf16.msra.mxu0 0
      %1893 = vmatpush.bf16.msra.mxu0 %v1884
      %1894 = vmatmul.bf16.gmra.mxu0 %v1881
      %v1895 = vpop.f32.mrf.mxu0
      %v1896 = vadd.f32 0.0, %v1895
      %v1897 = vpop.f32.mrf.mxu0
      %1898 = vdwg.mxu0
      %v1900 = vsel %vm1788, %v1836, 0
      %v1903 = vsel %vm1844, %v1840, 0
      %1905 = vmatpush.bf16.msra.mxu0 0
      %1906 = vmatpush.bf16.msra.mxu0 0
      %1907 = vmatpush.bf16.msra.mxu0 0
      %1908 = vmatpush.bf16.msra.mxu0 0
      %1909 = vmatpush.bf16.msra.mxu0 0
      %1910 = vmatpush.bf16.msra.mxu0 0
      %1911 = vmatpush.bf16.msra.mxu0 0
      %1912 = vmatpush.bf16.msra.mxu0 %v1903
      %1913 = vmatmul.bf16.gmra.mxu0 %v1900
      %v1914 = vpop.f32.mrf.mxu0
      %v1915 = vadd.f32 0.0, %v1914
      %v1916 = vpop.f32.mrf.mxu0
      %1917 = vdwg.mxu0
      %v1918 = vpack.c.bf16 %v1858, %v1858
      %v1919 = vpack.c.bf16 %v1877, %v1877
      %v1924 = vunpack.c.l.b16 %v1686
      %v1925 = vunpack.c.l.b16 %v1687
      %v1926 = vunpack.c.l.b16 %v1688
      %v1927 = vunpack.c.l.b16 %v1689
      %v1928 = vpack.c.b16 %v1925, %v1924
      %v1929 = vpack.c.b16 %v1927, %v1926
      %v1933 = vsel %vm1711, %v1919, 0
      %1935 = vmatpush.bf16.msra.mxu0 0
      %1936 = vmatpush.bf16.msra.mxu0 0
      %1937 = vmatpush.bf16.msra.mxu0 0
      %1938 = vmatpush.bf16.msra.mxu0 0
      %1939 = vmatpush.bf16.msra.mxu0 0
      %1940 = vmatpush.bf16.msra.mxu0 0
      %1941 = vmatpush.bf16.msra.mxu0 %v1929
      %1942 = vmatpush.bf16.msra.mxu0 %v1928
      %1943 = vmatmul.bf16.gmra.mxu0 %v1933
      %v1944 = vpop.f32.mrf.mxu0
      %v1945 = vadd.f32 0.0, %v1944
      %v1946 = vpop.f32.mrf.mxu0
      %1947 = vdwg.mxu0
      %v1952 = vunpack.c.l.b16 %v1682
      %v1953 = vunpack.c.l.b16 %v1683
      %v1954 = vunpack.c.l.b16 %v1684
      %v1955 = vunpack.c.l.b16 %v1685
      %v1956 = vpack.c.b16 %v1953, %v1952
      %v1957 = vpack.c.b16 %v1955, %v1954
      %v1961 = vsel %vm1711, %v1918, 0
      %1963 = vmatpush.bf16.msra.mxu0 0
      %1964 = vmatpush.bf16.msra.mxu0 0
      %1965 = vmatpush.bf16.msra.mxu0 0
      %1966 = vmatpush.bf16.msra.mxu0 0
      %1967 = vmatpush.bf16.msra.mxu0 0
      %1968 = vmatpush.bf16.msra.mxu0 0
      %1969 = vmatpush.bf16.msra.mxu0 %v1957
      %1970 = vmatpush.bf16.msra.mxu0 %v1956
      %1971 = vmatmul.bf16.gmra.mxu0 %v1961
      %v1972 = vpop.f32.mrf.mxu0
      %v1973 = vadd.f32 %v1945, %v1972
      %v1974 = vpop.f32.mrf.mxu0
      %1975 = vdwg.mxu0
      %v1976 = vpack.c.bf16 %v1896, %v1896
      %v1981 = vunpack.c.l.b16 %v1690
      %v1982 = vunpack.c.l.b16 %v1691
      %v1983 = vunpack.c.l.b16 %v1692
      %v1984 = vunpack.c.l.b16 %v1693
      %v1985 = vpack.c.b16 %v1982, %v1981
      %v1986 = vpack.c.b16 %v1984, %v1983
      %v1990 = vsel %vm1711, %v1976, 0
      %1992 = vmatpush.bf16.msra.mxu0 0
      %1993 = vmatpush.bf16.msra.mxu0 0
      %1994 = vmatpush.bf16.msra.mxu0 0
      %1995 = vmatpush.bf16.msra.mxu0 0
      %1996 = vmatpush.bf16.msra.mxu0 0
      %1997 = vmatpush.bf16.msra.mxu0 0
      %1998 = vmatpush.bf16.msra.mxu0 %v1986
      %1999 = vmatpush.bf16.msra.mxu0 %v1985
      %2000 = vmatmul.bf16.gmra.mxu0 %v1990
      %v2001 = vpop.f32.mrf.mxu0
      %v2002 = vadd.f32 0.0, %v2001
      %v2003 = vpop.f32.mrf.mxu0
      %2004 = vdwg.mxu0
      %v2005 = vadd.f32 %v1973, %v2002
      %v2006 = vpack.c.bf16 %v1915, %v1915
      %v2011 = vunpack.c.l.b16 %v1694
      %v2012 = vunpack.c.l.b16 %v1695
      %v2013 = vunpack.c.l.b16 %v1696
      %v2014 = vunpack.c.l.b16 %v1697
      %v2015 = vpack.c.b16 %v2012, %v2011
      %v2016 = vpack.c.b16 %v2014, %v2013
      %v2020 = vsel %vm1711, %v2006, 0
      %2022 = vmatpush.bf16.msra.mxu0 0
      %2023 = vmatpush.bf16.msra.mxu0 0
      %2024 = vmatpush.bf16.msra.mxu0 0
      %2025 = vmatpush.bf16.msra.mxu0 0
      %2026 = vmatpush.bf16.msra.mxu0 0
      %2027 = vmatpush.bf16.msra.mxu0 0
      %2028 = vmatpush.bf16.msra.mxu0 %v2016
      %2029 = vmatpush.bf16.msra.mxu0 %v2015
      %2030 = vmatmul.bf16.gmra.mxu0 %v2020
      %v2031 = vpop.f32.mrf.mxu0
      %v2032 = vadd.f32 0.0, %v2031
      %v2033 = vpop.f32.mrf.mxu0
      %2034 = vdwg.mxu0
      %v2035 = vadd.f32 %v2005, %v2032
      %v2037 = vperm.slane %v1698, 0
      %v2039 = vadd.f32 %v2035, %v2037
      %v2040 = vadd.f32 %v708, %v2039
      %v2041 = vld [vmem:[%s669] sm:$0x1]
      %v2042 = vld [vmem:[%s672] sm:$0x1]
      %2043 = vadd.xlane.f32.xlu0 %v2040
      %v2044 = vpop.xlane.xlu0 %2043
      %v2045 = vrcp.pop 128.0
      %v2046 = vmul.f32 128.0, %v2045
      %v2047 = vsub.f32 1.0, %v2046
      %v2048 = vmul.f32 %v2045, %v2047
      %v2049 = vadd.f32 %v2045, %v2048
      %vm2050 = vweird.f32 %v2045
      %v2051 = vsel %vm2050, %v2045, %v2049
      %v2052 = vmul.f32 %v2044, %v2051
      %v2053 = vsub.f32 %v2040, %v2052
      %v2054 = vmul.f32 %v2053, %v2053
      %2055 = vadd.xlane.f32.xlu0 %v2054
      %v2056 = vpop.xlane.xlu0 %2055
      %v2057 = vmul.f32 %v2056, %v2051
      %v2058 = vadd.f32 %v2057, 1e-05
      %v2059 = vrsqrt.pop %v2058
      %v2060 = vmul.f32 %v2059, %v2058
      %v2061 = vmul.f32 %v2060, %v2059
      %v2062 = vmul.f32 0.5, %v2061
      %v2063 = vsub.f32 1.5, %v2062
      %v2064 = vmul.f32 %v2059, %v2063
      %vm2065 = vweird.f32 %v2058
      %vm2066 = vweird.f32 %v2059
      %vm2067 = vmor %vm2065, %vm2066
      %v2068 = vsel %vm2067, %v2059, %v2064
      %v2069 = vmul.f32 %v2053, %v2068
      %v2071 = vperm.slane %v2041, 0
      %v2073 = vmul.f32 %v2069, %v2071
      %v2075 = vperm.slane %v2042, 0
      %v2077 = vadd.f32 %v2073, %v2075
      %v2078 = vld [vmem:[%s677] sm:$0xff]
      %v2079 = vld [vmem:[%s677 + $0x8] sm:$0xff]
      %v2080 = vld [vmem:[%s677 + $0x10] sm:$0xff]
      %v2081 = vld [vmem:[%s677 + $0x18] sm:$0xff]
      %v2082 = vld [vmem:[%s677 + $0x20] sm:$0xff]
      %v2083 = vld [vmem:[%s677 + $0x28] sm:$0xff]
      %v2084 = vld [vmem:[%s677 + $0x30] sm:$0xff]
      %v2085 = vld [vmem:[%s677 + $0x38] sm:$0xff]
      %v2086 = vld [vmem:[%s677 + $0x40] sm:$0xff]
      %v2087 = vld [vmem:[%s677 + $0x48] sm:$0xff]
      %v2088 = vld [vmem:[%s677 + $0x50] sm:$0xff]
      %v2089 = vld [vmem:[%s677 + $0x58] sm:$0xff]
      %v2090 = vld [vmem:[%s677 + $0x60] sm:$0xff]
      %v2091 = vld [vmem:[%s677 + $0x68] sm:$0xff]
      %v2092 = vld [vmem:[%s677 + $0x70] sm:$0xff]
      %v2093 = vld [vmem:[%s677 + $0x78] sm:$0xff]
      %v2094 = vld [vmem:[%s681] sm:$0x3]
      %v2095 = vld [vmem:[%s686] sm:$0xf]
      %v2096 = vld [vmem:[%s686 + $0x4] sm:$0xf]
      %v2097 = vld [vmem:[%s686 + $0x8] sm:$0xf]
      %v2098 = vld [vmem:[%s686 + $0xc] sm:$0xf]
      %v2099 = vld [vmem:[%s686 + $0x10] sm:$0xf]
      %v2100 = vld [vmem:[%s686 + $0x14] sm:$0xf]
      %v2101 = vld [vmem:[%s686 + $0x18] sm:$0xf]
      %v2102 = vld [vmem:[%s686 + $0x1c] sm:$0xf]
      %v2103 = vld [vmem:[%s686 + $0x20] sm:$0xf]
      %v2104 = vld [vmem:[%s686 + $0x24] sm:$0xf]
      %v2105 = vld [vmem:[%s686 + $0x28] sm:$0xf]
      %v2106 = vld [vmem:[%s686 + $0x2c] sm:$0xf]
      %v2107 = vld [vmem:[%s686 + $0x30] sm:$0xf]
      %v2108 = vld [vmem:[%s686 + $0x34] sm:$0xf]
      %v2109 = vld [vmem:[%s686 + $0x38] sm:$0xf]
      %v2110 = vld [vmem:[%s686 + $0x3c] sm:$0xf]
      %v2111 = vld [vmem:[%s686 + $0x40] sm:$0xf]
      %v2112 = vld [vmem:[%s686 + $0x44] sm:$0xf]
      %v2113 = vld [vmem:[%s686 + $0x48] sm:$0xf]
      %v2114 = vld [vmem:[%s686 + $0x4c] sm:$0xf]
      %v2115 = vld [vmem:[%s686 + $0x50] sm:$0xf]
      %v2116 = vld [vmem:[%s686 + $0x54] sm:$0xf]
      %v2117 = vld [vmem:[%s686 + $0x58] sm:$0xf]
      %v2118 = vld [vmem:[%s686 + $0x5c] sm:$0xf]
      %v2119 = vld [vmem:[%s686 + $0x60] sm:$0xf]
      %v2120 = vld [vmem:[%s686 + $0x64] sm:$0xf]
      %v2121 = vld [vmem:[%s686 + $0x68] sm:$0xf]
      %v2122 = vld [vmem:[%s686 + $0x6c] sm:$0xf]
      %v2123 = vld [vmem:[%s686 + $0x70] sm:$0xf]
      %v2124 = vld [vmem:[%s686 + $0x74] sm:$0xf]
      %v2125 = vld [vmem:[%s686 + $0x78] sm:$0xf]
      %v2126 = vld [vmem:[%s686 + $0x7c] sm:$0xf]
      %v2127 = vld [vmem:[%s689] sm:$0x1]
      %v2128 = vpack.c.bf16 %v2077, %v2077
      %v2130 = vperm.slane %v2094, 0
      %v2131 = vperm.slane %v2094, 1
      %v2150 = vunpack.c.l.b16 %v2078
      %v2151 = vunpack.c.h.b16 %v2078
      %v2152 = vunpack.c.l.b16 %v2079
      %v2153 = vunpack.c.h.b16 %v2079
      %v2154 = vunpack.c.l.b16 %v2080
      %v2155 = vunpack.c.h.b16 %v2080
      %v2156 = vunpack.c.l.b16 %v2081
      %v2157 = vunpack.c.h.b16 %v2081
      %v2158 = vunpack.c.l.b16 %v2082
      %v2159 = vunpack.c.h.b16 %v2082
      %v2160 = vunpack.c.l.b16 %v2083
      %v2161 = vunpack.c.h.b16 %v2083
      %v2162 = vunpack.c.l.b16 %v2084
      %v2163 = vunpack.c.h.b16 %v2084
      %v2164 = vunpack.c.l.b16 %v2085
      %v2165 = vunpack.c.h.b16 %v2085
      %v2166 = vunpack.c.l.b16 %v2086
      %v2167 = vunpack.c.h.b16 %v2086
      %v2168 = vunpack.c.l.b16 %v2087
      %v2169 = vunpack.c.h.b16 %v2087
      %v2170 = vunpack.c.l.b16 %v2088
      %v2171 = vunpack.c.h.b16 %v2088
      %v2172 = vunpack.c.l.b16 %v2089
      %v2173 = vunpack.c.h.b16 %v2089
      %v2174 = vunpack.c.l.b16 %v2090
      %v2175 = vunpack.c.h.b16 %v2090
      %v2176 = vunpack.c.l.b16 %v2091
      %v2177 = vunpack.c.h.b16 %v2091
      %v2178 = vunpack.c.l.b16 %v2092
      %v2179 = vunpack.c.h.b16 %v2092
      %v2180 = vunpack.c.l.b16 %v2093
      %v2181 = vunpack.c.h.b16 %v2093
      %v2182 = vpack.c.b16 %v2152, %v2150
      %v2183 = vpack.c.b16 %v2153, %v2151
      %v2184 = vpack.c.b16 %v2156, %v2154
      %v2185 = vpack.c.b16 %v2157, %v2155
      %v2186 = vpack.c.b16 %v2160, %v2158
      %v2187 = vpack.c.b16 %v2161, %v2159
      %v2188 = vpack.c.b16 %v2164, %v2162
      %v2189 = vpack.c.b16 %v2165, %v2163
      %v2190 = vpack.c.b16 %v2168, %v2166
      %v2191 = vpack.c.b16 %v2169, %v2167
      %v2192 = vpack.c.b16 %v2172, %v2170
      %v2193 = vpack.c.b16 %v2173, %v2171
      %v2194 = vpack.c.b16 %v2176, %v2174
      %v2195 = vpack.c.b16 %v2177, %v2175
      %v2196 = vpack.c.b16 %v2180, %v2178
      %v2197 = vpack.c.b16 %v2181, %v2179
      %2214 = vmatpush.bf16.msra.mxu0 %v2196
      %2215 = vmatpush.bf16.msra.mxu0 %v2194
      %2216 = vmatpush.bf16.msra.mxu0 %v2192
      %2217 = vmatpush.bf16.msra.mxu0 %v2190
      %2218 = vmatpush.bf16.msra.mxu0 %v2188
      %2219 = vmatpush.bf16.msra.mxu0 %v2186
      %2220 = vmatpush.bf16.msra.mxu0 %v2184
      %2221 = vmatpush.bf16.msra.mxu0 %v2182
      %2222 = vmatmul.bf16.gmra.mxu0 %v2128
      %v2223 = vpop.f32.mrf.mxu0
      %v2224 = vadd.f32 %v2130, %v2223
      %v2225 = vpop.f32.mrf.mxu0
      %2226 = vdwg.mxu0
      %2227 = vmatpush.bf16.msra.mxu0 %v2197
      %2228 = vmatpush.bf16.msra.mxu0 %v2195
      %2229 = vmatpush.bf16.msra.mxu0 %v2193
      %2230 = vmatpush.bf16.msra.mxu0 %v2191
      %2231 = vmatpush.bf16.msra.mxu0 %v2189
      %2232 = vmatpush.bf16.msra.mxu0 %v2187
      %2233 = vmatpush.bf16.msra.mxu0 %v2185
      %2234 = vmatpush.bf16.msra.mxu0 %v2183
      %2235 = vmatmul.bf16.gmra.mxu0 %v2128
      %v2236 = vpop.f32.mrf.mxu0
      %v2237 = vadd.f32 %v2131, %v2236
      %v2238 = vpop.f32.mrf.mxu0
      %2239 = vdwg.mxu0
      %v2240 = vmax.f32 %v2224, 0.0
      %v2241 = vmax.f32 %v2237, 0.0
      %v2242 = vpack.c.bf16 %v2240, %v2240
      %v2243 = vpack.c.bf16 %v2241, %v2241
      %v2245 = vperm.slane %v2127, 0
      %v2279 = vunpack.c.l.b16 %v2095
      %v2280 = vunpack.c.l.b16 %v2096
      %v2281 = vunpack.c.l.b16 %v2097
      %v2282 = vunpack.c.l.b16 %v2098
      %v2283 = vunpack.c.l.b16 %v2099
      %v2284 = vunpack.c.l.b16 %v2100
      %v2285 = vunpack.c.l.b16 %v2101
      %v2286 = vunpack.c.l.b16 %v2102
      %v2287 = vunpack.c.l.b16 %v2103
      %v2288 = vunpack.c.l.b16 %v2104
      %v2289 = vunpack.c.l.b16 %v2105
      %v2290 = vunpack.c.l.b16 %v2106
      %v2291 = vunpack.c.l.b16 %v2107
      %v2292 = vunpack.c.l.b16 %v2108
      %v2293 = vunpack.c.l.b16 %v2109
      %v2294 = vunpack.c.l.b16 %v2110
      %v2295 = vunpack.c.l.b16 %v2111
      %v2296 = vunpack.c.l.b16 %v2112
      %v2297 = vunpack.c.l.b16 %v2113
      %v2298 = vunpack.c.l.b16 %v2114
      %v2299 = vunpack.c.l.b16 %v2115
      %v2300 = vunpack.c.l.b16 %v2116
      %v2301 = vunpack.c.l.b16 %v2117
      %v2302 = vunpack.c.l.b16 %v2118
      %v2303 = vunpack.c.l.b16 %v2119
      %v2304 = vunpack.c.l.b16 %v2120
      %v2305 = vunpack.c.l.b16 %v2121
      %v2306 = vunpack.c.l.b16 %v2122
      %v2307 = vunpack.c.l.b16 %v2123
      %v2308 = vunpack.c.l.b16 %v2124
      %v2309 = vunpack.c.l.b16 %v2125
      %v2310 = vunpack.c.l.b16 %v2126
      %v2311 = vpack.c.b16 %v2280, %v2279
      %v2312 = vpack.c.b16 %v2282, %v2281
      %v2313 = vpack.c.b16 %v2284, %v2283
      %v2314 = vpack.c.b16 %v2286, %v2285
      %v2315 = vpack.c.b16 %v2288, %v2287
      %v2316 = vpack.c.b16 %v2290, %v2289
      %v2317 = vpack.c.b16 %v2292, %v2291
      %v2318 = vpack.c.b16 %v2294, %v2293
      %v2319 = vpack.c.b16 %v2296, %v2295
      %v2320 = vpack.c.b16 %v2298, %v2297
      %v2321 = vpack.c.b16 %v2300, %v2299
      %v2322 = vpack.c.b16 %v2302, %v2301
      %v2323 = vpack.c.b16 %v2304, %v2303
      %v2324 = vpack.c.b16 %v2306, %v2305
      %v2325 = vpack.c.b16 %v2308, %v2307
      %v2326 = vpack.c.b16 %v2310, %v2309
      %2343 = vmatpush.bf16.msra.mxu0 %v2318
      %2344 = vmatpush.bf16.msra.mxu0 %v2317
      %2345 = vmatpush.bf16.msra.mxu0 %v2316
      %2346 = vmatpush.bf16.msra.mxu0 %v2315
      %2347 = vmatpush.bf16.msra.mxu0 %v2314
      %2348 = vmatpush.bf16.msra.mxu0 %v2313
      %2349 = vmatpush.bf16.msra.mxu0 %v2312
      %2350 = vmatpush.bf16.msra.mxu0 %v2311
      %2351 = vmatmul.bf16.gmra.mxu0 %v2242
      %v2352 = vpop.f32.mrf.mxu0
      %v2353 = vadd.f32 %v2245, %v2352
      %v2354 = vpop.f32.mrf.mxu0
      %2355 = vdwg.mxu0
      %2356 = vmatpush.bf16.msra.mxu0 %v2326
      %2357 = vmatpush.bf16.msra.mxu0 %v2325
      %2358 = vmatpush.bf16.msra.mxu0 %v2324
      %2359 = vmatpush.bf16.msra.mxu0 %v2323
      %2360 = vmatpush.bf16.msra.mxu0 %v2322
      %2361 = vmatpush.bf16.msra.mxu0 %v2321
      %2362 = vmatpush.bf16.msra.mxu0 %v2320
      %2363 = vmatpush.bf16.msra.mxu0 %v2319
      %2364 = vmatmul.bf16.gmra.mxu0 %v2243
      %v2365 = vpop.f32.mrf.mxu0
      %v2366 = vadd.f32 %v2353, %v2365
      %v2367 = vpop.f32.mrf.mxu0
      %2368 = vdwg.mxu0
      %v2369 = vadd.f32 %v2077, %v2366
      %v2370 = vld [vmem:[%s692] sm:$0x1]
      %v2371 = vld [vmem:[%s695] sm:$0x1]
      %2372 = vadd.xlane.f32.xlu0 %v2369
      %v2373 = vpop.xlane.xlu0 %2372
      %v2374 = vmul.f32 %v2373, %v2051
      %v2375 = vsub.f32 %v2369, %v2374
      %v2376 = vmul.f32 %v2375, %v2375
      %2377 = vadd.xlane.f32.xlu0 %v2376
      %v2378 = vpop.xlane.xlu0 %2377
      %v2379 = vmul.f32 %v2378, %v2051
      %v2380 = vadd.f32 %v2379, 1e-05
      %v2381 = vrsqrt.pop %v2380
      %v2382 = vmul.f32 %v2381, %v2380
      %v2383 = vmul.f32 %v2382, %v2381
      %v2384 = vmul.f32 0.5, %v2383
      %v2385 = vsub.f32 1.5, %v2384
      %v2386 = vmul.f32 %v2381, %v2385
      %vm2387 = vweird.f32 %v2380
      %vm2388 = vweird.f32 %v2381
      %vm2389 = vmor %vm2387, %vm2388
      %v2390 = vsel %vm2389, %v2381, %v2386
      %v2391 = vmul.f32 %v2375, %v2390
      %v2393 = vperm.slane %v2370, 0
      %v2395 = vmul.f32 %v2391, %v2393
      %v2397 = vperm.slane %v2371, 0
      %v2399 = vadd.f32 %v2395, %v2397
      %2400 = vst [vmem:[#allocation2] sm:$0xff] %v2399
      %p2401 = scmp.eq.s32.totalorder %s31, 1
      // Predicated region
      $region85: #{translation_transformer_forward.3} parent=79 // pred_check
        %p2402 = pneg %p2401
      $region86: #{translation_transformer_forward.3} parent=79 // pred_check_branch
        %2404 = sbr.rel (%p2402) target = $region88
      $region87: #{translation_transformer_forward.3} parent=79 // pred_region
        %v2405 = vld [vmem:[%s13] sm:$0x1]
        %v2406 = vld [vmem:[%s14] sm:$0x1]
        %2407 = vadd.xlane.f32.xlu0 %v2399
        %v2408 = vpop.xlane.xlu0 %2407
        %v2409 = vmul.f32 %v2408, %v2051
        %v2410 = vsub.f32 %v2399, %v2409
        %v2411 = vmul.f32 %v2410, %v2410
        %2412 = vadd.xlane.f32.xlu0 %v2411
        %v2413 = vpop.xlane.xlu0 %2412
        %v2414 = vmul.f32 %v2413, %v2051
        %v2415 = vadd.f32 %v2414, 1e-05
        %v2416 = vrsqrt.pop %v2415
        %v2417 = vmul.f32 %v2416, %v2415
        %v2418 = vmul.f32 %v2417, %v2416
        %v2419 = vmul.f32 0.5, %v2418
        %v2420 = vsub.f32 1.5, %v2419
        %v2421 = vmul.f32 %v2416, %v2420
        %vm2422 = vweird.f32 %v2415
        %vm2423 = vweird.f32 %v2416
        %vm2424 = vmor %vm2422, %vm2423
        %v2425 = vsel %vm2424, %v2416, %v2421
        %v2426 = vmul.f32 %v2410, %v2425
        %v2428 = vperm.slane %v2405, 0
        %v2430 = vmul.f32 %v2426, %v2428
        %v2432 = vperm.slane %v2406, 0
        %v2434 = vadd.f32 %v2430, %v2432
        %v2435 = vpack.c.bf16 %v2434, %v2434
        %2436 = vst [vmem:[%s699] sm:$0xf] %v2435
      $region88: #{translation_transformer_forward.3} parent=79 // pred_fallthru
        _
      %p2437 = scmp.lt.s32.totalorder %s30, 1
      %s2438 = scalar_select %p2437, %s30, 1
      %s2439 = smul.addr %s2438, 4
      %s2440 = scalar_lea.vmem %s15, %s2439
      // Predicated region
      $region89: #{translation_transformer_forward.3} parent=79 // pred_check
        %p2441 = pneg %p436
      $region90: #{translation_transformer_forward.3} parent=79 // pred_check_branch
        %2443 = sbr.rel (%p2441) target = $region92
      $region91: #{translation_transformer_forward.3} parent=79 // pred_region
        _
      $region92: #{translation_transformer_forward.3} parent=79 // pred_fallthru
        _
    $region80: #{translation_transformer_forward.3} parent=5 // pred_fallthru
      _
    %p2444 = scmp.le.s32.totalorder 2, %s21
    // Predicated region
    $region93: #{translation_transformer_forward.3} parent=5 // pred_check
      %p2445 = pneg %p2444
    $region94: #{translation_transformer_forward.3} parent=5 // pred_check_branch
      %2447 = sbr.rel (%p2445) target = $region96
    $region95: #{translation_transformer_forward.3} parent=5 // pred_region
      %s2448 = ssub.s32 %s21, 2
      // Predicated region
      $region97: #{translation_transformer_forward.3} parent=95 // pred_check
        %p2449 = pneg %p442
      $region98: #{translation_transformer_forward.3} parent=95 // pred_check_branch
        %2451 = sbr.rel (%p2449) target = $region100
      $region99: #{translation_transformer_forward.3} parent=95 // pred_region
        %p2452 = scmp.lt.s32.totalorder %s32, 1
        %s2453 = scalar_select %p2452, %s32, 1
        %s2454 = smul.addr %s2453, 4
        %s2455 = scalar_lea.vmem %s15, %s2454
      $region100: #{translation_transformer_forward.3} parent=95 // pred_fallthru
        _
    $region96: #{translation_transformer_forward.3} parent=5 // pred_fallthru
      _
  $region6: #{translation_transformer_forward.3} parent=0 // loop_footer
    %s25 = sadd.s32 1, %s21
  $region7: #{translation_transformer_forward.3} parent=0 // loop_footer_branch
    %20 = sbr.rel target = $region3
  $region8: #{translation_transformer_forward.3} parent=0 // loop_exit
    _

// kernel: translation_transformer_forward.4
$region0: #{translation_transformer_forward.4}
  #allocation0 [shape = 'u32[]', space=smem, size = 0x4, offset = 0x4, fixed_abs, tag = 'smem constant byte address 0x4 - core index']
  #allocation1 [shape = 'u32[72,128]{1,0:T(1,128)}', space=vmem, size = 0x9000, scoped, tag = 'internal scratch']
  #allocation2 [shape = 'f32[8,128]{1,0:T(8,128)}', space=vmem, size = 0x1000, scoped, tag = 'scratch operand']
  %s0 = inlined_call_operand.vmem [shape: bf16[2,8,128], index: 0, kind: input, shape index: {}]
  %s1 = inlined_call_operand.vmem [shape: bf16[2,8,128], index: 1, kind: input, shape index: {}]
  %s2 = inlined_call_operand.vmem [shape: bf16[2,12,128,32], index: 2, kind: input, shape index: {}]
  %s3 = inlined_call_operand.vmem [shape: f32[2,12,1,32], index: 3, kind: input, shape index: {}]
  %s4 = inlined_call_operand.vmem [shape: bf16[2,4,32,128], index: 4, kind: input, shape index: {}]
  %s5 = inlined_call_operand.vmem [shape: f32[2,1,128], index: 5, kind: input, shape index: {}]
  %s6 = inlined_call_operand.vmem [shape: f32[2,1,128], index: 6, kind: input, shape index: {}]
  %s7 = inlined_call_operand.vmem [shape: f32[2,1,128], index: 7, kind: input, shape index: {}]
  %s8 = inlined_call_operand.vmem [shape: bf16[2,4,128,32], index: 8, kind: input, shape index: {}]
  %s9 = inlined_call_operand.vmem [shape: f32[2,4,1,32], index: 9, kind: input, shape index: {}]
  %s10 = inlined_call_operand.vmem [shape: bf16[2,8,128,32], index: 10, kind: input, shape index: {}]
  %s11 = inlined_call_operand.vmem [shape: f32[2,8,1,32], index: 11, kind: input, shape index: {}]
  %s12 = inlined_call_operand.vmem [shape: bf16[2,4,32,128], index: 12, kind: input, shape index: {}]
  %s13 = inlined_call_operand.vmem [shape: f32[2,1,128], index: 13, kind: input, shape index: {}]
  %s14 = inlined_call_operand.vmem [shape: f32[2,1,128], index: 14, kind: input, shape index: {}]
  %s15 = inlined_call_operand.vmem [shape: f32[2,1,128], index: 15, kind: input, shape index: {}]
  %s16 = inlined_call_operand.vmem [shape: bf16[2,128,256], index: 16, kind: input, shape index: {}]
  %s17 = inlined_call_operand.vmem [shape: f32[2,1,256], index: 17, kind: input, shape index: {}]
  %s18 = inlined_call_operand.vmem [shape: bf16[2,256,128], index: 18, kind: input, shape index: {}]
  %s19 = inlined_call_operand.vmem [shape: f32[2,1,128], index: 19, kind: input, shape index: {}]
  %s20 = inlined_call_operand.vmem [shape: f32[2,1,128], index: 20, kind: input, shape index: {}]
  %s21 = inlined_call_operand.vmem [shape: f32[2,1,128], index: 21, kind: input, shape index: {}]
  %s22 = inlined_call_operand.vmem [shape: f32[1,128], index: 22, kind: input, shape index: {}]
  %s23 = inlined_call_operand.vmem [shape: f32[1,128], index: 23, kind: input, shape index: {}]
  %s24 = inlined_call_operand.vmem [shape: bf16[2,8,128], index: 24, kind: output, shape index: {}]
  %s25 = sld [smem:[#allocation0]]
  $region137: #{translation_transformer_forward.4} parent=0
    _
  %s27 = ssub.s32 1, %s25
  %s28 = scalar_select 0, %s27, %s25
  loop: start=0, step=1, limit=6
  $region2: #{translation_transformer_forward.4} parent=0 // loop_pre_header
    _
  $region3: #{translation_transformer_forward.4} parent=0 // loop_header
    %s30 = sphi 0, %s34
    %p31 = scmp.ge.s32.totalorder %s30, 6
    %s37 = sphi 0, %s49
    %s38 = sphi 0, %s45
    %s39 = sphi 0, %s37
    %s40 = sphi 0, %s38
    %s41 = sphi 0, %s39
    %s42 = sphi 0, %s40
    %s52 = sphi 0, %s54
    %s55 = sphi 0, %s52
    %s56 = sphi 0, %s55
    %s72 = sphi 0, %s56
    %s78 = sphi 0, %s80
    %s81 = sphi 0, %s78
    %s82 = sphi 0, %s81
    %s98 = sphi 0, %s82
    %s104 = sphi 0, %s106
    %s107 = sphi 0, %s104
    %s108 = sphi 0, %s107
    %s124 = sphi 0, %s108
    %s130 = sphi 0, %s132
    %s133 = sphi 0, %s130
    %s134 = sphi 0, %s133
    %s150 = sphi 0, %s134
    %s156 = sphi 0, %s158
    %s159 = sphi 0, %s156
    %s160 = sphi 0, %s159
    %s176 = sphi 0, %s160
    %s182 = sphi 0, %s184
    %s185 = sphi 0, %s182
    %s186 = sphi 0, %s185
    %s202 = sphi 0, %s186
    %s208 = sphi 0, %s210
    %s211 = sphi 0, %s208
    %s212 = sphi 0, %s211
    %s228 = sphi 0, %s212
    %s234 = sphi 0, %s236
    %s237 = sphi 0, %s234
    %s238 = sphi 0, %s237
    %s254 = sphi 0, %s238
    %s260 = sphi 0, %s262
    %s263 = sphi 0, %s260
    %s264 = sphi 0, %s263
    %s280 = sphi 0, %s264
    %s286 = sphi 0, %s288
    %s289 = sphi 0, %s286
    %s290 = sphi 0, %s289
    %s306 = sphi 0, %s290
    %s312 = sphi 0, %s314
    %s315 = sphi 0, %s312
    %s316 = sphi 0, %s315
    %s332 = sphi 0, %s316
    %s338 = sphi 0, %s340
    %s341 = sphi 0, %s338
    %s342 = sphi 0, %s341
    %s358 = sphi 0, %s342
    %s364 = sphi 0, %s366
    %s367 = sphi 0, %s364
    %s368 = sphi 0, %s367
    %s384 = sphi 0, %s368
    %s390 = sphi 0, %s392
    %s393 = sphi 0, %s390
    %s394 = sphi 0, %s393
    %s410 = sphi 0, %s394
    %s416 = sphi 0, %s418
    %s419 = sphi 0, %s416
    %s420 = sphi 0, %s419
    %s436 = sphi 0, %s420
    %s442 = sphi 0, %s444
    %s445 = sphi 0, %s442
    %s446 = sphi 0, %s445
    %s462 = sphi 0, %s446
    %s468 = sphi 0, %s470
    %s471 = sphi 0, %s468
    %s472 = sphi 0, %s471
    %s488 = sphi 0, %s472
    %s494 = sphi 0, %s496
    %s497 = sphi 0, %s494
    %s498 = sphi 0, %s497
    %s514 = sphi 0, %s498
    %s520 = sphi 0, %s522
    %s523 = sphi 0, %s520
    %s524 = sphi 0, %s523
    %s540 = sphi 0, %s524
    %s546 = sphi 0, %s548
    %s549 = sphi 0, %s546
    %s550 = sphi 0, %s549
    %s566 = sphi 0, %s550
    %s572 = sphi 0, %s574
    %s575 = sphi 0, %s572
    %s576 = sphi 0, %s575
    %s592 = sphi 0, %s576
    %s598 = sphi 0, %s600
    %s601 = sphi 0, %s598
    %s602 = sphi 0, %s601
    %s618 = sphi 0, %s602
    %s622 = sphi 0, %s622
    %s624 = sphi 0, %s622
    %s625 = sphi 0, %s624
    %s639 = sphi 0, %s625
    %s643 = sphi 0, %s643
    %s645 = sphi 0, %s643
    %s646 = sphi 0, %s645
    %s660 = sphi 0, %s646
    %s666 = sphi 0, %s668
    %s669 = sphi 0, %s666
    %s670 = sphi 0, %s669
    %s686 = sphi 0, %s670
  $region4: #{translation_transformer_forward.4} parent=0 // loop_header_branch
    %33 = sbr.rel (%p31) target = $region8
  $region5: #{translation_transformer_forward.4} parent=0 // loop_body
    %s35 = ssub.s32 %s30, 1
    %s36 = ssub.s32 %s30, 2
    %s43 = sadd.s32 1, %s38
    %p44 = scmp.ge.s32.totalorder %s43, 2
    %s45 = scalar_select %p44, 0, %s43
    %s46 = sadd.s32 1, %s37
    %s47 = scalar_select %p44, %s46, %s37
    %p48 = scmp.ge.s32.totalorder %s47, 2
    %s49 = scalar_select %p48, 0, %s47
    %s50 = ssub.s32 %s37, %s49
    %p51 = scmp.eq.s32.totalorder %s50, 0
    %s53 = sadd.s32 %s52, 1
    %s54 = scalar_select %p51, %s52, %s53
    %p57 = pneg %p51
    %p58 = scmp.eq.s32.totalorder %s30, 3
    %p59 = por %p57, %p58
    %p60 = scmp.ne.s32.totalorder %s52, %s55
    %p61 = scmp.eq.s32.totalorder %s30, 0
    %p62 = por %p60, %p61
    %p63 = scmp.ne.s32.totalorder %s52, %s55
    %p64 = scmp.eq.s32.totalorder %s35, 3
    %p65 = por %p63, %p64
    %p66 = scmp.ne.s32.totalorder %s55, %s56
    %p67 = scmp.eq.s32.totalorder %s35, 0
    %p68 = por %p66, %p67
    %p69 = scmp.ne.s32.totalorder %s55, %s56
    %p70 = scmp.eq.s32.totalorder %s36, 3
    %p71 = por %p69, %p70
    %p73 = scmp.ne.s32.totalorder %s56, %s72
    %p74 = scmp.eq.s32.totalorder %s36, 0
    %p75 = por %p73, %p74
    %s76 = ssub.s32 %s37, %s49
    %p77 = scmp.eq.s32.totalorder %s76, 0
    %s79 = sadd.s32 %s78, 1
    %s80 = scalar_select %p77, %s78, %s79
    %p83 = pneg %p77
    %p84 = scmp.eq.s32.totalorder %s30, 3
    %p85 = por %p83, %p84
    %p86 = scmp.ne.s32.totalorder %s78, %s81
    %p87 = scmp.eq.s32.totalorder %s30, 0
    %p88 = por %p86, %p87
    %p89 = scmp.ne.s32.totalorder %s78, %s81
    %p90 = scmp.eq.s32.totalorder %s35, 3
    %p91 = por %p89, %p90
    %p92 = scmp.ne.s32.totalorder %s81, %s82
    %p93 = scmp.eq.s32.totalorder %s35, 0
    %p94 = por %p92, %p93
    %p95 = scmp.ne.s32.totalorder %s81, %s82
    %p96 = scmp.eq.s32.totalorder %s36, 3
    %p97 = por %p95, %p96
    %p99 = scmp.ne.s32.totalorder %s82, %s98
    %p100 = scmp.eq.s32.totalorder %s36, 0
    %p101 = por %p99, %p100
    %s102 = ssub.s32 %s38, %s45
    %p103 = scmp.eq.s32.totalorder %s102, 0
    %s105 = sadd.s32 %s104, 1
    %s106 = scalar_select %p103, %s104, %s105
    %p109 = pneg %p103
    %p110 = scmp.eq.s32.totalorder %s30, 3
    %p111 = por %p109, %p110
    %p112 = scmp.ne.s32.totalorder %s104, %s107
    %p113 = scmp.eq.s32.totalorder %s30, 0
    %p114 = por %p112, %p113
    %p115 = scmp.ne.s32.totalorder %s104, %s107
    %p116 = scmp.eq.s32.totalorder %s35, 3
    %p117 = por %p115, %p116
    %p118 = scmp.ne.s32.totalorder %s107, %s108
    %p119 = scmp.eq.s32.totalorder %s35, 0
    %p120 = por %p118, %p119
    %p121 = scmp.ne.s32.totalorder %s107, %s108
    %p122 = scmp.eq.s32.totalorder %s36, 3
    %p123 = por %p121, %p122
    %p125 = scmp.ne.s32.totalorder %s108, %s124
    %p126 = scmp.eq.s32.totalorder %s36, 0
    %p127 = por %p125, %p126
    %s128 = ssub.s32 %s38, %s45
    %p129 = scmp.eq.s32.totalorder %s128, 0
    %s131 = sadd.s32 %s130, 1
    %s132 = scalar_select %p129, %s130, %s131
    %p135 = pneg %p129
    %p136 = scmp.eq.s32.totalorder %s30, 3
    %p137 = por %p135, %p136
    %p138 = scmp.ne.s32.totalorder %s130, %s133
    %p139 = scmp.eq.s32.totalorder %s30, 0
    %p140 = por %p138, %p139
    %p141 = scmp.ne.s32.totalorder %s130, %s133
    %p142 = scmp.eq.s32.totalorder %s35, 3
    %p143 = por %p141, %p142
    %p144 = scmp.ne.s32.totalorder %s133, %s134
    %p145 = scmp.eq.s32.totalorder %s35, 0
    %p146 = por %p144, %p145
    %p147 = scmp.ne.s32.totalorder %s133, %s134
    %p148 = scmp.eq.s32.totalorder %s36, 3
    %p149 = por %p147, %p148
    %p151 = scmp.ne.s32.totalorder %s134, %s150
    %p152 = scmp.eq.s32.totalorder %s36, 0
    %p153 = por %p151, %p152
    %s154 = ssub.s32 %s38, %s45
    %p155 = scmp.eq.s32.totalorder %s154, 0
    %s157 = sadd.s32 %s156, 1
    %s158 = scalar_select %p155, %s156, %s157
    %p161 = pneg %p155
    %p162 = scmp.eq.s32.totalorder %s30, 3
    %p163 = por %p161, %p162
    %p164 = scmp.ne.s32.totalorder %s156, %s159
    %p165 = scmp.eq.s32.totalorder %s30, 0
    %p166 = por %p164, %p165
    %p167 = scmp.ne.s32.totalorder %s156, %s159
    %p168 = scmp.eq.s32.totalorder %s35, 3
    %p169 = por %p167, %p168
    %p170 = scmp.ne.s32.totalorder %s159, %s160
    %p171 = scmp.eq.s32.totalorder %s35, 0
    %p172 = por %p170, %p171
    %p173 = scmp.ne.s32.totalorder %s159, %s160
    %p174 = scmp.eq.s32.totalorder %s36, 3
    %p175 = por %p173, %p174
    %p177 = scmp.ne.s32.totalorder %s160, %s176
    %p178 = scmp.eq.s32.totalorder %s36, 0
    %p179 = por %p177, %p178
    %s180 = ssub.s32 %s38, %s45
    %p181 = scmp.eq.s32.totalorder %s180, 0
    %s183 = sadd.s32 %s182, 1
    %s184 = scalar_select %p181, %s182, %s183
    %p187 = pneg %p181
    %p188 = scmp.eq.s32.totalorder %s30, 3
    %p189 = por %p187, %p188
    %p190 = scmp.ne.s32.totalorder %s182, %s185
    %p191 = scmp.eq.s32.totalorder %s30, 0
    %p192 = por %p190, %p191
    %p193 = scmp.ne.s32.totalorder %s182, %s185
    %p194 = scmp.eq.s32.totalorder %s35, 3
    %p195 = por %p193, %p194
    %p196 = scmp.ne.s32.totalorder %s185, %s186
    %p197 = scmp.eq.s32.totalorder %s35, 0
    %p198 = por %p196, %p197
    %p199 = scmp.ne.s32.totalorder %s185, %s186
    %p200 = scmp.eq.s32.totalorder %s36, 3
    %p201 = por %p199, %p200
    %p203 = scmp.ne.s32.totalorder %s186, %s202
    %p204 = scmp.eq.s32.totalorder %s36, 0
    %p205 = por %p203, %p204
    %s206 = ssub.s32 %s38, %s45
    %p207 = scmp.eq.s32.totalorder %s206, 0
    %s209 = sadd.s32 %s208, 1
    %s210 = scalar_select %p207, %s208, %s209
    %p213 = pneg %p207
    %p214 = scmp.eq.s32.totalorder %s30, 3
    %p215 = por %p213, %p214
    %p216 = scmp.ne.s32.totalorder %s208, %s211
    %p217 = scmp.eq.s32.totalorder %s30, 0
    %p218 = por %p216, %p217
    %p219 = scmp.ne.s32.totalorder %s208, %s211
    %p220 = scmp.eq.s32.totalorder %s35, 3
    %p221 = por %p219, %p220
    %p222 = scmp.ne.s32.totalorder %s211, %s212
    %p223 = scmp.eq.s32.totalorder %s35, 0
    %p224 = por %p222, %p223
    %p225 = scmp.ne.s32.totalorder %s211, %s212
    %p226 = scmp.eq.s32.totalorder %s36, 3
    %p227 = por %p225, %p226
    %p229 = scmp.ne.s32.totalorder %s212, %s228
    %p230 = scmp.eq.s32.totalorder %s36, 0
    %p231 = por %p229, %p230
    %s232 = ssub.s32 %s38, %s45
    %p233 = scmp.eq.s32.totalorder %s232, 0
    %s235 = sadd.s32 %s234, 1
    %s236 = scalar_select %p233, %s234, %s235
    %p239 = pneg %p233
    %p240 = scmp.eq.s32.totalorder %s30, 3
    %p241 = por %p239, %p240
    %p242 = scmp.ne.s32.totalorder %s234, %s237
    %p243 = scmp.eq.s32.totalorder %s30, 0
    %p244 = por %p242, %p243
    %p245 = scmp.ne.s32.totalorder %s234, %s237
    %p246 = scmp.eq.s32.totalorder %s35, 3
    %p247 = por %p245, %p246
    %p248 = scmp.ne.s32.totalorder %s237, %s238
    %p249 = scmp.eq.s32.totalorder %s35, 0
    %p250 = por %p248, %p249
    %p251 = scmp.ne.s32.totalorder %s237, %s238
    %p252 = scmp.eq.s32.totalorder %s36, 3
    %p253 = por %p251, %p252
    %p255 = scmp.ne.s32.totalorder %s238, %s254
    %p256 = scmp.eq.s32.totalorder %s36, 0
    %p257 = por %p255, %p256
    %s258 = ssub.s32 %s38, %s45
    %p259 = scmp.eq.s32.totalorder %s258, 0
    %s261 = sadd.s32 %s260, 1
    %s262 = scalar_select %p259, %s260, %s261
    %p265 = pneg %p259
    %p266 = scmp.eq.s32.totalorder %s30, 3
    %p267 = por %p265, %p266
    %p268 = scmp.ne.s32.totalorder %s260, %s263
    %p269 = scmp.eq.s32.totalorder %s30, 0
    %p270 = por %p268, %p269
    %p271 = scmp.ne.s32.totalorder %s260, %s263
    %p272 = scmp.eq.s32.totalorder %s35, 3
    %p273 = por %p271, %p272
    %p274 = scmp.ne.s32.totalorder %s263, %s264
    %p275 = scmp.eq.s32.totalorder %s35, 0
    %p276 = por %p274, %p275
    %p277 = scmp.ne.s32.totalorder %s263, %s264
    %p278 = scmp.eq.s32.totalorder %s36, 3
    %p279 = por %p277, %p278
    %p281 = scmp.ne.s32.totalorder %s264, %s280
    %p282 = scmp.eq.s32.totalorder %s36, 0
    %p283 = por %p281, %p282
    %s284 = ssub.s32 %s38, %s45
    %p285 = scmp.eq.s32.totalorder %s284, 0
    %s287 = sadd.s32 %s286, 1
    %s288 = scalar_select %p285, %s286, %s287
    %p291 = pneg %p285
    %p292 = scmp.eq.s32.totalorder %s30, 3
    %p293 = por %p291, %p292
    %p294 = scmp.ne.s32.totalorder %s286, %s289
    %p295 = scmp.eq.s32.totalorder %s30, 0
    %p296 = por %p294, %p295
    %p297 = scmp.ne.s32.totalorder %s286, %s289
    %p298 = scmp.eq.s32.totalorder %s35, 3
    %p299 = por %p297, %p298
    %p300 = scmp.ne.s32.totalorder %s289, %s290
    %p301 = scmp.eq.s32.totalorder %s35, 0
    %p302 = por %p300, %p301
    %p303 = scmp.ne.s32.totalorder %s289, %s290
    %p304 = scmp.eq.s32.totalorder %s36, 3
    %p305 = por %p303, %p304
    %p307 = scmp.ne.s32.totalorder %s290, %s306
    %p308 = scmp.eq.s32.totalorder %s36, 0
    %p309 = por %p307, %p308
    %s310 = ssub.s32 %s38, %s45
    %p311 = scmp.eq.s32.totalorder %s310, 0
    %s313 = sadd.s32 %s312, 1
    %s314 = scalar_select %p311, %s312, %s313
    %p317 = pneg %p311
    %p318 = scmp.eq.s32.totalorder %s30, 3
    %p319 = por %p317, %p318
    %p320 = scmp.ne.s32.totalorder %s312, %s315
    %p321 = scmp.eq.s32.totalorder %s30, 0
    %p322 = por %p320, %p321
    %p323 = scmp.ne.s32.totalorder %s312, %s315
    %p324 = scmp.eq.s32.totalorder %s35, 3
    %p325 = por %p323, %p324
    %p326 = scmp.ne.s32.totalorder %s315, %s316
    %p327 = scmp.eq.s32.totalorder %s35, 0
    %p328 = por %p326, %p327
    %p329 = scmp.ne.s32.totalorder %s315, %s316
    %p330 = scmp.eq.s32.totalorder %s36, 3
    %p331 = por %p329, %p330
    %p333 = scmp.ne.s32.totalorder %s316, %s332
    %p334 = scmp.eq.s32.totalorder %s36, 0
    %p335 = por %p333, %p334
    %s336 = ssub.s32 %s38, %s45
    %p337 = scmp.eq.s32.totalorder %s336, 0
    %s339 = sadd.s32 %s338, 1
    %s340 = scalar_select %p337, %s338, %s339
    %p343 = pneg %p337
    %p344 = scmp.eq.s32.totalorder %s30, 3
    %p345 = por %p343, %p344
    %p346 = scmp.ne.s32.totalorder %s338, %s341
    %p347 = scmp.eq.s32.totalorder %s30, 0
    %p348 = por %p346, %p347
    %p349 = scmp.ne.s32.totalorder %s338, %s341
    %p350 = scmp.eq.s32.totalorder %s35, 3
    %p351 = por %p349, %p350
    %p352 = scmp.ne.s32.totalorder %s341, %s342
    %p353 = scmp.eq.s32.totalorder %s35, 0
    %p354 = por %p352, %p353
    %p355 = scmp.ne.s32.totalorder %s341, %s342
    %p356 = scmp.eq.s32.totalorder %s36, 3
    %p357 = por %p355, %p356
    %p359 = scmp.ne.s32.totalorder %s342, %s358
    %p360 = scmp.eq.s32.totalorder %s36, 0
    %p361 = por %p359, %p360
    %s362 = ssub.s32 %s38, %s45
    %p363 = scmp.eq.s32.totalorder %s362, 0
    %s365 = sadd.s32 %s364, 1
    %s366 = scalar_select %p363, %s364, %s365
    %p369 = pneg %p363
    %p370 = scmp.eq.s32.totalorder %s30, 3
    %p371 = por %p369, %p370
    %p372 = scmp.ne.s32.totalorder %s364, %s367
    %p373 = scmp.eq.s32.totalorder %s30, 0
    %p374 = por %p372, %p373
    %p375 = scmp.ne.s32.totalorder %s364, %s367
    %p376 = scmp.eq.s32.totalorder %s35, 3
    %p377 = por %p375, %p376
    %p378 = scmp.ne.s32.totalorder %s367, %s368
    %p379 = scmp.eq.s32.totalorder %s35, 0
    %p380 = por %p378, %p379
    %p381 = scmp.ne.s32.totalorder %s367, %s368
    %p382 = scmp.eq.s32.totalorder %s36, 3
    %p383 = por %p381, %p382
    %p385 = scmp.ne.s32.totalorder %s368, %s384
    %p386 = scmp.eq.s32.totalorder %s36, 0
    %p387 = por %p385, %p386
    %s388 = ssub.s32 %s38, %s45
    %p389 = scmp.eq.s32.totalorder %s388, 0
    %s391 = sadd.s32 %s390, 1
    %s392 = scalar_select %p389, %s390, %s391
    %p395 = pneg %p389
    %p396 = scmp.eq.s32.totalorder %s30, 3
    %p397 = por %p395, %p396
    %p398 = scmp.ne.s32.totalorder %s390, %s393
    %p399 = scmp.eq.s32.totalorder %s30, 0
    %p400 = por %p398, %p399
    %p401 = scmp.ne.s32.totalorder %s390, %s393
    %p402 = scmp.eq.s32.totalorder %s35, 3
    %p403 = por %p401, %p402
    %p404 = scmp.ne.s32.totalorder %s393, %s394
    %p405 = scmp.eq.s32.totalorder %s35, 0
    %p406 = por %p404, %p405
    %p407 = scmp.ne.s32.totalorder %s393, %s394
    %p408 = scmp.eq.s32.totalorder %s36, 3
    %p409 = por %p407, %p408
    %p411 = scmp.ne.s32.totalorder %s394, %s410
    %p412 = scmp.eq.s32.totalorder %s36, 0
    %p413 = por %p411, %p412
    %s414 = ssub.s32 %s38, %s45
    %p415 = scmp.eq.s32.totalorder %s414, 0
    %s417 = sadd.s32 %s416, 1
    %s418 = scalar_select %p415, %s416, %s417
    %p421 = pneg %p415
    %p422 = scmp.eq.s32.totalorder %s30, 3
    %p423 = por %p421, %p422
    %p424 = scmp.ne.s32.totalorder %s416, %s419
    %p425 = scmp.eq.s32.totalorder %s30, 0
    %p426 = por %p424, %p425
    %p427 = scmp.ne.s32.totalorder %s416, %s419
    %p428 = scmp.eq.s32.totalorder %s35, 3
    %p429 = por %p427, %p428
    %p430 = scmp.ne.s32.totalorder %s419, %s420
    %p431 = scmp.eq.s32.totalorder %s35, 0
    %p432 = por %p430, %p431
    %p433 = scmp.ne.s32.totalorder %s419, %s420
    %p434 = scmp.eq.s32.totalorder %s36, 3
    %p435 = por %p433, %p434
    %p437 = scmp.ne.s32.totalorder %s420, %s436
    %p438 = scmp.eq.s32.totalorder %s36, 0
    %p439 = por %p437, %p438
    %s440 = ssub.s32 %s38, %s45
    %p441 = scmp.eq.s32.totalorder %s440, 0
    %s443 = sadd.s32 %s442, 1
    %s444 = scalar_select %p441, %s442, %s443
    %p447 = pneg %p441
    %p448 = scmp.eq.s32.totalorder %s30, 3
    %p449 = por %p447, %p448
    %p450 = scmp.ne.s32.totalorder %s442, %s445
    %p451 = scmp.eq.s32.totalorder %s30, 0
    %p452 = por %p450, %p451
    %p453 = scmp.ne.s32.totalorder %s442, %s445
    %p454 = scmp.eq.s32.totalorder %s35, 3
    %p455 = por %p453, %p454
    %p456 = scmp.ne.s32.totalorder %s445, %s446
    %p457 = scmp.eq.s32.totalorder %s35, 0
    %p458 = por %p456, %p457
    %p459 = scmp.ne.s32.totalorder %s445, %s446
    %p460 = scmp.eq.s32.totalorder %s36, 3
    %p461 = por %p459, %p460
    %p463 = scmp.ne.s32.totalorder %s446, %s462
    %p464 = scmp.eq.s32.totalorder %s36, 0
    %p465 = por %p463, %p464
    %s466 = ssub.s32 %s38, %s45
    %p467 = scmp.eq.s32.totalorder %s466, 0
    %s469 = sadd.s32 %s468, 1
    %s470 = scalar_select %p467, %s468, %s469
    %p473 = pneg %p467
    %p474 = scmp.eq.s32.totalorder %s30, 3
    %p475 = por %p473, %p474
    %p476 = scmp.ne.s32.totalorder %s468, %s471
    %p477 = scmp.eq.s32.totalorder %s30, 0
    %p478 = por %p476, %p477
    %p479 = scmp.ne.s32.totalorder %s468, %s471
    %p480 = scmp.eq.s32.totalorder %s35, 3
    %p481 = por %p479, %p480
    %p482 = scmp.ne.s32.totalorder %s471, %s472
    %p483 = scmp.eq.s32.totalorder %s35, 0
    %p484 = por %p482, %p483
    %p485 = scmp.ne.s32.totalorder %s471, %s472
    %p486 = scmp.eq.s32.totalorder %s36, 3
    %p487 = por %p485, %p486
    %p489 = scmp.ne.s32.totalorder %s472, %s488
    %p490 = scmp.eq.s32.totalorder %s36, 0
    %p491 = por %p489, %p490
    %s492 = ssub.s32 %s38, %s45
    %p493 = scmp.eq.s32.totalorder %s492, 0
    %s495 = sadd.s32 %s494, 1
    %s496 = scalar_select %p493, %s494, %s495
    %p499 = pneg %p493
    %p500 = scmp.eq.s32.totalorder %s30, 3
    %p501 = por %p499, %p500
    %p502 = scmp.ne.s32.totalorder %s494, %s497
    %p503 = scmp.eq.s32.totalorder %s30, 0
    %p504 = por %p502, %p503
    %p505 = scmp.ne.s32.totalorder %s494, %s497
    %p506 = scmp.eq.s32.totalorder %s35, 3
    %p507 = por %p505, %p506
    %p508 = scmp.ne.s32.totalorder %s497, %s498
    %p509 = scmp.eq.s32.totalorder %s35, 0
    %p510 = por %p508, %p509
    %p511 = scmp.ne.s32.totalorder %s497, %s498
    %p512 = scmp.eq.s32.totalorder %s36, 3
    %p513 = por %p511, %p512
    %p515 = scmp.ne.s32.totalorder %s498, %s514
    %p516 = scmp.eq.s32.totalorder %s36, 0
    %p517 = por %p515, %p516
    %s518 = ssub.s32 %s38, %s45
    %p519 = scmp.eq.s32.totalorder %s518, 0
    %s521 = sadd.s32 %s520, 1
    %s522 = scalar_select %p519, %s520, %s521
    %p525 = pneg %p519
    %p526 = scmp.eq.s32.totalorder %s30, 3
    %p527 = por %p525, %p526
    %p528 = scmp.ne.s32.totalorder %s520, %s523
    %p529 = scmp.eq.s32.totalorder %s30, 0
    %p530 = por %p528, %p529
    %p531 = scmp.ne.s32.totalorder %s520, %s523
    %p532 = scmp.eq.s32.totalorder %s35, 3
    %p533 = por %p531, %p532
    %p534 = scmp.ne.s32.totalorder %s523, %s524
    %p535 = scmp.eq.s32.totalorder %s35, 0
    %p536 = por %p534, %p535
    %p537 = scmp.ne.s32.totalorder %s523, %s524
    %p538 = scmp.eq.s32.totalorder %s36, 3
    %p539 = por %p537, %p538
    %p541 = scmp.ne.s32.totalorder %s524, %s540
    %p542 = scmp.eq.s32.totalorder %s36, 0
    %p543 = por %p541, %p542
    %s544 = ssub.s32 %s38, %s45
    %p545 = scmp.eq.s32.totalorder %s544, 0
    %s547 = sadd.s32 %s546, 1
    %s548 = scalar_select %p545, %s546, %s547
    %p551 = pneg %p545
    %p552 = scmp.eq.s32.totalorder %s30, 3
    %p553 = por %p551, %p552
    %p554 = scmp.ne.s32.totalorder %s546, %s549
    %p555 = scmp.eq.s32.totalorder %s30, 0
    %p556 = por %p554, %p555
    %p557 = scmp.ne.s32.totalorder %s546, %s549
    %p558 = scmp.eq.s32.totalorder %s35, 3
    %p559 = por %p557, %p558
    %p560 = scmp.ne.s32.totalorder %s549, %s550
    %p561 = scmp.eq.s32.totalorder %s35, 0
    %p562 = por %p560, %p561
    %p563 = scmp.ne.s32.totalorder %s549, %s550
    %p564 = scmp.eq.s32.totalorder %s36, 3
    %p565 = por %p563, %p564
    %p567 = scmp.ne.s32.totalorder %s550, %s566
    %p568 = scmp.eq.s32.totalorder %s36, 0
    %p569 = por %p567, %p568
    %s570 = ssub.s32 %s38, %s45
    %p571 = scmp.eq.s32.totalorder %s570, 0
    %s573 = sadd.s32 %s572, 1
    %s574 = scalar_select %p571, %s572, %s573
    %p577 = pneg %p571
    %p578 = scmp.eq.s32.totalorder %s30, 3
    %p579 = por %p577, %p578
    %p580 = scmp.ne.s32.totalorder %s572, %s575
    %p581 = scmp.eq.s32.totalorder %s30, 0
    %p582 = por %p580, %p581
    %p583 = scmp.ne.s32.totalorder %s572, %s575
    %p584 = scmp.eq.s32.totalorder %s35, 3
    %p585 = por %p583, %p584
    %p586 = scmp.ne.s32.totalorder %s575, %s576
    %p587 = scmp.eq.s32.totalorder %s35, 0
    %p588 = por %p586, %p587
    %p589 = scmp.ne.s32.totalorder %s575, %s576
    %p590 = scmp.eq.s32.totalorder %s36, 3
    %p591 = por %p589, %p590
    %p593 = scmp.ne.s32.totalorder %s576, %s592
    %p594 = scmp.eq.s32.totalorder %s36, 0
    %p595 = por %p593, %p594
    %s596 = ssub.s32 %s38, %s45
    %p597 = scmp.eq.s32.totalorder %s596, 0
    %s599 = sadd.s32 %s598, 1
    %s600 = scalar_select %p597, %s598, %s599
    %p603 = pneg %p597
    %p604 = scmp.eq.s32.totalorder %s30, 3
    %p605 = por %p603, %p604
    %p606 = scmp.ne.s32.totalorder %s598, %s601
    %p607 = scmp.eq.s32.totalorder %s30, 0
    %p608 = por %p606, %p607
    %p609 = scmp.ne.s32.totalorder %s598, %s601
    %p610 = scmp.eq.s32.totalorder %s35, 3
    %p611 = por %p609, %p610
    %p612 = scmp.ne.s32.totalorder %s601, %s602
    %p613 = scmp.eq.s32.totalorder %s35, 0
    %p614 = por %p612, %p613
    %p615 = scmp.ne.s32.totalorder %s601, %s602
    %p616 = scmp.eq.s32.totalorder %s36, 3
    %p617 = por %p615, %p616
    %p619 = scmp.ne.s32.totalorder %s602, %s618
    %p620 = scmp.eq.s32.totalorder %s36, 0
    %p621 = por %p619, %p620
    %s623 = sadd.s32 %s622, 1
    %p626 = scmp.eq.s32.totalorder %s30, 3
    %p627 = scmp.ne.s32.totalorder %s622, %s624
    %p628 = scmp.eq.s32.totalorder %s30, 0
    %p629 = por %p627, %p628
    %p630 = scmp.ne.s32.totalorder %s622, %s624
    %p631 = scmp.eq.s32.totalorder %s35, 3
    %p632 = por %p630, %p631
    %p633 = scmp.ne.s32.totalorder %s624, %s625
    %p634 = scmp.eq.s32.totalorder %s35, 0
    %p635 = por %p633, %p634
    %p636 = scmp.ne.s32.totalorder %s624, %s625
    %p637 = scmp.eq.s32.totalorder %s36, 3
    %p638 = por %p636, %p637
    %p640 = scmp.ne.s32.totalorder %s625, %s639
    %p641 = scmp.eq.s32.totalorder %s36, 0
    %p642 = por %p640, %p641
    %s644 = sadd.s32 %s643, 1
    %p647 = scmp.eq.s32.totalorder %s30, 3
    %p648 = scmp.ne.s32.totalorder %s643, %s645
    %p649 = scmp.eq.s32.totalorder %s30, 0
    %p650 = por %p648, %p649
    %p651 = scmp.ne.s32.totalorder %s643, %s645
    %p652 = scmp.eq.s32.totalorder %s35, 3
    %p653 = por %p651, %p652
    %p654 = scmp.ne.s32.totalorder %s645, %s646
    %p655 = scmp.eq.s32.totalorder %s35, 0
    %p656 = por %p654, %p655
    %p657 = scmp.ne.s32.totalorder %s645, %s646
    %p658 = scmp.eq.s32.totalorder %s36, 3
    %p659 = por %p657, %p658
    %p661 = scmp.ne.s32.totalorder %s646, %s660
    %p662 = scmp.eq.s32.totalorder %s36, 0
    %p663 = por %p661, %p662
    %s664 = ssub.s32 %s37, %s49
    %p665 = scmp.eq.s32.totalorder %s664, 0
    %s667 = sadd.s32 %s666, 1
    %s668 = scalar_select %p665, %s666, %s667
    %p671 = pneg %p665
    %p672 = scmp.eq.s32.totalorder %s30, 3
    %p673 = por %p671, %p672
    %p674 = scmp.ne.s32.totalorder %s666, %s669
    %p675 = scmp.eq.s32.totalorder %s30, 0
    %p676 = por %p674, %p675
    %p677 = scmp.ne.s32.totalorder %s666, %s669
    %p678 = scmp.eq.s32.totalorder %s35, 3
    %p679 = por %p677, %p678
    %p680 = scmp.ne.s32.totalorder %s669, %s670
    %p681 = scmp.eq.s32.totalorder %s35, 0
    %p682 = por %p680, %p681
    %p683 = scmp.ne.s32.totalorder %s669, %s670
    %p684 = scmp.eq.s32.totalorder %s36, 3
    %p685 = por %p683, %p684
    %p687 = scmp.ne.s32.totalorder %s670, %s686
    %p688 = scmp.eq.s32.totalorder %s36, 0
    %p689 = por %p687, %p688
    %p690 = scmp.le.s32.totalorder 1, %s30
    %p691 = scmp.lt.s32.totalorder %s30, 5
    %p692 = pnand %p690, %p691
    %p693 = pneg %p692
    // Predicated region
    $region9: #{translation_transformer_forward.4} parent=5 // pred_check
      _
    $region10: #{translation_transformer_forward.4} parent=5 // pred_check_branch
      %695 = sbr.rel (%p692) target = $region12
    $region11: #{translation_transformer_forward.4} parent=5 // pred_region
      %s696 = ssub.s32 %s30, 1
      // Predicated region
      $region13: #{translation_transformer_forward.4} parent=11 // pred_check
        %p697 = pneg %p635
      $region14: #{translation_transformer_forward.4} parent=11 // pred_check_branch
        %699 = sbr.rel (%p697) target = $region16
      $region15: #{translation_transformer_forward.4} parent=11 // pred_region
        _
      $region16: #{translation_transformer_forward.4} parent=11 // pred_fallthru
        _
      // Predicated region
      $region17: #{translation_transformer_forward.4} parent=11 // pred_check
        %p700 = pneg %p656
      $region18: #{translation_transformer_forward.4} parent=11 // pred_check_branch
        %702 = sbr.rel (%p700) target = $region20
      $region19: #{translation_transformer_forward.4} parent=11 // pred_region
        _
      $region20: #{translation_transformer_forward.4} parent=11 // pred_fallthru
        _
    $region12: #{translation_transformer_forward.4} parent=5 // pred_fallthru
      _
    %p703 = scmp.lt.s32.totalorder %s30, 4
    // Predicated region
    $region21: #{translation_transformer_forward.4} parent=5 // pred_check
      %p704 = pneg %p703
    $region22: #{translation_transformer_forward.4} parent=5 // pred_check_branch
      %706 = sbr.rel (%p704) target = $region24
    $region23: #{translation_transformer_forward.4} parent=5 // pred_region
      // Predicated region
      $region25: #{translation_transformer_forward.4} parent=23 // pred_check
        %p707 = pneg %p62
      $region26: #{translation_transformer_forward.4} parent=23 // pred_check_branch
        %709 = sbr.rel (%p707) target = $region28
      $region27: #{translation_transformer_forward.4} parent=23 // pred_region
        %p710 = scmp.lt.s32.totalorder %s37, 1
        %s711 = scalar_select %p710, %s37, 1
        %s712 = smul.addr %s711, 4
        %s713 = scalar_lea.vmem %s0, %s712
      $region28: #{translation_transformer_forward.4} parent=23 // pred_fallthru
        _
      // Predicated region
      $region29: #{translation_transformer_forward.4} parent=23 // pred_check
        %p714 = pneg %p88
      $region30: #{translation_transformer_forward.4} parent=23 // pred_check_branch
        %716 = sbr.rel (%p714) target = $region32
      $region31: #{translation_transformer_forward.4} parent=23 // pred_region
        %p717 = scmp.lt.s32.totalorder %s37, 1
        %s718 = scalar_select %p717, %s37, 1
        %s719 = smul.addr %s718, 4
        %s720 = scalar_lea.vmem %s1, %s719
      $region32: #{translation_transformer_forward.4} parent=23 // pred_fallthru
        _
      // Predicated region
      $region33: #{translation_transformer_forward.4} parent=23 // pred_check
        %p721 = pneg %p114
      $region34: #{translation_transformer_forward.4} parent=23 // pred_check_branch
        %723 = sbr.rel (%p721) target = $region36
      $region35: #{translation_transformer_forward.4} parent=23 // pred_region
        %p724 = scmp.lt.s32.totalorder %s38, 1
        %s725 = scalar_select %p724, %s38, 1
        %s726 = smul.addr %s725, 192
        %s727 = smul.addr %s726, 4
        %s728 = scalar_lea.vmem %s2, %s727
      $region36: #{translation_transformer_forward.4} parent=23 // pred_fallthru
        _
      // Predicated region
      $region37: #{translation_transformer_forward.4} parent=23 // pred_check
        %p729 = pneg %p140
      $region38: #{translation_transformer_forward.4} parent=23 // pred_check_branch
        %731 = sbr.rel (%p729) target = $region40
      $region39: #{translation_transformer_forward.4} parent=23 // pred_region
        %p732 = scmp.lt.s32.totalorder %s38, 1
        %s733 = scalar_select %p732, %s38, 1
        %s734 = smul.addr %s733, 12
        %s735 = scalar_lea.vmem %s3, %s734
      $region40: #{translation_transformer_forward.4} parent=23 // pred_fallthru
        _
      // Predicated region
      $region41: #{translation_transformer_forward.4} parent=23 // pred_check
        %p736 = pneg %p166
      $region42: #{translation_transformer_forward.4} parent=23 // pred_check_branch
        %738 = sbr.rel (%p736) target = $region44
      $region43: #{translation_transformer_forward.4} parent=23 // pred_region
        %p739 = scmp.lt.s32.totalorder %s38, 1
        %s740 = scalar_select %p739, %s38, 1
        %s741 = smul.addr %s740, 16
        %s742 = smul.addr %s741, 4
        %s743 = scalar_lea.vmem %s4, %s742
      $region44: #{translation_transformer_forward.4} parent=23 // pred_fallthru
        _
      // Predicated region
      $region45: #{translation_transformer_forward.4} parent=23 // pred_check
        %p744 = pneg %p192
      $region46: #{translation_transformer_forward.4} parent=23 // pred_check_branch
        %746 = sbr.rel (%p744) target = $region48
      $region47: #{translation_transformer_forward.4} parent=23 // pred_region
        %p747 = scmp.lt.s32.totalorder %s38, 1
        %s748 = scalar_select %p747, %s38, 1
        %s749 = scalar_lea.vmem %s5, %s748
      $region48: #{translation_transformer_forward.4} parent=23 // pred_fallthru
        _
      // Predicated region
      $region49: #{translation_transformer_forward.4} parent=23 // pred_check
        %p750 = pneg %p218
      $region50: #{translation_transformer_forward.4} parent=23 // pred_check_branch
        %752 = sbr.rel (%p750) target = $region52
      $region51: #{translation_transformer_forward.4} parent=23 // pred_region
        %p753 = scmp.lt.s32.totalorder %s38, 1
        %s754 = scalar_select %p753, %s38, 1
        %s755 = scalar_lea.vmem %s6, %s754
      $region52: #{translation_transformer_forward.4} parent=23 // pred_fallthru
        _
      // Predicated region
      $region53: #{translation_transformer_forward.4} parent=23 // pred_check
        %p756 = pneg %p244
      $region54: #{translation_transformer_forward.4} parent=23 // pred_check_branch
        %758 = sbr.rel (%p756) target = $region56
      $region55: #{translation_transformer_forward.4} parent=23 // pred_region
        %p759 = scmp.lt.s32.totalorder %s38, 1
        %s760 = scalar_select %p759, %s38, 1
        %s761 = scalar_lea.vmem %s7, %s760
      $region56: #{translation_transformer_forward.4} parent=23 // pred_fallthru
        _
      // Predicated region
      $region57: #{translation_transformer_forward.4} parent=23 // pred_check
        %p762 = pneg %p270
      $region58: #{translation_transformer_forward.4} parent=23 // pred_check_branch
        %764 = sbr.rel (%p762) target = $region60
      $region59: #{translation_transformer_forward.4} parent=23 // pred_region
        %p765 = scmp.lt.s32.totalorder %s38, 1
        %s766 = scalar_select %p765, %s38, 1
        %s767 = smul.addr %s766, 64
        %s768 = smul.addr %s767, 4
        %s769 = scalar_lea.vmem %s8, %s768
      $region60: #{translation_transformer_forward.4} parent=23 // pred_fallthru
        _
      // Predicated region
      $region61: #{translation_transformer_forward.4} parent=23 // pred_check
        %p770 = pneg %p296
      $region62: #{translation_transformer_forward.4} parent=23 // pred_check_branch
        %772 = sbr.rel (%p770) target = $region64
      $region63: #{translation_transformer_forward.4} parent=23 // pred_region
        %p773 = scmp.lt.s32.totalorder %s38, 1
        %s774 = scalar_select %p773, %s38, 1
        %s775 = smul.addr %s774, 4
        %s776 = scalar_lea.vmem %s9, %s775
      $region64: #{translation_transformer_forward.4} parent=23 // pred_fallthru
        _
      // Predicated region
      $region65: #{translation_transformer_forward.4} parent=23 // pred_check
        %p777 = pneg %p322
      $region66: #{translation_transformer_forward.4} parent=23 // pred_check_branch
        %779 = sbr.rel (%p777) target = $region68
      $region67: #{translation_transformer_forward.4} parent=23 // pred_region
        %p780 = scmp.lt.s32.totalorder %s38, 1
        %s781 = scalar_select %p780, %s38, 1
        %s782 = smul.addr %s781, 128
        %s783 = smul.addr %s782, 4
        %s784 = scalar_lea.vmem %s10, %s783
      $region68: #{translation_transformer_forward.4} parent=23 // pred_fallthru
        _
      // Predicated region
      $region69: #{translation_transformer_forward.4} parent=23 // pred_check
        %p785 = pneg %p348
      $region70: #{translation_transformer_forward.4} parent=23 // pred_check_branch
        %787 = sbr.rel (%p785) target = $region72
      $region71: #{translation_transformer_forward.4} parent=23 // pred_region
        %p788 = scmp.lt.s32.totalorder %s38, 1
        %s789 = scalar_select %p788, %s38, 1
        %s790 = smul.addr %s789, 8
        %s791 = scalar_lea.vmem %s11, %s790
      $region72: #{translation_transformer_forward.4} parent=23 // pred_fallthru
        _
      // Predicated region
      $region73: #{translation_transformer_forward.4} parent=23 // pred_check
        %p792 = pneg %p374
      $region74: #{translation_transformer_forward.4} parent=23 // pred_check_branch
        %794 = sbr.rel (%p792) target = $region76
      $region75: #{translation_transformer_forward.4} parent=23 // pred_region
        %p795 = scmp.lt.s32.totalorder %s38, 1
        %s796 = scalar_select %p795, %s38, 1
        %s797 = smul.addr %s796, 16
        %s798 = smul.addr %s797, 4
        %s799 = scalar_lea.vmem %s12, %s798
      $region76: #{translation_transformer_forward.4} parent=23 // pred_fallthru
        _
      // Predicated region
      $region77: #{translation_transformer_forward.4} parent=23 // pred_check
        %p800 = pneg %p400
      $region78: #{translation_transformer_forward.4} parent=23 // pred_check_branch
        %802 = sbr.rel (%p800) target = $region80
      $region79: #{translation_transformer_forward.4} parent=23 // pred_region
        %p803 = scmp.lt.s32.totalorder %s38, 1
        %s804 = scalar_select %p803, %s38, 1
        %s805 = scalar_lea.vmem %s13, %s804
      $region80: #{translation_transformer_forward.4} parent=23 // pred_fallthru
        _
      // Predicated region
      $region81: #{translation_transformer_forward.4} parent=23 // pred_check
        %p806 = pneg %p426
      $region82: #{translation_transformer_forward.4} parent=23 // pred_check_branch
        %808 = sbr.rel (%p806) target = $region84
      $region83: #{translation_transformer_forward.4} parent=23 // pred_region
        %p809 = scmp.lt.s32.totalorder %s38, 1
        %s810 = scalar_select %p809, %s38, 1
        %s811 = scalar_lea.vmem %s14, %s810
      $region84: #{translation_transformer_forward.4} parent=23 // pred_fallthru
        _
      // Predicated region
      $region85: #{translation_transformer_forward.4} parent=23 // pred_check
        %p812 = pneg %p452
      $region86: #{translation_transformer_forward.4} parent=23 // pred_check_branch
        %814 = sbr.rel (%p812) target = $region88
      $region87: #{translation_transformer_forward.4} parent=23 // pred_region
        %p815 = scmp.lt.s32.totalorder %s38, 1
        %s816 = scalar_select %p815, %s38, 1
        %s817 = scalar_lea.vmem %s15, %s816
      $region88: #{translation_transformer_forward.4} parent=23 // pred_fallthru
        _
      // Predicated region
      $region89: #{translation_transformer_forward.4} parent=23 // pred_check
        %p818 = pneg %p478
      $region90: #{translation_transformer_forward.4} parent=23 // pred_check_branch
        %820 = sbr.rel (%p818) target = $region92
      $region91: #{translation_transformer_forward.4} parent=23 // pred_region
        %p821 = scmp.lt.s32.totalorder %s38, 1
        %s822 = scalar_select %p821, %s38, 1
        %s823 = smul.addr %s822, 32
        %s824 = smul.addr %s823, 4
        %s825 = scalar_lea.vmem %s16, %s824
      $region92: #{translation_transformer_forward.4} parent=23 // pred_fallthru
        _
      // Predicated region
      $region93: #{translation_transformer_forward.4} parent=23 // pred_check
        %p826 = pneg %p504
      $region94: #{translation_transformer_forward.4} parent=23 // pred_check_branch
        %828 = sbr.rel (%p826) target = $region96
      $region95: #{translation_transformer_forward.4} parent=23 // pred_region
        %p829 = scmp.lt.s32.totalorder %s38, 1
        %s830 = scalar_select %p829, %s38, 1
        %s831 = smul.addr %s830, 2
        %s832 = scalar_lea.vmem %s17, %s831
      $region96: #{translation_transformer_forward.4} parent=23 // pred_fallthru
        _
      // Predicated region
      $region97: #{translation_transformer_forward.4} parent=23 // pred_check
        %p833 = pneg %p530
      $region98: #{translation_transformer_forward.4} parent=23 // pred_check_branch
        %835 = sbr.rel (%p833) target = $region100
      $region99: #{translation_transformer_forward.4} parent=23 // pred_region
        %p836 = scmp.lt.s32.totalorder %s38, 1
        %s837 = scalar_select %p836, %s38, 1
        %s838 = smul.addr %s837, 32
        %s839 = smul.addr %s838, 4
        %s840 = scalar_lea.vmem %s18, %s839
      $region100: #{translation_transformer_forward.4} parent=23 // pred_fallthru
        _
      // Predicated region
      $region101: #{translation_transformer_forward.4} parent=23 // pred_check
        %p841 = pneg %p556
      $region102: #{translation_transformer_forward.4} parent=23 // pred_check_branch
        %843 = sbr.rel (%p841) target = $region104
      $region103: #{translation_transformer_forward.4} parent=23 // pred_region
        %p844 = scmp.lt.s32.totalorder %s38, 1
        %s845 = scalar_select %p844, %s38, 1
        %s846 = scalar_lea.vmem %s19, %s845
      $region104: #{translation_transformer_forward.4} parent=23 // pred_fallthru
        _
      // Predicated region
      $region105: #{translation_transformer_forward.4} parent=23 // pred_check
        %p847 = pneg %p582
      $region106: #{translation_transformer_forward.4} parent=23 // pred_check_branch
        %849 = sbr.rel (%p847) target = $region108
      $region107: #{translation_transformer_forward.4} parent=23 // pred_region
        %p850 = scmp.lt.s32.totalorder %s38, 1
        %s851 = scalar_select %p850, %s38, 1
        %s852 = scalar_lea.vmem %s20, %s851
      $region108: #{translation_transformer_forward.4} parent=23 // pred_fallthru
        _
      // Predicated region
      $region109: #{translation_transformer_forward.4} parent=23 // pred_check
        %p853 = pneg %p608
      $region110: #{translation_transformer_forward.4} parent=23 // pred_check_branch
        %855 = sbr.rel (%p853) target = $region112
      $region111: #{translation_transformer_forward.4} parent=23 // pred_region
        %p856 = scmp.lt.s32.totalorder %s38, 1
        %s857 = scalar_select %p856, %s38, 1
        %s858 = scalar_lea.vmem %s21, %s857
      $region112: #{translation_transformer_forward.4} parent=23 // pred_fallthru
        _
    $region24: #{translation_transformer_forward.4} parent=5 // pred_fallthru
      _
    %p859 = scmp.le.s32.totalorder 1, %s30
    %p860 = scmp.lt.s32.totalorder %s30, 5
    %p861 = pnand %p859, %p860
    %p862 = pneg %p861
    // Predicated region
    $region113: #{translation_transformer_forward.4} parent=5 // pred_check
      _
    $region114: #{translation_transformer_forward.4} parent=5 // pred_check_branch
      %864 = sbr.rel (%p861) target = $region116
    $region115: #{translation_transformer_forward.4} parent=5 // pred_region
      %s865 = ssub.s32 %s30, 1
      %p866 = scmp.lt.s32.totalorder %s39, 1
      %s867 = scalar_select %p866, %s39, 1
      %s868 = smul.addr %s867, 4
      %s869 = scalar_lea.vmem %s0, %s868
      %p870 = pneg %p68
      %p871 = pneg %p65
      %p872 = scmp.lt.s32.totalorder %s39, 1
      %s873 = scalar_select %p872, %s39, 1
      %s874 = smul.addr %s873, 4
      %s875 = scalar_lea.vmem %s1, %s874
      %p876 = pneg %p94
      %p877 = pneg %p91
      %p878 = scmp.lt.s32.totalorder %s40, 1
      %s879 = scalar_select %p878, %s40, 1
      %s880 = smul.addr %s879, 192
      %s881 = smul.addr %s880, 4
      %s882 = scalar_lea.vmem %s2, %s881
      %p883 = pneg %p120
      %p884 = pneg %p117
      %p885 = scmp.lt.s32.totalorder %s40, 1
      %s886 = scalar_select %p885, %s40, 1
      %s887 = smul.addr %s886, 12
      %s888 = scalar_lea.vmem %s3, %s887
      %p889 = pneg %p146
      %p890 = pneg %p143
      %p891 = scmp.lt.s32.totalorder %s40, 1
      %s892 = scalar_select %p891, %s40, 1
      %s893 = smul.addr %s892, 16
      %s894 = smul.addr %s893, 4
      %s895 = scalar_lea.vmem %s4, %s894
      %p896 = pneg %p172
      %p897 = pneg %p169
      %p898 = scmp.lt.s32.totalorder %s40, 1
      %s899 = scalar_select %p898, %s40, 1
      %s900 = scalar_lea.vmem %s5, %s899
      %p901 = pneg %p198
      %p902 = pneg %p195
      %p903 = scmp.lt.s32.totalorder %s40, 1
      %s904 = scalar_select %p903, %s40, 1
      %s905 = scalar_lea.vmem %s6, %s904
      %p906 = pneg %p224
      %p907 = pneg %p221
      %p908 = scmp.lt.s32.totalorder %s40, 1
      %s909 = scalar_select %p908, %s40, 1
      %s910 = scalar_lea.vmem %s7, %s909
      %p911 = pneg %p250
      %p912 = pneg %p247
      %p913 = scmp.lt.s32.totalorder %s40, 1
      %s914 = scalar_select %p913, %s40, 1
      %s915 = smul.addr %s914, 64
      %s916 = smul.addr %s915, 4
      %s917 = scalar_lea.vmem %s8, %s916
      %p918 = pneg %p276
      %p919 = pneg %p273
      %p920 = scmp.lt.s32.totalorder %s40, 1
      %s921 = scalar_select %p920, %s40, 1
      %s922 = smul.addr %s921, 4
      %s923 = scalar_lea.vmem %s9, %s922
      %p924 = pneg %p302
      %p925 = pneg %p299
      %p926 = scmp.lt.s32.totalorder %s40, 1
      %s927 = scalar_select %p926, %s40, 1
      %s928 = smul.addr %s927, 128
      %s929 = smul.addr %s928, 4
      %s930 = scalar_lea.vmem %s10, %s929
      %p931 = pneg %p328
      %p932 = pneg %p325
      %p933 = scmp.lt.s32.totalorder %s40, 1
      %s934 = scalar_select %p933, %s40, 1
      %s935 = smul.addr %s934, 8
      %s936 = scalar_lea.vmem %s11, %s935
      %p937 = pneg %p354
      %p938 = pneg %p351
      %p939 = scmp.lt.s32.totalorder %s40, 1
      %s940 = scalar_select %p939, %s40, 1
      %s941 = smul.addr %s940, 16
      %s942 = smul.addr %s941, 4
      %s943 = scalar_lea.vmem %s12, %s942
      %p944 = pneg %p380
      %p945 = pneg %p377
      %p946 = scmp.lt.s32.totalorder %s40, 1
      %s947 = scalar_select %p946, %s40, 1
      %s948 = scalar_lea.vmem %s13, %s947
      %p949 = pneg %p406
      %p950 = pneg %p403
      %p951 = scmp.lt.s32.totalorder %s40, 1
      %s952 = scalar_select %p951, %s40, 1
      %s953 = scalar_lea.vmem %s14, %s952
      %p954 = pneg %p432
      %p955 = pneg %p429
      %p956 = scmp.lt.s32.totalorder %s40, 1
      %s957 = scalar_select %p956, %s40, 1
      %s958 = scalar_lea.vmem %s15, %s957
      %p959 = pneg %p458
      %p960 = pneg %p455
      %p961 = scmp.lt.s32.totalorder %s40, 1
      %s962 = scalar_select %p961, %s40, 1
      %s963 = smul.addr %s962, 32
      %s964 = smul.addr %s963, 4
      %s965 = scalar_lea.vmem %s16, %s964
      %p966 = pneg %p484
      %p967 = pneg %p481
      %p968 = scmp.lt.s32.totalorder %s40, 1
      %s969 = scalar_select %p968, %s40, 1
      %s970 = smul.addr %s969, 2
      %s971 = scalar_lea.vmem %s17, %s970
      %p972 = pneg %p510
      %p973 = pneg %p507
      %p974 = scmp.lt.s32.totalorder %s40, 1
      %s975 = scalar_select %p974, %s40, 1
      %s976 = smul.addr %s975, 32
      %s977 = smul.addr %s976, 4
      %s978 = scalar_lea.vmem %s18, %s977
      %p979 = pneg %p536
      %p980 = pneg %p533
      %p981 = scmp.lt.s32.totalorder %s40, 1
      %s982 = scalar_select %p981, %s40, 1
      %s983 = scalar_lea.vmem %s19, %s982
      %p984 = pneg %p562
      %p985 = pneg %p559
      %p986 = scmp.lt.s32.totalorder %s40, 1
      %s987 = scalar_select %p986, %s40, 1
      %s988 = scalar_lea.vmem %s20, %s987
      %p989 = pneg %p588
      %p990 = pneg %p585
      %p991 = scmp.lt.s32.totalorder %s40, 1
      %s992 = scalar_select %p991, %s40, 1
      %s993 = scalar_lea.vmem %s21, %s992
      %p994 = pneg %p614
      %p995 = pneg %p611
      %p996 = pneg %p635
      %p997 = pneg %p632
      %p998 = pneg %p656
      %p999 = pneg %p653
      %p1000 = pneg %p682
      %p1001 = pneg %p679
      %p1002 = scmp.lt.s32.totalorder %s39, 1
      %s1003 = scalar_select %p1002, %s39, 1
      %s1004 = smul.addr %s1003, 4
      %s1005 = scalar_lea.vmem %s24, %s1004
      %p1006 = scmp.lt.s32.totalorder %s39, 1
      %s1007 = scalar_select %p1006, %s39, 1
      %s1008 = smul.addr %s1007, 4
      %s1009 = scalar_lea.vmem %s0, %s1008
      %p1010 = scmp.lt.s32.totalorder %s39, 1
      %s1011 = scalar_select %p1010, %s39, 1
      %s1012 = smul.addr %s1011, 4
      %s1013 = scalar_lea.vmem %s1, %s1012
      %p1014 = scmp.lt.s32.totalorder %s40, 1
      %s1015 = scalar_select %p1014, %s40, 1
      %s1016 = smul.addr %s1015, 192
      %s1017 = smul.addr %s1016, 4
      %s1018 = scalar_lea.vmem %s2, %s1017
      %p1019 = scmp.lt.s32.totalorder %s40, 1
      %s1020 = scalar_select %p1019, %s40, 1
      %s1021 = smul.addr %s1020, 12
      %s1022 = scalar_lea.vmem %s3, %s1021
      %p1023 = scmp.lt.s32.totalorder %s40, 1
      %s1024 = scalar_select %p1023, %s40, 1
      %s1025 = smul.addr %s1024, 16
      %s1026 = smul.addr %s1025, 4
      %s1027 = scalar_lea.vmem %s4, %s1026
      %p1028 = scmp.lt.s32.totalorder %s40, 1
      %s1029 = scalar_select %p1028, %s40, 1
      %s1030 = scalar_lea.vmem %s5, %s1029
      %p1031 = scmp.lt.s32.totalorder %s40, 1
      %s1032 = scalar_select %p1031, %s40, 1
      %s1033 = scalar_lea.vmem %s6, %s1032
      %p1034 = scmp.lt.s32.totalorder %s40, 1
      %s1035 = scalar_select %p1034, %s40, 1
      %s1036 = scalar_lea.vmem %s7, %s1035
      %p1037 = scmp.lt.s32.totalorder %s40, 1
      %s1038 = scalar_select %p1037, %s40, 1
      %s1039 = smul.addr %s1038, 64
      %s1040 = smul.addr %s1039, 4
      %s1041 = scalar_lea.vmem %s8, %s1040
      %p1042 = scmp.lt.s32.totalorder %s40, 1
      %s1043 = scalar_select %p1042, %s40, 1
      %s1044 = smul.addr %s1043, 4
      %s1045 = scalar_lea.vmem %s9, %s1044
      %p1046 = scmp.lt.s32.totalorder %s40, 1
      %s1047 = scalar_select %p1046, %s40, 1
      %s1048 = smul.addr %s1047, 128
      %s1049 = smul.addr %s1048, 4
      %s1050 = scalar_lea.vmem %s10, %s1049
      %p1051 = scmp.lt.s32.totalorder %s40, 1
      %s1052 = scalar_select %p1051, %s40, 1
      %s1053 = smul.addr %s1052, 8
      %s1054 = scalar_lea.vmem %s11, %s1053
      %p1055 = scmp.lt.s32.totalorder %s40, 1
      %s1056 = scalar_select %p1055, %s40, 1
      %s1057 = smul.addr %s1056, 16
      %s1058 = smul.addr %s1057, 4
      %s1059 = scalar_lea.vmem %s12, %s1058
      %p1060 = scmp.lt.s32.totalorder %s40, 1
      %s1061 = scalar_select %p1060, %s40, 1
      %s1062 = scalar_lea.vmem %s13, %s1061
      %p1063 = scmp.lt.s32.totalorder %s40, 1
      %s1064 = scalar_select %p1063, %s40, 1
      %s1065 = scalar_lea.vmem %s14, %s1064
      %p1066 = scmp.lt.s32.totalorder %s40, 1
      %s1067 = scalar_select %p1066, %s40, 1
      %s1068 = scalar_lea.vmem %s15, %s1067
      %p1069 = scmp.lt.s32.totalorder %s40, 1
      %s1070 = scalar_select %p1069, %s40, 1
      %s1071 = smul.addr %s1070, 32
      %s1072 = smul.addr %s1071, 4
      %s1073 = scalar_lea.vmem %s16, %s1072
      %p1074 = scmp.lt.s32.totalorder %s40, 1
      %s1075 = scalar_select %p1074, %s40, 1
      %s1076 = smul.addr %s1075, 2
      %s1077 = scalar_lea.vmem %s17, %s1076
      %p1078 = scmp.lt.s32.totalorder %s40, 1
      %s1079 = scalar_select %p1078, %s40, 1
      %s1080 = smul.addr %s1079, 32
      %s1081 = smul.addr %s1080, 4
      %s1082 = scalar_lea.vmem %s18, %s1081
      %p1083 = scmp.lt.s32.totalorder %s40, 1
      %s1084 = scalar_select %p1083, %s40, 1
      %s1085 = scalar_lea.vmem %s19, %s1084
      %p1086 = scmp.lt.s32.totalorder %s40, 1
      %s1087 = scalar_select %p1086, %s40, 1
      %s1088 = scalar_lea.vmem %s20, %s1087
      %p1089 = scmp.lt.s32.totalorder %s40, 1
      %s1090 = scalar_select %p1089, %s40, 1
      %s1091 = scalar_lea.vmem %s21, %s1090
      %p1092 = scmp.lt.s32.totalorder %s39, 1
      %s1093 = scalar_select %p1092, %s39, 1
      %s1094 = smul.addr %s1093, 4
      %s1095 = scalar_lea.vmem %s24, %s1094
      %p1097 = scmp.eq.s32.totalorder %s40, 0
      // Predicated region
      $region117: #{translation_transformer_forward.4} parent=115 // pred_check
        %p1098 = pneg %p1097
      $region118: #{translation_transformer_forward.4} parent=115 // pred_check_branch
        %1100 = sbr.rel (%p1098) target = $region120
      $region119: #{translation_transformer_forward.4} parent=115 // pred_region
        %v1101 = vld [vmem:[%s1009] sm:$0xf]
        %v1102 = vunpack.c.l.bf16 %v1101
        %1103 = vst [vmem:[#allocation2] sm:$0xff] %v1102
      $region120: #{translation_transformer_forward.4} parent=115 // pred_fallthru
        _
      %v1104 = vld [vmem:[#allocation2] sm:$0xff]
      %v1105 = vld [vmem:[%s1013] sm:$0xf]
      %v1106 = vlaneseq
      %v1107 = vshrl.u32 %v1106, 7
      %v1108 = vlaneseq
      %v1109 = vand.u32 %v1108, 127
      %vm1110 = vcmp.ge.s32.totalorder %v1107, %v1109
      %v1111 = vld [vmem:[%s1018] sm:$0xf]
      %v1112 = vld [vmem:[%s1018 + $0x4] sm:$0xf]
      %v1113 = vld [vmem:[%s1018 + $0x8] sm:$0xf]
      %v1114 = vld [vmem:[%s1018 + $0xc] sm:$0xf]
      %v1115 = vld [vmem:[%s1018 + $0x10] sm:$0xf]
      %v1116 = vld [vmem:[%s1018 + $0x14] sm:$0xf]
      %v1117 = vld [vmem:[%s1018 + $0x18] sm:$0xf]
      %v1118 = vld [vmem:[%s1018 + $0x1c] sm:$0xf]
      %v1119 = vld [vmem:[%s1018 + $0x20] sm:$0xf]
      %v1120 = vld [vmem:[%s1018 + $0x24] sm:$0xf]
      %v1121 = vld [vmem:[%s1018 + $0x28] sm:$0xf]
      %v1122 = vld [vmem:[%s1018 + $0x2c] sm:$0xf]
      %v1123 = vld [vmem:[%s1018 + $0x30] sm:$0xf]
      %v1124 = vld [vmem:[%s1018 + $0x34] sm:$0xf]
      %v1125 = vld [vmem:[%s1018 + $0x38] sm:$0xf]
      %v1126 = vld [vmem:[%s1018 + $0x3c] sm:$0xf]
      %v1127 = vld [vmem:[%s1018 + $0x40] sm:$0xf]
      %v1128 = vld [vmem:[%s1018 + $0x44] sm:$0xf]
      %v1129 = vld [vmem:[%s1018 + $0x48] sm:$0xf]
      %v1130 = vld [vmem:[%s1018 + $0x4c] sm:$0xf]
      %v1131 = vld [vmem:[%s1018 + $0x50] sm:$0xf]
      %v1132 = vld [vmem:[%s1018 + $0x54] sm:$0xf]
      %v1133 = vld [vmem:[%s1018 + $0x58] sm:$0xf]
      %v1134 = vld [vmem:[%s1018 + $0x5c] sm:$0xf]
      %v1135 = vld [vmem:[%s1018 + $0x60] sm:$0xf]
      %v1136 = vld [vmem:[%s1018 + $0x64] sm:$0xf]
      %v1137 = vld [vmem:[%s1018 + $0x68] sm:$0xf]
      %v1138 = vld [vmem:[%s1018 + $0x6c] sm:$0xf]
      %v1139 = vld [vmem:[%s1018 + $0x70] sm:$0xf]
      %v1140 = vld [vmem:[%s1018 + $0x74] sm:$0xf]
      %v1141 = vld [vmem:[%s1018 + $0x78] sm:$0xf]
      %v1142 = vld [vmem:[%s1018 + $0x7c] sm:$0xf]
      %v1143 = vld [vmem:[%s1018 + $0x80] sm:$0xf]
      %v1144 = vld [vmem:[%s1018 + $0x84] sm:$0xf]
      %v1145 = vld [vmem:[%s1018 + $0x88] sm:$0xf]
      %v1146 = vld [vmem:[%s1018 + $0x8c] sm:$0xf]
      %v1147 = vld [vmem:[%s1018 + $0x90] sm:$0xf]
      %v1148 = vld [vmem:[%s1018 + $0x94] sm:$0xf]
      %v1149 = vld [vmem:[%s1018 + $0x98] sm:$0xf]
      %v1150 = vld [vmem:[%s1018 + $0x9c] sm:$0xf]
      %v1151 = vld [vmem:[%s1018 + $0xa0] sm:$0xf]
      %v1152 = vld [vmem:[%s1018 + $0xa4] sm:$0xf]
      %v1153 = vld [vmem:[%s1018 + $0xa8] sm:$0xf]
      %v1154 = vld [vmem:[%s1018 + $0xac] sm:$0xf]
      %v1155 = vld [vmem:[%s1018 + $0xb0] sm:$0xf]
      %v1156 = vld [vmem:[%s1018 + $0xb4] sm:$0xf]
      %v1157 = vld [vmem:[%s1018 + $0xb8] sm:$0xf]
      %v1158 = vld [vmem:[%s1018 + $0xbc] sm:$0xf]
      %v1159 = vld [vmem:[%s1018 + $0xc0] sm:$0xf]
      %v1160 = vld [vmem:[%s1018 + $0xc4] sm:$0xf]
      %v1161 = vld [vmem:[%s1018 + $0xc8] sm:$0xf]
      %v1162 = vld [vmem:[%s1018 + $0xcc] sm:$0xf]
      %v1163 = vld [vmem:[%s1018 + $0xd0] sm:$0xf]
      %v1164 = vld [vmem:[%s1018 + $0xd4] sm:$0xf]
      %v1165 = vld [vmem:[%s1018 + $0xd8] sm:$0xf]
      %v1166 = vld [vmem:[%s1018 + $0xdc] sm:$0xf]
      %v1167 = vld [vmem:[%s1018 + $0xe0] sm:$0xf]
      %v1168 = vld [vmem:[%s1018 + $0xe4] sm:$0xf]
      %v1169 = vld [vmem:[%s1018 + $0xe8] sm:$0xf]
      %v1170 = vld [vmem:[%s1018 + $0xec] sm:$0xf]
      %v1171 = vld [vmem:[%s1018 + $0xf0] sm:$0xf]
      %v1172 = vld [vmem:[%s1018 + $0xf4] sm:$0xf]
      %v1173 = vld [vmem:[%s1018 + $0xf8] sm:$0xf]
      %v1174 = vld [vmem:[%s1018 + $0xfc] sm:$0xf]
      %v1175 = vld [vmem:[%s1018 + $0x100] sm:$0xf]
      %v1176 = vld [vmem:[%s1018 + $0x104] sm:$0xf]
      %v1177 = vld [vmem:[%s1018 + $0x108] sm:$0xf]
      %v1178 = vld [vmem:[%s1018 + $0x10c] sm:$0xf]
      %v1179 = vld [vmem:[%s1018 + $0x110] sm:$0xf]
      %v1180 = vld [vmem:[%s1018 + $0x114] sm:$0xf]
      %v1181 = vld [vmem:[%s1018 + $0x118] sm:$0xf]
      %v1182 = vld [vmem:[%s1018 + $0x11c] sm:$0xf]
      %v1183 = vld [vmem:[%s1018 + $0x120] sm:$0xf]
      %v1184 = vld [vmem:[%s1018 + $0x124] sm:$0xf]
      %v1185 = vld [vmem:[%s1018 + $0x128] sm:$0xf]
      %v1186 = vld [vmem:[%s1018 + $0x12c] sm:$0xf]
      %v1187 = vld [vmem:[%s1018 + $0x130] sm:$0xf]
      %v1188 = vld [vmem:[%s1018 + $0x134] sm:$0xf]
      %v1189 = vld [vmem:[%s1018 + $0x138] sm:$0xf]
      %v1190 = vld [vmem:[%s1018 + $0x13c] sm:$0xf]
      %v1191 = vld [vmem:[%s1018 + $0x140] sm:$0xf]
      %v1192 = vld [vmem:[%s1018 + $0x144] sm:$0xf]
      %v1193 = vld [vmem:[%s1018 + $0x148] sm:$0xf]
      %v1194 = vld [vmem:[%s1018 + $0x14c] sm:$0xf]
      %v1195 = vld [vmem:[%s1018 + $0x150] sm:$0xf]
      %v1196 = vld [vmem:[%s1018 + $0x154] sm:$0xf]
      %v1197 = vld [vmem:[%s1018 + $0x158] sm:$0xf]
      %v1198 = vld [vmem:[%s1018 + $0x15c] sm:$0xf]
      %v1199 = vld [vmem:[%s1018 + $0x160] sm:$0xf]
      %v1200 = vld [vmem:[%s1018 + $0x164] sm:$0xf]
      %v1201 = vld [vmem:[%s1018 + $0x168] sm:$0xf]
      %v1202 = vld [vmem:[%s1018 + $0x16c] sm:$0xf]
      %v1203 = vld [vmem:[%s1018 + $0x170] sm:$0xf]
      %v1204 = vld [vmem:[%s1018 + $0x174] sm:$0xf]
      %v1205 = vld [vmem:[%s1018 + $0x178] sm:$0xf]
      %v1206 = vld [vmem:[%s1018 + $0x17c] sm:$0xf]
      %v1207 = vld [vmem:[%s1018 + $0x180] sm:$0xf]
      %v1208 = vld [vmem:[%s1018 + $0x184] sm:$0xf]
      %v1209 = vld [vmem:[%s1018 + $0x188] sm:$0xf]
      %v1210 = vld [vmem:[%s1018 + $0x18c] sm:$0xf]
      %v1211 = vld [vmem:[%s1018 + $0x190] sm:$0xf]
      %v1212 = vld [vmem:[%s1018 + $0x194] sm:$0xf]
      %v1213 = vld [vmem:[%s1018 + $0x198] sm:$0xf]
      %v1214 = vld [vmem:[%s1018 + $0x19c] sm:$0xf]
      %v1215 = vld [vmem:[%s1018 + $0x1a0] sm:$0xf]
      %v1216 = vld [vmem:[%s1018 + $0x1a4] sm:$0xf]
      %v1217 = vld [vmem:[%s1018 + $0x1a8] sm:$0xf]
      %v1218 = vld [vmem:[%s1018 + $0x1ac] sm:$0xf]
      %v1219 = vld [vmem:[%s1018 + $0x1b0] sm:$0xf]
      %v1220 = vld [vmem:[%s1018 + $0x1b4] sm:$0xf]
      %v1221 = vld [vmem:[%s1018 + $0x1b8] sm:$0xf]
      %v1222 = vld [vmem:[%s1018 + $0x1bc] sm:$0xf]
      %v1223 = vld [vmem:[%s1018 + $0x1c0] sm:$0xf]
      %v1224 = vld [vmem:[%s1018 + $0x1c4] sm:$0xf]
      %v1225 = vld [vmem:[%s1018 + $0x1c8] sm:$0xf]
      %v1226 = vld [vmem:[%s1018 + $0x1cc] sm:$0xf]
      %v1227 = vld [vmem:[%s1018 + $0x1d0] sm:$0xf]
      %v1228 = vld [vmem:[%s1018 + $0x1d4] sm:$0xf]
      %v1229 = vld [vmem:[%s1018 + $0x1d8] sm:$0xf]
      %v1230 = vld [vmem:[%s1018 + $0x1dc] sm:$0xf]
      %v1231 = vld [vmem:[%s1018 + $0x1e0] sm:$0xf]
      %v1232 = vld [vmem:[%s1018 + $0x1e4] sm:$0xf]
      %v1233 = vld [vmem:[%s1018 + $0x1e8] sm:$0xf]
      %v1234 = vld [vmem:[%s1018 + $0x1ec] sm:$0xf]
      %v1235 = vld [vmem:[%s1018 + $0x1f0] sm:$0xf]
      %v1236 = vld [vmem:[%s1018 + $0x1f4] sm:$0xf]
      %v1237 = vld [vmem:[%s1018 + $0x1f8] sm:$0xf]
      %v1238 = vld [vmem:[%s1018 + $0x1fc] sm:$0xf]
      %v1239 = vld [vmem:[%s1018 + $0x200] sm:$0xf]
      %v1240 = vld [vmem:[%s1018 + $0x204] sm:$0xf]
      %v1241 = vld [vmem:[%s1018 + $0x208] sm:$0xf]
      %v1242 = vld [vmem:[%s1018 + $0x20c] sm:$0xf]
      %v1243 = vld [vmem:[%s1018 + $0x210] sm:$0xf]
      %v1244 = vld [vmem:[%s1018 + $0x214] sm:$0xf]
      %v1245 = vld [vmem:[%s1018 + $0x218] sm:$0xf]
      %v1246 = vld [vmem:[%s1018 + $0x21c] sm:$0xf]
      %v1247 = vld [vmem:[%s1018 + $0x220] sm:$0xf]
      %v1248 = vld [vmem:[%s1018 + $0x224] sm:$0xf]
      %v1249 = vld [vmem:[%s1018 + $0x228] sm:$0xf]
      %v1250 = vld [vmem:[%s1018 + $0x22c] sm:$0xf]
      %v1251 = vld [vmem:[%s1018 + $0x230] sm:$0xf]
      %v1252 = vld [vmem:[%s1018 + $0x234] sm:$0xf]
      %v1253 = vld [vmem:[%s1018 + $0x238] sm:$0xf]
      %v1254 = vld [vmem:[%s1018 + $0x23c] sm:$0xf]
      %v1255 = vld [vmem:[%s1018 + $0x240] sm:$0xf]
      %v1256 = vld [vmem:[%s1018 + $0x244] sm:$0xf]
      %v1257 = vld [vmem:[%s1018 + $0x248] sm:$0xf]
      %v1258 = vld [vmem:[%s1018 + $0x24c] sm:$0xf]
      %v1259 = vld [vmem:[%s1018 + $0x250] sm:$0xf]
      %v1260 = vld [vmem:[%s1018 + $0x254] sm:$0xf]
      %v1261 = vld [vmem:[%s1018 + $0x258] sm:$0xf]
      %v1262 = vld [vmem:[%s1018 + $0x25c] sm:$0xf]
      %v1263 = vld [vmem:[%s1018 + $0x260] sm:$0xf]
      %v1264 = vld [vmem:[%s1018 + $0x264] sm:$0xf]
      %v1265 = vld [vmem:[%s1018 + $0x268] sm:$0xf]
      %v1266 = vld [vmem:[%s1018 + $0x26c] sm:$0xf]
      %v1267 = vld [vmem:[%s1018 + $0x270] sm:$0xf]
      %v1268 = vld [vmem:[%s1018 + $0x274] sm:$0xf]
      %v1269 = vld [vmem:[%s1018 + $0x278] sm:$0xf]
      %v1270 = vld [vmem:[%s1018 + $0x27c] sm:$0xf]
      %v1271 = vld [vmem:[%s1018 + $0x280] sm:$0xf]
      %v1272 = vld [vmem:[%s1018 + $0x284] sm:$0xf]
      %v1273 = vld [vmem:[%s1018 + $0x288] sm:$0xf]
      %v1274 = vld [vmem:[%s1018 + $0x28c] sm:$0xf]
      %v1275 = vld [vmem:[%s1018 + $0x290] sm:$0xf]
      %v1276 = vld [vmem:[%s1018 + $0x294] sm:$0xf]
      %v1277 = vld [vmem:[%s1018 + $0x298] sm:$0xf]
      %v1278 = vld [vmem:[%s1018 + $0x29c] sm:$0xf]
      %v1279 = vld [vmem:[%s1018 + $0x2a0] sm:$0xf]
      %v1280 = vld [vmem:[%s1018 + $0x2a4] sm:$0xf]
      %v1281 = vld [vmem:[%s1018 + $0x2a8] sm:$0xf]
      %v1282 = vld [vmem:[%s1018 + $0x2ac] sm:$0xf]
      %v1283 = vld [vmem:[%s1018 + $0x2b0] sm:$0xf]
      %v1284 = vld [vmem:[%s1018 + $0x2b4] sm:$0xf]
      %v1285 = vld [vmem:[%s1018 + $0x2b8] sm:$0xf]
      %v1286 = vld [vmem:[%s1018 + $0x2bc] sm:$0xf]
      %v1287 = vld [vmem:[%s1018 + $0x2c0] sm:$0xf]
      %v1288 = vld [vmem:[%s1018 + $0x2c4] sm:$0xf]
      %v1289 = vld [vmem:[%s1018 + $0x2c8] sm:$0xf]
      %v1290 = vld [vmem:[%s1018 + $0x2cc] sm:$0xf]
      %v1291 = vld [vmem:[%s1018 + $0x2d0] sm:$0xf]
      %v1292 = vld [vmem:[%s1018 + $0x2d4] sm:$0xf]
      %v1293 = vld [vmem:[%s1018 + $0x2d8] sm:$0xf]
      %v1294 = vld [vmem:[%s1018 + $0x2dc] sm:$0xf]
      %v1295 = vld [vmem:[%s1018 + $0x2e0] sm:$0xf]
      %v1296 = vld [vmem:[%s1018 + $0x2e4] sm:$0xf]
      %v1297 = vld [vmem:[%s1018 + $0x2e8] sm:$0xf]
      %v1298 = vld [vmem:[%s1018 + $0x2ec] sm:$0xf]
      %v1299 = vld [vmem:[%s1018 + $0x2f0] sm:$0xf]
      %v1300 = vld [vmem:[%s1018 + $0x2f4] sm:$0xf]
      %v1301 = vld [vmem:[%s1018 + $0x2f8] sm:$0xf]
      %v1302 = vld [vmem:[%s1018 + $0x2fc] sm:$0xf]
      %v1303 = vld [vmem:[%s1022] sm:$0x1]
      %v1304 = vld [vmem:[%s1022 + $0x1] sm:$0x1]
      %v1305 = vld [vmem:[%s1022 + $0x2] sm:$0x1]
      %v1306 = vld [vmem:[%s1022 + $0x3] sm:$0x1]
      %v1307 = vld [vmem:[%s1022 + $0x4] sm:$0x1]
      %v1308 = vld [vmem:[%s1022 + $0x5] sm:$0x1]
      %v1309 = vld [vmem:[%s1022 + $0x6] sm:$0x1]
      %v1310 = vld [vmem:[%s1022 + $0x7] sm:$0x1]
      %v1311 = vld [vmem:[%s1022 + $0x8] sm:$0x1]
      %v1312 = vld [vmem:[%s1022 + $0x9] sm:$0x1]
      %v1313 = vld [vmem:[%s1022 + $0xa] sm:$0x1]
      %v1314 = vld [vmem:[%s1022 + $0xb] sm:$0x1]
      %v1315 = vpack.c.bf16 %v1104, %v1104
      %v1328 = vperm.slane %v1303, 0
      %v1329 = vperm.slane %v1304, 0
      %v1330 = vperm.slane %v1305, 0
      %v1331 = vperm.slane %v1306, 0
      %v1332 = vperm.slane %v1307, 0
      %v1333 = vperm.slane %v1308, 0
      %v1334 = vperm.slane %v1309, 0
      %v1335 = vperm.slane %v1310, 0
      %v1336 = vperm.slane %v1311, 0
      %v1337 = vperm.slane %v1312, 0
      %v1338 = vperm.slane %v1313, 0
      %v1339 = vperm.slane %v1314, 0
      %v1368 = vunpack.c.l.b16 %v1111
      %v1369 = vunpack.c.l.b16 %v1112
      %v1370 = vunpack.c.l.b16 %v1113
      %v1371 = vunpack.c.l.b16 %v1114
      %v1372 = vunpack.c.l.b16 %v1115
      %v1373 = vunpack.c.l.b16 %v1116
      %v1374 = vunpack.c.l.b16 %v1117
      %v1375 = vunpack.c.l.b16 %v1118
      %v1376 = vunpack.c.l.b16 %v1119
      %v1377 = vunpack.c.l.b16 %v1120
      %v1378 = vunpack.c.l.b16 %v1121
      %v1379 = vunpack.c.l.b16 %v1122
      %v1380 = vunpack.c.l.b16 %v1123
      %v1381 = vunpack.c.l.b16 %v1124
      %v1382 = vunpack.c.l.b16 %v1125
      %v1383 = vunpack.c.l.b16 %v1126
      %v1384 = vpack.c.b16 %v1369, %v1368
      %v1385 = vpack.c.b16 %v1371, %v1370
      %v1386 = vpack.c.b16 %v1373, %v1372
      %v1387 = vpack.c.b16 %v1375, %v1374
      %v1388 = vpack.c.b16 %v1377, %v1376
      %v1389 = vpack.c.b16 %v1379, %v1378
      %v1390 = vpack.c.b16 %v1381, %v1380
      %v1391 = vpack.c.b16 %v1383, %v1382
      %1400 = vmatpush.bf16.msra.mxu0 %v1391
      %1401 = vmatpush.bf16.msra.mxu0 %v1390
      %1402 = vmatpush.bf16.msra.mxu0 %v1389
      %1403 = vmatpush.bf16.msra.mxu0 %v1388
      %1404 = vmatpush.bf16.msra.mxu0 %v1387
      %1405 = vmatpush.bf16.msra.mxu0 %v1386
      %1406 = vmatpush.bf16.msra.mxu0 %v1385
      %1407 = vmatpush.bf16.msra.mxu0 %v1384
      %1408 = vmatmul.bf16.gmra.mxu0 %v1315
      %v1409 = vpop.f32.mrf.mxu0
      %v1410 = vadd.f32 %v1328, %v1409
      %v1411 = vpop.f32.mrf.mxu0
      %1412 = vdwg.mxu0
      %v1429 = vunpack.c.l.b16 %v1127
      %v1430 = vunpack.c.l.b16 %v1128
      %v1431 = vunpack.c.l.b16 %v1129
      %v1432 = vunpack.c.l.b16 %v1130
      %v1433 = vunpack.c.l.b16 %v1131
      %v1434 = vunpack.c.l.b16 %v1132
      %v1435 = vunpack.c.l.b16 %v1133
      %v1436 = vunpack.c.l.b16 %v1134
      %v1437 = vunpack.c.l.b16 %v1135
      %v1438 = vunpack.c.l.b16 %v1136
      %v1439 = vunpack.c.l.b16 %v1137
      %v1440 = vunpack.c.l.b16 %v1138
      %v1441 = vunpack.c.l.b16 %v1139
      %v1442 = vunpack.c.l.b16 %v1140
      %v1443 = vunpack.c.l.b16 %v1141
      %v1444 = vunpack.c.l.b16 %v1142
      %v1445 = vpack.c.b16 %v1430, %v1429
      %v1446 = vpack.c.b16 %v1432, %v1431
      %v1447 = vpack.c.b16 %v1434, %v1433
      %v1448 = vpack.c.b16 %v1436, %v1435
      %v1449 = vpack.c.b16 %v1438, %v1437
      %v1450 = vpack.c.b16 %v1440, %v1439
      %v1451 = vpack.c.b16 %v1442, %v1441
      %v1452 = vpack.c.b16 %v1444, %v1443
      %1461 = vmatpush.bf16.msra.mxu0 %v1452
      %1462 = vmatpush.bf16.msra.mxu0 %v1451
      %1463 = vmatpush.bf16.msra.mxu0 %v1450
      %1464 = vmatpush.bf16.msra.mxu0 %v1449
      %1465 = vmatpush.bf16.msra.mxu0 %v1448
      %1466 = vmatpush.bf16.msra.mxu0 %v1447
      %1467 = vmatpush.bf16.msra.mxu0 %v1446
      %1468 = vmatpush.bf16.msra.mxu0 %v1445
      %1469 = vmatmul.bf16.gmra.mxu0 %v1315
      %v1470 = vpop.f32.mrf.mxu0
      %v1471 = vadd.f32 %v1329, %v1470
      %v1472 = vpop.f32.mrf.mxu0
      %1473 = vdwg.mxu0
      %v1490 = vunpack.c.l.b16 %v1143
      %v1491 = vunpack.c.l.b16 %v1144
      %v1492 = vunpack.c.l.b16 %v1145
      %v1493 = vunpack.c.l.b16 %v1146
      %v1494 = vunpack.c.l.b16 %v1147
      %v1495 = vunpack.c.l.b16 %v1148
      %v1496 = vunpack.c.l.b16 %v1149
      %v1497 = vunpack.c.l.b16 %v1150
      %v1498 = vunpack.c.l.b16 %v1151
      %v1499 = vunpack.c.l.b16 %v1152
      %v1500 = vunpack.c.l.b16 %v1153
      %v1501 = vunpack.c.l.b16 %v1154
      %v1502 = vunpack.c.l.b16 %v1155
      %v1503 = vunpack.c.l.b16 %v1156
      %v1504 = vunpack.c.l.b16 %v1157
      %v1505 = vunpack.c.l.b16 %v1158
      %v1506 = vpack.c.b16 %v1491, %v1490
      %v1507 = vpack.c.b16 %v1493, %v1492
      %v1508 = vpack.c.b16 %v1495, %v1494
      %v1509 = vpack.c.b16 %v1497, %v1496
      %v1510 = vpack.c.b16 %v1499, %v1498
      %v1511 = vpack.c.b16 %v1501, %v1500
      %v1512 = vpack.c.b16 %v1503, %v1502
      %v1513 = vpack.c.b16 %v1505, %v1504
      %1522 = vmatpush.bf16.msra.mxu0 %v1513
      %1523 = vmatpush.bf16.msra.mxu0 %v1512
      %1524 = vmatpush.bf16.msra.mxu0 %v1511
      %1525 = vmatpush.bf16.msra.mxu0 %v1510
      %1526 = vmatpush.bf16.msra.mxu0 %v1509
      %1527 = vmatpush.bf16.msra.mxu0 %v1508
      %1528 = vmatpush.bf16.msra.mxu0 %v1507
      %1529 = vmatpush.bf16.msra.mxu0 %v1506
      %1530 = vmatmul.bf16.gmra.mxu0 %v1315
      %v1531 = vpop.f32.mrf.mxu0
      %v1532 = vadd.f32 %v1330, %v1531
      %v1533 = vpop.f32.mrf.mxu0
      %1534 = vdwg.mxu0
      %v1551 = vunpack.c.l.b16 %v1159
      %v1552 = vunpack.c.l.b16 %v1160
      %v1553 = vunpack.c.l.b16 %v1161
      %v1554 = vunpack.c.l.b16 %v1162
      %v1555 = vunpack.c.l.b16 %v1163
      %v1556 = vunpack.c.l.b16 %v1164
      %v1557 = vunpack.c.l.b16 %v1165
      %v1558 = vunpack.c.l.b16 %v1166
      %v1559 = vunpack.c.l.b16 %v1167
      %v1560 = vunpack.c.l.b16 %v1168
      %v1561 = vunpack.c.l.b16 %v1169
      %v1562 = vunpack.c.l.b16 %v1170
      %v1563 = vunpack.c.l.b16 %v1171
      %v1564 = vunpack.c.l.b16 %v1172
      %v1565 = vunpack.c.l.b16 %v1173
      %v1566 = vunpack.c.l.b16 %v1174
      %v1567 = vpack.c.b16 %v1552, %v1551
      %v1568 = vpack.c.b16 %v1554, %v1553
      %v1569 = vpack.c.b16 %v1556, %v1555
      %v1570 = vpack.c.b16 %v1558, %v1557
      %v1571 = vpack.c.b16 %v1560, %v1559
      %v1572 = vpack.c.b16 %v1562, %v1561
      %v1573 = vpack.c.b16 %v1564, %v1563
      %v1574 = vpack.c.b16 %v1566, %v1565
      %1583 = vmatpush.bf16.msra.mxu0 %v1574
      %1584 = vmatpush.bf16.msra.mxu0 %v1573
      %1585 = vmatpush.bf16.msra.mxu0 %v1572
      %1586 = vmatpush.bf16.msra.mxu0 %v1571
      %1587 = vmatpush.bf16.msra.mxu0 %v1570
      %1588 = vmatpush.bf16.msra.mxu0 %v1569
      %1589 = vmatpush.bf16.msra.mxu0 %v1568
      %1590 = vmatpush.bf16.msra.mxu0 %v1567
      %1591 = vmatmul.bf16.gmra.mxu0 %v1315
      %v1592 = vpop.f32.mrf.mxu0
      %v1593 = vadd.f32 %v1331, %v1592
      %v1594 = vpop.f32.mrf.mxu0
      %1595 = vdwg.mxu0
      %v1612 = vunpack.c.l.b16 %v1175
      %v1613 = vunpack.c.l.b16 %v1176
      %v1614 = vunpack.c.l.b16 %v1177
      %v1615 = vunpack.c.l.b16 %v1178
      %v1616 = vunpack.c.l.b16 %v1179
      %v1617 = vunpack.c.l.b16 %v1180
      %v1618 = vunpack.c.l.b16 %v1181
      %v1619 = vunpack.c.l.b16 %v1182
      %v1620 = vunpack.c.l.b16 %v1183
      %v1621 = vunpack.c.l.b16 %v1184
      %v1622 = vunpack.c.l.b16 %v1185
      %v1623 = vunpack.c.l.b16 %v1186
      %v1624 = vunpack.c.l.b16 %v1187
      %v1625 = vunpack.c.l.b16 %v1188
      %v1626 = vunpack.c.l.b16 %v1189
      %v1627 = vunpack.c.l.b16 %v1190
      %v1628 = vpack.c.b16 %v1613, %v1612
      %v1629 = vpack.c.b16 %v1615, %v1614
      %v1630 = vpack.c.b16 %v1617, %v1616
      %v1631 = vpack.c.b16 %v1619, %v1618
      %v1632 = vpack.c.b16 %v1621, %v1620
      %v1633 = vpack.c.b16 %v1623, %v1622
      %v1634 = vpack.c.b16 %v1625, %v1624
      %v1635 = vpack.c.b16 %v1627, %v1626
      %1644 = vmatpush.bf16.msra.mxu0 %v1635
      %1645 = vmatpush.bf16.msra.mxu0 %v1634
      %1646 = vmatpush.bf16.msra.mxu0 %v1633
      %1647 = vmatpush.bf16.msra.mxu0 %v1632
      %1648 = vmatpush.bf16.msra.mxu0 %v1631
      %1649 = vmatpush.bf16.msra.mxu0 %v1630
      %1650 = vmatpush.bf16.msra.mxu0 %v1629
      %1651 = vmatpush.bf16.msra.mxu0 %v1628
      %1652 = vmatmul.bf16.gmra.mxu0 %v1315
      %v1653 = vpop.f32.mrf.mxu0
      %v1654 = vadd.f32 %v1332, %v1653
      %v1655 = vpop.f32.mrf.mxu0
      %1656 = vdwg.mxu0
      %v1673 = vunpack.c.l.b16 %v1191
      %v1674 = vunpack.c.l.b16 %v1192
      %v1675 = vunpack.c.l.b16 %v1193
      %v1676 = vunpack.c.l.b16 %v1194
      %v1677 = vunpack.c.l.b16 %v1195
      %v1678 = vunpack.c.l.b16 %v1196
      %v1679 = vunpack.c.l.b16 %v1197
      %v1680 = vunpack.c.l.b16 %v1198
      %v1681 = vunpack.c.l.b16 %v1199
      %v1682 = vunpack.c.l.b16 %v1200
      %v1683 = vunpack.c.l.b16 %v1201
      %v1684 = vunpack.c.l.b16 %v1202
      %v1685 = vunpack.c.l.b16 %v1203
      %v1686 = vunpack.c.l.b16 %v1204
      %v1687 = vunpack.c.l.b16 %v1205
      %v1688 = vunpack.c.l.b16 %v1206
      %v1689 = vpack.c.b16 %v1674, %v1673
      %v1690 = vpack.c.b16 %v1676, %v1675
      %v1691 = vpack.c.b16 %v1678, %v1677
      %v1692 = vpack.c.b16 %v1680, %v1679
      %v1693 = vpack.c.b16 %v1682, %v1681
      %v1694 = vpack.c.b16 %v1684, %v1683
      %v1695 = vpack.c.b16 %v1686, %v1685
      %v1696 = vpack.c.b16 %v1688, %v1687
      %1705 = vmatpush.bf16.msra.mxu0 %v1696
      %1706 = vmatpush.bf16.msra.mxu0 %v1695
      %1707 = vmatpush.bf16.msra.mxu0 %v1694
      %1708 = vmatpush.bf16.msra.mxu0 %v1693
      %1709 = vmatpush.bf16.msra.mxu0 %v1692
      %1710 = vmatpush.bf16.msra.mxu0 %v1691
      %1711 = vmatpush.bf16.msra.mxu0 %v1690
      %1712 = vmatpush.bf16.msra.mxu0 %v1689
      %1713 = vmatmul.bf16.gmra.mxu0 %v1315
      %v1714 = vpop.f32.mrf.mxu0
      %v1715 = vadd.f32 %v1333, %v1714
      %v1716 = vpop.f32.mrf.mxu0
      %1717 = vdwg.mxu0
      %v1734 = vunpack.c.l.b16 %v1207
      %v1735 = vunpack.c.l.b16 %v1208
      %v1736 = vunpack.c.l.b16 %v1209
      %v1737 = vunpack.c.l.b16 %v1210
      %v1738 = vunpack.c.l.b16 %v1211
      %v1739 = vunpack.c.l.b16 %v1212
      %v1740 = vunpack.c.l.b16 %v1213
      %v1741 = vunpack.c.l.b16 %v1214
      %v1742 = vunpack.c.l.b16 %v1215
      %v1743 = vunpack.c.l.b16 %v1216
      %v1744 = vunpack.c.l.b16 %v1217
      %v1745 = vunpack.c.l.b16 %v1218
      %v1746 = vunpack.c.l.b16 %v1219
      %v1747 = vunpack.c.l.b16 %v1220
      %v1748 = vunpack.c.l.b16 %v1221
      %v1749 = vunpack.c.l.b16 %v1222
      %v1750 = vpack.c.b16 %v1735, %v1734
      %v1751 = vpack.c.b16 %v1737, %v1736
      %v1752 = vpack.c.b16 %v1739, %v1738
      %v1753 = vpack.c.b16 %v1741, %v1740
      %v1754 = vpack.c.b16 %v1743, %v1742
      %v1755 = vpack.c.b16 %v1745, %v1744
      %v1756 = vpack.c.b16 %v1747, %v1746
      %v1757 = vpack.c.b16 %v1749, %v1748
      %1766 = vmatpush.bf16.msra.mxu0 %v1757
      %1767 = vmatpush.bf16.msra.mxu0 %v1756
      %1768 = vmatpush.bf16.msra.mxu0 %v1755
      %1769 = vmatpush.bf16.msra.mxu0 %v1754
      %1770 = vmatpush.bf16.msra.mxu0 %v1753
      %1771 = vmatpush.bf16.msra.mxu0 %v1752
      %1772 = vmatpush.bf16.msra.mxu0 %v1751
      %1773 = vmatpush.bf16.msra.mxu0 %v1750
      %1774 = vmatmul.bf16.gmra.mxu0 %v1315
      %v1775 = vpop.f32.mrf.mxu0
      %v1776 = vadd.f32 %v1334, %v1775
      %v1777 = vpop.f32.mrf.mxu0
      %1778 = vdwg.mxu0
      %v1795 = vunpack.c.l.b16 %v1223
      %v1796 = vunpack.c.l.b16 %v1224
      %v1797 = vunpack.c.l.b16 %v1225
      %v1798 = vunpack.c.l.b16 %v1226
      %v1799 = vunpack.c.l.b16 %v1227
      %v1800 = vunpack.c.l.b16 %v1228
      %v1801 = vunpack.c.l.b16 %v1229
      %v1802 = vunpack.c.l.b16 %v1230
      %v1803 = vunpack.c.l.b16 %v1231
      %v1804 = vunpack.c.l.b16 %v1232
      %v1805 = vunpack.c.l.b16 %v1233
      %v1806 = vunpack.c.l.b16 %v1234
      %v1807 = vunpack.c.l.b16 %v1235
      %v1808 = vunpack.c.l.b16 %v1236
      %v1809 = vunpack.c.l.b16 %v1237
      %v1810 = vunpack.c.l.b16 %v1238
      %v1811 = vpack.c.b16 %v1796, %v1795
      %v1812 = vpack.c.b16 %v1798, %v1797
      %v1813 = vpack.c.b16 %v1800, %v1799
      %v1814 = vpack.c.b16 %v1802, %v1801
      %v1815 = vpack.c.b16 %v1804, %v1803
      %v1816 = vpack.c.b16 %v1806, %v1805
      %v1817 = vpack.c.b16 %v1808, %v1807
      %v1818 = vpack.c.b16 %v1810, %v1809
      %1827 = vmatpush.bf16.msra.mxu0 %v1818
      %1828 = vmatpush.bf16.msra.mxu0 %v1817
      %1829 = vmatpush.bf16.msra.mxu0 %v1816
      %1830 = vmatpush.bf16.msra.mxu0 %v1815
      %1831 = vmatpush.bf16.msra.mxu0 %v1814
      %1832 = vmatpush.bf16.msra.mxu0 %v1813
      %1833 = vmatpush.bf16.msra.mxu0 %v1812
      %1834 = vmatpush.bf16.msra.mxu0 %v1811
      %1835 = vmatmul.bf16.gmra.mxu0 %v1315
      %v1836 = vpop.f32.mrf.mxu0
      %v1837 = vadd.f32 %v1335, %v1836
      %v1838 = vpop.f32.mrf.mxu0
      %1839 = vdwg.mxu0
      %v1856 = vunpack.c.l.b16 %v1239
      %v1857 = vunpack.c.l.b16 %v1240
      %v1858 = vunpack.c.l.b16 %v1241
      %v1859 = vunpack.c.l.b16 %v1242
      %v1860 = vunpack.c.l.b16 %v1243
      %v1861 = vunpack.c.l.b16 %v1244
      %v1862 = vunpack.c.l.b16 %v1245
      %v1863 = vunpack.c.l.b16 %v1246
      %v1864 = vunpack.c.l.b16 %v1247
      %v1865 = vunpack.c.l.b16 %v1248
      %v1866 = vunpack.c.l.b16 %v1249
      %v1867 = vunpack.c.l.b16 %v1250
      %v1868 = vunpack.c.l.b16 %v1251
      %v1869 = vunpack.c.l.b16 %v1252
      %v1870 = vunpack.c.l.b16 %v1253
      %v1871 = vunpack.c.l.b16 %v1254
      %v1872 = vpack.c.b16 %v1857, %v1856
      %v1873 = vpack.c.b16 %v1859, %v1858
      %v1874 = vpack.c.b16 %v1861, %v1860
      %v1875 = vpack.c.b16 %v1863, %v1862
      %v1876 = vpack.c.b16 %v1865, %v1864
      %v1877 = vpack.c.b16 %v1867, %v1866
      %v1878 = vpack.c.b16 %v1869, %v1868
      %v1879 = vpack.c.b16 %v1871, %v1870
      %1888 = vmatpush.bf16.msra.mxu0 %v1879
      %1889 = vmatpush.bf16.msra.mxu0 %v1878
      %1890 = vmatpush.bf16.msra.mxu0 %v1877
      %1891 = vmatpush.bf16.msra.mxu0 %v1876
      %1892 = vmatpush.bf16.msra.mxu0 %v1875
      %1893 = vmatpush.bf16.msra.mxu0 %v1874
      %1894 = vmatpush.bf16.msra.mxu0 %v1873
      %1895 = vmatpush.bf16.msra.mxu0 %v1872
      %1896 = vmatmul.bf16.gmra.mxu0 %v1315
      %v1897 = vpop.f32.mrf.mxu0
      %v1898 = vadd.f32 %v1336, %v1897
      %v1899 = vpop.f32.mrf.mxu0
      %1900 = vdwg.mxu0
      %v1917 = vunpack.c.l.b16 %v1255
      %v1918 = vunpack.c.l.b16 %v1256
      %v1919 = vunpack.c.l.b16 %v1257
      %v1920 = vunpack.c.l.b16 %v1258
      %v1921 = vunpack.c.l.b16 %v1259
      %v1922 = vunpack.c.l.b16 %v1260
      %v1923 = vunpack.c.l.b16 %v1261
      %v1924 = vunpack.c.l.b16 %v1262
      %v1925 = vunpack.c.l.b16 %v1263
      %v1926 = vunpack.c.l.b16 %v1264
      %v1927 = vunpack.c.l.b16 %v1265
      %v1928 = vunpack.c.l.b16 %v1266
      %v1929 = vunpack.c.l.b16 %v1267
      %v1930 = vunpack.c.l.b16 %v1268
      %v1931 = vunpack.c.l.b16 %v1269
      %v1932 = vunpack.c.l.b16 %v1270
      %v1933 = vpack.c.b16 %v1918, %v1917
      %v1934 = vpack.c.b16 %v1920, %v1919
      %v1935 = vpack.c.b16 %v1922, %v1921
      %v1936 = vpack.c.b16 %v1924, %v1923
      %v1937 = vpack.c.b16 %v1926, %v1925
      %v1938 = vpack.c.b16 %v1928, %v1927
      %v1939 = vpack.c.b16 %v1930, %v1929
      %v1940 = vpack.c.b16 %v1932, %v1931
      %1949 = vmatpush.bf16.msra.mxu0 %v1940
      %1950 = vmatpush.bf16.msra.mxu0 %v1939
      %1951 = vmatpush.bf16.msra.mxu0 %v1938
      %1952 = vmatpush.bf16.msra.mxu0 %v1937
      %1953 = vmatpush.bf16.msra.mxu0 %v1936
      %1954 = vmatpush.bf16.msra.mxu0 %v1935
      %1955 = vmatpush.bf16.msra.mxu0 %v1934
      %1956 = vmatpush.bf16.msra.mxu0 %v1933
      %1957 = vmatmul.bf16.gmra.mxu0 %v1315
      %v1958 = vpop.f32.mrf.mxu0
      %v1959 = vadd.f32 %v1337, %v1958
      %v1960 = vpop.f32.mrf.mxu0
      %1961 = vdwg.mxu0
      %v1978 = vunpack.c.l.b16 %v1271
      %v1979 = vunpack.c.l.b16 %v1272
      %v1980 = vunpack.c.l.b16 %v1273
      %v1981 = vunpack.c.l.b16 %v1274
      %v1982 = vunpack.c.l.b16 %v1275
      %v1983 = vunpack.c.l.b16 %v1276
      %v1984 = vunpack.c.l.b16 %v1277
      %v1985 = vunpack.c.l.b16 %v1278
      %v1986 = vunpack.c.l.b16 %v1279
      %v1987 = vunpack.c.l.b16 %v1280
      %v1988 = vunpack.c.l.b16 %v1281
      %v1989 = vunpack.c.l.b16 %v1282
      %v1990 = vunpack.c.l.b16 %v1283
      %v1991 = vunpack.c.l.b16 %v1284
      %v1992 = vunpack.c.l.b16 %v1285
      %v1993 = vunpack.c.l.b16 %v1286
      %v1994 = vpack.c.b16 %v1979, %v1978
      %v1995 = vpack.c.b16 %v1981, %v1980
      %v1996 = vpack.c.b16 %v1983, %v1982
      %v1997 = vpack.c.b16 %v1985, %v1984
      %v1998 = vpack.c.b16 %v1987, %v1986
      %v1999 = vpack.c.b16 %v1989, %v1988
      %v2000 = vpack.c.b16 %v1991, %v1990
      %v2001 = vpack.c.b16 %v1993, %v1992
      %2010 = vmatpush.bf16.msra.mxu0 %v2001
      %2011 = vmatpush.bf16.msra.mxu0 %v2000
      %2012 = vmatpush.bf16.msra.mxu0 %v1999
      %2013 = vmatpush.bf16.msra.mxu0 %v1998
      %2014 = vmatpush.bf16.msra.mxu0 %v1997
      %2015 = vmatpush.bf16.msra.mxu0 %v1996
      %2016 = vmatpush.bf16.msra.mxu0 %v1995
      %2017 = vmatpush.bf16.msra.mxu0 %v1994
      %2018 = vmatmul.bf16.gmra.mxu0 %v1315
      %v2019 = vpop.f32.mrf.mxu0
      %v2020 = vadd.f32 %v1338, %v2019
      %v2021 = vpop.f32.mrf.mxu0
      %2022 = vdwg.mxu0
      %v2039 = vunpack.c.l.b16 %v1287
      %v2040 = vunpack.c.l.b16 %v1288
      %v2041 = vunpack.c.l.b16 %v1289
      %v2042 = vunpack.c.l.b16 %v1290
      %v2043 = vunpack.c.l.b16 %v1291
      %v2044 = vunpack.c.l.b16 %v1292
      %v2045 = vunpack.c.l.b16 %v1293
      %v2046 = vunpack.c.l.b16 %v1294
      %v2047 = vunpack.c.l.b16 %v1295
      %v2048 = vunpack.c.l.b16 %v1296
      %v2049 = vunpack.c.l.b16 %v1297
      %v2050 = vunpack.c.l.b16 %v1298
      %v2051 = vunpack.c.l.b16 %v1299
      %v2052 = vunpack.c.l.b16 %v1300
      %v2053 = vunpack.c.l.b16 %v1301
      %v2054 = vunpack.c.l.b16 %v1302
      %v2055 = vpack.c.b16 %v2040, %v2039
      %v2056 = vpack.c.b16 %v2042, %v2041
      %v2057 = vpack.c.b16 %v2044, %v2043
      %v2058 = vpack.c.b16 %v2046, %v2045
      %v2059 = vpack.c.b16 %v2048, %v2047
      %v2060 = vpack.c.b16 %v2050, %v2049
      %v2061 = vpack.c.b16 %v2052, %v2051
      %v2062 = vpack.c.b16 %v2054, %v2053
      %2071 = vmatpush.bf16.msra.mxu0 %v2062
      %2072 = vmatpush.bf16.msra.mxu0 %v2061
      %2073 = vmatpush.bf16.msra.mxu0 %v2060
      %2074 = vmatpush.bf16.msra.mxu0 %v2059
      %2075 = vmatpush.bf16.msra.mxu0 %v2058
      %2076 = vmatpush.bf16.msra.mxu0 %v2057
      %2077 = vmatpush.bf16.msra.mxu0 %v2056
      %2078 = vmatpush.bf16.msra.mxu0 %v2055
      %2079 = vmatmul.bf16.gmra.mxu0 %v1315
      %v2080 = vpop.f32.mrf.mxu0
      %v2081 = vadd.f32 %v1339, %v2080
      %v2082 = vpop.f32.mrf.mxu0
      %2083 = vdwg.mxu0
      %v2084 = vld [vmem:[%s1027] sm:$0xf]
      %v2085 = vld [vmem:[%s1027 + $0x4] sm:$0xf]
      %v2086 = vld [vmem:[%s1027 + $0x8] sm:$0xf]
      %v2087 = vld [vmem:[%s1027 + $0xc] sm:$0xf]
      %v2088 = vld [vmem:[%s1027 + $0x10] sm:$0xf]
      %v2089 = vld [vmem:[%s1027 + $0x14] sm:$0xf]
      %v2090 = vld [vmem:[%s1027 + $0x18] sm:$0xf]
      %v2091 = vld [vmem:[%s1027 + $0x1c] sm:$0xf]
      %v2092 = vld [vmem:[%s1027 + $0x20] sm:$0xf]
      %v2093 = vld [vmem:[%s1027 + $0x24] sm:$0xf]
      %v2094 = vld [vmem:[%s1027 + $0x28] sm:$0xf]
      %v2095 = vld [vmem:[%s1027 + $0x2c] sm:$0xf]
      %v2096 = vld [vmem:[%s1027 + $0x30] sm:$0xf]
      %v2097 = vld [vmem:[%s1027 + $0x34] sm:$0xf]
      %v2098 = vld [vmem:[%s1027 + $0x38] sm:$0xf]
      %v2099 = vld [vmem:[%s1027 + $0x3c] sm:$0xf]
      %v2100 = vld [vmem:[%s1030] sm:$0x1]
      %v2101 = vmul.f32 %v1410, 0.17677669
      %v2102 = vmul.f32 %v1471, 0.17677669
      %v2103 = vmul.f32 %v1532, 0.17677669
      %v2104 = vmul.f32 %v1593, 0.17677669
      %v2105 = vpack.c.bf16 %v2101, %v2101
      %v2106 = vpack.c.bf16 %v2102, %v2102
      %v2107 = vpack.c.bf16 %v2103, %v2103
      %v2108 = vpack.c.bf16 %v2104, %v2104
      %v2109 = vpack.c.bf16 %v1654, %v1654
      %v2110 = vpack.c.bf16 %v1715, %v1715
      %v2111 = vpack.c.bf16 %v1776, %v1776
      %v2112 = vpack.c.bf16 %v1837, %v1837
      %vm2113 = vcmask 261120
      %v2115 = vsel %vm2113, %v2105, 0
      %v2118 = vsel %vm2113, %v2109, 0
      %2120 = vmatpush.bf16.xpose.msra.mxu0 0
      %2121 = vmatpush.bf16.xpose.msra.mxu0 0
      %2122 = vmatpush.bf16.xpose.msra.mxu0 0
      %2123 = vmatpush.bf16.xpose.msra.mxu0 0
      %2124 = vmatpush.bf16.xpose.msra.mxu0 0
      %2125 = vmatpush.bf16.xpose.msra.mxu0 0
      %2126 = vmatpush.bf16.xpose.msra.mxu0 0
      %2127 = vmatpush.bf16.xpose.msra.mxu0 %v2118
      %2128 = vmatmul.bf16.gmra.mxu0 %v2115
      %v2129 = vpop.f32.mrf.mxu0
      %v2130 = vadd.f32 0.0, %v2129
      %v2131 = vpop.f32.mrf.mxu0
      %2132 = vdwg.mxu0
      %v2134 = vsel %vm2113, %v2106, 0
      %v2137 = vsel %vm2113, %v2110, 0
      %2139 = vmatpush.bf16.xpose.msra.mxu0 0
      %2140 = vmatpush.bf16.xpose.msra.mxu0 0
      %2141 = vmatpush.bf16.xpose.msra.mxu0 0
      %2142 = vmatpush.bf16.xpose.msra.mxu0 0
      %2143 = vmatpush.bf16.xpose.msra.mxu0 0
      %2144 = vmatpush.bf16.xpose.msra.mxu0 0
      %2145 = vmatpush.bf16.xpose.msra.mxu0 0
      %2146 = vmatpush.bf16.xpose.msra.mxu0 %v2137
      %2147 = vmatmul.bf16.gmra.mxu0 %v2134
      %v2148 = vpop.f32.mrf.mxu0
      %v2149 = vadd.f32 0.0, %v2148
      %v2150 = vpop.f32.mrf.mxu0
      %2151 = vdwg.mxu0
      %v2153 = vsel %vm2113, %v2107, 0
      %v2156 = vsel %vm2113, %v2111, 0
      %2158 = vmatpush.bf16.xpose.msra.mxu0 0
      %2159 = vmatpush.bf16.xpose.msra.mxu0 0
      %2160 = vmatpush.bf16.xpose.msra.mxu0 0
      %2161 = vmatpush.bf16.xpose.msra.mxu0 0
      %2162 = vmatpush.bf16.xpose.msra.mxu0 0
      %2163 = vmatpush.bf16.xpose.msra.mxu0 0
      %2164 = vmatpush.bf16.xpose.msra.mxu0 0
      %2165 = vmatpush.bf16.xpose.msra.mxu0 %v2156
      %2166 = vmatmul.bf16.gmra.mxu0 %v2153
      %v2167 = vpop.f32.mrf.mxu0
      %v2168 = vadd.f32 0.0, %v2167
      %v2169 = vpop.f32.mrf.mxu0
      %2170 = vdwg.mxu0
      %v2172 = vsel %vm2113, %v2108, 0
      %v2175 = vsel %vm2113, %v2112, 0
      %2177 = vmatpush.bf16.xpose.msra.mxu0 0
      %2178 = vmatpush.bf16.xpose.msra.mxu0 0
      %2179 = vmatpush.bf16.xpose.msra.mxu0 0
      %2180 = vmatpush.bf16.xpose.msra.mxu0 0
      %2181 = vmatpush.bf16.xpose.msra.mxu0 0
      %2182 = vmatpush.bf16.xpose.msra.mxu0 0
      %2183 = vmatpush.bf16.xpose.msra.mxu0 0
      %2184 = vmatpush.bf16.xpose.msra.mxu0 %v2175
      %2185 = vmatmul.bf16.gmra.mxu0 %v2172
      %v2186 = vpop.f32.mrf.mxu0
      %v2187 = vadd.f32 0.0, %v2186
      %v2188 = vpop.f32.mrf.mxu0
      %2189 = vdwg.mxu0
      %v2190 = vsel %vm1110, 1, 0
      %vm2191 = vcmp.eq.s32.totalorder %v2190, 1
      %v2192 = vsel %vm2191, %v2130, -1e+30
      %v2193 = vsel %vm2191, %v2149, -1e+30
      %v2194 = vsel %vm2191, %v2168, -1e+30
      %v2195 = vsel %vm2191, %v2187, -1e+30
      %vm2196 = vcmask 64512
      %v2197 = vsel %vm2196, %v2192, -inf
      %2198 = vmax.xlane.f32.xlu0 %v2197
      %v2199 = vpop.xlane.xlu0 %2198
      %v2200 = vsel %vm2196, %v2193, -inf
      %2201 = vmax.xlane.f32.xlu0 %v2200
      %v2202 = vpop.xlane.xlu0 %2201
      %v2203 = vsel %vm2196, %v2194, -inf
      %2204 = vmax.xlane.f32.xlu0 %v2203
      %v2205 = vpop.xlane.xlu0 %2204
      %v2206 = vsel %vm2196, %v2195, -inf
      %2207 = vmax.xlane.f32.xlu0 %v2206
      %v2208 = vpop.xlane.xlu0 %2207
      %v2209 = vsub.f32 %v2192, %v2199
      %v2210 = vsub.f32 %v2193, %v2202
      %v2211 = vsub.f32 %v2194, %v2205
      %v2212 = vsub.f32 %v2195, %v2208
      %v2213 = vmul.f32 %v2209, 1.442695
      %v2214 = vpow.pop %v2213
      %v2215 = vmul.f32 %v2210, 1.442695
      %v2216 = vpow.pop %v2215
      %v2217 = vmul.f32 %v2211, 1.442695
      %v2218 = vpow.pop %v2217
      %v2219 = vmul.f32 %v2212, 1.442695
      %v2220 = vpow.pop %v2219
      %v2221 = vsel %vm2196, %v2214, 0.0
      %2222 = vadd.xlane.f32.xlu0 %v2221
      %v2223 = vpop.xlane.xlu0 %2222
      %v2224 = vsel %vm2196, %v2216, 0.0
      %2225 = vadd.xlane.f32.xlu0 %v2224
      %v2226 = vpop.xlane.xlu0 %2225
      %v2227 = vsel %vm2196, %v2218, 0.0
      %2228 = vadd.xlane.f32.xlu0 %v2227
      %v2229 = vpop.xlane.xlu0 %2228
      %v2230 = vsel %vm2196, %v2220, 0.0
      %2231 = vadd.xlane.f32.xlu0 %v2230
      %v2232 = vpop.xlane.xlu0 %2231
      %v2233 = vrcp.pop %v2223
      %v2234 = vrcp.pop %v2226
      %v2235 = vrcp.pop %v2229
      %v2236 = vrcp.pop %v2232
      %v2237 = vmul.f32 %v2214, %v2233
      %v2238 = vmul.f32 %v2216, %v2234
      %v2239 = vmul.f32 %v2218, %v2235
      %v2240 = vmul.f32 %v2220, %v2236
      %v2241 = vpack.c.bf16 %v2237, %v2237
      %v2242 = vpack.c.bf16 %v2238, %v2238
      %v2243 = vpack.c.bf16 %v2239, %v2239
      %v2244 = vpack.c.bf16 %v2240, %v2240
      %v2245 = vpack.c.bf16 %v1898, %v1898
      %v2246 = vpack.c.bf16 %v1959, %v1959
      %v2247 = vpack.c.bf16 %v2020, %v2020
      %v2248 = vpack.c.bf16 %v2081, %v2081
      %v2250 = vsel %vm2196, %v2241, 0
      %vm2252 = vcmask 1043456
      %v2254 = vsel %vm2252, %v2245, 0
      %2256 = vmatpush.bf16.msra.mxu0 0
      %2257 = vmatpush.bf16.msra.mxu0 0
      %2258 = vmatpush.bf16.msra.mxu0 0
      %2259 = vmatpush.bf16.msra.mxu0 0
      %2260 = vmatpush.bf16.msra.mxu0 0
      %2261 = vmatpush.bf16.msra.mxu0 0
      %2262 = vmatpush.bf16.msra.mxu0 0
      %2263 = vmatpush.bf16.msra.mxu0 %v2254
      %2264 = vmatmul.bf16.gmra.mxu0 %v2250
      %v2265 = vpop.f32.mrf.mxu0
      %v2266 = vadd.f32 0.0, %v2265
      %v2267 = vpop.f32.mrf.mxu0
      %2268 = vdwg.mxu0
      %v2270 = vsel %vm2196, %v2242, 0
      %v2273 = vsel %vm2252, %v2246, 0
      %2275 = vmatpush.bf16.msra.mxu0 0
      %2276 = vmatpush.bf16.msra.mxu0 0
      %2277 = vmatpush.bf16.msra.mxu0 0
      %2278 = vmatpush.bf16.msra.mxu0 0
      %2279 = vmatpush.bf16.msra.mxu0 0
      %2280 = vmatpush.bf16.msra.mxu0 0
      %2281 = vmatpush.bf16.msra.mxu0 0
      %2282 = vmatpush.bf16.msra.mxu0 %v2273
      %2283 = vmatmul.bf16.gmra.mxu0 %v2270
      %v2284 = vpop.f32.mrf.mxu0
      %v2285 = vadd.f32 0.0, %v2284
      %v2286 = vpop.f32.mrf.mxu0
      %2287 = vdwg.mxu0
      %v2289 = vsel %vm2196, %v2243, 0
      %v2292 = vsel %vm2252, %v2247, 0
      %2294 = vmatpush.bf16.msra.mxu0 0
      %2295 = vmatpush.bf16.msra.mxu0 0
      %2296 = vmatpush.bf16.msra.mxu0 0
      %2297 = vmatpush.bf16.msra.mxu0 0
      %2298 = vmatpush.bf16.msra.mxu0 0
      %2299 = vmatpush.bf16.msra.mxu0 0
      %2300 = vmatpush.bf16.msra.mxu0 0
      %2301 = vmatpush.bf16.msra.mxu0 %v2292
      %2302 = vmatmul.bf16.gmra.mxu0 %v2289
      %v2303 = vpop.f32.mrf.mxu0
      %v2304 = vadd.f32 0.0, %v2303
      %v2305 = vpop.f32.mrf.mxu0
      %2306 = vdwg.mxu0
      %v2308 = vsel %vm2196, %v2244, 0
      %v2311 = vsel %vm2252, %v2248, 0
      %2313 = vmatpush.bf16.msra.mxu0 0
      %2314 = vmatpush.bf16.msra.mxu0 0
      %2315 = vmatpush.bf16.msra.mxu0 0
      %2316 = vmatpush.bf16.msra.mxu0 0
      %2317 = vmatpush.bf16.msra.mxu0 0
      %2318 = vmatpush.bf16.msra.mxu0 0
      %2319 = vmatpush.bf16.msra.mxu0 0
      %2320 = vmatpush.bf16.msra.mxu0 %v2311
      %2321 = vmatmul.bf16.gmra.mxu0 %v2308
      %v2322 = vpop.f32.mrf.mxu0
      %v2323 = vadd.f32 0.0, %v2322
      %v2324 = vpop.f32.mrf.mxu0
      %2325 = vdwg.mxu0
      %v2326 = vpack.c.bf16 %v2266, %v2266
      %v2327 = vpack.c.bf16 %v2285, %v2285
      %v2332 = vunpack.c.l.b16 %v2088
      %v2333 = vunpack.c.l.b16 %v2089
      %v2334 = vunpack.c.l.b16 %v2090
      %v2335 = vunpack.c.l.b16 %v2091
      %v2336 = vpack.c.b16 %v2333, %v2332
      %v2337 = vpack.c.b16 %v2335, %v2334
      %v2341 = vsel %vm2113, %v2327, 0
      %2343 = vmatpush.bf16.msra.mxu0 0
      %2344 = vmatpush.bf16.msra.mxu0 0
      %2345 = vmatpush.bf16.msra.mxu0 0
      %2346 = vmatpush.bf16.msra.mxu0 0
      %2347 = vmatpush.bf16.msra.mxu0 0
      %2348 = vmatpush.bf16.msra.mxu0 0
      %2349 = vmatpush.bf16.msra.mxu0 %v2337
      %2350 = vmatpush.bf16.msra.mxu0 %v2336
      %2351 = vmatmul.bf16.gmra.mxu0 %v2341
      %v2352 = vpop.f32.mrf.mxu0
      %v2353 = vadd.f32 0.0, %v2352
      %v2354 = vpop.f32.mrf.mxu0
      %2355 = vdwg.mxu0
      %v2360 = vunpack.c.l.b16 %v2084
      %v2361 = vunpack.c.l.b16 %v2085
      %v2362 = vunpack.c.l.b16 %v2086
      %v2363 = vunpack.c.l.b16 %v2087
      %v2364 = vpack.c.b16 %v2361, %v2360
      %v2365 = vpack.c.b16 %v2363, %v2362
      %v2369 = vsel %vm2113, %v2326, 0
      %2371 = vmatpush.bf16.msra.mxu0 0
      %2372 = vmatpush.bf16.msra.mxu0 0
      %2373 = vmatpush.bf16.msra.mxu0 0
      %2374 = vmatpush.bf16.msra.mxu0 0
      %2375 = vmatpush.bf16.msra.mxu0 0
      %2376 = vmatpush.bf16.msra.mxu0 0
      %2377 = vmatpush.bf16.msra.mxu0 %v2365
      %2378 = vmatpush.bf16.msra.mxu0 %v2364
      %2379 = vmatmul.bf16.gmra.mxu0 %v2369
      %v2380 = vpop.f32.mrf.mxu0
      %v2381 = vadd.f32 %v2353, %v2380
      %v2382 = vpop.f32.mrf.mxu0
      %2383 = vdwg.mxu0
      %v2384 = vpack.c.bf16 %v2304, %v2304
      %v2389 = vunpack.c.l.b16 %v2092
      %v2390 = vunpack.c.l.b16 %v2093
      %v2391 = vunpack.c.l.b16 %v2094
      %v2392 = vunpack.c.l.b16 %v2095
      %v2393 = vpack.c.b16 %v2390, %v2389
      %v2394 = vpack.c.b16 %v2392, %v2391
      %v2398 = vsel %vm2113, %v2384, 0
      %2400 = vmatpush.bf16.msra.mxu0 0
      %2401 = vmatpush.bf16.msra.mxu0 0
      %2402 = vmatpush.bf16.msra.mxu0 0
      %2403 = vmatpush.bf16.msra.mxu0 0
      %2404 = vmatpush.bf16.msra.mxu0 0
      %2405 = vmatpush.bf16.msra.mxu0 0
      %2406 = vmatpush.bf16.msra.mxu0 %v2394
      %2407 = vmatpush.bf16.msra.mxu0 %v2393
      %2408 = vmatmul.bf16.gmra.mxu0 %v2398
      %v2409 = vpop.f32.mrf.mxu0
      %v2410 = vadd.f32 0.0, %v2409
      %v2411 = vpop.f32.mrf.mxu0
      %2412 = vdwg.mxu0
      %v2413 = vadd.f32 %v2381, %v2410
      %v2414 = vpack.c.bf16 %v2323, %v2323
      %v2419 = vunpack.c.l.b16 %v2096
      %v2420 = vunpack.c.l.b16 %v2097
      %v2421 = vunpack.c.l.b16 %v2098
      %v2422 = vunpack.c.l.b16 %v2099
      %v2423 = vpack.c.b16 %v2420, %v2419
      %v2424 = vpack.c.b16 %v2422, %v2421
      %v2428 = vsel %vm2113, %v2414, 0
      %2430 = vmatpush.bf16.msra.mxu0 0
      %2431 = vmatpush.bf16.msra.mxu0 0
      %2432 = vmatpush.bf16.msra.mxu0 0
      %2433 = vmatpush.bf16.msra.mxu0 0
      %2434 = vmatpush.bf16.msra.mxu0 0
      %2435 = vmatpush.bf16.msra.mxu0 0
      %2436 = vmatpush.bf16.msra.mxu0 %v2424
      %2437 = vmatpush.bf16.msra.mxu0 %v2423
      %2438 = vmatmul.bf16.gmra.mxu0 %v2428
      %v2439 = vpop.f32.mrf.mxu0
      %v2440 = vadd.f32 0.0, %v2439
      %v2441 = vpop.f32.mrf.mxu0
      %2442 = vdwg.mxu0
      %v2443 = vadd.f32 %v2413, %v2440
      %v2445 = vperm.slane %v2100, 0
      %v2447 = vadd.f32 %v2443, %v2445
      %v2448 = vadd.f32 %v1104, %v2447
      %v2449 = vld [vmem:[%s1033] sm:$0x1]
      %v2450 = vld [vmem:[%s1036] sm:$0x1]
      %2451 = vadd.xlane.f32.xlu0 %v2448
      %v2452 = vpop.xlane.xlu0 %2451
      %v2453 = vrcp.pop 128.0
      %v2454 = vmul.f32 128.0, %v2453
      %v2455 = vsub.f32 1.0, %v2454
      %v2456 = vmul.f32 %v2453, %v2455
      %v2457 = vadd.f32 %v2453, %v2456
      %vm2458 = vweird.f32 %v2453
      %v2459 = vsel %vm2458, %v2453, %v2457
      %v2460 = vmul.f32 %v2452, %v2459
      %v2461 = vsub.f32 %v2448, %v2460
      %v2462 = vmul.f32 %v2461, %v2461
      %2463 = vadd.xlane.f32.xlu0 %v2462
      %v2464 = vpop.xlane.xlu0 %2463
      %v2465 = vmul.f32 %v2464, %v2459
      %v2466 = vadd.f32 %v2465, 1e-05
      %v2467 = vrsqrt.pop %v2466
      %v2468 = vmul.f32 %v2467, %v2466
      %v2469 = vmul.f32 %v2468, %v2467
      %v2470 = vmul.f32 0.5, %v2469
      %v2471 = vsub.f32 1.5, %v2470
      %v2472 = vmul.f32 %v2467, %v2471
      %vm2473 = vweird.f32 %v2466
      %vm2474 = vweird.f32 %v2467
      %vm2475 = vmor %vm2473, %vm2474
      %v2476 = vsel %vm2475, %v2467, %v2472
      %v2477 = vmul.f32 %v2461, %v2476
      %v2479 = vperm.slane %v2449, 0
      %v2481 = vmul.f32 %v2477, %v2479
      %v2483 = vperm.slane %v2450, 0
      %v2485 = vadd.f32 %v2481, %v2483
      %v2486 = vld [vmem:[%s1041] sm:$0xf]
      %v2487 = vld [vmem:[%s1041 + $0x4] sm:$0xf]
      %v2488 = vld [vmem:[%s1041 + $0x8] sm:$0xf]
      %v2489 = vld [vmem:[%s1041 + $0xc] sm:$0xf]
      %v2490 = vld [vmem:[%s1041 + $0x10] sm:$0xf]
      %v2491 = vld [vmem:[%s1041 + $0x14] sm:$0xf]
      %v2492 = vld [vmem:[%s1041 + $0x18] sm:$0xf]
      %v2493 = vld [vmem:[%s1041 + $0x1c] sm:$0xf]
      %v2494 = vld [vmem:[%s1041 + $0x20] sm:$0xf]
      %v2495 = vld [vmem:[%s1041 + $0x24] sm:$0xf]
      %v2496 = vld [vmem:[%s1041 + $0x28] sm:$0xf]
      %v2497 = vld [vmem:[%s1041 + $0x2c] sm:$0xf]
      %v2498 = vld [vmem:[%s1041 + $0x30] sm:$0xf]
      %v2499 = vld [vmem:[%s1041 + $0x34] sm:$0xf]
      %v2500 = vld [vmem:[%s1041 + $0x38] sm:$0xf]
      %v2501 = vld [vmem:[%s1041 + $0x3c] sm:$0xf]
      %v2502 = vld [vmem:[%s1041 + $0x40] sm:$0xf]
      %v2503 = vld [vmem:[%s1041 + $0x44] sm:$0xf]
      %v2504 = vld [vmem:[%s1041 + $0x48] sm:$0xf]
      %v2505 = vld [vmem:[%s1041 + $0x4c] sm:$0xf]
      %v2506 = vld [vmem:[%s1041 + $0x50] sm:$0xf]
      %v2507 = vld [vmem:[%s1041 + $0x54] sm:$0xf]
      %v2508 = vld [vmem:[%s1041 + $0x58] sm:$0xf]
      %v2509 = vld [vmem:[%s1041 + $0x5c] sm:$0xf]
      %v2510 = vld [vmem:[%s1041 + $0x60] sm:$0xf]
      %v2511 = vld [vmem:[%s1041 + $0x64] sm:$0xf]
      %v2512 = vld [vmem:[%s1041 + $0x68] sm:$0xf]
      %v2513 = vld [vmem:[%s1041 + $0x6c] sm:$0xf]
      %v2514 = vld [vmem:[%s1041 + $0x70] sm:$0xf]
      %v2515 = vld [vmem:[%s1041 + $0x74] sm:$0xf]
      %v2516 = vld [vmem:[%s1041 + $0x78] sm:$0xf]
      %v2517 = vld [vmem:[%s1041 + $0x7c] sm:$0xf]
      %v2518 = vld [vmem:[%s1041 + $0x80] sm:$0xf]
      %v2519 = vld [vmem:[%s1041 + $0x84] sm:$0xf]
      %v2520 = vld [vmem:[%s1041 + $0x88] sm:$0xf]
      %v2521 = vld [vmem:[%s1041 + $0x8c] sm:$0xf]
      %v2522 = vld [vmem:[%s1041 + $0x90] sm:$0xf]
      %v2523 = vld [vmem:[%s1041 + $0x94] sm:$0xf]
      %v2524 = vld [vmem:[%s1041 + $0x98] sm:$0xf]
      %v2525 = vld [vmem:[%s1041 + $0x9c] sm:$0xf]
      %v2526 = vld [vmem:[%s1041 + $0xa0] sm:$0xf]
      %v2527 = vld [vmem:[%s1041 + $0xa4] sm:$0xf]
      %v2528 = vld [vmem:[%s1041 + $0xa8] sm:$0xf]
      %v2529 = vld [vmem:[%s1041 + $0xac] sm:$0xf]
      %v2530 = vld [vmem:[%s1041 + $0xb0] sm:$0xf]
      %v2531 = vld [vmem:[%s1041 + $0xb4] sm:$0xf]
      %v2532 = vld [vmem:[%s1041 + $0xb8] sm:$0xf]
      %v2533 = vld [vmem:[%s1041 + $0xbc] sm:$0xf]
      %v2534 = vld [vmem:[%s1041 + $0xc0] sm:$0xf]
      %v2535 = vld [vmem:[%s1041 + $0xc4] sm:$0xf]
      %v2536 = vld [vmem:[%s1041 + $0xc8] sm:$0xf]
      %v2537 = vld [vmem:[%s1041 + $0xcc] sm:$0xf]
      %v2538 = vld [vmem:[%s1041 + $0xd0] sm:$0xf]
      %v2539 = vld [vmem:[%s1041 + $0xd4] sm:$0xf]
      %v2540 = vld [vmem:[%s1041 + $0xd8] sm:$0xf]
      %v2541 = vld [vmem:[%s1041 + $0xdc] sm:$0xf]
      %v2542 = vld [vmem:[%s1041 + $0xe0] sm:$0xf]
      %v2543 = vld [vmem:[%s1041 + $0xe4] sm:$0xf]
      %v2544 = vld [vmem:[%s1041 + $0xe8] sm:$0xf]
      %v2545 = vld [vmem:[%s1041 + $0xec] sm:$0xf]
      %v2546 = vld [vmem:[%s1041 + $0xf0] sm:$0xf]
      %v2547 = vld [vmem:[%s1041 + $0xf4] sm:$0xf]
      %v2548 = vld [vmem:[%s1041 + $0xf8] sm:$0xf]
      %v2549 = vld [vmem:[%s1041 + $0xfc] sm:$0xf]
      %v2550 = vld [vmem:[%s1045] sm:$0x1]
      %v2551 = vld [vmem:[%s1045 + $0x1] sm:$0x1]
      %v2552 = vld [vmem:[%s1045 + $0x2] sm:$0x1]
      %v2553 = vld [vmem:[%s1045 + $0x3] sm:$0x1]
      %v2554 = vpack.c.bf16 %v2485, %v2485
      %v2559 = vperm.slane %v2550, 0
      %v2560 = vperm.slane %v2551, 0
      %v2561 = vperm.slane %v2552, 0
      %v2562 = vperm.slane %v2553, 0
      %v2583 = vunpack.c.l.b16 %v2486
      %v2584 = vunpack.c.l.b16 %v2487
      %v2585 = vunpack.c.l.b16 %v2488
      %v2586 = vunpack.c.l.b16 %v2489
      %v2587 = vunpack.c.l.b16 %v2490
      %v2588 = vunpack.c.l.b16 %v2491
      %v2589 = vunpack.c.l.b16 %v2492
      %v2590 = vunpack.c.l.b16 %v2493
      %v2591 = vunpack.c.l.b16 %v2494
      %v2592 = vunpack.c.l.b16 %v2495
      %v2593 = vunpack.c.l.b16 %v2496
      %v2594 = vunpack.c.l.b16 %v2497
      %v2595 = vunpack.c.l.b16 %v2498
      %v2596 = vunpack.c.l.b16 %v2499
      %v2597 = vunpack.c.l.b16 %v2500
      %v2598 = vunpack.c.l.b16 %v2501
      %v2599 = vpack.c.b16 %v2584, %v2583
      %v2600 = vpack.c.b16 %v2586, %v2585
      %v2601 = vpack.c.b16 %v2588, %v2587
      %v2602 = vpack.c.b16 %v2590, %v2589
      %v2603 = vpack.c.b16 %v2592, %v2591
      %v2604 = vpack.c.b16 %v2594, %v2593
      %v2605 = vpack.c.b16 %v2596, %v2595
      %v2606 = vpack.c.b16 %v2598, %v2597
      %2615 = vmatpush.bf16.msra.mxu0 %v2606
      %2616 = vmatpush.bf16.msra.mxu0 %v2605
      %2617 = vmatpush.bf16.msra.mxu0 %v2604
      %2618 = vmatpush.bf16.msra.mxu0 %v2603
      %2619 = vmatpush.bf16.msra.mxu0 %v2602
      %2620 = vmatpush.bf16.msra.mxu0 %v2601
      %2621 = vmatpush.bf16.msra.mxu0 %v2600
      %2622 = vmatpush.bf16.msra.mxu0 %v2599
      %2623 = vmatmul.bf16.gmra.mxu0 %v2554
      %v2624 = vpop.f32.mrf.mxu0
      %v2625 = vadd.f32 %v2559, %v2624
      %v2626 = vpop.f32.mrf.mxu0
      %2627 = vdwg.mxu0
      %v2644 = vunpack.c.l.b16 %v2502
      %v2645 = vunpack.c.l.b16 %v2503
      %v2646 = vunpack.c.l.b16 %v2504
      %v2647 = vunpack.c.l.b16 %v2505
      %v2648 = vunpack.c.l.b16 %v2506
      %v2649 = vunpack.c.l.b16 %v2507
      %v2650 = vunpack.c.l.b16 %v2508
      %v2651 = vunpack.c.l.b16 %v2509
      %v2652 = vunpack.c.l.b16 %v2510
      %v2653 = vunpack.c.l.b16 %v2511
      %v2654 = vunpack.c.l.b16 %v2512
      %v2655 = vunpack.c.l.b16 %v2513
      %v2656 = vunpack.c.l.b16 %v2514
      %v2657 = vunpack.c.l.b16 %v2515
      %v2658 = vunpack.c.l.b16 %v2516
      %v2659 = vunpack.c.l.b16 %v2517
      %v2660 = vpack.c.b16 %v2645, %v2644
      %v2661 = vpack.c.b16 %v2647, %v2646
      %v2662 = vpack.c.b16 %v2649, %v2648
      %v2663 = vpack.c.b16 %v2651, %v2650
      %v2664 = vpack.c.b16 %v2653, %v2652
      %v2665 = vpack.c.b16 %v2655, %v2654
      %v2666 = vpack.c.b16 %v2657, %v2656
      %v2667 = vpack.c.b16 %v2659, %v2658
      %2676 = vmatpush.bf16.msra.mxu0 %v2667
      %2677 = vmatpush.bf16.msra.mxu0 %v2666
      %2678 = vmatpush.bf16.msra.mxu0 %v2665
      %2679 = vmatpush.bf16.msra.mxu0 %v2664
      %2680 = vmatpush.bf16.msra.mxu0 %v2663
      %2681 = vmatpush.bf16.msra.mxu0 %v2662
      %2682 = vmatpush.bf16.msra.mxu0 %v2661
      %2683 = vmatpush.bf16.msra.mxu0 %v2660
      %2684 = vmatmul.bf16.gmra.mxu0 %v2554
      %v2685 = vpop.f32.mrf.mxu0
      %v2686 = vadd.f32 %v2560, %v2685
      %v2687 = vpop.f32.mrf.mxu0
      %2688 = vdwg.mxu0
      %v2705 = vunpack.c.l.b16 %v2518
      %v2706 = vunpack.c.l.b16 %v2519
      %v2707 = vunpack.c.l.b16 %v2520
      %v2708 = vunpack.c.l.b16 %v2521
      %v2709 = vunpack.c.l.b16 %v2522
      %v2710 = vunpack.c.l.b16 %v2523
      %v2711 = vunpack.c.l.b16 %v2524
      %v2712 = vunpack.c.l.b16 %v2525
      %v2713 = vunpack.c.l.b16 %v2526
      %v2714 = vunpack.c.l.b16 %v2527
      %v2715 = vunpack.c.l.b16 %v2528
      %v2716 = vunpack.c.l.b16 %v2529
      %v2717 = vunpack.c.l.b16 %v2530
      %v2718 = vunpack.c.l.b16 %v2531
      %v2719 = vunpack.c.l.b16 %v2532
      %v2720 = vunpack.c.l.b16 %v2533
      %v2721 = vpack.c.b16 %v2706, %v2705
      %v2722 = vpack.c.b16 %v2708, %v2707
      %v2723 = vpack.c.b16 %v2710, %v2709
      %v2724 = vpack.c.b16 %v2712, %v2711
      %v2725 = vpack.c.b16 %v2714, %v2713
      %v2726 = vpack.c.b16 %v2716, %v2715
      %v2727 = vpack.c.b16 %v2718, %v2717
      %v2728 = vpack.c.b16 %v2720, %v2719
      %2737 = vmatpush.bf16.msra.mxu0 %v2728
      %2738 = vmatpush.bf16.msra.mxu0 %v2727
      %2739 = vmatpush.bf16.msra.mxu0 %v2726
      %2740 = vmatpush.bf16.msra.mxu0 %v2725
      %2741 = vmatpush.bf16.msra.mxu0 %v2724
      %2742 = vmatpush.bf16.msra.mxu0 %v2723
      %2743 = vmatpush.bf16.msra.mxu0 %v2722
      %2744 = vmatpush.bf16.msra.mxu0 %v2721
      %2745 = vmatmul.bf16.gmra.mxu0 %v2554
      %v2746 = vpop.f32.mrf.mxu0
      %v2747 = vadd.f32 %v2561, %v2746
      %v2748 = vpop.f32.mrf.mxu0
      %2749 = vdwg.mxu0
      %v2766 = vunpack.c.l.b16 %v2534
      %v2767 = vunpack.c.l.b16 %v2535
      %v2768 = vunpack.c.l.b16 %v2536
      %v2769 = vunpack.c.l.b16 %v2537
      %v2770 = vunpack.c.l.b16 %v2538
      %v2771 = vunpack.c.l.b16 %v2539
      %v2772 = vunpack.c.l.b16 %v2540
      %v2773 = vunpack.c.l.b16 %v2541
      %v2774 = vunpack.c.l.b16 %v2542
      %v2775 = vunpack.c.l.b16 %v2543
      %v2776 = vunpack.c.l.b16 %v2544
      %v2777 = vunpack.c.l.b16 %v2545
      %v2778 = vunpack.c.l.b16 %v2546
      %v2779 = vunpack.c.l.b16 %v2547
      %v2780 = vunpack.c.l.b16 %v2548
      %v2781 = vunpack.c.l.b16 %v2549
      %v2782 = vpack.c.b16 %v2767, %v2766
      %v2783 = vpack.c.b16 %v2769, %v2768
      %v2784 = vpack.c.b16 %v2771, %v2770
      %v2785 = vpack.c.b16 %v2773, %v2772
      %v2786 = vpack.c.b16 %v2775, %v2774
      %v2787 = vpack.c.b16 %v2777, %v2776
      %v2788 = vpack.c.b16 %v2779, %v2778
      %v2789 = vpack.c.b16 %v2781, %v2780
      %2798 = vmatpush.bf16.msra.mxu0 %v2789
      %2799 = vmatpush.bf16.msra.mxu0 %v2788
      %2800 = vmatpush.bf16.msra.mxu0 %v2787
      %2801 = vmatpush.bf16.msra.mxu0 %v2786
      %2802 = vmatpush.bf16.msra.mxu0 %v2785
      %2803 = vmatpush.bf16.msra.mxu0 %v2784
      %2804 = vmatpush.bf16.msra.mxu0 %v2783
      %2805 = vmatpush.bf16.msra.mxu0 %v2782
      %2806 = vmatmul.bf16.gmra.mxu0 %v2554
      %v2807 = vpop.f32.mrf.mxu0
      %v2808 = vadd.f32 %v2562, %v2807
      %v2809 = vpop.f32.mrf.mxu0
      %2810 = vdwg.mxu0
      %v2811 = vld [vmem:[%s1050] sm:$0xf]
      %v2812 = vld [vmem:[%s1050 + $0x4] sm:$0xf]
      %v2813 = vld [vmem:[%s1050 + $0x8] sm:$0xf]
      %v2814 = vld [vmem:[%s1050 + $0xc] sm:$0xf]
      %v2815 = vld [vmem:[%s1050 + $0x10] sm:$0xf]
      %v2816 = vld [vmem:[%s1050 + $0x14] sm:$0xf]
      %v2817 = vld [vmem:[%s1050 + $0x18] sm:$0xf]
      %v2818 = vld [vmem:[%s1050 + $0x1c] sm:$0xf]
      %v2819 = vld [vmem:[%s1050 + $0x20] sm:$0xf]
      %v2820 = vld [vmem:[%s1050 + $0x24] sm:$0xf]
      %v2821 = vld [vmem:[%s1050 + $0x28] sm:$0xf]
      %v2822 = vld [vmem:[%s1050 + $0x2c] sm:$0xf]
      %v2823 = vld [vmem:[%s1050 + $0x30] sm:$0xf]
      %v2824 = vld [vmem:[%s1050 + $0x34] sm:$0xf]
      %v2825 = vld [vmem:[%s1050 + $0x38] sm:$0xf]
      %v2826 = vld [vmem:[%s1050 + $0x3c] sm:$0xf]
      %v2827 = vld [vmem:[%s1050 + $0x40] sm:$0xf]
      %v2828 = vld [vmem:[%s1050 + $0x44] sm:$0xf]
      %v2829 = vld [vmem:[%s1050 + $0x48] sm:$0xf]
      %v2830 = vld [vmem:[%s1050 + $0x4c] sm:$0xf]
      %v2831 = vld [vmem:[%s1050 + $0x50] sm:$0xf]
      %v2832 = vld [vmem:[%s1050 + $0x54] sm:$0xf]
      %v2833 = vld [vmem:[%s1050 + $0x58] sm:$0xf]
      %v2834 = vld [vmem:[%s1050 + $0x5c] sm:$0xf]
      %v2835 = vld [vmem:[%s1050 + $0x60] sm:$0xf]
      %v2836 = vld [vmem:[%s1050 + $0x64] sm:$0xf]
      %v2837 = vld [vmem:[%s1050 + $0x68] sm:$0xf]
      %v2838 = vld [vmem:[%s1050 + $0x6c] sm:$0xf]
      %v2839 = vld [vmem:[%s1050 + $0x70] sm:$0xf]
      %v2840 = vld [vmem:[%s1050 + $0x74] sm:$0xf]
      %v2841 = vld [vmem:[%s1050 + $0x78] sm:$0xf]
      %v2842 = vld [vmem:[%s1050 + $0x7c] sm:$0xf]
      %v2843 = vld [vmem:[%s1050 + $0x80] sm:$0xf]
      %v2844 = vld [vmem:[%s1050 + $0x84] sm:$0xf]
      %v2845 = vld [vmem:[%s1050 + $0x88] sm:$0xf]
      %v2846 = vld [vmem:[%s1050 + $0x8c] sm:$0xf]
      %v2847 = vld [vmem:[%s1050 + $0x90] sm:$0xf]
      %v2848 = vld [vmem:[%s1050 + $0x94] sm:$0xf]
      %v2849 = vld [vmem:[%s1050 + $0x98] sm:$0xf]
      %v2850 = vld [vmem:[%s1050 + $0x9c] sm:$0xf]
      %v2851 = vld [vmem:[%s1050 + $0xa0] sm:$0xf]
      %v2852 = vld [vmem:[%s1050 + $0xa4] sm:$0xf]
      %v2853 = vld [vmem:[%s1050 + $0xa8] sm:$0xf]
      %v2854 = vld [vmem:[%s1050 + $0xac] sm:$0xf]
      %v2855 = vld [vmem:[%s1050 + $0xb0] sm:$0xf]
      %v2856 = vld [vmem:[%s1050 + $0xb4] sm:$0xf]
      %v2857 = vld [vmem:[%s1050 + $0xb8] sm:$0xf]
      %v2858 = vld [vmem:[%s1050 + $0xbc] sm:$0xf]
      %v2859 = vld [vmem:[%s1050 + $0xc0] sm:$0xf]
      %v2860 = vld [vmem:[%s1050 + $0xc4] sm:$0xf]
      %v2861 = vld [vmem:[%s1050 + $0xc8] sm:$0xf]
      %v2862 = vld [vmem:[%s1050 + $0xcc] sm:$0xf]
      %v2863 = vld [vmem:[%s1050 + $0xd0] sm:$0xf]
      %v2864 = vld [vmem:[%s1050 + $0xd4] sm:$0xf]
      %v2865 = vld [vmem:[%s1050 + $0xd8] sm:$0xf]
      %v2866 = vld [vmem:[%s1050 + $0xdc] sm:$0xf]
      %v2867 = vld [vmem:[%s1050 + $0xe0] sm:$0xf]
      %v2868 = vld [vmem:[%s1050 + $0xe4] sm:$0xf]
      %v2869 = vld [vmem:[%s1050 + $0xe8] sm:$0xf]
      %v2870 = vld [vmem:[%s1050 + $0xec] sm:$0xf]
      %v2871 = vld [vmem:[%s1050 + $0xf0] sm:$0xf]
      %v2872 = vld [vmem:[%s1050 + $0xf4] sm:$0xf]
      %v2873 = vld [vmem:[%s1050 + $0xf8] sm:$0xf]
      %v2874 = vld [vmem:[%s1050 + $0xfc] sm:$0xf]
      %v2875 = vld [vmem:[%s1050 + $0x100] sm:$0xf]
      %v2876 = vld [vmem:[%s1050 + $0x104] sm:$0xf]
      %v2877 = vld [vmem:[%s1050 + $0x108] sm:$0xf]
      %v2878 = vld [vmem:[%s1050 + $0x10c] sm:$0xf]
      %v2879 = vld [vmem:[%s1050 + $0x110] sm:$0xf]
      %v2880 = vld [vmem:[%s1050 + $0x114] sm:$0xf]
      %v2881 = vld [vmem:[%s1050 + $0x118] sm:$0xf]
      %v2882 = vld [vmem:[%s1050 + $0x11c] sm:$0xf]
      %v2883 = vld [vmem:[%s1050 + $0x120] sm:$0xf]
      %v2884 = vld [vmem:[%s1050 + $0x124] sm:$0xf]
      %v2885 = vld [vmem:[%s1050 + $0x128] sm:$0xf]
      %v2886 = vld [vmem:[%s1050 + $0x12c] sm:$0xf]
      %v2887 = vld [vmem:[%s1050 + $0x130] sm:$0xf]
      %v2888 = vld [vmem:[%s1050 + $0x134] sm:$0xf]
      %v2889 = vld [vmem:[%s1050 + $0x138] sm:$0xf]
      %v2890 = vld [vmem:[%s1050 + $0x13c] sm:$0xf]
      %v2891 = vld [vmem:[%s1050 + $0x140] sm:$0xf]
      %v2892 = vld [vmem:[%s1050 + $0x144] sm:$0xf]
      %v2893 = vld [vmem:[%s1050 + $0x148] sm:$0xf]
      %v2894 = vld [vmem:[%s1050 + $0x14c] sm:$0xf]
      %v2895 = vld [vmem:[%s1050 + $0x150] sm:$0xf]
      %v2896 = vld [vmem:[%s1050 + $0x154] sm:$0xf]
      %v2897 = vld [vmem:[%s1050 + $0x158] sm:$0xf]
      %v2898 = vld [vmem:[%s1050 + $0x15c] sm:$0xf]
      %v2899 = vld [vmem:[%s1050 + $0x160] sm:$0xf]
      %v2900 = vld [vmem:[%s1050 + $0x164] sm:$0xf]
      %v2901 = vld [vmem:[%s1050 + $0x168] sm:$0xf]
      %v2902 = vld [vmem:[%s1050 + $0x16c] sm:$0xf]
      %v2903 = vld [vmem:[%s1050 + $0x170] sm:$0xf]
      %v2904 = vld [vmem:[%s1050 + $0x174] sm:$0xf]
      %v2905 = vld [vmem:[%s1050 + $0x178] sm:$0xf]
      %v2906 = vld [vmem:[%s1050 + $0x17c] sm:$0xf]
      %v2907 = vld [vmem:[%s1050 + $0x180] sm:$0xf]
      %v2908 = vld [vmem:[%s1050 + $0x184] sm:$0xf]
      %v2909 = vld [vmem:[%s1050 + $0x188] sm:$0xf]
      %v2910 = vld [vmem:[%s1050 + $0x18c] sm:$0xf]
      %v2911 = vld [vmem:[%s1050 + $0x190] sm:$0xf]
      %v2912 = vld [vmem:[%s1050 + $0x194] sm:$0xf]
      %v2913 = vld [vmem:[%s1050 + $0x198] sm:$0xf]
      %v2914 = vld [vmem:[%s1050 + $0x19c] sm:$0xf]
      %v2915 = vld [vmem:[%s1050 + $0x1a0] sm:$0xf]
      %v2916 = vld [vmem:[%s1050 + $0x1a4] sm:$0xf]
      %v2917 = vld [vmem:[%s1050 + $0x1a8] sm:$0xf]
      %v2918 = vld [vmem:[%s1050 + $0x1ac] sm:$0xf]
      %v2919 = vld [vmem:[%s1050 + $0x1b0] sm:$0xf]
      %v2920 = vld [vmem:[%s1050 + $0x1b4] sm:$0xf]
      %v2921 = vld [vmem:[%s1050 + $0x1b8] sm:$0xf]
      %v2922 = vld [vmem:[%s1050 + $0x1bc] sm:$0xf]
      %v2923 = vld [vmem:[%s1050 + $0x1c0] sm:$0xf]
      %v2924 = vld [vmem:[%s1050 + $0x1c4] sm:$0xf]
      %v2925 = vld [vmem:[%s1050 + $0x1c8] sm:$0xf]
      %v2926 = vld [vmem:[%s1050 + $0x1cc] sm:$0xf]
      %v2927 = vld [vmem:[%s1050 + $0x1d0] sm:$0xf]
      %v2928 = vld [vmem:[%s1050 + $0x1d4] sm:$0xf]
      %v2929 = vld [vmem:[%s1050 + $0x1d8] sm:$0xf]
      %v2930 = vld [vmem:[%s1050 + $0x1dc] sm:$0xf]
      %v2931 = vld [vmem:[%s1050 + $0x1e0] sm:$0xf]
      %v2932 = vld [vmem:[%s1050 + $0x1e4] sm:$0xf]
      %v2933 = vld [vmem:[%s1050 + $0x1e8] sm:$0xf]
      %v2934 = vld [vmem:[%s1050 + $0x1ec] sm:$0xf]
      %v2935 = vld [vmem:[%s1050 + $0x1f0] sm:$0xf]
      %v2936 = vld [vmem:[%s1050 + $0x1f4] sm:$0xf]
      %v2937 = vld [vmem:[%s1050 + $0x1f8] sm:$0xf]
      %v2938 = vld [vmem:[%s1050 + $0x1fc] sm:$0xf]
      %v2939 = vld [vmem:[%s1054] sm:$0x1]
      %v2940 = vld [vmem:[%s1054 + $0x1] sm:$0x1]
      %v2941 = vld [vmem:[%s1054 + $0x2] sm:$0x1]
      %v2942 = vld [vmem:[%s1054 + $0x3] sm:$0x1]
      %v2943 = vld [vmem:[%s1054 + $0x4] sm:$0x1]
      %v2944 = vld [vmem:[%s1054 + $0x5] sm:$0x1]
      %v2945 = vld [vmem:[%s1054 + $0x6] sm:$0x1]
      %v2946 = vld [vmem:[%s1054 + $0x7] sm:$0x1]
      %v2955 = vperm.slane %v2939, 0
      %v2956 = vperm.slane %v2940, 0
      %v2957 = vperm.slane %v2941, 0
      %v2958 = vperm.slane %v2942, 0
      %v2959 = vperm.slane %v2943, 0
      %v2960 = vperm.slane %v2944, 0
      %v2961 = vperm.slane %v2945, 0
      %v2962 = vperm.slane %v2946, 0
      %v2987 = vunpack.c.l.b16 %v2811
      %v2988 = vunpack.c.l.b16 %v2812
      %v2989 = vunpack.c.l.b16 %v2813
      %v2990 = vunpack.c.l.b16 %v2814
      %v2991 = vunpack.c.l.b16 %v2815
      %v2992 = vunpack.c.l.b16 %v2816
      %v2993 = vunpack.c.l.b16 %v2817
      %v2994 = vunpack.c.l.b16 %v2818
      %v2995 = vunpack.c.l.b16 %v2819
      %v2996 = vunpack.c.l.b16 %v2820
      %v2997 = vunpack.c.l.b16 %v2821
      %v2998 = vunpack.c.l.b16 %v2822
      %v2999 = vunpack.c.l.b16 %v2823
      %v3000 = vunpack.c.l.b16 %v2824
      %v3001 = vunpack.c.l.b16 %v2825
      %v3002 = vunpack.c.l.b16 %v2826
      %v3003 = vpack.c.b16 %v2988, %v2987
      %v3004 = vpack.c.b16 %v2990, %v2989
      %v3005 = vpack.c.b16 %v2992, %v2991
      %v3006 = vpack.c.b16 %v2994, %v2993
      %v3007 = vpack.c.b16 %v2996, %v2995
      %v3008 = vpack.c.b16 %v2998, %v2997
      %v3009 = vpack.c.b16 %v3000, %v2999
      %v3010 = vpack.c.b16 %v3002, %v3001
      %3019 = vmatpush.bf16.msra.mxu0 %v3010
      %3020 = vmatpush.bf16.msra.mxu0 %v3009
      %3021 = vmatpush.bf16.msra.mxu0 %v3008
      %3022 = vmatpush.bf16.msra.mxu0 %v3007
      %3023 = vmatpush.bf16.msra.mxu0 %v3006
      %3024 = vmatpush.bf16.msra.mxu0 %v3005
      %3025 = vmatpush.bf16.msra.mxu0 %v3004
      %3026 = vmatpush.bf16.msra.mxu0 %v3003
      %3027 = vmatmul.bf16.gmra.mxu0 %v1105
      %v3028 = vpop.f32.mrf.mxu0
      %v3029 = vadd.f32 %v2955, %v3028
      %v3030 = vpop.f32.mrf.mxu0
      %3031 = vdwg.mxu0
      %v3048 = vunpack.c.l.b16 %v2827
      %v3049 = vunpack.c.l.b16 %v2828
      %v3050 = vunpack.c.l.b16 %v2829
      %v3051 = vunpack.c.l.b16 %v2830
      %v3052 = vunpack.c.l.b16 %v2831
      %v3053 = vunpack.c.l.b16 %v2832
      %v3054 = vunpack.c.l.b16 %v2833
      %v3055 = vunpack.c.l.b16 %v2834
      %v3056 = vunpack.c.l.b16 %v2835
      %v3057 = vunpack.c.l.b16 %v2836
      %v3058 = vunpack.c.l.b16 %v2837
      %v3059 = vunpack.c.l.b16 %v2838
      %v3060 = vunpack.c.l.b16 %v2839
      %v3061 = vunpack.c.l.b16 %v2840
      %v3062 = vunpack.c.l.b16 %v2841
      %v3063 = vunpack.c.l.b16 %v2842
      %v3064 = vpack.c.b16 %v3049, %v3048
      %v3065 = vpack.c.b16 %v3051, %v3050
      %v3066 = vpack.c.b16 %v3053, %v3052
      %v3067 = vpack.c.b16 %v3055, %v3054
      %v3068 = vpack.c.b16 %v3057, %v3056
      %v3069 = vpack.c.b16 %v3059, %v3058
      %v3070 = vpack.c.b16 %v3061, %v3060
      %v3071 = vpack.c.b16 %v3063, %v3062
      %3080 = vmatpush.bf16.msra.mxu0 %v3071
      %3081 = vmatpush.bf16.msra.mxu0 %v3070
      %3082 = vmatpush.bf16.msra.mxu0 %v3069
      %3083 = vmatpush.bf16.msra.mxu0 %v3068
      %3084 = vmatpush.bf16.msra.mxu0 %v3067
      %3085 = vmatpush.bf16.msra.mxu0 %v3066
      %3086 = vmatpush.bf16.msra.mxu0 %v3065
      %3087 = vmatpush.bf16.msra.mxu0 %v3064
      %3088 = vmatmul.bf16.gmra.mxu0 %v1105
      %v3089 = vpop.f32.mrf.mxu0
      %v3090 = vadd.f32 %v2956, %v3089
      %v3091 = vpop.f32.mrf.mxu0
      %3092 = vdwg.mxu0
      %v3109 = vunpack.c.l.b16 %v2843
      %v3110 = vunpack.c.l.b16 %v2844
      %v3111 = vunpack.c.l.b16 %v2845
      %v3112 = vunpack.c.l.b16 %v2846
      %v3113 = vunpack.c.l.b16 %v2847
      %v3114 = vunpack.c.l.b16 %v2848
      %v3115 = vunpack.c.l.b16 %v2849
      %v3116 = vunpack.c.l.b16 %v2850
      %v3117 = vunpack.c.l.b16 %v2851
      %v3118 = vunpack.c.l.b16 %v2852
      %v3119 = vunpack.c.l.b16 %v2853
      %v3120 = vunpack.c.l.b16 %v2854
      %v3121 = vunpack.c.l.b16 %v2855
      %v3122 = vunpack.c.l.b16 %v2856
      %v3123 = vunpack.c.l.b16 %v2857
      %v3124 = vunpack.c.l.b16 %v2858
      %v3125 = vpack.c.b16 %v3110, %v3109
      %v3126 = vpack.c.b16 %v3112, %v3111
      %v3127 = vpack.c.b16 %v3114, %v3113
      %v3128 = vpack.c.b16 %v3116, %v3115
      %v3129 = vpack.c.b16 %v3118, %v3117
      %v3130 = vpack.c.b16 %v3120, %v3119
      %v3131 = vpack.c.b16 %v3122, %v3121
      %v3132 = vpack.c.b16 %v3124, %v3123
      %3141 = vmatpush.bf16.msra.mxu0 %v3132
      %3142 = vmatpush.bf16.msra.mxu0 %v3131
      %3143 = vmatpush.bf16.msra.mxu0 %v3130
      %3144 = vmatpush.bf16.msra.mxu0 %v3129
      %3145 = vmatpush.bf16.msra.mxu0 %v3128
      %3146 = vmatpush.bf16.msra.mxu0 %v3127
      %3147 = vmatpush.bf16.msra.mxu0 %v3126
      %3148 = vmatpush.bf16.msra.mxu0 %v3125
      %3149 = vmatmul.bf16.gmra.mxu0 %v1105
      %v3150 = vpop.f32.mrf.mxu0
      %v3151 = vadd.f32 %v2957, %v3150
      %v3152 = vpop.f32.mrf.mxu0
      %3153 = vdwg.mxu0
      %v3170 = vunpack.c.l.b16 %v2859
      %v3171 = vunpack.c.l.b16 %v2860
      %v3172 = vunpack.c.l.b16 %v2861
      %v3173 = vunpack.c.l.b16 %v2862
      %v3174 = vunpack.c.l.b16 %v2863
      %v3175 = vunpack.c.l.b16 %v2864
      %v3176 = vunpack.c.l.b16 %v2865
      %v3177 = vunpack.c.l.b16 %v2866
      %v3178 = vunpack.c.l.b16 %v2867
      %v3179 = vunpack.c.l.b16 %v2868
      %v3180 = vunpack.c.l.b16 %v2869
      %v3181 = vunpack.c.l.b16 %v2870
      %v3182 = vunpack.c.l.b16 %v2871
      %v3183 = vunpack.c.l.b16 %v2872
      %v3184 = vunpack.c.l.b16 %v2873
      %v3185 = vunpack.c.l.b16 %v2874
      %v3186 = vpack.c.b16 %v3171, %v3170
      %v3187 = vpack.c.b16 %v3173, %v3172
      %v3188 = vpack.c.b16 %v3175, %v3174
      %v3189 = vpack.c.b16 %v3177, %v3176
      %v3190 = vpack.c.b16 %v3179, %v3178
      %v3191 = vpack.c.b16 %v3181, %v3180
      %v3192 = vpack.c.b16 %v3183, %v3182
      %v3193 = vpack.c.b16 %v3185, %v3184
      %3202 = vmatpush.bf16.msra.mxu0 %v3193
      %3203 = vmatpush.bf16.msra.mxu0 %v3192
      %3204 = vmatpush.bf16.msra.mxu0 %v3191
      %3205 = vmatpush.bf16.msra.mxu0 %v3190
      %3206 = vmatpush.bf16.msra.mxu0 %v3189
      %3207 = vmatpush.bf16.msra.mxu0 %v3188
      %3208 = vmatpush.bf16.msra.mxu0 %v3187
      %3209 = vmatpush.bf16.msra.mxu0 %v3186
      %3210 = vmatmul.bf16.gmra.mxu0 %v1105
      %v3211 = vpop.f32.mrf.mxu0
      %v3212 = vadd.f32 %v2958, %v3211
      %v3213 = vpop.f32.mrf.mxu0
      %3214 = vdwg.mxu0
      %v3231 = vunpack.c.l.b16 %v2875
      %v3232 = vunpack.c.l.b16 %v2876
      %v3233 = vunpack.c.l.b16 %v2877
      %v3234 = vunpack.c.l.b16 %v2878
      %v3235 = vunpack.c.l.b16 %v2879
      %v3236 = vunpack.c.l.b16 %v2880
      %v3237 = vunpack.c.l.b16 %v2881
      %v3238 = vunpack.c.l.b16 %v2882
      %v3239 = vunpack.c.l.b16 %v2883
      %v3240 = vunpack.c.l.b16 %v2884
      %v3241 = vunpack.c.l.b16 %v2885
      %v3242 = vunpack.c.l.b16 %v2886
      %v3243 = vunpack.c.l.b16 %v2887
      %v3244 = vunpack.c.l.b16 %v2888
      %v3245 = vunpack.c.l.b16 %v2889
      %v3246 = vunpack.c.l.b16 %v2890
      %v3247 = vpack.c.b16 %v3232, %v3231
      %v3248 = vpack.c.b16 %v3234, %v3233
      %v3249 = vpack.c.b16 %v3236, %v3235
      %v3250 = vpack.c.b16 %v3238, %v3237
      %v3251 = vpack.c.b16 %v3240, %v3239
      %v3252 = vpack.c.b16 %v3242, %v3241
      %v3253 = vpack.c.b16 %v3244, %v3243
      %v3254 = vpack.c.b16 %v3246, %v3245
      %3263 = vmatpush.bf16.msra.mxu0 %v3254
      %3264 = vmatpush.bf16.msra.mxu0 %v3253
      %3265 = vmatpush.bf16.msra.mxu0 %v3252
      %3266 = vmatpush.bf16.msra.mxu0 %v3251
      %3267 = vmatpush.bf16.msra.mxu0 %v3250
      %3268 = vmatpush.bf16.msra.mxu0 %v3249
      %3269 = vmatpush.bf16.msra.mxu0 %v3248
      %3270 = vmatpush.bf16.msra.mxu0 %v3247
      %3271 = vmatmul.bf16.gmra.mxu0 %v1105
      %v3272 = vpop.f32.mrf.mxu0
      %v3273 = vadd.f32 %v2959, %v3272
      %v3274 = vpop.f32.mrf.mxu0
      %3275 = vdwg.mxu0
      %v3292 = vunpack.c.l.b16 %v2891
      %v3293 = vunpack.c.l.b16 %v2892
      %v3294 = vunpack.c.l.b16 %v2893
      %v3295 = vunpack.c.l.b16 %v2894
      %v3296 = vunpack.c.l.b16 %v2895
      %v3297 = vunpack.c.l.b16 %v2896
      %v3298 = vunpack.c.l.b16 %v2897
      %v3299 = vunpack.c.l.b16 %v2898
      %v3300 = vunpack.c.l.b16 %v2899
      %v3301 = vunpack.c.l.b16 %v2900
      %v3302 = vunpack.c.l.b16 %v2901
      %v3303 = vunpack.c.l.b16 %v2902
      %v3304 = vunpack.c.l.b16 %v2903
      %v3305 = vunpack.c.l.b16 %v2904
      %v3306 = vunpack.c.l.b16 %v2905
      %v3307 = vunpack.c.l.b16 %v2906
      %v3308 = vpack.c.b16 %v3293, %v3292
      %v3309 = vpack.c.b16 %v3295, %v3294
      %v3310 = vpack.c.b16 %v3297, %v3296
      %v3311 = vpack.c.b16 %v3299, %v3298
      %v3312 = vpack.c.b16 %v3301, %v3300
      %v3313 = vpack.c.b16 %v3303, %v3302
      %v3314 = vpack.c.b16 %v3305, %v3304
      %v3315 = vpack.c.b16 %v3307, %v3306
      %3324 = vmatpush.bf16.msra.mxu0 %v3315
      %3325 = vmatpush.bf16.msra.mxu0 %v3314
      %3326 = vmatpush.bf16.msra.mxu0 %v3313
      %3327 = vmatpush.bf16.msra.mxu0 %v3312
      %3328 = vmatpush.bf16.msra.mxu0 %v3311
      %3329 = vmatpush.bf16.msra.mxu0 %v3310
      %3330 = vmatpush.bf16.msra.mxu0 %v3309
      %3331 = vmatpush.bf16.msra.mxu0 %v3308
      %3332 = vmatmul.bf16.gmra.mxu0 %v1105
      %v3333 = vpop.f32.mrf.mxu0
      %v3334 = vadd.f32 %v2960, %v3333
      %v3335 = vpop.f32.mrf.mxu0
      %3336 = vdwg.mxu0
      %v3353 = vunpack.c.l.b16 %v2907
      %v3354 = vunpack.c.l.b16 %v2908
      %v3355 = vunpack.c.l.b16 %v2909
      %v3356 = vunpack.c.l.b16 %v2910
      %v3357 = vunpack.c.l.b16 %v2911
      %v3358 = vunpack.c.l.b16 %v2912
      %v3359 = vunpack.c.l.b16 %v2913
      %v3360 = vunpack.c.l.b16 %v2914
      %v3361 = vunpack.c.l.b16 %v2915
      %v3362 = vunpack.c.l.b16 %v2916
      %v3363 = vunpack.c.l.b16 %v2917
      %v3364 = vunpack.c.l.b16 %v2918
      %v3365 = vunpack.c.l.b16 %v2919
      %v3366 = vunpack.c.l.b16 %v2920
      %v3367 = vunpack.c.l.b16 %v2921
      %v3368 = vunpack.c.l.b16 %v2922
      %v3369 = vpack.c.b16 %v3354, %v3353
      %v3370 = vpack.c.b16 %v3356, %v3355
      %v3371 = vpack.c.b16 %v3358, %v3357
      %v3372 = vpack.c.b16 %v3360, %v3359
      %v3373 = vpack.c.b16 %v3362, %v3361
      %v3374 = vpack.c.b16 %v3364, %v3363
      %v3375 = vpack.c.b16 %v3366, %v3365
      %v3376 = vpack.c.b16 %v3368, %v3367
      %3385 = vmatpush.bf16.msra.mxu0 %v3376
      %3386 = vmatpush.bf16.msra.mxu0 %v3375
      %3387 = vmatpush.bf16.msra.mxu0 %v3374
      %3388 = vmatpush.bf16.msra.mxu0 %v3373
      %3389 = vmatpush.bf16.msra.mxu0 %v3372
      %3390 = vmatpush.bf16.msra.mxu0 %v3371
      %3391 = vmatpush.bf16.msra.mxu0 %v3370
      %3392 = vmatpush.bf16.msra.mxu0 %v3369
      %3393 = vmatmul.bf16.gmra.mxu0 %v1105
      %v3394 = vpop.f32.mrf.mxu0
      %v3395 = vadd.f32 %v2961, %v3394
      %v3396 = vpop.f32.mrf.mxu0
      %3397 = vdwg.mxu0
      %v3414 = vunpack.c.l.b16 %v2923
      %v3415 = vunpack.c.l.b16 %v2924
      %v3416 = vunpack.c.l.b16 %v2925
      %v3417 = vunpack.c.l.b16 %v2926
      %v3418 = vunpack.c.l.b16 %v2927
      %v3419 = vunpack.c.l.b16 %v2928
      %v3420 = vunpack.c.l.b16 %v2929
      %v3421 = vunpack.c.l.b16 %v2930
      %v3422 = vunpack.c.l.b16 %v2931
      %v3423 = vunpack.c.l.b16 %v2932
      %v3424 = vunpack.c.l.b16 %v2933
      %v3425 = vunpack.c.l.b16 %v2934
      %v3426 = vunpack.c.l.b16 %v2935
      %v3427 = vunpack.c.l.b16 %v2936
      %v3428 = vunpack.c.l.b16 %v2937
      %v3429 = vunpack.c.l.b16 %v2938
      %v3430 = vpack.c.b16 %v3415, %v3414
      %v3431 = vpack.c.b16 %v3417, %v3416
      %v3432 = vpack.c.b16 %v3419, %v3418
      %v3433 = vpack.c.b16 %v3421, %v3420
      %v3434 = vpack.c.b16 %v3423, %v3422
      %v3435 = vpack.c.b16 %v3425, %v3424
      %v3436 = vpack.c.b16 %v3427, %v3426
      %v3437 = vpack.c.b16 %v3429, %v3428
      %3446 = vmatpush.bf16.msra.mxu0 %v3437
      %3447 = vmatpush.bf16.msra.mxu0 %v3436
      %3448 = vmatpush.bf16.msra.mxu0 %v3435
      %3449 = vmatpush.bf16.msra.mxu0 %v3434
      %3450 = vmatpush.bf16.msra.mxu0 %v3433
      %3451 = vmatpush.bf16.msra.mxu0 %v3432
      %3452 = vmatpush.bf16.msra.mxu0 %v3431
      %3453 = vmatpush.bf16.msra.mxu0 %v3430
      %3454 = vmatmul.bf16.gmra.mxu0 %v1105
      %v3455 = vpop.f32.mrf.mxu0
      %v3456 = vadd.f32 %v2962, %v3455
      %v3457 = vpop.f32.mrf.mxu0
      %3458 = vdwg.mxu0
      %v3459 = vld [vmem:[%s1059] sm:$0xf]
      %v3460 = vld [vmem:[%s1059 + $0x4] sm:$0xf]
      %v3461 = vld [vmem:[%s1059 + $0x8] sm:$0xf]
      %v3462 = vld [vmem:[%s1059 + $0xc] sm:$0xf]
      %v3463 = vld [vmem:[%s1059 + $0x10] sm:$0xf]
      %v3464 = vld [vmem:[%s1059 + $0x14] sm:$0xf]
      %v3465 = vld [vmem:[%s1059 + $0x18] sm:$0xf]
      %v3466 = vld [vmem:[%s1059 + $0x1c] sm:$0xf]
      %v3467 = vld [vmem:[%s1059 + $0x20] sm:$0xf]
      %v3468 = vld [vmem:[%s1059 + $0x24] sm:$0xf]
      %v3469 = vld [vmem:[%s1059 + $0x28] sm:$0xf]
      %v3470 = vld [vmem:[%s1059 + $0x2c] sm:$0xf]
      %v3471 = vld [vmem:[%s1059 + $0x30] sm:$0xf]
      %v3472 = vld [vmem:[%s1059 + $0x34] sm:$0xf]
      %v3473 = vld [vmem:[%s1059 + $0x38] sm:$0xf]
      %v3474 = vld [vmem:[%s1059 + $0x3c] sm:$0xf]
      %v3475 = vld [vmem:[%s1062] sm:$0x1]
      %v3476 = vmul.f32 %v2625, 0.17677669
      %v3477 = vmul.f32 %v2686, 0.17677669
      %v3478 = vmul.f32 %v2747, 0.17677669
      %v3479 = vmul.f32 %v2808, 0.17677669
      %v3480 = vpack.c.bf16 %v3476, %v3476
      %v3481 = vpack.c.bf16 %v3477, %v3477
      %v3482 = vpack.c.bf16 %v3478, %v3478
      %v3483 = vpack.c.bf16 %v3479, %v3479
      %v3484 = vpack.c.bf16 %v3029, %v3029
      %v3485 = vpack.c.bf16 %v3090, %v3090
      %v3486 = vpack.c.bf16 %v3151, %v3151
      %v3487 = vpack.c.bf16 %v3212, %v3212
      %v3489 = vsel %vm2113, %v3480, 0
      %v3492 = vsel %vm2113, %v3484, 0
      %3494 = vmatpush.bf16.xpose.msra.mxu0 0
      %3495 = vmatpush.bf16.xpose.msra.mxu0 0
      %3496 = vmatpush.bf16.xpose.msra.mxu0 0
      %3497 = vmatpush.bf16.xpose.msra.mxu0 0
      %3498 = vmatpush.bf16.xpose.msra.mxu0 0
      %3499 = vmatpush.bf16.xpose.msra.mxu0 0
      %3500 = vmatpush.bf16.xpose.msra.mxu0 0
      %3501 = vmatpush.bf16.xpose.msra.mxu0 %v3492
      %3502 = vmatmul.bf16.gmra.mxu0 %v3489
      %v3503 = vpop.f32.mrf.mxu0
      %v3504 = vadd.f32 0.0, %v3503
      %v3505 = vpop.f32.mrf.mxu0
      %3506 = vdwg.mxu0
      %v3508 = vsel %vm2113, %v3481, 0
      %v3511 = vsel %vm2113, %v3485, 0
      %3513 = vmatpush.bf16.xpose.msra.mxu0 0
      %3514 = vmatpush.bf16.xpose.msra.mxu0 0
      %3515 = vmatpush.bf16.xpose.msra.mxu0 0
      %3516 = vmatpush.bf16.xpose.msra.mxu0 0
      %3517 = vmatpush.bf16.xpose.msra.mxu0 0
      %3518 = vmatpush.bf16.xpose.msra.mxu0 0
      %3519 = vmatpush.bf16.xpose.msra.mxu0 0
      %3520 = vmatpush.bf16.xpose.msra.mxu0 %v3511
      %3521 = vmatmul.bf16.gmra.mxu0 %v3508
      %v3522 = vpop.f32.mrf.mxu0
      %v3523 = vadd.f32 0.0, %v3522
      %v3524 = vpop.f32.mrf.mxu0
      %3525 = vdwg.mxu0
      %v3527 = vsel %vm2113, %v3482, 0
      %v3530 = vsel %vm2113, %v3486, 0
      %3532 = vmatpush.bf16.xpose.msra.mxu0 0
      %3533 = vmatpush.bf16.xpose.msra.mxu0 0
      %3534 = vmatpush.bf16.xpose.msra.mxu0 0
      %3535 = vmatpush.bf16.xpose.msra.mxu0 0
      %3536 = vmatpush.bf16.xpose.msra.mxu0 0
      %3537 = vmatpush.bf16.xpose.msra.mxu0 0
      %3538 = vmatpush.bf16.xpose.msra.mxu0 0
      %3539 = vmatpush.bf16.xpose.msra.mxu0 %v3530
      %3540 = vmatmul.bf16.gmra.mxu0 %v3527
      %v3541 = vpop.f32.mrf.mxu0
      %v3542 = vadd.f32 0.0, %v3541
      %v3543 = vpop.f32.mrf.mxu0
      %3544 = vdwg.mxu0
      %v3546 = vsel %vm2113, %v3483, 0
      %v3549 = vsel %vm2113, %v3487, 0
      %3551 = vmatpush.bf16.xpose.msra.mxu0 0
      %3552 = vmatpush.bf16.xpose.msra.mxu0 0
      %3553 = vmatpush.bf16.xpose.msra.mxu0 0
      %3554 = vmatpush.bf16.xpose.msra.mxu0 0
      %3555 = vmatpush.bf16.xpose.msra.mxu0 0
      %3556 = vmatpush.bf16.xpose.msra.mxu0 0
      %3557 = vmatpush.bf16.xpose.msra.mxu0 0
      %3558 = vmatpush.bf16.xpose.msra.mxu0 %v3549
      %3559 = vmatmul.bf16.gmra.mxu0 %v3546
      %v3560 = vpop.f32.mrf.mxu0
      %v3561 = vadd.f32 0.0, %v3560
      %v3562 = vpop.f32.mrf.mxu0
      %3563 = vdwg.mxu0
      %v3564 = vsel %vm2196, %v3504, -inf
      %3565 = vmax.xlane.f32.xlu0 %v3564
      %v3566 = vpop.xlane.xlu0 %3565
      %v3567 = vsel %vm2196, %v3523, -inf
      %3568 = vmax.xlane.f32.xlu0 %v3567
      %v3569 = vpop.xlane.xlu0 %3568
      %v3570 = vsel %vm2196, %v3542, -inf
      %3571 = vmax.xlane.f32.xlu0 %v3570
      %v3572 = vpop.xlane.xlu0 %3571
      %v3573 = vsel %vm2196, %v3561, -inf
      %3574 = vmax.xlane.f32.xlu0 %v3573
      %v3575 = vpop.xlane.xlu0 %3574
      %v3576 = vsub.f32 %v3504, %v3566
      %v3577 = vsub.f32 %v3523, %v3569
      %v3578 = vsub.f32 %v3542, %v3572
      %v3579 = vsub.f32 %v3561, %v3575
      %v3580 = vmul.f32 %v3576, 1.442695
      %v3581 = vpow.pop %v3580
      %v3582 = vmul.f32 %v3577, 1.442695
      %v3583 = vpow.pop %v3582
      %v3584 = vmul.f32 %v3578, 1.442695
      %v3585 = vpow.pop %v3584
      %v3586 = vmul.f32 %v3579, 1.442695
      %v3587 = vpow.pop %v3586
      %v3588 = vsel %vm2196, %v3581, 0.0
      %3589 = vadd.xlane.f32.xlu0 %v3588
      %v3590 = vpop.xlane.xlu0 %3589
      %v3591 = vsel %vm2196, %v3583, 0.0
      %3592 = vadd.xlane.f32.xlu0 %v3591
      %v3593 = vpop.xlane.xlu0 %3592
      %v3594 = vsel %vm2196, %v3585, 0.0
      %3595 = vadd.xlane.f32.xlu0 %v3594
      %v3596 = vpop.xlane.xlu0 %3595
      %v3597 = vsel %vm2196, %v3587, 0.0
      %3598 = vadd.xlane.f32.xlu0 %v3597
      %v3599 = vpop.xlane.xlu0 %3598
      %v3600 = vrcp.pop %v3590
      %v3601 = vrcp.pop %v3593
      %v3602 = vrcp.pop %v3596
      %v3603 = vrcp.pop %v3599
      %v3604 = vmul.f32 %v3581, %v3600
      %v3605 = vmul.f32 %v3583, %v3601
      %v3606 = vmul.f32 %v3585, %v3602
      %v3607 = vmul.f32 %v3587, %v3603
      %v3608 = vpack.c.bf16 %v3604, %v3604
      %v3609 = vpack.c.bf16 %v3605, %v3605
      %v3610 = vpack.c.bf16 %v3606, %v3606
      %v3611 = vpack.c.bf16 %v3607, %v3607
      %v3612 = vpack.c.bf16 %v3273, %v3273
      %v3613 = vpack.c.bf16 %v3334, %v3334
      %v3614 = vpack.c.bf16 %v3395, %v3395
      %v3615 = vpack.c.bf16 %v3456, %v3456
      %v3617 = vsel %vm2196, %v3608, 0
      %v3620 = vsel %vm2252, %v3612, 0
      %3622 = vmatpush.bf16.msra.mxu0 0
      %3623 = vmatpush.bf16.msra.mxu0 0
      %3624 = vmatpush.bf16.msra.mxu0 0
      %3625 = vmatpush.bf16.msra.mxu0 0
      %3626 = vmatpush.bf16.msra.mxu0 0
      %3627 = vmatpush.bf16.msra.mxu0 0
      %3628 = vmatpush.bf16.msra.mxu0 0
      %3629 = vmatpush.bf16.msra.mxu0 %v3620
      %3630 = vmatmul.bf16.gmra.mxu0 %v3617
      %v3631 = vpop.f32.mrf.mxu0
      %v3632 = vadd.f32 0.0, %v3631
      %v3633 = vpop.f32.mrf.mxu0
      %3634 = vdwg.mxu0
      %v3636 = vsel %vm2196, %v3609, 0
      %v3639 = vsel %vm2252, %v3613, 0
      %3641 = vmatpush.bf16.msra.mxu0 0
      %3642 = vmatpush.bf16.msra.mxu0 0
      %3643 = vmatpush.bf16.msra.mxu0 0
      %3644 = vmatpush.bf16.msra.mxu0 0
      %3645 = vmatpush.bf16.msra.mxu0 0
      %3646 = vmatpush.bf16.msra.mxu0 0
      %3647 = vmatpush.bf16.msra.mxu0 0
      %3648 = vmatpush.bf16.msra.mxu0 %v3639
      %3649 = vmatmul.bf16.gmra.mxu0 %v3636
      %v3650 = vpop.f32.mrf.mxu0
      %v3651 = vadd.f32 0.0, %v3650
      %v3652 = vpop.f32.mrf.mxu0
      %3653 = vdwg.mxu0
      %v3655 = vsel %vm2196, %v3610, 0
      %v3658 = vsel %vm2252, %v3614, 0
      %3660 = vmatpush.bf16.msra.mxu0 0
      %3661 = vmatpush.bf16.msra.mxu0 0
      %3662 = vmatpush.bf16.msra.mxu0 0
      %3663 = vmatpush.bf16.msra.mxu0 0
      %3664 = vmatpush.bf16.msra.mxu0 0
      %3665 = vmatpush.bf16.msra.mxu0 0
      %3666 = vmatpush.bf16.msra.mxu0 0
      %3667 = vmatpush.bf16.msra.mxu0 %v3658
      %3668 = vmatmul.bf16.gmra.mxu0 %v3655
      %v3669 = vpop.f32.mrf.mxu0
      %v3670 = vadd.f32 0.0, %v3669
      %v3671 = vpop.f32.mrf.mxu0
      %3672 = vdwg.mxu0
      %v3674 = vsel %vm2196, %v3611, 0
      %v3677 = vsel %vm2252, %v3615, 0
      %3679 = vmatpush.bf16.msra.mxu0 0
      %3680 = vmatpush.bf16.msra.mxu0 0
      %3681 = vmatpush.bf16.msra.mxu0 0
      %3682 = vmatpush.bf16.msra.mxu0 0
      %3683 = vmatpush.bf16.msra.mxu0 0
      %3684 = vmatpush.bf16.msra.mxu0 0
      %3685 = vmatpush.bf16.msra.mxu0 0
      %3686 = vmatpush.bf16.msra.mxu0 %v3677
      %3687 = vmatmul.bf16.gmra.mxu0 %v3674
      %v3688 = vpop.f32.mrf.mxu0
      %v3689 = vadd.f32 0.0, %v3688
      %v3690 = vpop.f32.mrf.mxu0
      %3691 = vdwg.mxu0
      %v3692 = vpack.c.bf16 %v3632, %v3632
      %v3693 = vpack.c.bf16 %v3651, %v3651
      %v3698 = vunpack.c.l.b16 %v3463
      %v3699 = vunpack.c.l.b16 %v3464
      %v3700 = vunpack.c.l.b16 %v3465
      %v3701 = vunpack.c.l.b16 %v3466
      %v3702 = vpack.c.b16 %v3699, %v3698
      %v3703 = vpack.c.b16 %v3701, %v3700
      %v3707 = vsel %vm2113, %v3693, 0
      %3709 = vmatpush.bf16.msra.mxu0 0
      %3710 = vmatpush.bf16.msra.mxu0 0
      %3711 = vmatpush.bf16.msra.mxu0 0
      %3712 = vmatpush.bf16.msra.mxu0 0
      %3713 = vmatpush.bf16.msra.mxu0 0
      %3714 = vmatpush.bf16.msra.mxu0 0
      %3715 = vmatpush.bf16.msra.mxu0 %v3703
      %3716 = vmatpush.bf16.msra.mxu0 %v3702
      %3717 = vmatmul.bf16.gmra.mxu0 %v3707
      %v3718 = vpop.f32.mrf.mxu0
      %v3719 = vadd.f32 0.0, %v3718
      %v3720 = vpop.f32.mrf.mxu0
      %3721 = vdwg.mxu0
      %v3726 = vunpack.c.l.b16 %v3459
      %v3727 = vunpack.c.l.b16 %v3460
      %v3728 = vunpack.c.l.b16 %v3461
      %v3729 = vunpack.c.l.b16 %v3462
      %v3730 = vpack.c.b16 %v3727, %v3726
      %v3731 = vpack.c.b16 %v3729, %v3728
      %v3735 = vsel %vm2113, %v3692, 0
      %3737 = vmatpush.bf16.msra.mxu0 0
      %3738 = vmatpush.bf16.msra.mxu0 0
      %3739 = vmatpush.bf16.msra.mxu0 0
      %3740 = vmatpush.bf16.msra.mxu0 0
      %3741 = vmatpush.bf16.msra.mxu0 0
      %3742 = vmatpush.bf16.msra.mxu0 0
      %3743 = vmatpush.bf16.msra.mxu0 %v3731
      %3744 = vmatpush.bf16.msra.mxu0 %v3730
      %3745 = vmatmul.bf16.gmra.mxu0 %v3735
      %v3746 = vpop.f32.mrf.mxu0
      %v3747 = vadd.f32 %v3719, %v3746
      %v3748 = vpop.f32.mrf.mxu0
      %3749 = vdwg.mxu0
      %v3750 = vpack.c.bf16 %v3670, %v3670
      %v3755 = vunpack.c.l.b16 %v3467
      %v3756 = vunpack.c.l.b16 %v3468
      %v3757 = vunpack.c.l.b16 %v3469
      %v3758 = vunpack.c.l.b16 %v3470
      %v3759 = vpack.c.b16 %v3756, %v3755
      %v3760 = vpack.c.b16 %v3758, %v3757
      %v3764 = vsel %vm2113, %v3750, 0
      %3766 = vmatpush.bf16.msra.mxu0 0
      %3767 = vmatpush.bf16.msra.mxu0 0
      %3768 = vmatpush.bf16.msra.mxu0 0
      %3769 = vmatpush.bf16.msra.mxu0 0
      %3770 = vmatpush.bf16.msra.mxu0 0
      %3771 = vmatpush.bf16.msra.mxu0 0
      %3772 = vmatpush.bf16.msra.mxu0 %v3760
      %3773 = vmatpush.bf16.msra.mxu0 %v3759
      %3774 = vmatmul.bf16.gmra.mxu0 %v3764
      %v3775 = vpop.f32.mrf.mxu0
      %v3776 = vadd.f32 0.0, %v3775
      %v3777 = vpop.f32.mrf.mxu0
      %3778 = vdwg.mxu0
      %v3779 = vadd.f32 %v3747, %v3776
      %v3780 = vpack.c.bf16 %v3689, %v3689
      %v3785 = vunpack.c.l.b16 %v3471
      %v3786 = vunpack.c.l.b16 %v3472
      %v3787 = vunpack.c.l.b16 %v3473
      %v3788 = vunpack.c.l.b16 %v3474
      %v3789 = vpack.c.b16 %v3786, %v3785
      %v3790 = vpack.c.b16 %v3788, %v3787
      %v3794 = vsel %vm2113, %v3780, 0
      %3796 = vmatpush.bf16.msra.mxu0 0
      %3797 = vmatpush.bf16.msra.mxu0 0
      %3798 = vmatpush.bf16.msra.mxu0 0
      %3799 = vmatpush.bf16.msra.mxu0 0
      %3800 = vmatpush.bf16.msra.mxu0 0
      %3801 = vmatpush.bf16.msra.mxu0 0
      %3802 = vmatpush.bf16.msra.mxu0 %v3790
      %3803 = vmatpush.bf16.msra.mxu0 %v3789
      %3804 = vmatmul.bf16.gmra.mxu0 %v3794
      %v3805 = vpop.f32.mrf.mxu0
      %v3806 = vadd.f32 0.0, %v3805
      %v3807 = vpop.f32.mrf.mxu0
      %3808 = vdwg.mxu0
      %v3809 = vadd.f32 %v3779, %v3806
      %v3811 = vperm.slane %v3475, 0
      %v3813 = vadd.f32 %v3809, %v3811
      %v3814 = vadd.f32 %v2485, %v3813
      %v3815 = vld [vmem:[%s1065] sm:$0x1]
      %v3816 = vld [vmem:[%s1068] sm:$0x1]
      %3817 = vadd.xlane.f32.xlu0 %v3814
      %v3818 = vpop.xlane.xlu0 %3817
      %v3819 = vmul.f32 %v3818, %v2459
      %v3820 = vsub.f32 %v3814, %v3819
      %v3821 = vmul.f32 %v3820, %v3820
      %3822 = vadd.xlane.f32.xlu0 %v3821
      %v3823 = vpop.xlane.xlu0 %3822
      %v3824 = vmul.f32 %v3823, %v2459
      %v3825 = vadd.f32 %v3824, 1e-05
      %v3826 = vrsqrt.pop %v3825
      %v3827 = vmul.f32 %v3826, %v3825
      %v3828 = vmul.f32 %v3827, %v3826
      %v3829 = vmul.f32 0.5, %v3828
      %v3830 = vsub.f32 1.5, %v3829
      %v3831 = vmul.f32 %v3826, %v3830
      %vm3832 = vweird.f32 %v3825
      %vm3833 = vweird.f32 %v3826
      %vm3834 = vmor %vm3832, %vm3833
      %v3835 = vsel %vm3834, %v3826, %v3831
      %v3836 = vmul.f32 %v3820, %v3835
      %v3838 = vperm.slane %v3815, 0
      %v3840 = vmul.f32 %v3836, %v3838
      %v3842 = vperm.slane %v3816, 0
      %v3844 = vadd.f32 %v3840, %v3842
      %v3845 = vld [vmem:[%s1073] sm:$0xff]
      %v3846 = vld [vmem:[%s1073 + $0x8] sm:$0xff]
      %v3847 = vld [vmem:[%s1073 + $0x10] sm:$0xff]
      %v3848 = vld [vmem:[%s1073 + $0x18] sm:$0xff]
      %v3849 = vld [vmem:[%s1073 + $0x20] sm:$0xff]
      %v3850 = vld [vmem:[%s1073 + $0x28] sm:$0xff]
      %v3851 = vld [vmem:[%s1073 + $0x30] sm:$0xff]
      %v3852 = vld [vmem:[%s1073 + $0x38] sm:$0xff]
      %v3853 = vld [vmem:[%s1073 + $0x40] sm:$0xff]
      %v3854 = vld [vmem:[%s1073 + $0x48] sm:$0xff]
      %v3855 = vld [vmem:[%s1073 + $0x50] sm:$0xff]
      %v3856 = vld [vmem:[%s1073 + $0x58] sm:$0xff]
      %v3857 = vld [vmem:[%s1073 + $0x60] sm:$0xff]
      %v3858 = vld [vmem:[%s1073 + $0x68] sm:$0xff]
      %v3859 = vld [vmem:[%s1073 + $0x70] sm:$0xff]
      %v3860 = vld [vmem:[%s1073 + $0x78] sm:$0xff]
      %v3861 = vld [vmem:[%s1077] sm:$0x3]
      %v3862 = vld [vmem:[%s1082] sm:$0xf]
      %v3863 = vld [vmem:[%s1082 + $0x4] sm:$0xf]
      %v3864 = vld [vmem:[%s1082 + $0x8] sm:$0xf]
      %v3865 = vld [vmem:[%s1082 + $0xc] sm:$0xf]
      %v3866 = vld [vmem:[%s1082 + $0x10] sm:$0xf]
      %v3867 = vld [vmem:[%s1082 + $0x14] sm:$0xf]
      %v3868 = vld [vmem:[%s1082 + $0x18] sm:$0xf]
      %v3869 = vld [vmem:[%s1082 + $0x1c] sm:$0xf]
      %v3870 = vld [vmem:[%s1082 + $0x20] sm:$0xf]
      %v3871 = vld [vmem:[%s1082 + $0x24] sm:$0xf]
      %v3872 = vld [vmem:[%s1082 + $0x28] sm:$0xf]
      %v3873 = vld [vmem:[%s1082 + $0x2c] sm:$0xf]
      %v3874 = vld [vmem:[%s1082 + $0x30] sm:$0xf]
      %v3875 = vld [vmem:[%s1082 + $0x34] sm:$0xf]
      %v3876 = vld [vmem:[%s1082 + $0x38] sm:$0xf]
      %v3877 = vld [vmem:[%s1082 + $0x3c] sm:$0xf]
      %v3878 = vld [vmem:[%s1082 + $0x40] sm:$0xf]
      %v3879 = vld [vmem:[%s1082 + $0x44] sm:$0xf]
      %v3880 = vld [vmem:[%s1082 + $0x48] sm:$0xf]
      %v3881 = vld [vmem:[%s1082 + $0x4c] sm:$0xf]
      %v3882 = vld [vmem:[%s1082 + $0x50] sm:$0xf]
      %v3883 = vld [vmem:[%s1082 + $0x54] sm:$0xf]
      %v3884 = vld [vmem:[%s1082 + $0x58] sm:$0xf]
      %v3885 = vld [vmem:[%s1082 + $0x5c] sm:$0xf]
      %v3886 = vld [vmem:[%s1082 + $0x60] sm:$0xf]
      %v3887 = vld [vmem:[%s1082 + $0x64] sm:$0xf]
      %v3888 = vld [vmem:[%s1082 + $0x68] sm:$0xf]
      %v3889 = vld [vmem:[%s1082 + $0x6c] sm:$0xf]
      %v3890 = vld [vmem:[%s1082 + $0x70] sm:$0xf]
      %v3891 = vld [vmem:[%s1082 + $0x74] sm:$0xf]
      %v3892 = vld [vmem:[%s1082 + $0x78] sm:$0xf]
      %v3893 = vld [vmem:[%s1082 + $0x7c] sm:$0xf]
      %v3894 = vld [vmem:[%s1085] sm:$0x1]
      %v3895 = vpack.c.bf16 %v3844, %v3844
      %v3897 = vperm.slane %v3861, 0
      %v3898 = vperm.slane %v3861, 1
      %v3917 = vunpack.c.l.b16 %v3845
      %v3918 = vunpack.c.h.b16 %v3845
      %v3919 = vunpack.c.l.b16 %v3846
      %v3920 = vunpack.c.h.b16 %v3846
      %v3921 = vunpack.c.l.b16 %v3847
      %v3922 = vunpack.c.h.b16 %v3847
      %v3923 = vunpack.c.l.b16 %v3848
      %v3924 = vunpack.c.h.b16 %v3848
      %v3925 = vunpack.c.l.b16 %v3849
      %v3926 = vunpack.c.h.b16 %v3849
      %v3927 = vunpack.c.l.b16 %v3850
      %v3928 = vunpack.c.h.b16 %v3850
      %v3929 = vunpack.c.l.b16 %v3851
      %v3930 = vunpack.c.h.b16 %v3851
      %v3931 = vunpack.c.l.b16 %v3852
      %v3932 = vunpack.c.h.b16 %v3852
      %v3933 = vunpack.c.l.b16 %v3853
      %v3934 = vunpack.c.h.b16 %v3853
      %v3935 = vunpack.c.l.b16 %v3854
      %v3936 = vunpack.c.h.b16 %v3854
      %v3937 = vunpack.c.l.b16 %v3855
      %v3938 = vunpack.c.h.b16 %v3855
      %v3939 = vunpack.c.l.b16 %v3856
      %v3940 = vunpack.c.h.b16 %v3856
      %v3941 = vunpack.c.l.b16 %v3857
      %v3942 = vunpack.c.h.b16 %v3857
      %v3943 = vunpack.c.l.b16 %v3858
      %v3944 = vunpack.c.h.b16 %v3858
      %v3945 = vunpack.c.l.b16 %v3859
      %v3946 = vunpack.c.h.b16 %v3859
      %v3947 = vunpack.c.l.b16 %v3860
      %v3948 = vunpack.c.h.b16 %v3860
      %v3949 = vpack.c.b16 %v3919, %v3917
      %v3950 = vpack.c.b16 %v3920, %v3918
      %v3951 = vpack.c.b16 %v3923, %v3921
      %v3952 = vpack.c.b16 %v3924, %v3922
      %v3953 = vpack.c.b16 %v3927, %v3925
      %v3954 = vpack.c.b16 %v3928, %v3926
      %v3955 = vpack.c.b16 %v3931, %v3929
      %v3956 = vpack.c.b16 %v3932, %v3930
      %v3957 = vpack.c.b16 %v3935, %v3933
      %v3958 = vpack.c.b16 %v3936, %v3934
      %v3959 = vpack.c.b16 %v3939, %v3937
      %v3960 = vpack.c.b16 %v3940, %v3938
      %v3961 = vpack.c.b16 %v3943, %v3941
      %v3962 = vpack.c.b16 %v3944, %v3942
      %v3963 = vpack.c.b16 %v3947, %v3945
      %v3964 = vpack.c.b16 %v3948, %v3946
      %3981 = vmatpush.bf16.msra.mxu0 %v3963
      %3982 = vmatpush.bf16.msra.mxu0 %v3961
      %3983 = vmatpush.bf16.msra.mxu0 %v3959
      %3984 = vmatpush.bf16.msra.mxu0 %v3957
      %3985 = vmatpush.bf16.msra.mxu0 %v3955
      %3986 = vmatpush.bf16.msra.mxu0 %v3953
      %3987 = vmatpush.bf16.msra.mxu0 %v3951
      %3988 = vmatpush.bf16.msra.mxu0 %v3949
      %3989 = vmatmul.bf16.gmra.mxu0 %v3895
      %v3990 = vpop.f32.mrf.mxu0
      %v3991 = vadd.f32 %v3897, %v3990
      %v3992 = vpop.f32.mrf.mxu0
      %3993 = vdwg.mxu0
      %3994 = vmatpush.bf16.msra.mxu0 %v3964
      %3995 = vmatpush.bf16.msra.mxu0 %v3962
      %3996 = vmatpush.bf16.msra.mxu0 %v3960
      %3997 = vmatpush.bf16.msra.mxu0 %v3958
      %3998 = vmatpush.bf16.msra.mxu0 %v3956
      %3999 = vmatpush.bf16.msra.mxu0 %v3954
      %4000 = vmatpush.bf16.msra.mxu0 %v3952
      %4001 = vmatpush.bf16.msra.mxu0 %v3950
      %4002 = vmatmul.bf16.gmra.mxu0 %v3895
      %v4003 = vpop.f32.mrf.mxu0
      %v4004 = vadd.f32 %v3898, %v4003
      %v4005 = vpop.f32.mrf.mxu0
      %4006 = vdwg.mxu0
      %v4007 = vmax.f32 %v3991, 0.0
      %v4008 = vmax.f32 %v4004, 0.0
      %v4009 = vpack.c.bf16 %v4007, %v4007
      %v4010 = vpack.c.bf16 %v4008, %v4008
      %v4012 = vperm.slane %v3894, 0
      %v4046 = vunpack.c.l.b16 %v3862
      %v4047 = vunpack.c.l.b16 %v3863
      %v4048 = vunpack.c.l.b16 %v3864
      %v4049 = vunpack.c.l.b16 %v3865
      %v4050 = vunpack.c.l.b16 %v3866
      %v4051 = vunpack.c.l.b16 %v3867
      %v4052 = vunpack.c.l.b16 %v3868
      %v4053 = vunpack.c.l.b16 %v3869
      %v4054 = vunpack.c.l.b16 %v3870
      %v4055 = vunpack.c.l.b16 %v3871
      %v4056 = vunpack.c.l.b16 %v3872
      %v4057 = vunpack.c.l.b16 %v3873
      %v4058 = vunpack.c.l.b16 %v3874
      %v4059 = vunpack.c.l.b16 %v3875
      %v4060 = vunpack.c.l.b16 %v3876
      %v4061 = vunpack.c.l.b16 %v3877
      %v4062 = vunpack.c.l.b16 %v3878
      %v4063 = vunpack.c.l.b16 %v3879
      %v4064 = vunpack.c.l.b16 %v3880
      %v4065 = vunpack.c.l.b16 %v3881
      %v4066 = vunpack.c.l.b16 %v3882
      %v4067 = vunpack.c.l.b16 %v3883
      %v4068 = vunpack.c.l.b16 %v3884
      %v4069 = vunpack.c.l.b16 %v3885
      %v4070 = vunpack.c.l.b16 %v3886
      %v4071 = vunpack.c.l.b16 %v3887
      %v4072 = vunpack.c.l.b16 %v3888
      %v4073 = vunpack.c.l.b16 %v3889
      %v4074 = vunpack.c.l.b16 %v3890
      %v4075 = vunpack.c.l.b16 %v3891
      %v4076 = vunpack.c.l.b16 %v3892
      %v4077 = vunpack.c.l.b16 %v3893
      %v4078 = vpack.c.b16 %v4047, %v4046
      %v4079 = vpack.c.b16 %v4049, %v4048
      %v4080 = vpack.c.b16 %v4051, %v4050
      %v4081 = vpack.c.b16 %v4053, %v4052
      %v4082 = vpack.c.b16 %v4055, %v4054
      %v4083 = vpack.c.b16 %v4057, %v4056
      %v4084 = vpack.c.b16 %v4059, %v4058
      %v4085 = vpack.c.b16 %v4061, %v4060
      %v4086 = vpack.c.b16 %v4063, %v4062
      %v4087 = vpack.c.b16 %v4065, %v4064
      %v4088 = vpack.c.b16 %v4067, %v4066
      %v4089 = vpack.c.b16 %v4069, %v4068
      %v4090 = vpack.c.b16 %v4071, %v4070
      %v4091 = vpack.c.b16 %v4073, %v4072
      %v4092 = vpack.c.b16 %v4075, %v4074
      %v4093 = vpack.c.b16 %v4077, %v4076
      %4110 = vmatpush.bf16.msra.mxu0 %v4085
      %4111 = vmatpush.bf16.msra.mxu0 %v4084
      %4112 = vmatpush.bf16.msra.mxu0 %v4083
      %4113 = vmatpush.bf16.msra.mxu0 %v4082
      %4114 = vmatpush.bf16.msra.mxu0 %v4081
      %4115 = vmatpush.bf16.msra.mxu0 %v4080
      %4116 = vmatpush.bf16.msra.mxu0 %v4079
      %4117 = vmatpush.bf16.msra.mxu0 %v4078
      %4118 = vmatmul.bf16.gmra.mxu0 %v4009
      %v4119 = vpop.f32.mrf.mxu0
      %v4120 = vadd.f32 %v4012, %v4119
      %v4121 = vpop.f32.mrf.mxu0
      %4122 = vdwg.mxu0
      %4123 = vmatpush.bf16.msra.mxu0 %v4093
      %4124 = vmatpush.bf16.msra.mxu0 %v4092
      %4125 = vmatpush.bf16.msra.mxu0 %v4091
      %4126 = vmatpush.bf16.msra.mxu0 %v4090
      %4127 = vmatpush.bf16.msra.mxu0 %v4089
      %4128 = vmatpush.bf16.msra.mxu0 %v4088
      %4129 = vmatpush.bf16.msra.mxu0 %v4087
      %4130 = vmatpush.bf16.msra.mxu0 %v4086
      %4131 = vmatmul.bf16.gmra.mxu0 %v4010
      %v4132 = vpop.f32.mrf.mxu0
      %v4133 = vadd.f32 %v4120, %v4132
      %v4134 = vpop.f32.mrf.mxu0
      %4135 = vdwg.mxu0
      %v4136 = vadd.f32 %v3844, %v4133
      %v4137 = vld [vmem:[%s1088] sm:$0x1]
      %v4138 = vld [vmem:[%s1091] sm:$0x1]
      %4139 = vadd.xlane.f32.xlu0 %v4136
      %v4140 = vpop.xlane.xlu0 %4139
      %v4141 = vmul.f32 %v4140, %v2459
      %v4142 = vsub.f32 %v4136, %v4141
      %v4143 = vmul.f32 %v4142, %v4142
      %4144 = vadd.xlane.f32.xlu0 %v4143
      %v4145 = vpop.xlane.xlu0 %4144
      %v4146 = vmul.f32 %v4145, %v2459
      %v4147 = vadd.f32 %v4146, 1e-05
      %v4148 = vrsqrt.pop %v4147
      %v4149 = vmul.f32 %v4148, %v4147
      %v4150 = vmul.f32 %v4149, %v4148
      %v4151 = vmul.f32 0.5, %v4150
      %v4152 = vsub.f32 1.5, %v4151
      %v4153 = vmul.f32 %v4148, %v4152
      %vm4154 = vweird.f32 %v4147
      %vm4155 = vweird.f32 %v4148
      %vm4156 = vmor %vm4154, %vm4155
      %v4157 = vsel %vm4156, %v4148, %v4153
      %v4158 = vmul.f32 %v4142, %v4157
      %v4160 = vperm.slane %v4137, 0
      %v4162 = vmul.f32 %v4158, %v4160
      %v4164 = vperm.slane %v4138, 0
      %v4166 = vadd.f32 %v4162, %v4164
      %4167 = vst [vmem:[#allocation2] sm:$0xff] %v4166
      %p4168 = scmp.eq.s32.totalorder %s40, 1
      // Predicated region
      $region121: #{translation_transformer_forward.4} parent=115 // pred_check
        %p4169 = pneg %p4168
      $region122: #{translation_transformer_forward.4} parent=115 // pred_check_branch
        %4171 = sbr.rel (%p4169) target = $region124
      $region123: #{translation_transformer_forward.4} parent=115 // pred_region
        %v4172 = vld [vmem:[%s22] sm:$0x1]
        %v4173 = vld [vmem:[%s23] sm:$0x1]
        %4174 = vadd.xlane.f32.xlu0 %v4166
        %v4175 = vpop.xlane.xlu0 %4174
        %v4176 = vmul.f32 %v4175, %v2459
        %v4177 = vsub.f32 %v4166, %v4176
        %v4178 = vmul.f32 %v4177, %v4177
        %4179 = vadd.xlane.f32.xlu0 %v4178
        %v4180 = vpop.xlane.xlu0 %4179
        %v4181 = vmul.f32 %v4180, %v2459
        %v4182 = vadd.f32 %v4181, 1e-05
        %v4183 = vrsqrt.pop %v4182
        %v4184 = vmul.f32 %v4183, %v4182
        %v4185 = vmul.f32 %v4184, %v4183
        %v4186 = vmul.f32 0.5, %v4185
        %v4187 = vsub.f32 1.5, %v4186
        %v4188 = vmul.f32 %v4183, %v4187
        %vm4189 = vweird.f32 %v4182
        %vm4190 = vweird.f32 %v4183
        %vm4191 = vmor %vm4189, %vm4190
        %v4192 = vsel %vm4191, %v4183, %v4188
        %v4193 = vmul.f32 %v4177, %v4192
        %v4195 = vperm.slane %v4172, 0
        %v4197 = vmul.f32 %v4193, %v4195
        %v4199 = vperm.slane %v4173, 0
        %v4201 = vadd.f32 %v4197, %v4199
        %v4202 = vpack.c.bf16 %v4201, %v4201
        %4203 = vst [vmem:[%s1095] sm:$0xf] %v4202
      $region124: #{translation_transformer_forward.4} parent=115 // pred_fallthru
        _
      %p4204 = scmp.lt.s32.totalorder %s39, 1
      %s4205 = scalar_select %p4204, %s39, 1
      %s4206 = smul.addr %s4205, 4
      %s4207 = scalar_lea.vmem %s24, %s4206
      // Predicated region
      $region125: #{translation_transformer_forward.4} parent=115 // pred_check
        %p4208 = pneg %p679
      $region126: #{translation_transformer_forward.4} parent=115 // pred_check_branch
        %4210 = sbr.rel (%p4208) target = $region128
      $region127: #{translation_transformer_forward.4} parent=115 // pred_region
        _
      $region128: #{translation_transformer_forward.4} parent=115 // pred_fallthru
        _
    $region116: #{translation_transformer_forward.4} parent=5 // pred_fallthru
      _
    %p4211 = scmp.le.s32.totalorder 2, %s30
    // Predicated region
    $region129: #{translation_transformer_forward.4} parent=5 // pred_check
      %p4212 = pneg %p4211
    $region130: #{translation_transformer_forward.4} parent=5 // pred_check_branch
      %4214 = sbr.rel (%p4212) target = $region132
    $region131: #{translation_transformer_forward.4} parent=5 // pred_region
      %s4215 = ssub.s32 %s30, 2
      // Predicated region
      $region133: #{translation_transformer_forward.4} parent=131 // pred_check
        %p4216 = pneg %p685
      $region134: #{translation_transformer_forward.4} parent=131 // pred_check_branch
        %4218 = sbr.rel (%p4216) target = $region136
      $region135: #{translation_transformer_forward.4} parent=131 // pred_region
        %p4219 = scmp.lt.s32.totalorder %s41, 1
        %s4220 = scalar_select %p4219, %s41, 1
        %s4221 = smul.addr %s4220, 4
        %s4222 = scalar_lea.vmem %s24, %s4221
      $region136: #{translation_transformer_forward.4} parent=131 // pred_fallthru
        _
    $region132: #{translation_transformer_forward.4} parent=5 // pred_fallthru
      _
  $region6: #{translation_transformer_forward.4} parent=0 // loop_footer
    %s34 = sadd.s32 1, %s30
  $region7: #{translation_transformer_forward.4} parent=0 // loop_footer_branch
    %29 = sbr.rel target = $region3
  $region8: #{translation_transformer_forward.4} parent=0 // loop_exit
    _

</llo_original>
